<compile_context>
chip_gen: v7x
topology: tpu7x:2x2x1
jax: 0.10.0
libtpu: 0.0.40
codegen_flags: <defaults>
</compile_context>

<pallas_src>
import jax
import jax.numpy as jnp
from jax.experimental import pallas as pl
from jax.experimental.pallas import tpu as pltpu

H = 8            # free spatial dim (max-reduced); small for the example
W = 160          # forced by fc1 = Linear(160*32, 160)
C_OUT = 32
F_IN = C_OUT * W       # 5120
F_OUT = 160

_XPAD_OFF = 128                    # lane-tile-aligned offset where x is stored
_XPAD_W = _XPAD_OFF + W + 128      # scratch width, zeros on both sides of x


def xnet_fused_kernel(x_ref, wconv_ref, bconv_ref, wfc_ref, bfc_ref, o_ref,
                      xpad_ref, pooled_ref):
    """Fused conv3x3(1->32) + bias + relu + max-over-H + Linear(5120,160), one batch elem.

    x_ref    : (1, 1, H, W)       input block
    wconv_ref: (C_OUT, 9)         conv weights, tap-minor (ki*3+kj)
    bconv_ref: (C_OUT, 1)         conv bias
    wfc_ref  : (F_IN, F_OUT)      fc weight, pre-transposed, VMEM-resident across batch
    bfc_ref  : (1, F_OUT)         fc bias
    o_ref    : (1, 1, F_OUT)      output block
    xpad_ref : (H, _XPAD_W)       VMEM scratch for the column halo
    pooled_ref:(C_OUT, W)         VMEM scratch for pooled activations
    """
    # ---- build zero-padded columns in VMEM scratch (halo handled in-kernel) ----
    xpad_ref[...] = jnp.zeros((H, _XPAD_W), jnp.float32)
    xpad_ref[:, _XPAD_OFF:_XPAD_OFF + W] = x_ref[0, 0]          # aligned store
    xpw = xpad_ref[...]                                         # (H, _XPAD_W)
    # xs[kj][h, w] == x[h, w + kj - 1]  (zero outside the valid range)
    xs = tuple(xpw[:, _XPAD_OFF - 1 + kj:_XPAD_OFF - 1 + kj + W] for kj in range(3))

    bias = bconv_ref[...]                                       # (C_OUT, 1)

    # ---- conv + bias + relu, folding the max-over-H into the row loop ----
    # Working set stays ~(C_OUT, W) acc + (C_OUT, W) running max (no spills).
    pooled = None
    for h in range(H):
        acc = jnp.zeros((C_OUT, W), jnp.float32)
        for ki in range(3):
            r = h + ki - 1
            if r < 0 or r >= H:          # zero-padded rows: tap contributes nothing
                continue
            for kj in range(3):
                tap = ki * 3 + kj
                wcol = wconv_ref[:, tap:tap + 1]                # (C_OUT, 1)
                acc = acc + wcol * xs[kj][r][None, :]           # outer-product tap
        acc = jnp.maximum(acc + bias, 0.0)                      # bias + relu
        pooled = acc if pooled is None else jnp.maximum(pooled, acc)

    pooled_ref[...] = pooled                                    # park in VMEM

    # ---- fc1: flatten order is k = c*W + w, so contract each channel row of the
    #      pooled activations against the matching sublane-aligned row block of the
    #      resident (F_IN, F_OUT) weight.  Avoids any in-kernel (32,160)->(1,5120)
    #      relayout. ----
    acc_fc = bfc_ref[...]                                       # (1, F_OUT), start at bias
    for c in range(C_OUT):
        lhs = pooled_ref[c:c + 1, :]                            # (1, W)
        rhs = wfc_ref[c * W:(c + 1) * W, :]                     # (W, F_OUT)
        acc_fc = acc_fc + jnp.dot(lhs, rhs, preferred_element_type=jnp.float32)
    o_ref[0] = acc_fc


def prepare_params(w_conv, b_conv, w_fc, b_fc):
    """One-time weight layout prep (hoisted out of the forward path)."""
    return {
        "w_conv": jnp.asarray(w_conv, jnp.float32).reshape(C_OUT, 9),  # (C_OUT, 9), tap-minor
        "b_conv": jnp.asarray(b_conv, jnp.float32).reshape(C_OUT, 1),  # (C_OUT, 1)
        "w_fc_t": jnp.asarray(w_fc, jnp.float32).T,                    # (F_IN, F_OUT)
        "b_fc": jnp.asarray(b_fc, jnp.float32).reshape(1, F_OUT),      # (1, F_OUT)
    }


@jax.jit
def xnet_forward(x_nchw, prepped):
    # x_nchw: (B, 1, H, W) — same NCHW convention as the PyTorch module.
    B = x_nchw.shape[0]
    out = pl.pallas_call(
        xnet_fused_kernel,
        out_shape=jax.ShapeDtypeStruct((B, 1, F_OUT), jnp.float32),
        grid=(B,),
        in_specs=[
            pl.BlockSpec((1, 1, H, W), lambda b: (b, 0, 0, 0)),
            pl.BlockSpec((C_OUT, 9), lambda b: (0, 0)),
            pl.BlockSpec((C_OUT, 1), lambda b: (0, 0)),
            pl.BlockSpec((F_IN, F_OUT), lambda b: (0, 0)),   # constant index -> resident weight
            pl.BlockSpec((1, F_OUT), lambda b: (0, 0)),
        ],
        out_specs=pl.BlockSpec((1, 1, F_OUT), lambda b: (b, 0, 0)),
        scratch_shapes=[
            pltpu.VMEM((H, _XPAD_W), jnp.float32),
            pltpu.VMEM((C_OUT, W), jnp.float32),
        ],
        compiler_params=pltpu.CompilerParams(
            dimension_semantics=("parallel",),       # splits batch across v7x's 2 TCs
            vmem_limit_bytes=32 * 1024 * 1024,
        ),
    )(x_nchw, prepped["w_conv"], prepped["b_conv"], prepped["w_fc_t"], prepped["b_fc"])
    return out.reshape(B, F_OUT)    # drop the unit dim (free, same layout)


if __name__ == "__main__":
    key = jax.random.PRNGKey(0)
    k1, k2, k3, k4, k5 = jax.random.split(key, 5)
    B = 2
    x = jax.random.normal(k1, (B, 1, H, W), jnp.float32)
    w_conv = jax.random.normal(k2, (C_OUT, 1, 3, 3), jnp.float32) * 0.1
    b_conv = jax.random.normal(k3, (C_OUT,), jnp.float32) * 0.1
    w_fc = jax.random.normal(k4, (F_OUT, F_IN), jnp.float32) * 0.01
    b_fc = jax.random.normal(k5, (F_OUT,), jnp.float32) * 0.01

    # Weight layout prep happens once, outside the forward path.
    prepped = jax.block_until_ready(prepare_params(w_conv, b_conv, w_fc, b_fc))

    out = jax.block_until_ready(xnet_forward(x, prepped))

    # Pure-JAX reference for correctness.
    ref = jax.lax.conv_general_dilated(
        x, w_conv, (1, 1), "SAME",
        dimension_numbers=("NCHW", "OIHW", "NCHW"),
    ) + b_conv[None, :, None, None]
    ref = jnp.maximum(ref, 0.0)
    ref = jnp.max(ref, axis=2)                 # amax over H -> (B, 32, W)
    ref = ref.reshape(B, -1)                   # flatten(x, 1): index = c*W + w
    ref = ref @ w_fc.T + b_fc

    assert out.shape == (B, F_OUT), out.shape
    max_err = float(jnp.max(jnp.abs(out - ref)))
    assert jnp.allclose(out, ref, atol=2e-4, rtol=2e-4), max_err
    print("KERNEL_OK")
</pallas_src>

<mosaic_0001>
module attributes {stable_mosaic.version = 11 : i64} {
  func.func @xnet_fused_kernel(%arg0: i32, %arg1: memref<1x1x8x160xf32, #tpu.memory_space<vmem>>, %arg2: memref<32x9xf32, #tpu.memory_space<vmem>>, %arg3: memref<32x1xf32, #tpu.memory_space<vmem>>, %arg4: memref<5120x160xf32, #tpu.memory_space<vmem>>, %arg5: memref<1x160xf32, #tpu.memory_space<vmem>>, %arg6: memref<1x1x160xf32, #tpu.memory_space<vmem>>, %arg7: memref<8x416xf32, #tpu.memory_space<vmem>>, %arg8: memref<32x160xf32, #tpu.memory_space<vmem>>) attributes {dimension_semantics = [#tpu.dimension_semantics<parallel>], iteration_bounds = array<i64: 2>, scalar_prefetch = 0 : i64, scratch_operands = 2 : i64, tpu.core_type = #tpu.core_type<tc>, window_params = [{transform_indices = @transform_0, window_bounds = array<i64: 1, 1, 8, 160>}, {pipeline_mode = #tpu.pipeline_mode<synchronous>, transform_indices = @transform_1, window_bounds = array<i64: 32, 9>}, {pipeline_mode = #tpu.pipeline_mode<synchronous>, transform_indices = @transform_2, window_bounds = array<i64: 32, 1>}, {pipeline_mode = #tpu.pipeline_mode<synchronous>, transform_indices = @transform_3, window_bounds = array<i64: 5120, 160>}, {pipeline_mode = #tpu.pipeline_mode<synchronous>, transform_indices = @transform_4, window_bounds = array<i64: 1, 160>}, {transform_indices = @transform_5, window_bounds = array<i64: 1, 1, 160>}]} {
    %cst = arith.constant 0.000000e+00 : f32
    %0 = vector.broadcast %cst : f32 to vector<8x416xf32>
    %c0 = arith.constant 0 : index
    %c0_0 = arith.constant 0 : index
    %1 = vector.load %arg7[%c0, %c0_0] : memref<8x416xf32, #tpu.memory_space<vmem>>, vector<8x416xf32>
    tpu.vector_store %arg7[%c0, %c0_0], %0 {strides = array<i32>} : memref<8x416xf32, #tpu.memory_space<vmem>>, vector<8x416xf32>,
    %c0_1 = arith.constant 0 : index
    %c0_2 = arith.constant 0 : index
    %c0_3 = arith.constant 0 : index
    %c0_4 = arith.constant 0 : index
    %2 = vector.load %arg1[%c0_1, %c0_2, %c0_3, %c0_4] : memref<1x1x8x160xf32, #tpu.memory_space<vmem>>, vector<1x1x8x160xf32>
    %3 = vector.shape_cast %2 : vector<1x1x8x160xf32> to vector<8x160xf32>
    %c0_5 = arith.constant 0 : index
    %c128 = arith.constant 128 : index
    %4 = vector.load %arg7[%c0_5, %c128] : memref<8x416xf32, #tpu.memory_space<vmem>>, vector<8x160xf32>
    tpu.vector_store %arg7[%c0_5, %c128], %3 {strides = array<i32>} : memref<8x416xf32, #tpu.memory_space<vmem>>, vector<8x160xf32>,
    %c0_6 = arith.constant 0 : index
    %c0_7 = arith.constant 0 : index
    %5 = vector.load %arg7[%c0_6, %c0_7] : memref<8x416xf32, #tpu.memory_space<vmem>>, vector<8x416xf32>
    %6 = vector.extract_strided_slice %5 {offsets = [0, 127], sizes = [8, 160], strides = [1, 1]} : vector<8x416xf32> to vector<8x160xf32>
    %7 = vector.extract_strided_slice %5 {offsets = [0, 128], sizes = [8, 160], strides = [1, 1]} : vector<8x416xf32> to vector<8x160xf32>
    %8 = vector.extract_strided_slice %5 {offsets = [0, 129], sizes = [8, 160], strides = [1, 1]} : vector<8x416xf32> to vector<8x160xf32>
    %c0_8 = arith.constant 0 : index
    %c0_9 = arith.constant 0 : index
    %9 = vector.load %arg3[%c0_8, %c0_9] : memref<32x1xf32, #tpu.memory_space<vmem>>, vector<32x1xf32>
    %cst_10 = arith.constant 0.000000e+00 : f32
    %10 = vector.broadcast %cst_10 : f32 to vector<32x160xf32>
    %c0_11 = arith.constant 0 : index
    %c3 = arith.constant 3 : index
    %11 = vector.load %arg2[%c0_11, %c3] : memref<32x9xf32, #tpu.memory_space<vmem>>, vector<32x1xf32>
    %12 = vector.extract_strided_slice %6 {offsets = [0, 0], sizes = [1, 160], strides = [1, 1]} : vector<8x160xf32> to vector<1x160xf32>
    %13 = vector.shape_cast %12 : vector<1x160xf32> to vector<160xf32>
    %14 = vector.shape_cast %13 : vector<160xf32> to vector<1x160xf32>
    %15 = vector.broadcast %11 : vector<32x1xf32> to vector<32x160xf32>
    %16 = vector.broadcast %14 : vector<1x160xf32> to vector<32x160xf32>
    %17 = arith.mulf %15, %16 : vector<32x160xf32>
    %18 = arith.addf %10, %17 : vector<32x160xf32>
    %c0_12 = arith.constant 0 : index
    %c4 = arith.constant 4 : index
    %19 = vector.load %arg2[%c0_12, %c4] : memref<32x9xf32, #tpu.memory_space<vmem>>, vector<32x1xf32>
    %20 = vector.extract_strided_slice %7 {offsets = [0, 0], sizes = [1, 160], strides = [1, 1]} : vector<8x160xf32> to vector<1x160xf32>
    %21 = vector.shape_cast %20 : vector<1x160xf32> to vector<160xf32>
    %22 = vector.shape_cast %21 : vector<160xf32> to vector<1x160xf32>
    %23 = vector.broadcast %19 : vector<32x1xf32> to vector<32x160xf32>
    %24 = vector.broadcast %22 : vector<1x160xf32> to vector<32x160xf32>
    %25 = arith.mulf %23, %24 : vector<32x160xf32>
    %26 = arith.addf %18, %25 : vector<32x160xf32>
    %c0_13 = arith.constant 0 : index
    %c5 = arith.constant 5 : index
    %27 = vector.load %arg2[%c0_13, %c5] : memref<32x9xf32, #tpu.memory_space<vmem>>, vector<32x1xf32>
    %28 = vector.extract_strided_slice %8 {offsets = [0, 0], sizes = [1, 160], strides = [1, 1]} : vector<8x160xf32> to vector<1x160xf32>
    %29 = vector.shape_cast %28 : vector<1x160xf32> to vector<160xf32>
    %30 = vector.shape_cast %29 : vector<160xf32> to vector<1x160xf32>
    %31 = vector.broadcast %27 : vector<32x1xf32> to vector<32x160xf32>
    %32 = vector.broadcast %30 : vector<1x160xf32> to vector<32x160xf32>
    %33 = arith.mulf %31, %32 : vector<32x160xf32>
    %34 = arith.addf %26, %33 : vector<32x160xf32>
    %c0_14 = arith.constant 0 : index
    %c6 = arith.constant 6 : index
    %35 = vector.load %arg2[%c0_14, %c6] : memref<32x9xf32, #tpu.memory_space<vmem>>, vector<32x1xf32>
    %36 = vector.extract_strided_slice %6 {offsets = [1, 0], sizes = [1, 160], strides = [1, 1]} : vector<8x160xf32> to vector<1x160xf32>
    %37 = vector.shape_cast %36 : vector<1x160xf32> to vector<160xf32>
    %38 = vector.shape_cast %37 : vector<160xf32> to vector<1x160xf32>
    %39 = vector.broadcast %35 : vector<32x1xf32> to vector<32x160xf32>
    %40 = vector.broadcast %38 : vector<1x160xf32> to vector<32x160xf32>
    %41 = arith.mulf %39, %40 : vector<32x160xf32>
    %42 = arith.addf %34, %41 : vector<32x160xf32>
    %c0_15 = arith.constant 0 : index
    %c7 = arith.constant 7 : index
    %43 = vector.load %arg2[%c0_15, %c7] : memref<32x9xf32, #tpu.memory_space<vmem>>, vector<32x1xf32>
    %44 = vector.extract_strided_slice %7 {offsets = [1, 0], sizes = [1, 160], strides = [1, 1]} : vector<8x160xf32> to vector<1x160xf32>
    %45 = vector.shape_cast %44 : vector<1x160xf32> to vector<160xf32>
    %46 = vector.shape_cast %45 : vector<160xf32> to vector<1x160xf32>
    %47 = vector.broadcast %43 : vector<32x1xf32> to vector<32x160xf32>
    %48 = vector.broadcast %46 : vector<1x160xf32> to vector<32x160xf32>
    %49 = arith.mulf %47, %48 : vector<32x160xf32>
    %50 = arith.addf %42, %49 : vector<32x160xf32>
    %c0_16 = arith.constant 0 : index
    %c8 = arith.constant 8 : index
    %51 = vector.load %arg2[%c0_16, %c8] : memref<32x9xf32, #tpu.memory_space<vmem>>, vector<32x1xf32>
    %52 = vector.extract_strided_slice %8 {offsets = [1, 0], sizes = [1, 160], strides = [1, 1]} : vector<8x160xf32> to vector<1x160xf32>
    %53 = vector.shape_cast %52 : vector<1x160xf32> to vector<160xf32>
    %54 = vector.shape_cast %53 : vector<160xf32> to vector<1x160xf32>
    %55 = vector.broadcast %51 : vector<32x1xf32> to vector<32x160xf32>
    %56 = vector.broadcast %54 : vector<1x160xf32> to vector<32x160xf32>
    %57 = arith.mulf %55, %56 : vector<32x160xf32>
    %58 = arith.addf %50, %57 : vector<32x160xf32>
    %59 = vector.broadcast %9 : vector<32x1xf32> to vector<32x160xf32>
    %60 = arith.addf %58, %59 : vector<32x160xf32>
    %cst_17 = arith.constant 0.000000e+00 : f32
    %61 = vector.broadcast %cst_17 : f32 to vector<32x160xf32>
    %62 = arith.maximumf %60, %61 : vector<32x160xf32>
    %cst_18 = arith.constant 0.000000e+00 : f32
    %63 = vector.broadcast %cst_18 : f32 to vector<32x160xf32>
    %c0_19 = arith.constant 0 : index
    %c0_20 = arith.constant 0 : index
    %64 = vector.load %arg2[%c0_19, %c0_20] : memref<32x9xf32, #tpu.memory_space<vmem>>, vector<32x1xf32>
    %65 = vector.extract_strided_slice %6 {offsets = [0, 0], sizes = [1, 160], strides = [1, 1]} : vector<8x160xf32> to vector<1x160xf32>
    %66 = vector.shape_cast %65 : vector<1x160xf32> to vector<160xf32>
    %67 = vector.shape_cast %66 : vector<160xf32> to vector<1x160xf32>
    %68 = vector.broadcast %64 : vector<32x1xf32> to vector<32x160xf32>
    %69 = vector.broadcast %67 : vector<1x160xf32> to vector<32x160xf32>
    %70 = arith.mulf %68, %69 : vector<32x160xf32>
    %71 = arith.addf %63, %70 : vector<32x160xf32>
    %c0_21 = arith.constant 0 : index
    %c1 = arith.constant 1 : index
    %72 = vector.load %arg2[%c0_21, %c1] : memref<32x9xf32, #tpu.memory_space<vmem>>, vector<32x1xf32>
    %73 = vector.extract_strided_slice %7 {offsets = [0, 0], sizes = [1, 160], strides = [1, 1]} : vector<8x160xf32> to vector<1x160xf32>
    %74 = vector.shape_cast %73 : vector<1x160xf32> to vector<160xf32>
    %75 = vector.shape_cast %74 : vector<160xf32> to vector<1x160xf32>
    %76 = vector.broadcast %72 : vector<32x1xf32> to vector<32x160xf32>
    %77 = vector.broadcast %75 : vector<1x160xf32> to vector<32x160xf32>
    %78 = arith.mulf %76, %77 : vector<32x160xf32>
    %79 = arith.addf %71, %78 : vector<32x160xf32>
    %c0_22 = arith.constant 0 : index
    %c2 = arith.constant 2 : index
    %80 = vector.load %arg2[%c0_22, %c2] : memref<32x9xf32, #tpu.memory_space<vmem>>, vector<32x1xf32>
    %81 = vector.extract_strided_slice %8 {offsets = [0, 0], sizes = [1, 160], strides = [1, 1]} : vector<8x160xf32> to vector<1x160xf32>
    %82 = vector.shape_cast %81 : vector<1x160xf32> to vector<160xf32>
    %83 = vector.shape_cast %82 : vector<160xf32> to vector<1x160xf32>
    %84 = vector.broadcast %80 : vector<32x1xf32> to vector<32x160xf32>
    %85 = vector.broadcast %83 : vector<1x160xf32> to vector<32x160xf32>
    %86 = arith.mulf %84, %85 : vector<32x160xf32>
    %87 = arith.addf %79, %86 : vector<32x160xf32>
    %c0_23 = arith.constant 0 : index
    %c3_24 = arith.constant 3 : index
    %88 = vector.load %arg2[%c0_23, %c3_24] : memref<32x9xf32, #tpu.memory_space<vmem>>, vector<32x1xf32>
    %89 = vector.extract_strided_slice %6 {offsets = [1, 0], sizes = [1, 160], strides = [1, 1]} : vector<8x160xf32> to vector<1x160xf32>
    %90 = vector.shape_cast %89 : vector<1x160xf32> to vector<160xf32>
    %91 = vector.shape_cast %90 : vector<160xf32> to vector<1x160xf32>
    %92 = vector.broadcast %88 : vector<32x1xf32> to vector<32x160xf32>
    %93 = vector.broadcast %91 : vector<1x160xf32> to vector<32x160xf32>
    %94 = arith.mulf %92, %93 : vector<32x160xf32>
    %95 = arith.addf %87, %94 : vector<32x160xf32>
    %c0_25 = arith.constant 0 : index
    %c4_26 = arith.constant 4 : index
    %96 = vector.load %arg2[%c0_25, %c4_26] : memref<32x9xf32, #tpu.memory_space<vmem>>, vector<32x1xf32>
    %97 = vector.extract_strided_slice %7 {offsets = [1, 0], sizes = [1, 160], strides = [1, 1]} : vector<8x160xf32> to vector<1x160xf32>
    %98 = vector.shape_cast %97 : vector<1x160xf32> to vector<160xf32>
    %99 = vector.shape_cast %98 : vector<160xf32> to vector<1x160xf32>
    %100 = vector.broadcast %96 : vector<32x1xf32> to vector<32x160xf32>
    %101 = vector.broadcast %99 : vector<1x160xf32> to vector<32x160xf32>
    %102 = arith.mulf %100, %101 : vector<32x160xf32>
    %103 = arith.addf %95, %102 : vector<32x160xf32>
    %c0_27 = arith.constant 0 : index
    %c5_28 = arith.constant 5 : index
    %104 = vector.load %arg2[%c0_27, %c5_28] : memref<32x9xf32, #tpu.memory_space<vmem>>, vector<32x1xf32>
    %105 = vector.extract_strided_slice %8 {offsets = [1, 0], sizes = [1, 160], strides = [1, 1]} : vector<8x160xf32> to vector<1x160xf32>
    %106 = vector.shape_cast %105 : vector<1x160xf32> to vector<160xf32>
    %107 = vector.shape_cast %106 : vector<160xf32> to vector<1x160xf32>
    %108 = vector.broadcast %104 : vector<32x1xf32> to vector<32x160xf32>
    %109 = vector.broadcast %107 : vector<1x160xf32> to vector<32x160xf32>
    %110 = arith.mulf %108, %109 : vector<32x160xf32>
    %111 = arith.addf %103, %110 : vector<32x160xf32>
    %c0_29 = arith.constant 0 : index
    %c6_30 = arith.constant 6 : index
    %112 = vector.load %arg2[%c0_29, %c6_30] : memref<32x9xf32, #tpu.memory_space<vmem>>, vector<32x1xf32>
    %113 = vector.extract_strided_slice %6 {offsets = [2, 0], sizes = [1, 160], strides = [1, 1]} : vector<8x160xf32> to vector<1x160xf32>
    %114 = vector.shape_cast %113 : vector<1x160xf32> to vector<160xf32>
    %115 = vector.shape_cast %114 : vector<160xf32> to vector<1x160xf32>
    %116 = vector.broadcast %112 : vector<32x1xf32> to vector<32x160xf32>
    %117 = vector.broadcast %115 : vector<1x160xf32> to vector<32x160xf32>
    %118 = arith.mulf %116, %117 : vector<32x160xf32>
    %119 = arith.addf %111, %118 : vector<32x160xf32>
    %c0_31 = arith.constant 0 : index
    %c7_32 = arith.constant 7 : index
    %120 = vector.load %arg2[%c0_31, %c7_32] : memref<32x9xf32, #tpu.memory_space<vmem>>, vector<32x1xf32>
    %121 = vector.extract_strided_slice %7 {offsets = [2, 0], sizes = [1, 160], strides = [1, 1]} : vector<8x160xf32> to vector<1x160xf32>
    %122 = vector.shape_cast %121 : vector<1x160xf32> to vector<160xf32>
    %123 = vector.shape_cast %122 : vector<160xf32> to vector<1x160xf32>
    %124 = vector.broadcast %120 : vector<32x1xf32> to vector<32x160xf32>
    %125 = vector.broadcast %123 : vector<1x160xf32> to vector<32x160xf32>
    %126 = arith.mulf %124, %125 : vector<32x160xf32>
    %127 = arith.addf %119, %126 : vector<32x160xf32>
    %c0_33 = arith.constant 0 : index
    %c8_34 = arith.constant 8 : index
    %128 = vector.load %arg2[%c0_33, %c8_34] : memref<32x9xf32, #tpu.memory_space<vmem>>, vector<32x1xf32>
    %129 = vector.extract_strided_slice %8 {offsets = [2, 0], sizes = [1, 160], strides = [1, 1]} : vector<8x160xf32> to vector<1x160xf32>
    %130 = vector.shape_cast %129 : vector<1x160xf32> to vector<160xf32>
    %131 = vector.shape_cast %130 : vector<160xf32> to vector<1x160xf32>
    %132 = vector.broadcast %128 : vector<32x1xf32> to vector<32x160xf32>
    %133 = vector.broadcast %131 : vector<1x160xf32> to vector<32x160xf32>
    %134 = arith.mulf %132, %133 : vector<32x160xf32>
    %135 = arith.addf %127, %134 : vector<32x160xf32>
    %136 = vector.broadcast %9 : vector<32x1xf32> to vector<32x160xf32>
    %137 = arith.addf %135, %136 : vector<32x160xf32>
    %cst_35 = arith.constant 0.000000e+00 : f32
    %138 = vector.broadcast %cst_35 : f32 to vector<32x160xf32>
    %139 = arith.maximumf %137, %138 : vector<32x160xf32>
    %140 = arith.maximumf %62, %139 : vector<32x160xf32>
    %cst_36 = arith.constant 0.000000e+00 : f32
    %141 = vector.broadcast %cst_36 : f32 to vector<32x160xf32>
    %c0_37 = arith.constant 0 : index
    %c0_38 = arith.constant 0 : index
    %142 = vector.load %arg2[%c0_37, %c0_38] : memref<32x9xf32, #tpu.memory_space<vmem>>, vector<32x1xf32>
    %143 = vector.extract_strided_slice %6 {offsets = [1, 0], sizes = [1, 160], strides = [1, 1]} : vector<8x160xf32> to vector<1x160xf32>
    %144 = vector.shape_cast %143 : vector<1x160xf32> to vector<160xf32>
    %145 = vector.shape_cast %144 : vector<160xf32> to vector<1x160xf32>
    %146 = vector.broadcast %142 : vector<32x1xf32> to vector<32x160xf32>
    %147 = vector.broadcast %145 : vector<1x160xf32> to vector<32x160xf32>
    %148 = arith.mulf %146, %147 : vector<32x160xf32>
    %149 = arith.addf %141, %148 : vector<32x160xf32>
    %c0_39 = arith.constant 0 : index
    %c1_40 = arith.constant 1 : index
    %150 = vector.load %arg2[%c0_39, %c1_40] : memref<32x9xf32, #tpu.memory_space<vmem>>, vector<32x1xf32>
    %151 = vector.extract_strided_slice %7 {offsets = [1, 0], sizes = [1, 160], strides = [1, 1]} : vector<8x160xf32> to vector<1x160xf32>
    %152 = vector.shape_cast %151 : vector<1x160xf32> to vector<160xf32>
    %153 = vector.shape_cast %152 : vector<160xf32> to vector<1x160xf32>
    %154 = vector.broadcast %150 : vector<32x1xf32> to vector<32x160xf32>
    %155 = vector.broadcast %153 : vector<1x160xf32> to vector<32x160xf32>
    %156 = arith.mulf %154, %155 : vector<32x160xf32>
    %157 = arith.addf %149, %156 : vector<32x160xf32>
    %c0_41 = arith.constant 0 : index
    %c2_42 = arith.constant 2 : index
    %158 = vector.load %arg2[%c0_41, %c2_42] : memref<32x9xf32, #tpu.memory_space<vmem>>, vector<32x1xf32>
    %159 = vector.extract_strided_slice %8 {offsets = [1, 0], sizes = [1, 160], strides = [1, 1]} : vector<8x160xf32> to vector<1x160xf32>
    %160 = vector.shape_cast %159 : vector<1x160xf32> to vector<160xf32>
    %161 = vector.shape_cast %160 : vector<160xf32> to vector<1x160xf32>
    %162 = vector.broadcast %158 : vector<32x1xf32> to vector<32x160xf32>
    %163 = vector.broadcast %161 : vector<1x160xf32> to vector<32x160xf32>
    %164 = arith.mulf %162, %163 : vector<32x160xf32>
    %165 = arith.addf %157, %164 : vector<32x160xf32>
    %c0_43 = arith.constant 0 : index
    %c3_44 = arith.constant 3 : index
    %166 = vector.load %arg2[%c0_43, %c3_44] : memref<32x9xf32, #tpu.memory_space<vmem>>, vector<32x1xf32>
    %167 = vector.extract_strided_slice %6 {offsets = [2, 0], sizes = [1, 160], strides = [1, 1]} : vector<8x160xf32> to vector<1x160xf32>
    %168 = vector.shape_cast %167 : vector<1x160xf32> to vector<160xf32>
    %169 = vector.shape_cast %168 : vector<160xf32> to vector<1x160xf32>
    %170 = vector.broadcast %166 : vector<32x1xf32> to vector<32x160xf32>
    %171 = vector.broadcast %169 : vector<1x160xf32> to vector<32x160xf32>
    %172 = arith.mulf %170, %171 : vector<32x160xf32>
    %173 = arith.addf %165, %172 : vector<32x160xf32>
    %c0_45 = arith.constant 0 : index
    %c4_46 = arith.constant 4 : index
    %174 = vector.load %arg2[%c0_45, %c4_46] : memref<32x9xf32, #tpu.memory_space<vmem>>, vector<32x1xf32>
    %175 = vector.extract_strided_slice %7 {offsets = [2, 0], sizes = [1, 160], strides = [1, 1]} : vector<8x160xf32> to vector<1x160xf32>
    %176 = vector.shape_cast %175 : vector<1x160xf32> to vector<160xf32>
    %177 = vector.shape_cast %176 : vector<160xf32> to vector<1x160xf32>
    %178 = vector.broadcast %174 : vector<32x1xf32> to vector<32x160xf32>
    %179 = vector.broadcast %177 : vector<1x160xf32> to vector<32x160xf32>
    %180 = arith.mulf %178, %179 : vector<32x160xf32>
    %181 = arith.addf %173, %180 : vector<32x160xf32>
    %c0_47 = arith.constant 0 : index
    %c5_48 = arith.constant 5 : index
    %182 = vector.load %arg2[%c0_47, %c5_48] : memref<32x9xf32, #tpu.memory_space<vmem>>, vector<32x1xf32>
    %183 = vector.extract_strided_slice %8 {offsets = [2, 0], sizes = [1, 160], strides = [1, 1]} : vector<8x160xf32> to vector<1x160xf32>
    %184 = vector.shape_cast %183 : vector<1x160xf32> to vector<160xf32>
    %185 = vector.shape_cast %184 : vector<160xf32> to vector<1x160xf32>
    %186 = vector.broadcast %182 : vector<32x1xf32> to vector<32x160xf32>
    %187 = vector.broadcast %185 : vector<1x160xf32> to vector<32x160xf32>
    %188 = arith.mulf %186, %187 : vector<32x160xf32>
    %189 = arith.addf %181, %188 : vector<32x160xf32>
    %c0_49 = arith.constant 0 : index
    %c6_50 = arith.constant 6 : index
    %190 = vector.load %arg2[%c0_49, %c6_50] : memref<32x9xf32, #tpu.memory_space<vmem>>, vector<32x1xf32>
    %191 = vector.extract_strided_slice %6 {offsets = [3, 0], sizes = [1, 160], strides = [1, 1]} : vector<8x160xf32> to vector<1x160xf32>
    %192 = vector.shape_cast %191 : vector<1x160xf32> to vector<160xf32>
    %193 = vector.shape_cast %192 : vector<160xf32> to vector<1x160xf32>
    %194 = vector.broadcast %190 : vector<32x1xf32> to vector<32x160xf32>
    %195 = vector.broadcast %193 : vector<1x160xf32> to vector<32x160xf32>
    %196 = arith.mulf %194, %195 : vector<32x160xf32>
    %197 = arith.addf %189, %196 : vector<32x160xf32>
    %c0_51 = arith.constant 0 : index
    %c7_52 = arith.constant 7 : index
    %198 = vector.load %arg2[%c0_51, %c7_52] : memref<32x9xf32, #tpu.memory_space<vmem>>, vector<32x1xf32>
    %199 = vector.extract_strided_slice %7 {offsets = [3, 0], sizes = [1, 160], strides = [1, 1]} : vector<8x160xf32> to vector<1x160xf32>
    %200 = vector.shape_cast %199 : vector<1x160xf32> to vector<160xf32>
    %201 = vector.shape_cast %200 : vector<160xf32> to vector<1x160xf32>
    %202 = vector.broadcast %198 : vector<32x1xf32> to vector<32x160xf32>
    %203 = vector.broadcast %201 : vector<1x160xf32> to vector<32x160xf32>
    %204 = arith.mulf %202, %203 : vector<32x160xf32>
    %205 = arith.addf %197, %204 : vector<32x160xf32>
    %c0_53 = arith.constant 0 : index
    %c8_54 = arith.constant 8 : index
    %206 = vector.load %arg2[%c0_53, %c8_54] : memref<32x9xf32, #tpu.memory_space<vmem>>, vector<32x1xf32>
    %207 = vector.extract_strided_slice %8 {offsets = [3, 0], sizes = [1, 160], strides = [1, 1]} : vector<8x160xf32> to vector<1x160xf32>
    %208 = vector.shape_cast %207 : vector<1x160xf32> to vector<160xf32>
    %209 = vector.shape_cast %208 : vector<160xf32> to vector<1x160xf32>
    %210 = vector.broadcast %206 : vector<32x1xf32> to vector<32x160xf32>
    %211 = vector.broadcast %209 : vector<1x160xf32> to vector<32x160xf32>
    %212 = arith.mulf %210, %211 : vector<32x160xf32>
    %213 = arith.addf %205, %212 : vector<32x160xf32>
    %214 = vector.broadcast %9 : vector<32x1xf32> to vector<32x160xf32>
    %215 = arith.addf %213, %214 : vector<32x160xf32>
    %cst_55 = arith.constant 0.000000e+00 : f32
    %216 = vector.broadcast %cst_55 : f32 to vector<32x160xf32>
    %217 = arith.maximumf %215, %216 : vector<32x160xf32>
    %218 = arith.maximumf %140, %217 : vector<32x160xf32>
    %cst_56 = arith.constant 0.000000e+00 : f32
    %219 = vector.broadcast %cst_56 : f32 to vector<32x160xf32>
    %c0_57 = arith.constant 0 : index
    %c0_58 = arith.constant 0 : index
    %220 = vector.load %arg2[%c0_57, %c0_58] : memref<32x9xf32, #tpu.memory_space<vmem>>, vector<32x1xf32>
    %221 = vector.extract_strided_slice %6 {offsets = [2, 0], sizes = [1, 160], strides = [1, 1]} : vector<8x160xf32> to vector<1x160xf32>
    %222 = vector.shape_cast %221 : vector<1x160xf32> to vector<160xf32>
    %223 = vector.shape_cast %222 : vector<160xf32> to vector<1x160xf32>
    %224 = vector.broadcast %220 : vector<32x1xf32> to vector<32x160xf32>
    %225 = vector.broadcast %223 : vector<1x160xf32> to vector<32x160xf32>
    %226 = arith.mulf %224, %225 : vector<32x160xf32>
    %227 = arith.addf %219, %226 : vector<32x160xf32>
    %c0_59 = arith.constant 0 : index
    %c1_60 = arith.constant 1 : index
    %228 = vector.load %arg2[%c0_59, %c1_60] : memref<32x9xf32, #tpu.memory_space<vmem>>, vector<32x1xf32>
    %229 = vector.extract_strided_slice %7 {offsets = [2, 0], sizes = [1, 160], strides = [1, 1]} : vector<8x160xf32> to vector<1x160xf32>
    %230 = vector.shape_cast %229 : vector<1x160xf32> to vector<160xf32>
    %231 = vector.shape_cast %230 : vector<160xf32> to vector<1x160xf32>
    %232 = vector.broadcast %228 : vector<32x1xf32> to vector<32x160xf32>
    %233 = vector.broadcast %231 : vector<1x160xf32> to vector<32x160xf32>
    %234 = arith.mulf %232, %233 : vector<32x160xf32>
    %235 = arith.addf %227, %234 : vector<32x160xf32>
    %c0_61 = arith.constant 0 : index
    %c2_62 = arith.constant 2 : index
    %236 = vector.load %arg2[%c0_61, %c2_62] : memref<32x9xf32, #tpu.memory_space<vmem>>, vector<32x1xf32>
    %237 = vector.extract_strided_slice %8 {offsets = [2, 0], sizes = [1, 160], strides = [1, 1]} : vector<8x160xf32> to vector<1x160xf32>
    %238 = vector.shape_cast %237 : vector<1x160xf32> to vector<160xf32>
    %239 = vector.shape_cast %238 : vector<160xf32> to vector<1x160xf32>
    %240 = vector.broadcast %236 : vector<32x1xf32> to vector<32x160xf32>
    %241 = vector.broadcast %239 : vector<1x160xf32> to vector<32x160xf32>
    %242 = arith.mulf %240, %241 : vector<32x160xf32>
    %243 = arith.addf %235, %242 : vector<32x160xf32>
    %c0_63 = arith.constant 0 : index
    %c3_64 = arith.constant 3 : index
    %244 = vector.load %arg2[%c0_63, %c3_64] : memref<32x9xf32, #tpu.memory_space<vmem>>, vector<32x1xf32>
    %245 = vector.extract_strided_slice %6 {offsets = [3, 0], sizes = [1, 160], strides = [1, 1]} : vector<8x160xf32> to vector<1x160xf32>
    %246 = vector.shape_cast %245 : vector<1x160xf32> to vector<160xf32>
    %247 = vector.shape_cast %246 : vector<160xf32> to vector<1x160xf32>
    %248 = vector.broadcast %244 : vector<32x1xf32> to vector<32x160xf32>
    %249 = vector.broadcast %247 : vector<1x160xf32> to vector<32x160xf32>
    %250 = arith.mulf %248, %249 : vector<32x160xf32>
    %251 = arith.addf %243, %250 : vector<32x160xf32>
    %c0_65 = arith.constant 0 : index
    %c4_66 = arith.constant 4 : index
    %252 = vector.load %arg2[%c0_65, %c4_66] : memref<32x9xf32, #tpu.memory_space<vmem>>, vector<32x1xf32>
    %253 = vector.extract_strided_slice %7 {offsets = [3, 0], sizes = [1, 160], strides = [1, 1]} : vector<8x160xf32> to vector<1x160xf32>
    %254 = vector.shape_cast %253 : vector<1x160xf32> to vector<160xf32>
    %255 = vector.shape_cast %254 : vector<160xf32> to vector<1x160xf32>
    %256 = vector.broadcast %252 : vector<32x1xf32> to vector<32x160xf32>
    %257 = vector.broadcast %255 : vector<1x160xf32> to vector<32x160xf32>
    %258 = arith.mulf %256, %257 : vector<32x160xf32>
    %259 = arith.addf %251, %258 : vector<32x160xf32>
    %c0_67 = arith.constant 0 : index
    %c5_68 = arith.constant 5 : index
    %260 = vector.load %arg2[%c0_67, %c5_68] : memref<32x9xf32, #tpu.memory_space<vmem>>, vector<32x1xf32>
    %261 = vector.extract_strided_slice %8 {offsets = [3, 0], sizes = [1, 160], strides = [1, 1]} : vector<8x160xf32> to vector<1x160xf32>
    %262 = vector.shape_cast %261 : vector<1x160xf32> to vector<160xf32>
    %263 = vector.shape_cast %262 : vector<160xf32> to vector<1x160xf32>
    %264 = vector.broadcast %260 : vector<32x1xf32> to vector<32x160xf32>
    %265 = vector.broadcast %263 : vector<1x160xf32> to vector<32x160xf32>
    %266 = arith.mulf %264, %265 : vector<32x160xf32>
    %267 = arith.addf %259, %266 : vector<32x160xf32>
    %c0_69 = arith.constant 0 : index
    %c6_70 = arith.constant 6 : index
    %268 = vector.load %arg2[%c0_69, %c6_70] : memref<32x9xf32, #tpu.memory_space<vmem>>, vector<32x1xf32>
    %269 = vector.extract_strided_slice %6 {offsets = [4, 0], sizes = [1, 160], strides = [1, 1]} : vector<8x160xf32> to vector<1x160xf32>
    %270 = vector.shape_cast %269 : vector<1x160xf32> to vector<160xf32>
    %271 = vector.shape_cast %270 : vector<160xf32> to vector<1x160xf32>
    %272 = vector.broadcast %268 : vector<32x1xf32> to vector<32x160xf32>
    %273 = vector.broadcast %271 : vector<1x160xf32> to vector<32x160xf32>
    %274 = arith.mulf %272, %273 : vector<32x160xf32>
    %275 = arith.addf %267, %274 : vector<32x160xf32>
    %c0_71 = arith.constant 0 : index
    %c7_72 = arith.constant 7 : index
    %276 = vector.load %arg2[%c0_71, %c7_72] : memref<32x9xf32, #tpu.memory_space<vmem>>, vector<32x1xf32>
    %277 = vector.extract_strided_slice %7 {offsets = [4, 0], sizes = [1, 160], strides = [1, 1]} : vector<8x160xf32> to vector<1x160xf32>
    %278 = vector.shape_cast %277 : vector<1x160xf32> to vector<160xf32>
    %279 = vector.shape_cast %278 : vector<160xf32> to vector<1x160xf32>
    %280 = vector.broadcast %276 : vector<32x1xf32> to vector<32x160xf32>
    %281 = vector.broadcast %279 : vector<1x160xf32> to vector<32x160xf32>
    %282 = arith.mulf %280, %281 : vector<32x160xf32>
    %283 = arith.addf %275, %282 : vector<32x160xf32>
    %c0_73 = arith.constant 0 : index
    %c8_74 = arith.constant 8 : index
    %284 = vector.load %arg2[%c0_73, %c8_74] : memref<32x9xf32, #tpu.memory_space<vmem>>, vector<32x1xf32>
    %285 = vector.extract_strided_slice %8 {offsets = [4, 0], sizes = [1, 160], strides = [1, 1]} : vector<8x160xf32> to vector<1x160xf32>
    %286 = vector.shape_cast %285 : vector<1x160xf32> to vector<160xf32>
    %287 = vector.shape_cast %286 : vector<160xf32> to vector<1x160xf32>
    %288 = vector.broadcast %284 : vector<32x1xf32> to vector<32x160xf32>
    %289 = vector.broadcast %287 : vector<1x160xf32> to vector<32x160xf32>
    %290 = arith.mulf %288, %289 : vector<32x160xf32>
    %291 = arith.addf %283, %290 : vector<32x160xf32>
    %292 = vector.broadcast %9 : vector<32x1xf32> to vector<32x160xf32>
    %293 = arith.addf %291, %292 : vector<32x160xf32>
    %cst_75 = arith.constant 0.000000e+00 : f32
    %294 = vector.broadcast %cst_75 : f32 to vector<32x160xf32>
    %295 = arith.maximumf %293, %294 : vector<32x160xf32>
    %296 = arith.maximumf %218, %295 : vector<32x160xf32>
    %cst_76 = arith.constant 0.000000e+00 : f32
    %297 = vector.broadcast %cst_76 : f32 to vector<32x160xf32>
    %c0_77 = arith.constant 0 : index
    %c0_78 = arith.constant 0 : index
    %298 = vector.load %arg2[%c0_77, %c0_78] : memref<32x9xf32, #tpu.memory_space<vmem>>, vector<32x1xf32>
    %299 = vector.extract_strided_slice %6 {offsets = [3, 0], sizes = [1, 160], strides = [1, 1]} : vector<8x160xf32> to vector<1x160xf32>
    %300 = vector.shape_cast %299 : vector<1x160xf32> to vector<160xf32>
    %301 = vector.shape_cast %300 : vector<160xf32> to vector<1x160xf32>
    %302 = vector.broadcast %298 : vector<32x1xf32> to vector<32x160xf32>
    %303 = vector.broadcast %301 : vector<1x160xf32> to vector<32x160xf32>
    %304 = arith.mulf %302, %303 : vector<32x160xf32>
    %305 = arith.addf %297, %304 : vector<32x160xf32>
    %c0_79 = arith.constant 0 : index
    %c1_80 = arith.constant 1 : index
    %306 = vector.load %arg2[%c0_79, %c1_80] : memref<32x9xf32, #tpu.memory_space<vmem>>, vector<32x1xf32>
    %307 = vector.extract_strided_slice %7 {offsets = [3, 0], sizes = [1, 160], strides = [1, 1]} : vector<8x160xf32> to vector<1x160xf32>
    %308 = vector.shape_cast %307 : vector<1x160xf32> to vector<160xf32>
    %309 = vector.shape_cast %308 : vector<160xf32> to vector<1x160xf32>
    %310 = vector.broadcast %306 : vector<32x1xf32> to vector<32x160xf32>
    %311 = vector.broadcast %309 : vector<1x160xf32> to vector<32x160xf32>
    %312 = arith.mulf %310, %311 : vector<32x160xf32>
    %313 = arith.addf %305, %312 : vector<32x160xf32>
    %c0_81 = arith.constant 0 : index
    %c2_82 = arith.constant 2 : index
    %314 = vector.load %arg2[%c0_81, %c2_82] : memref<32x9xf32, #tpu.memory_space<vmem>>, vector<32x1xf32>
    %315 = vector.extract_strided_slice %8 {offsets = [3, 0], sizes = [1, 160], strides = [1, 1]} : vector<8x160xf32> to vector<1x160xf32>
    %316 = vector.shape_cast %315 : vector<1x160xf32> to vector<160xf32>
    %317 = vector.shape_cast %316 : vector<160xf32> to vector<1x160xf32>
    %318 = vector.broadcast %314 : vector<32x1xf32> to vector<32x160xf32>
    %319 = vector.broadcast %317 : vector<1x160xf32> to vector<32x160xf32>
    %320 = arith.mulf %318, %319 : vector<32x160xf32>
    %321 = arith.addf %313, %320 : vector<32x160xf32>
    %c0_83 = arith.constant 0 : index
    %c3_84 = arith.constant 3 : index
    %322 = vector.load %arg2[%c0_83, %c3_84] : memref<32x9xf32, #tpu.memory_space<vmem>>, vector<32x1xf32>
    %323 = vector.extract_strided_slice %6 {offsets = [4, 0], sizes = [1, 160], strides = [1, 1]} : vector<8x160xf32> to vector<1x160xf32>
    %324 = vector.shape_cast %323 : vector<1x160xf32> to vector<160xf32>
    %325 = vector.shape_cast %324 : vector<160xf32> to vector<1x160xf32>
    %326 = vector.broadcast %322 : vector<32x1xf32> to vector<32x160xf32>
    %327 = vector.broadcast %325 : vector<1x160xf32> to vector<32x160xf32>
    %328 = arith.mulf %326, %327 : vector<32x160xf32>
    %329 = arith.addf %321, %328 : vector<32x160xf32>
    %c0_85 = arith.constant 0 : index
    %c4_86 = arith.constant 4 : index
    %330 = vector.load %arg2[%c0_85, %c4_86] : memref<32x9xf32, #tpu.memory_space<vmem>>, vector<32x1xf32>
    %331 = vector.extract_strided_slice %7 {offsets = [4, 0], sizes = [1, 160], strides = [1, 1]} : vector<8x160xf32> to vector<1x160xf32>
    %332 = vector.shape_cast %331 : vector<1x160xf32> to vector<160xf32>
    %333 = vector.shape_cast %332 : vector<160xf32> to vector<1x160xf32>
    %334 = vector.broadcast %330 : vector<32x1xf32> to vector<32x160xf32>
    %335 = vector.broadcast %333 : vector<1x160xf32> to vector<32x160xf32>
    %336 = arith.mulf %334, %335 : vector<32x160xf32>
    %337 = arith.addf %329, %336 : vector<32x160xf32>
    %c0_87 = arith.constant 0 : index
    %c5_88 = arith.constant 5 : index
    %338 = vector.load %arg2[%c0_87, %c5_88] : memref<32x9xf32, #tpu.memory_space<vmem>>, vector<32x1xf32>
    %339 = vector.extract_strided_slice %8 {offsets = [4, 0], sizes = [1, 160], strides = [1, 1]} : vector<8x160xf32> to vector<1x160xf32>
    %340 = vector.shape_cast %339 : vector<1x160xf32> to vector<160xf32>
    %341 = vector.shape_cast %340 : vector<160xf32> to vector<1x160xf32>
    %342 = vector.broadcast %338 : vector<32x1xf32> to vector<32x160xf32>
    %343 = vector.broadcast %341 : vector<1x160xf32> to vector<32x160xf32>
    %344 = arith.mulf %342, %343 : vector<32x160xf32>
    %345 = arith.addf %337, %344 : vector<32x160xf32>
    %c0_89 = arith.constant 0 : index
    %c6_90 = arith.constant 6 : index
    %346 = vector.load %arg2[%c0_89, %c6_90] : memref<32x9xf32, #tpu.memory_space<vmem>>, vector<32x1xf32>
    %347 = vector.extract_strided_slice %6 {offsets = [5, 0], sizes = [1, 160], strides = [1, 1]} : vector<8x160xf32> to vector<1x160xf32>
    %348 = vector.shape_cast %347 : vector<1x160xf32> to vector<160xf32>
    %349 = vector.shape_cast %348 : vector<160xf32> to vector<1x160xf32>
    %350 = vector.broadcast %346 : vector<32x1xf32> to vector<32x160xf32>
    %351 = vector.broadcast %349 : vector<1x160xf32> to vector<32x160xf32>
    %352 = arith.mulf %350, %351 : vector<32x160xf32>
    %353 = arith.addf %345, %352 : vector<32x160xf32>
    %c0_91 = arith.constant 0 : index
    %c7_92 = arith.constant 7 : index
    %354 = vector.load %arg2[%c0_91, %c7_92] : memref<32x9xf32, #tpu.memory_space<vmem>>, vector<32x1xf32>
    %355 = vector.extract_strided_slice %7 {offsets = [5, 0], sizes = [1, 160], strides = [1, 1]} : vector<8x160xf32> to vector<1x160xf32>
    %356 = vector.shape_cast %355 : vector<1x160xf32> to vector<160xf32>
    %357 = vector.shape_cast %356 : vector<160xf32> to vector<1x160xf32>
    %358 = vector.broadcast %354 : vector<32x1xf32> to vector<32x160xf32>
    %359 = vector.broadcast %357 : vector<1x160xf32> to vector<32x160xf32>
    %360 = arith.mulf %358, %359 : vector<32x160xf32>
    %361 = arith.addf %353, %360 : vector<32x160xf32>
    %c0_93 = arith.constant 0 : index
    %c8_94 = arith.constant 8 : index
    %362 = vector.load %arg2[%c0_93, %c8_94] : memref<32x9xf32, #tpu.memory_space<vmem>>, vector<32x1xf32>
    %363 = vector.extract_strided_slice %8 {offsets = [5, 0], sizes = [1, 160], strides = [1, 1]} : vector<8x160xf32> to vector<1x160xf32>
    %364 = vector.shape_cast %363 : vector<1x160xf32> to vector<160xf32>
    %365 = vector.shape_cast %364 : vector<160xf32> to vector<1x160xf32>
    %366 = vector.broadcast %362 : vector<32x1xf32> to vector<32x160xf32>
    %367 = vector.broadcast %365 : vector<1x160xf32> to vector<32x160xf32>
    %368 = arith.mulf %366, %367 : vector<32x160xf32>
    %369 = arith.addf %361, %368 : vector<32x160xf32>
    %370 = vector.broadcast %9 : vector<32x1xf32> to vector<32x160xf32>
    %371 = arith.addf %369, %370 : vector<32x160xf32>
    %cst_95 = arith.constant 0.000000e+00 : f32
    %372 = vector.broadcast %cst_95 : f32 to vector<32x160xf32>
    %373 = arith.maximumf %371, %372 : vector<32x160xf32>
    %374 = arith.maximumf %296, %373 : vector<32x160xf32>
    %cst_96 = arith.constant 0.000000e+00 : f32
    %375 = vector.broadcast %cst_96 : f32 to vector<32x160xf32>
    %c0_97 = arith.constant 0 : index
    %c0_98 = arith.constant 0 : index
    %376 = vector.load %arg2[%c0_97, %c0_98] : memref<32x9xf32, #tpu.memory_space<vmem>>, vector<32x1xf32>
    %377 = vector.extract_strided_slice %6 {offsets = [4, 0], sizes = [1, 160], strides = [1, 1]} : vector<8x160xf32> to vector<1x160xf32>
    %378 = vector.shape_cast %377 : vector<1x160xf32> to vector<160xf32>
    %379 = vector.shape_cast %378 : vector<160xf32> to vector<1x160xf32>
    %380 = vector.broadcast %376 : vector<32x1xf32> to vector<32x160xf32>
    %381 = vector.broadcast %379 : vector<1x160xf32> to vector<32x160xf32>
    %382 = arith.mulf %380, %381 : vector<32x160xf32>
    %383 = arith.addf %375, %382 : vector<32x160xf32>
    %c0_99 = arith.constant 0 : index
    %c1_100 = arith.constant 1 : index
    %384 = vector.load %arg2[%c0_99, %c1_100] : memref<32x9xf32, #tpu.memory_space<vmem>>, vector<32x1xf32>
    %385 = vector.extract_strided_slice %7 {offsets = [4, 0], sizes = [1, 160], strides = [1, 1]} : vector<8x160xf32> to vector<1x160xf32>
    %386 = vector.shape_cast %385 : vector<1x160xf32> to vector<160xf32>
    %387 = vector.shape_cast %386 : vector<160xf32> to vector<1x160xf32>
    %388 = vector.broadcast %384 : vector<32x1xf32> to vector<32x160xf32>
    %389 = vector.broadcast %387 : vector<1x160xf32> to vector<32x160xf32>
    %390 = arith.mulf %388, %389 : vector<32x160xf32>
    %391 = arith.addf %383, %390 : vector<32x160xf32>
    %c0_101 = arith.constant 0 : index
    %c2_102 = arith.constant 2 : index
    %392 = vector.load %arg2[%c0_101, %c2_102] : memref<32x9xf32, #tpu.memory_space<vmem>>, vector<32x1xf32>
    %393 = vector.extract_strided_slice %8 {offsets = [4, 0], sizes = [1, 160], strides = [1, 1]} : vector<8x160xf32> to vector<1x160xf32>
    %394 = vector.shape_cast %393 : vector<1x160xf32> to vector<160xf32>
    %395 = vector.shape_cast %394 : vector<160xf32> to vector<1x160xf32>
    %396 = vector.broadcast %392 : vector<32x1xf32> to vector<32x160xf32>
    %397 = vector.broadcast %395 : vector<1x160xf32> to vector<32x160xf32>
    %398 = arith.mulf %396, %397 : vector<32x160xf32>
    %399 = arith.addf %391, %398 : vector<32x160xf32>
    %c0_103 = arith.constant 0 : index
    %c3_104 = arith.constant 3 : index
    %400 = vector.load %arg2[%c0_103, %c3_104] : memref<32x9xf32, #tpu.memory_space<vmem>>, vector<32x1xf32>
    %401 = vector.extract_strided_slice %6 {offsets = [5, 0], sizes = [1, 160], strides = [1, 1]} : vector<8x160xf32> to vector<1x160xf32>
    %402 = vector.shape_cast %401 : vector<1x160xf32> to vector<160xf32>
    %403 = vector.shape_cast %402 : vector<160xf32> to vector<1x160xf32>
    %404 = vector.broadcast %400 : vector<32x1xf32> to vector<32x160xf32>
    %405 = vector.broadcast %403 : vector<1x160xf32> to vector<32x160xf32>
    %406 = arith.mulf %404, %405 : vector<32x160xf32>
    %407 = arith.addf %399, %406 : vector<32x160xf32>
    %c0_105 = arith.constant 0 : index
    %c4_106 = arith.constant 4 : index
    %408 = vector.load %arg2[%c0_105, %c4_106] : memref<32x9xf32, #tpu.memory_space<vmem>>, vector<32x1xf32>
    %409 = vector.extract_strided_slice %7 {offsets = [5, 0], sizes = [1, 160], strides = [1, 1]} : vector<8x160xf32> to vector<1x160xf32>
    %410 = vector.shape_cast %409 : vector<1x160xf32> to vector<160xf32>
    %411 = vector.shape_cast %410 : vector<160xf32> to vector<1x160xf32>
    %412 = vector.broadcast %408 : vector<32x1xf32> to vector<32x160xf32>
    %413 = vector.broadcast %411 : vector<1x160xf32> to vector<32x160xf32>
    %414 = arith.mulf %412, %413 : vector<32x160xf32>
    %415 = arith.addf %407, %414 : vector<32x160xf32>
    %c0_107 = arith.constant 0 : index
    %c5_108 = arith.constant 5 : index
    %416 = vector.load %arg2[%c0_107, %c5_108] : memref<32x9xf32, #tpu.memory_space<vmem>>, vector<32x1xf32>
    %417 = vector.extract_strided_slice %8 {offsets = [5, 0], sizes = [1, 160], strides = [1, 1]} : vector<8x160xf32> to vector<1x160xf32>
    %418 = vector.shape_cast %417 : vector<1x160xf32> to vector<160xf32>
    %419 = vector.shape_cast %418 : vector<160xf32> to vector<1x160xf32>
    %420 = vector.broadcast %416 : vector<32x1xf32> to vector<32x160xf32>
    %421 = vector.broadcast %419 : vector<1x160xf32> to vector<32x160xf32>
    %422 = arith.mulf %420, %421 : vector<32x160xf32>
    %423 = arith.addf %415, %422 : vector<32x160xf32>
    %c0_109 = arith.constant 0 : index
    %c6_110 = arith.constant 6 : index
    %424 = vector.load %arg2[%c0_109, %c6_110] : memref<32x9xf32, #tpu.memory_space<vmem>>, vector<32x1xf32>
    %425 = vector.extract_strided_slice %6 {offsets = [6, 0], sizes = [1, 160], strides = [1, 1]} : vector<8x160xf32> to vector<1x160xf32>
    %426 = vector.shape_cast %425 : vector<1x160xf32> to vector<160xf32>
    %427 = vector.shape_cast %426 : vector<160xf32> to vector<1x160xf32>
    %428 = vector.broadcast %424 : vector<32x1xf32> to vector<32x160xf32>
    %429 = vector.broadcast %427 : vector<1x160xf32> to vector<32x160xf32>
    %430 = arith.mulf %428, %429 : vector<32x160xf32>
    %431 = arith.addf %423, %430 : vector<32x160xf32>
    %c0_111 = arith.constant 0 : index
    %c7_112 = arith.constant 7 : index
    %432 = vector.load %arg2[%c0_111, %c7_112] : memref<32x9xf32, #tpu.memory_space<vmem>>, vector<32x1xf32>
    %433 = vector.extract_strided_slice %7 {offsets = [6, 0], sizes = [1, 160], strides = [1, 1]} : vector<8x160xf32> to vector<1x160xf32>
    %434 = vector.shape_cast %433 : vector<1x160xf32> to vector<160xf32>
    %435 = vector.shape_cast %434 : vector<160xf32> to vector<1x160xf32>
    %436 = vector.broadcast %432 : vector<32x1xf32> to vector<32x160xf32>
    %437 = vector.broadcast %435 : vector<1x160xf32> to vector<32x160xf32>
    %438 = arith.mulf %436, %437 : vector<32x160xf32>
    %439 = arith.addf %431, %438 : vector<32x160xf32>
    %c0_113 = arith.constant 0 : index
    %c8_114 = arith.constant 8 : index
    %440 = vector.load %arg2[%c0_113, %c8_114] : memref<32x9xf32, #tpu.memory_space<vmem>>, vector<32x1xf32>
    %441 = vector.extract_strided_slice %8 {offsets = [6, 0], sizes = [1, 160], strides = [1, 1]} : vector<8x160xf32> to vector<1x160xf32>
    %442 = vector.shape_cast %441 : vector<1x160xf32> to vector<160xf32>
    %443 = vector.shape_cast %442 : vector<160xf32> to vector<1x160xf32>
    %444 = vector.broadcast %440 : vector<32x1xf32> to vector<32x160xf32>
    %445 = vector.broadcast %443 : vector<1x160xf32> to vector<32x160xf32>
    %446 = arith.mulf %444, %445 : vector<32x160xf32>
    %447 = arith.addf %439, %446 : vector<32x160xf32>
    %448 = vector.broadcast %9 : vector<32x1xf32> to vector<32x160xf32>
    %449 = arith.addf %447, %448 : vector<32x160xf32>
    %cst_115 = arith.constant 0.000000e+00 : f32
    %450 = vector.broadcast %cst_115 : f32 to vector<32x160xf32>
    %451 = arith.maximumf %449, %450 : vector<32x160xf32>
    %452 = arith.maximumf %374, %451 : vector<32x160xf32>
    %cst_116 = arith.constant 0.000000e+00 : f32
    %453 = vector.broadcast %cst_116 : f32 to vector<32x160xf32>
    %c0_117 = arith.constant 0 : index
    %c0_118 = arith.constant 0 : index
    %454 = vector.load %arg2[%c0_117, %c0_118] : memref<32x9xf32, #tpu.memory_space<vmem>>, vector<32x1xf32>
    %455 = vector.extract_strided_slice %6 {offsets = [5, 0], sizes = [1, 160], strides = [1, 1]} : vector<8x160xf32> to vector<1x160xf32>
    %456 = vector.shape_cast %455 : vector<1x160xf32> to vector<160xf32>
    %457 = vector.shape_cast %456 : vector<160xf32> to vector<1x160xf32>
    %458 = vector.broadcast %454 : vector<32x1xf32> to vector<32x160xf32>
    %459 = vector.broadcast %457 : vector<1x160xf32> to vector<32x160xf32>
    %460 = arith.mulf %458, %459 : vector<32x160xf32>
    %461 = arith.addf %453, %460 : vector<32x160xf32>
    %c0_119 = arith.constant 0 : index
    %c1_120 = arith.constant 1 : index
    %462 = vector.load %arg2[%c0_119, %c1_120] : memref<32x9xf32, #tpu.memory_space<vmem>>, vector<32x1xf32>
    %463 = vector.extract_strided_slice %7 {offsets = [5, 0], sizes = [1, 160], strides = [1, 1]} : vector<8x160xf32> to vector<1x160xf32>
    %464 = vector.shape_cast %463 : vector<1x160xf32> to vector<160xf32>
    %465 = vector.shape_cast %464 : vector<160xf32> to vector<1x160xf32>
    %466 = vector.broadcast %462 : vector<32x1xf32> to vector<32x160xf32>
    %467 = vector.broadcast %465 : vector<1x160xf32> to vector<32x160xf32>
    %468 = arith.mulf %466, %467 : vector<32x160xf32>
    %469 = arith.addf %461, %468 : vector<32x160xf32>
    %c0_121 = arith.constant 0 : index
    %c2_122 = arith.constant 2 : index
    %470 = vector.load %arg2[%c0_121, %c2_122] : memref<32x9xf32, #tpu.memory_space<vmem>>, vector<32x1xf32>
    %471 = vector.extract_strided_slice %8 {offsets = [5, 0], sizes = [1, 160], strides = [1, 1]} : vector<8x160xf32> to vector<1x160xf32>
    %472 = vector.shape_cast %471 : vector<1x160xf32> to vector<160xf32>
    %473 = vector.shape_cast %472 : vector<160xf32> to vector<1x160xf32>
    %474 = vector.broadcast %470 : vector<32x1xf32> to vector<32x160xf32>
    %475 = vector.broadcast %473 : vector<1x160xf32> to vector<32x160xf32>
    %476 = arith.mulf %474, %475 : vector<32x160xf32>
    %477 = arith.addf %469, %476 : vector<32x160xf32>
    %c0_123 = arith.constant 0 : index
    %c3_124 = arith.constant 3 : index
    %478 = vector.load %arg2[%c0_123, %c3_124] : memref<32x9xf32, #tpu.memory_space<vmem>>, vector<32x1xf32>
    %479 = vector.extract_strided_slice %6 {offsets = [6, 0], sizes = [1, 160], strides = [1, 1]} : vector<8x160xf32> to vector<1x160xf32>
    %480 = vector.shape_cast %479 : vector<1x160xf32> to vector<160xf32>
    %481 = vector.shape_cast %480 : vector<160xf32> to vector<1x160xf32>
    %482 = vector.broadcast %478 : vector<32x1xf32> to vector<32x160xf32>
    %483 = vector.broadcast %481 : vector<1x160xf32> to vector<32x160xf32>
    %484 = arith.mulf %482, %483 : vector<32x160xf32>
    %485 = arith.addf %477, %484 : vector<32x160xf32>
    %c0_125 = arith.constant 0 : index
    %c4_126 = arith.constant 4 : index
    %486 = vector.load %arg2[%c0_125, %c4_126] : memref<32x9xf32, #tpu.memory_space<vmem>>, vector<32x1xf32>
    %487 = vector.extract_strided_slice %7 {offsets = [6, 0], sizes = [1, 160], strides = [1, 1]} : vector<8x160xf32> to vector<1x160xf32>
    %488 = vector.shape_cast %487 : vector<1x160xf32> to vector<160xf32>
    %489 = vector.shape_cast %488 : vector<160xf32> to vector<1x160xf32>
    %490 = vector.broadcast %486 : vector<32x1xf32> to vector<32x160xf32>
    %491 = vector.broadcast %489 : vector<1x160xf32> to vector<32x160xf32>
    %492 = arith.mulf %490, %491 : vector<32x160xf32>
    %493 = arith.addf %485, %492 : vector<32x160xf32>
    %c0_127 = arith.constant 0 : index
    %c5_128 = arith.constant 5 : index
    %494 = vector.load %arg2[%c0_127, %c5_128] : memref<32x9xf32, #tpu.memory_space<vmem>>, vector<32x1xf32>
    %495 = vector.extract_strided_slice %8 {offsets = [6, 0], sizes = [1, 160], strides = [1, 1]} : vector<8x160xf32> to vector<1x160xf32>
    %496 = vector.shape_cast %495 : vector<1x160xf32> to vector<160xf32>
    %497 = vector.shape_cast %496 : vector<160xf32> to vector<1x160xf32>
    %498 = vector.broadcast %494 : vector<32x1xf32> to vector<32x160xf32>
    %499 = vector.broadcast %497 : vector<1x160xf32> to vector<32x160xf32>
    %500 = arith.mulf %498, %499 : vector<32x160xf32>
    %501 = arith.addf %493, %500 : vector<32x160xf32>
    %c0_129 = arith.constant 0 : index
    %c6_130 = arith.constant 6 : index
    %502 = vector.load %arg2[%c0_129, %c6_130] : memref<32x9xf32, #tpu.memory_space<vmem>>, vector<32x1xf32>
    %503 = vector.extract_strided_slice %6 {offsets = [7, 0], sizes = [1, 160], strides = [1, 1]} : vector<8x160xf32> to vector<1x160xf32>
    %504 = vector.shape_cast %503 : vector<1x160xf32> to vector<160xf32>
    %505 = vector.shape_cast %504 : vector<160xf32> to vector<1x160xf32>
    %506 = vector.broadcast %502 : vector<32x1xf32> to vector<32x160xf32>
    %507 = vector.broadcast %505 : vector<1x160xf32> to vector<32x160xf32>
    %508 = arith.mulf %506, %507 : vector<32x160xf32>
    %509 = arith.addf %501, %508 : vector<32x160xf32>
    %c0_131 = arith.constant 0 : index
    %c7_132 = arith.constant 7 : index
    %510 = vector.load %arg2[%c0_131, %c7_132] : memref<32x9xf32, #tpu.memory_space<vmem>>, vector<32x1xf32>
    %511 = vector.extract_strided_slice %7 {offsets = [7, 0], sizes = [1, 160], strides = [1, 1]} : vector<8x160xf32> to vector<1x160xf32>
    %512 = vector.shape_cast %511 : vector<1x160xf32> to vector<160xf32>
    %513 = vector.shape_cast %512 : vector<160xf32> to vector<1x160xf32>
    %514 = vector.broadcast %510 : vector<32x1xf32> to vector<32x160xf32>
    %515 = vector.broadcast %513 : vector<1x160xf32> to vector<32x160xf32>
    %516 = arith.mulf %514, %515 : vector<32x160xf32>
    %517 = arith.addf %509, %516 : vector<32x160xf32>
    %c0_133 = arith.constant 0 : index
    %c8_134 = arith.constant 8 : index
    %518 = vector.load %arg2[%c0_133, %c8_134] : memref<32x9xf32, #tpu.memory_space<vmem>>, vector<32x1xf32>
    %519 = vector.extract_strided_slice %8 {offsets = [7, 0], sizes = [1, 160], strides = [1, 1]} : vector<8x160xf32> to vector<1x160xf32>
    %520 = vector.shape_cast %519 : vector<1x160xf32> to vector<160xf32>
    %521 = vector.shape_cast %520 : vector<160xf32> to vector<1x160xf32>
    %522 = vector.broadcast %518 : vector<32x1xf32> to vector<32x160xf32>
    %523 = vector.broadcast %521 : vector<1x160xf32> to vector<32x160xf32>
    %524 = arith.mulf %522, %523 : vector<32x160xf32>
    %525 = arith.addf %517, %524 : vector<32x160xf32>
    %526 = vector.broadcast %9 : vector<32x1xf32> to vector<32x160xf32>
    %527 = arith.addf %525, %526 : vector<32x160xf32>
    %cst_135 = arith.constant 0.000000e+00 : f32
    %528 = vector.broadcast %cst_135 : f32 to vector<32x160xf32>
    %529 = arith.maximumf %527, %528 : vector<32x160xf32>
    %530 = arith.maximumf %452, %529 : vector<32x160xf32>
    %cst_136 = arith.constant 0.000000e+00 : f32
    %531 = vector.broadcast %cst_136 : f32 to vector<32x160xf32>
    %c0_137 = arith.constant 0 : index
    %c0_138 = arith.constant 0 : index
    %532 = vector.load %arg2[%c0_137, %c0_138] : memref<32x9xf32, #tpu.memory_space<vmem>>, vector<32x1xf32>
    %533 = vector.extract_strided_slice %6 {offsets = [6, 0], sizes = [1, 160], strides = [1, 1]} : vector<8x160xf32> to vector<1x160xf32>
    %534 = vector.shape_cast %533 : vector<1x160xf32> to vector<160xf32>
    %535 = vector.shape_cast %534 : vector<160xf32> to vector<1x160xf32>
    %536 = vector.broadcast %532 : vector<32x1xf32> to vector<32x160xf32>
    %537 = vector.broadcast %535 : vector<1x160xf32> to vector<32x160xf32>
    %538 = arith.mulf %536, %537 : vector<32x160xf32>
    %539 = arith.addf %531, %538 : vector<32x160xf32>
    %c0_139 = arith.constant 0 : index
    %c1_140 = arith.constant 1 : index
    %540 = vector.load %arg2[%c0_139, %c1_140] : memref<32x9xf32, #tpu.memory_space<vmem>>, vector<32x1xf32>
    %541 = vector.extract_strided_slice %7 {offsets = [6, 0], sizes = [1, 160], strides = [1, 1]} : vector<8x160xf32> to vector<1x160xf32>
    %542 = vector.shape_cast %541 : vector<1x160xf32> to vector<160xf32>
    %543 = vector.shape_cast %542 : vector<160xf32> to vector<1x160xf32>
    %544 = vector.broadcast %540 : vector<32x1xf32> to vector<32x160xf32>
    %545 = vector.broadcast %543 : vector<1x160xf32> to vector<32x160xf32>
    %546 = arith.mulf %544, %545 : vector<32x160xf32>
    %547 = arith.addf %539, %546 : vector<32x160xf32>
    %c0_141 = arith.constant 0 : index
    %c2_142 = arith.constant 2 : index
    %548 = vector.load %arg2[%c0_141, %c2_142] : memref<32x9xf32, #tpu.memory_space<vmem>>, vector<32x1xf32>
    %549 = vector.extract_strided_slice %8 {offsets = [6, 0], sizes = [1, 160], strides = [1, 1]} : vector<8x160xf32> to vector<1x160xf32>
    %550 = vector.shape_cast %549 : vector<1x160xf32> to vector<160xf32>
    %551 = vector.shape_cast %550 : vector<160xf32> to vector<1x160xf32>
    %552 = vector.broadcast %548 : vector<32x1xf32> to vector<32x160xf32>
    %553 = vector.broadcast %551 : vector<1x160xf32> to vector<32x160xf32>
    %554 = arith.mulf %552, %553 : vector<32x160xf32>
    %555 = arith.addf %547, %554 : vector<32x160xf32>
    %c0_143 = arith.constant 0 : index
    %c3_144 = arith.constant 3 : index
    %556 = vector.load %arg2[%c0_143, %c3_144] : memref<32x9xf32, #tpu.memory_space<vmem>>, vector<32x1xf32>
    %557 = vector.extract_strided_slice %6 {offsets = [7, 0], sizes = [1, 160], strides = [1, 1]} : vector<8x160xf32> to vector<1x160xf32>
    %558 = vector.shape_cast %557 : vector<1x160xf32> to vector<160xf32>
    %559 = vector.shape_cast %558 : vector<160xf32> to vector<1x160xf32>
    %560 = vector.broadcast %556 : vector<32x1xf32> to vector<32x160xf32>
    %561 = vector.broadcast %559 : vector<1x160xf32> to vector<32x160xf32>
    %562 = arith.mulf %560, %561 : vector<32x160xf32>
    %563 = arith.addf %555, %562 : vector<32x160xf32>
    %c0_145 = arith.constant 0 : index
    %c4_146 = arith.constant 4 : index
    %564 = vector.load %arg2[%c0_145, %c4_146] : memref<32x9xf32, #tpu.memory_space<vmem>>, vector<32x1xf32>
    %565 = vector.extract_strided_slice %7 {offsets = [7, 0], sizes = [1, 160], strides = [1, 1]} : vector<8x160xf32> to vector<1x160xf32>
    %566 = vector.shape_cast %565 : vector<1x160xf32> to vector<160xf32>
    %567 = vector.shape_cast %566 : vector<160xf32> to vector<1x160xf32>
    %568 = vector.broadcast %564 : vector<32x1xf32> to vector<32x160xf32>
    %569 = vector.broadcast %567 : vector<1x160xf32> to vector<32x160xf32>
    %570 = arith.mulf %568, %569 : vector<32x160xf32>
    %571 = arith.addf %563, %570 : vector<32x160xf32>
    %c0_147 = arith.constant 0 : index
    %c5_148 = arith.constant 5 : index
    %572 = vector.load %arg2[%c0_147, %c5_148] : memref<32x9xf32, #tpu.memory_space<vmem>>, vector<32x1xf32>
    %573 = vector.extract_strided_slice %8 {offsets = [7, 0], sizes = [1, 160], strides = [1, 1]} : vector<8x160xf32> to vector<1x160xf32>
    %574 = vector.shape_cast %573 : vector<1x160xf32> to vector<160xf32>
    %575 = vector.shape_cast %574 : vector<160xf32> to vector<1x160xf32>
    %576 = vector.broadcast %572 : vector<32x1xf32> to vector<32x160xf32>
    %577 = vector.broadcast %575 : vector<1x160xf32> to vector<32x160xf32>
    %578 = arith.mulf %576, %577 : vector<32x160xf32>
    %579 = arith.addf %571, %578 : vector<32x160xf32>
    %580 = vector.broadcast %9 : vector<32x1xf32> to vector<32x160xf32>
    %581 = arith.addf %579, %580 : vector<32x160xf32>
    %cst_149 = arith.constant 0.000000e+00 : f32
    %582 = vector.broadcast %cst_149 : f32 to vector<32x160xf32>
    %583 = arith.maximumf %581, %582 : vector<32x160xf32>
    %584 = arith.maximumf %530, %583 : vector<32x160xf32>
    %c0_150 = arith.constant 0 : index
    %c0_151 = arith.constant 0 : index
    %585 = vector.load %arg8[%c0_150, %c0_151] : memref<32x160xf32, #tpu.memory_space<vmem>>, vector<32x160xf32>
    tpu.vector_store %arg8[%c0_150, %c0_151], %584 {strides = array<i32>} : memref<32x160xf32, #tpu.memory_space<vmem>>, vector<32x160xf32>,
    %c0_152 = arith.constant 0 : index
    %c0_153 = arith.constant 0 : index
    %586 = vector.load %arg5[%c0_152, %c0_153] : memref<1x160xf32, #tpu.memory_space<vmem>>, vector<1x160xf32>
    %c0_154 = arith.constant 0 : index
    %c0_155 = arith.constant 0 : index
    %587 = vector.load %arg8[%c0_154, %c0_155] : memref<32x160xf32, #tpu.memory_space<vmem>>, vector<1x160xf32>
    %c0_156 = arith.constant 0 : index
    %c0_157 = arith.constant 0 : index
    %588 = vector.load %arg4[%c0_156, %c0_157] : memref<5120x160xf32, #tpu.memory_space<vmem>>, vector<160x160xf32>
    %cst_158 = arith.constant dense<0.000000e+00> : vector<1x160xf32>
    %589 = tpu.matmul %587, %588, %cst_158 {dimension_numbers = #tpu.dot_dimension_numbers<[1], [0], [0], [1], [0, 0, 1, 1], [], []>} : vector<1x160xf32>, vector<160x160xf32>, vector<1x160xf32> -> vector<1x160xf32>
    %590 = arith.addf %586, %589 : vector<1x160xf32>
    %c1_159 = arith.constant 1 : index
    %c0_160 = arith.constant 0 : index
    %591 = vector.load %arg8[%c1_159, %c0_160] : memref<32x160xf32, #tpu.memory_space<vmem>>, vector<1x160xf32>
    %c160 = arith.constant 160 : index
    %c0_161 = arith.constant 0 : index
    %592 = vector.load %arg4[%c160, %c0_161] : memref<5120x160xf32, #tpu.memory_space<vmem>>, vector<160x160xf32>
    %cst_162 = arith.constant dense<0.000000e+00> : vector<1x160xf32>
    %593 = tpu.matmul %591, %592, %cst_162 {dimension_numbers = #tpu.dot_dimension_numbers<[1], [0], [0], [1], [0, 0, 1, 1], [], []>} : vector<1x160xf32>, vector<160x160xf32>, vector<1x160xf32> -> vector<1x160xf32>
    %594 = arith.addf %590, %593 : vector<1x160xf32>
    %c2_163 = arith.constant 2 : index
    %c0_164 = arith.constant 0 : index
    %595 = vector.load %arg8[%c2_163, %c0_164] : memref<32x160xf32, #tpu.memory_space<vmem>>, vector<1x160xf32>
    %c320 = arith.constant 320 : index
    %c0_165 = arith.constant 0 : index
    %596 = vector.load %arg4[%c320, %c0_165] : memref<5120x160xf32, #tpu.memory_space<vmem>>, vector<160x160xf32>
    %cst_166 = arith.constant dense<0.000000e+00> : vector<1x160xf32>
    %597 = tpu.matmul %595, %596, %cst_166 {dimension_numbers = #tpu.dot_dimension_numbers<[1], [0], [0], [1], [0, 0, 1, 1], [], []>} : vector<1x160xf32>, vector<160x160xf32>, vector<1x160xf32> -> vector<1x160xf32>
    %598 = arith.addf %594, %597 : vector<1x160xf32>
    %c3_167 = arith.constant 3 : index
    %c0_168 = arith.constant 0 : index
    %599 = vector.load %arg8[%c3_167, %c0_168] : memref<32x160xf32, #tpu.memory_space<vmem>>, vector<1x160xf32>
    %c480 = arith.constant 480 : index
    %c0_169 = arith.constant 0 : index
    %600 = vector.load %arg4[%c480, %c0_169] : memref<5120x160xf32, #tpu.memory_space<vmem>>, vector<160x160xf32>
    %cst_170 = arith.constant dense<0.000000e+00> : vector<1x160xf32>
    %601 = tpu.matmul %599, %600, %cst_170 {dimension_numbers = #tpu.dot_dimension_numbers<[1], [0], [0], [1], [0, 0, 1, 1], [], []>} : vector<1x160xf32>, vector<160x160xf32>, vector<1x160xf32> -> vector<1x160xf32>
    %602 = arith.addf %598, %601 : vector<1x160xf32>
    %c4_171 = arith.constant 4 : index
    %c0_172 = arith.constant 0 : index
    %603 = vector.load %arg8[%c4_171, %c0_172] : memref<32x160xf32, #tpu.memory_space<vmem>>, vector<1x160xf32>
    %c640 = arith.constant 640 : index
    %c0_173 = arith.constant 0 : index
    %604 = vector.load %arg4[%c640, %c0_173] : memref<5120x160xf32, #tpu.memory_space<vmem>>, vector<160x160xf32>
    %cst_174 = arith.constant dense<0.000000e+00> : vector<1x160xf32>
    %605 = tpu.matmul %603, %604, %cst_174 {dimension_numbers = #tpu.dot_dimension_numbers<[1], [0], [0], [1], [0, 0, 1, 1], [], []>} : vector<1x160xf32>, vector<160x160xf32>, vector<1x160xf32> -> vector<1x160xf32>
    %606 = arith.addf %602, %605 : vector<1x160xf32>
    %c5_175 = arith.constant 5 : index
    %c0_176 = arith.constant 0 : index
    %607 = vector.load %arg8[%c5_175, %c0_176] : memref<32x160xf32, #tpu.memory_space<vmem>>, vector<1x160xf32>
    %c800 = arith.constant 800 : index
    %c0_177 = arith.constant 0 : index
    %608 = vector.load %arg4[%c800, %c0_177] : memref<5120x160xf32, #tpu.memory_space<vmem>>, vector<160x160xf32>
    %cst_178 = arith.constant dense<0.000000e+00> : vector<1x160xf32>
    %609 = tpu.matmul %607, %608, %cst_178 {dimension_numbers = #tpu.dot_dimension_numbers<[1], [0], [0], [1], [0, 0, 1, 1], [], []>} : vector<1x160xf32>, vector<160x160xf32>, vector<1x160xf32> -> vector<1x160xf32>
    %610 = arith.addf %606, %609 : vector<1x160xf32>
    %c6_179 = arith.constant 6 : index
    %c0_180 = arith.constant 0 : index
    %611 = vector.load %arg8[%c6_179, %c0_180] : memref<32x160xf32, #tpu.memory_space<vmem>>, vector<1x160xf32>
    %c960 = arith.constant 960 : index
    %c0_181 = arith.constant 0 : index
    %612 = vector.load %arg4[%c960, %c0_181] : memref<5120x160xf32, #tpu.memory_space<vmem>>, vector<160x160xf32>
    %cst_182 = arith.constant dense<0.000000e+00> : vector<1x160xf32>
    %613 = tpu.matmul %611, %612, %cst_182 {dimension_numbers = #tpu.dot_dimension_numbers<[1], [0], [0], [1], [0, 0, 1, 1], [], []>} : vector<1x160xf32>, vector<160x160xf32>, vector<1x160xf32> -> vector<1x160xf32>
    %614 = arith.addf %610, %613 : vector<1x160xf32>
    %c7_183 = arith.constant 7 : index
    %c0_184 = arith.constant 0 : index
    %615 = vector.load %arg8[%c7_183, %c0_184] : memref<32x160xf32, #tpu.memory_space<vmem>>, vector<1x160xf32>
    %c1120 = arith.constant 1120 : index
    %c0_185 = arith.constant 0 : index
    %616 = vector.load %arg4[%c1120, %c0_185] : memref<5120x160xf32, #tpu.memory_space<vmem>>, vector<160x160xf32>
    %cst_186 = arith.constant dense<0.000000e+00> : vector<1x160xf32>
    %617 = tpu.matmul %615, %616, %cst_186 {dimension_numbers = #tpu.dot_dimension_numbers<[1], [0], [0], [1], [0, 0, 1, 1], [], []>} : vector<1x160xf32>, vector<160x160xf32>, vector<1x160xf32> -> vector<1x160xf32>
    %618 = arith.addf %614, %617 : vector<1x160xf32>
    %c8_187 = arith.constant 8 : index
    %c0_188 = arith.constant 0 : index
    %619 = vector.load %arg8[%c8_187, %c0_188] : memref<32x160xf32, #tpu.memory_space<vmem>>, vector<1x160xf32>
    %c1280 = arith.constant 1280 : index
    %c0_189 = arith.constant 0 : index
    %620 = vector.load %arg4[%c1280, %c0_189] : memref<5120x160xf32, #tpu.memory_space<vmem>>, vector<160x160xf32>
    %cst_190 = arith.constant dense<0.000000e+00> : vector<1x160xf32>
    %621 = tpu.matmul %619, %620, %cst_190 {dimension_numbers = #tpu.dot_dimension_numbers<[1], [0], [0], [1], [0, 0, 1, 1], [], []>} : vector<1x160xf32>, vector<160x160xf32>, vector<1x160xf32> -> vector<1x160xf32>
    %622 = arith.addf %618, %621 : vector<1x160xf32>
    %c9 = arith.constant 9 : index
    %c0_191 = arith.constant 0 : index
    %623 = vector.load %arg8[%c9, %c0_191] : memref<32x160xf32, #tpu.memory_space<vmem>>, vector<1x160xf32>
    %c1440 = arith.constant 1440 : index
    %c0_192 = arith.constant 0 : index
    %624 = vector.load %arg4[%c1440, %c0_192] : memref<5120x160xf32, #tpu.memory_space<vmem>>, vector<160x160xf32>
    %cst_193 = arith.constant dense<0.000000e+00> : vector<1x160xf32>
    %625 = tpu.matmul %623, %624, %cst_193 {dimension_numbers = #tpu.dot_dimension_numbers<[1], [0], [0], [1], [0, 0, 1, 1], [], []>} : vector<1x160xf32>, vector<160x160xf32>, vector<1x160xf32> -> vector<1x160xf32>
    %626 = arith.addf %622, %625 : vector<1x160xf32>
    %c10 = arith.constant 10 : index
    %c0_194 = arith.constant 0 : index
    %627 = vector.load %arg8[%c10, %c0_194] : memref<32x160xf32, #tpu.memory_space<vmem>>, vector<1x160xf32>
    %c1600 = arith.constant 1600 : index
    %c0_195 = arith.constant 0 : index
    %628 = vector.load %arg4[%c1600, %c0_195] : memref<5120x160xf32, #tpu.memory_space<vmem>>, vector<160x160xf32>
    %cst_196 = arith.constant dense<0.000000e+00> : vector<1x160xf32>
    %629 = tpu.matmul %627, %628, %cst_196 {dimension_numbers = #tpu.dot_dimension_numbers<[1], [0], [0], [1], [0, 0, 1, 1], [], []>} : vector<1x160xf32>, vector<160x160xf32>, vector<1x160xf32> -> vector<1x160xf32>
    %630 = arith.addf %626, %629 : vector<1x160xf32>
    %c11 = arith.constant 11 : index
    %c0_197 = arith.constant 0 : index
    %631 = vector.load %arg8[%c11, %c0_197] : memref<32x160xf32, #tpu.memory_space<vmem>>, vector<1x160xf32>
    %c1760 = arith.constant 1760 : index
    %c0_198 = arith.constant 0 : index
    %632 = vector.load %arg4[%c1760, %c0_198] : memref<5120x160xf32, #tpu.memory_space<vmem>>, vector<160x160xf32>
    %cst_199 = arith.constant dense<0.000000e+00> : vector<1x160xf32>
    %633 = tpu.matmul %631, %632, %cst_199 {dimension_numbers = #tpu.dot_dimension_numbers<[1], [0], [0], [1], [0, 0, 1, 1], [], []>} : vector<1x160xf32>, vector<160x160xf32>, vector<1x160xf32> -> vector<1x160xf32>
    %634 = arith.addf %630, %633 : vector<1x160xf32>
    %c12 = arith.constant 12 : index
    %c0_200 = arith.constant 0 : index
    %635 = vector.load %arg8[%c12, %c0_200] : memref<32x160xf32, #tpu.memory_space<vmem>>, vector<1x160xf32>
    %c1920 = arith.constant 1920 : index
    %c0_201 = arith.constant 0 : index
    %636 = vector.load %arg4[%c1920, %c0_201] : memref<5120x160xf32, #tpu.memory_space<vmem>>, vector<160x160xf32>
    %cst_202 = arith.constant dense<0.000000e+00> : vector<1x160xf32>
    %637 = tpu.matmul %635, %636, %cst_202 {dimension_numbers = #tpu.dot_dimension_numbers<[1], [0], [0], [1], [0, 0, 1, 1], [], []>} : vector<1x160xf32>, vector<160x160xf32>, vector<1x160xf32> -> vector<1x160xf32>
    %638 = arith.addf %634, %637 : vector<1x160xf32>
    %c13 = arith.constant 13 : index
    %c0_203 = arith.constant 0 : index
    %639 = vector.load %arg8[%c13, %c0_203] : memref<32x160xf32, #tpu.memory_space<vmem>>, vector<1x160xf32>
    %c2080 = arith.constant 2080 : index
    %c0_204 = arith.constant 0 : index
    %640 = vector.load %arg4[%c2080, %c0_204] : memref<5120x160xf32, #tpu.memory_space<vmem>>, vector<160x160xf32>
    %cst_205 = arith.constant dense<0.000000e+00> : vector<1x160xf32>
    %641 = tpu.matmul %639, %640, %cst_205 {dimension_numbers = #tpu.dot_dimension_numbers<[1], [0], [0], [1], [0, 0, 1, 1], [], []>} : vector<1x160xf32>, vector<160x160xf32>, vector<1x160xf32> -> vector<1x160xf32>
    %642 = arith.addf %638, %641 : vector<1x160xf32>
    %c14 = arith.constant 14 : index
    %c0_206 = arith.constant 0 : index
    %643 = vector.load %arg8[%c14, %c0_206] : memref<32x160xf32, #tpu.memory_space<vmem>>, vector<1x160xf32>
    %c2240 = arith.constant 2240 : index
    %c0_207 = arith.constant 0 : index
    %644 = vector.load %arg4[%c2240, %c0_207] : memref<5120x160xf32, #tpu.memory_space<vmem>>, vector<160x160xf32>
    %cst_208 = arith.constant dense<0.000000e+00> : vector<1x160xf32>
    %645 = tpu.matmul %643, %644, %cst_208 {dimension_numbers = #tpu.dot_dimension_numbers<[1], [0], [0], [1], [0, 0, 1, 1], [], []>} : vector<1x160xf32>, vector<160x160xf32>, vector<1x160xf32> -> vector<1x160xf32>
    %646 = arith.addf %642, %645 : vector<1x160xf32>
    %c15 = arith.constant 15 : index
    %c0_209 = arith.constant 0 : index
    %647 = vector.load %arg8[%c15, %c0_209] : memref<32x160xf32, #tpu.memory_space<vmem>>, vector<1x160xf32>
    %c2400 = arith.constant 2400 : index
    %c0_210 = arith.constant 0 : index
    %648 = vector.load %arg4[%c2400, %c0_210] : memref<5120x160xf32, #tpu.memory_space<vmem>>, vector<160x160xf32>
    %cst_211 = arith.constant dense<0.000000e+00> : vector<1x160xf32>
    %649 = tpu.matmul %647, %648, %cst_211 {dimension_numbers = #tpu.dot_dimension_numbers<[1], [0], [0], [1], [0, 0, 1, 1], [], []>} : vector<1x160xf32>, vector<160x160xf32>, vector<1x160xf32> -> vector<1x160xf32>
    %650 = arith.addf %646, %649 : vector<1x160xf32>
    %c16 = arith.constant 16 : index
    %c0_212 = arith.constant 0 : index
    %651 = vector.load %arg8[%c16, %c0_212] : memref<32x160xf32, #tpu.memory_space<vmem>>, vector<1x160xf32>
    %c2560 = arith.constant 2560 : index
    %c0_213 = arith.constant 0 : index
    %652 = vector.load %arg4[%c2560, %c0_213] : memref<5120x160xf32, #tpu.memory_space<vmem>>, vector<160x160xf32>
    %cst_214 = arith.constant dense<0.000000e+00> : vector<1x160xf32>
    %653 = tpu.matmul %651, %652, %cst_214 {dimension_numbers = #tpu.dot_dimension_numbers<[1], [0], [0], [1], [0, 0, 1, 1], [], []>} : vector<1x160xf32>, vector<160x160xf32>, vector<1x160xf32> -> vector<1x160xf32>
    %654 = arith.addf %650, %653 : vector<1x160xf32>
    %c17 = arith.constant 17 : index
    %c0_215 = arith.constant 0 : index
    %655 = vector.load %arg8[%c17, %c0_215] : memref<32x160xf32, #tpu.memory_space<vmem>>, vector<1x160xf32>
    %c2720 = arith.constant 2720 : index
    %c0_216 = arith.constant 0 : index
    %656 = vector.load %arg4[%c2720, %c0_216] : memref<5120x160xf32, #tpu.memory_space<vmem>>, vector<160x160xf32>
    %cst_217 = arith.constant dense<0.000000e+00> : vector<1x160xf32>
    %657 = tpu.matmul %655, %656, %cst_217 {dimension_numbers = #tpu.dot_dimension_numbers<[1], [0], [0], [1], [0, 0, 1, 1], [], []>} : vector<1x160xf32>, vector<160x160xf32>, vector<1x160xf32> -> vector<1x160xf32>
    %658 = arith.addf %654, %657 : vector<1x160xf32>
    %c18 = arith.constant 18 : index
    %c0_218 = arith.constant 0 : index
    %659 = vector.load %arg8[%c18, %c0_218] : memref<32x160xf32, #tpu.memory_space<vmem>>, vector<1x160xf32>
    %c2880 = arith.constant 2880 : index
    %c0_219 = arith.constant 0 : index
    %660 = vector.load %arg4[%c2880, %c0_219] : memref<5120x160xf32, #tpu.memory_space<vmem>>, vector<160x160xf32>
    %cst_220 = arith.constant dense<0.000000e+00> : vector<1x160xf32>
    %661 = tpu.matmul %659, %660, %cst_220 {dimension_numbers = #tpu.dot_dimension_numbers<[1], [0], [0], [1], [0, 0, 1, 1], [], []>} : vector<1x160xf32>, vector<160x160xf32>, vector<1x160xf32> -> vector<1x160xf32>
    %662 = arith.addf %658, %661 : vector<1x160xf32>
    %c19 = arith.constant 19 : index
    %c0_221 = arith.constant 0 : index
    %663 = vector.load %arg8[%c19, %c0_221] : memref<32x160xf32, #tpu.memory_space<vmem>>, vector<1x160xf32>
    %c3040 = arith.constant 3040 : index
    %c0_222 = arith.constant 0 : index
    %664 = vector.load %arg4[%c3040, %c0_222] : memref<5120x160xf32, #tpu.memory_space<vmem>>, vector<160x160xf32>
    %cst_223 = arith.constant dense<0.000000e+00> : vector<1x160xf32>
    %665 = tpu.matmul %663, %664, %cst_223 {dimension_numbers = #tpu.dot_dimension_numbers<[1], [0], [0], [1], [0, 0, 1, 1], [], []>} : vector<1x160xf32>, vector<160x160xf32>, vector<1x160xf32> -> vector<1x160xf32>
    %666 = arith.addf %662, %665 : vector<1x160xf32>
    %c20 = arith.constant 20 : index
    %c0_224 = arith.constant 0 : index
    %667 = vector.load %arg8[%c20, %c0_224] : memref<32x160xf32, #tpu.memory_space<vmem>>, vector<1x160xf32>
    %c3200 = arith.constant 3200 : index
    %c0_225 = arith.constant 0 : index
    %668 = vector.load %arg4[%c3200, %c0_225] : memref<5120x160xf32, #tpu.memory_space<vmem>>, vector<160x160xf32>
    %cst_226 = arith.constant dense<0.000000e+00> : vector<1x160xf32>
    %669 = tpu.matmul %667, %668, %cst_226 {dimension_numbers = #tpu.dot_dimension_numbers<[1], [0], [0], [1], [0, 0, 1, 1], [], []>} : vector<1x160xf32>, vector<160x160xf32>, vector<1x160xf32> -> vector<1x160xf32>
    %670 = arith.addf %666, %669 : vector<1x160xf32>
    %c21 = arith.constant 21 : index
    %c0_227 = arith.constant 0 : index
    %671 = vector.load %arg8[%c21, %c0_227] : memref<32x160xf32, #tpu.memory_space<vmem>>, vector<1x160xf32>
    %c3360 = arith.constant 3360 : index
    %c0_228 = arith.constant 0 : index
    %672 = vector.load %arg4[%c3360, %c0_228] : memref<5120x160xf32, #tpu.memory_space<vmem>>, vector<160x160xf32>
    %cst_229 = arith.constant dense<0.000000e+00> : vector<1x160xf32>
    %673 = tpu.matmul %671, %672, %cst_229 {dimension_numbers = #tpu.dot_dimension_numbers<[1], [0], [0], [1], [0, 0, 1, 1], [], []>} : vector<1x160xf32>, vector<160x160xf32>, vector<1x160xf32> -> vector<1x160xf32>
    %674 = arith.addf %670, %673 : vector<1x160xf32>
    %c22 = arith.constant 22 : index
    %c0_230 = arith.constant 0 : index
    %675 = vector.load %arg8[%c22, %c0_230] : memref<32x160xf32, #tpu.memory_space<vmem>>, vector<1x160xf32>
    %c3520 = arith.constant 3520 : index
    %c0_231 = arith.constant 0 : index
    %676 = vector.load %arg4[%c3520, %c0_231] : memref<5120x160xf32, #tpu.memory_space<vmem>>, vector<160x160xf32>
    %cst_232 = arith.constant dense<0.000000e+00> : vector<1x160xf32>
    %677 = tpu.matmul %675, %676, %cst_232 {dimension_numbers = #tpu.dot_dimension_numbers<[1], [0], [0], [1], [0, 0, 1, 1], [], []>} : vector<1x160xf32>, vector<160x160xf32>, vector<1x160xf32> -> vector<1x160xf32>
    %678 = arith.addf %674, %677 : vector<1x160xf32>
    %c23 = arith.constant 23 : index
    %c0_233 = arith.constant 0 : index
    %679 = vector.load %arg8[%c23, %c0_233] : memref<32x160xf32, #tpu.memory_space<vmem>>, vector<1x160xf32>
    %c3680 = arith.constant 3680 : index
    %c0_234 = arith.constant 0 : index
    %680 = vector.load %arg4[%c3680, %c0_234] : memref<5120x160xf32, #tpu.memory_space<vmem>>, vector<160x160xf32>
    %cst_235 = arith.constant dense<0.000000e+00> : vector<1x160xf32>
    %681 = tpu.matmul %679, %680, %cst_235 {dimension_numbers = #tpu.dot_dimension_numbers<[1], [0], [0], [1], [0, 0, 1, 1], [], []>} : vector<1x160xf32>, vector<160x160xf32>, vector<1x160xf32> -> vector<1x160xf32>
    %682 = arith.addf %678, %681 : vector<1x160xf32>
    %c24 = arith.constant 24 : index
    %c0_236 = arith.constant 0 : index
    %683 = vector.load %arg8[%c24, %c0_236] : memref<32x160xf32, #tpu.memory_space<vmem>>, vector<1x160xf32>
    %c3840 = arith.constant 3840 : index
    %c0_237 = arith.constant 0 : index
    %684 = vector.load %arg4[%c3840, %c0_237] : memref<5120x160xf32, #tpu.memory_space<vmem>>, vector<160x160xf32>
    %cst_238 = arith.constant dense<0.000000e+00> : vector<1x160xf32>
    %685 = tpu.matmul %683, %684, %cst_238 {dimension_numbers = #tpu.dot_dimension_numbers<[1], [0], [0], [1], [0, 0, 1, 1], [], []>} : vector<1x160xf32>, vector<160x160xf32>, vector<1x160xf32> -> vector<1x160xf32>
    %686 = arith.addf %682, %685 : vector<1x160xf32>
    %c25 = arith.constant 25 : index
    %c0_239 = arith.constant 0 : index
    %687 = vector.load %arg8[%c25, %c0_239] : memref<32x160xf32, #tpu.memory_space<vmem>>, vector<1x160xf32>
    %c4000 = arith.constant 4000 : index
    %c0_240 = arith.constant 0 : index
    %688 = vector.load %arg4[%c4000, %c0_240] : memref<5120x160xf32, #tpu.memory_space<vmem>>, vector<160x160xf32>
    %cst_241 = arith.constant dense<0.000000e+00> : vector<1x160xf32>
    %689 = tpu.matmul %687, %688, %cst_241 {dimension_numbers = #tpu.dot_dimension_numbers<[1], [0], [0], [1], [0, 0, 1, 1], [], []>} : vector<1x160xf32>, vector<160x160xf32>, vector<1x160xf32> -> vector<1x160xf32>
    %690 = arith.addf %686, %689 : vector<1x160xf32>
    %c26 = arith.constant 26 : index
    %c0_242 = arith.constant 0 : index
    %691 = vector.load %arg8[%c26, %c0_242] : memref<32x160xf32, #tpu.memory_space<vmem>>, vector<1x160xf32>
    %c4160 = arith.constant 4160 : index
    %c0_243 = arith.constant 0 : index
    %692 = vector.load %arg4[%c4160, %c0_243] : memref<5120x160xf32, #tpu.memory_space<vmem>>, vector<160x160xf32>
    %cst_244 = arith.constant dense<0.000000e+00> : vector<1x160xf32>
    %693 = tpu.matmul %691, %692, %cst_244 {dimension_numbers = #tpu.dot_dimension_numbers<[1], [0], [0], [1], [0, 0, 1, 1], [], []>} : vector<1x160xf32>, vector<160x160xf32>, vector<1x160xf32> -> vector<1x160xf32>
    %694 = arith.addf %690, %693 : vector<1x160xf32>
    %c27 = arith.constant 27 : index
    %c0_245 = arith.constant 0 : index
    %695 = vector.load %arg8[%c27, %c0_245] : memref<32x160xf32, #tpu.memory_space<vmem>>, vector<1x160xf32>
    %c4320 = arith.constant 4320 : index
    %c0_246 = arith.constant 0 : index
    %696 = vector.load %arg4[%c4320, %c0_246] : memref<5120x160xf32, #tpu.memory_space<vmem>>, vector<160x160xf32>
    %cst_247 = arith.constant dense<0.000000e+00> : vector<1x160xf32>
    %697 = tpu.matmul %695, %696, %cst_247 {dimension_numbers = #tpu.dot_dimension_numbers<[1], [0], [0], [1], [0, 0, 1, 1], [], []>} : vector<1x160xf32>, vector<160x160xf32>, vector<1x160xf32> -> vector<1x160xf32>
    %698 = arith.addf %694, %697 : vector<1x160xf32>
    %c28 = arith.constant 28 : index
    %c0_248 = arith.constant 0 : index
    %699 = vector.load %arg8[%c28, %c0_248] : memref<32x160xf32, #tpu.memory_space<vmem>>, vector<1x160xf32>
    %c4480 = arith.constant 4480 : index
    %c0_249 = arith.constant 0 : index
    %700 = vector.load %arg4[%c4480, %c0_249] : memref<5120x160xf32, #tpu.memory_space<vmem>>, vector<160x160xf32>
    %cst_250 = arith.constant dense<0.000000e+00> : vector<1x160xf32>
    %701 = tpu.matmul %699, %700, %cst_250 {dimension_numbers = #tpu.dot_dimension_numbers<[1], [0], [0], [1], [0, 0, 1, 1], [], []>} : vector<1x160xf32>, vector<160x160xf32>, vector<1x160xf32> -> vector<1x160xf32>
    %702 = arith.addf %698, %701 : vector<1x160xf32>
    %c29 = arith.constant 29 : index
    %c0_251 = arith.constant 0 : index
    %703 = vector.load %arg8[%c29, %c0_251] : memref<32x160xf32, #tpu.memory_space<vmem>>, vector<1x160xf32>
    %c4640 = arith.constant 4640 : index
    %c0_252 = arith.constant 0 : index
    %704 = vector.load %arg4[%c4640, %c0_252] : memref<5120x160xf32, #tpu.memory_space<vmem>>, vector<160x160xf32>
    %cst_253 = arith.constant dense<0.000000e+00> : vector<1x160xf32>
    %705 = tpu.matmul %703, %704, %cst_253 {dimension_numbers = #tpu.dot_dimension_numbers<[1], [0], [0], [1], [0, 0, 1, 1], [], []>} : vector<1x160xf32>, vector<160x160xf32>, vector<1x160xf32> -> vector<1x160xf32>
    %706 = arith.addf %702, %705 : vector<1x160xf32>
    %c30 = arith.constant 30 : index
    %c0_254 = arith.constant 0 : index
    %707 = vector.load %arg8[%c30, %c0_254] : memref<32x160xf32, #tpu.memory_space<vmem>>, vector<1x160xf32>
    %c4800 = arith.constant 4800 : index
    %c0_255 = arith.constant 0 : index
    %708 = vector.load %arg4[%c4800, %c0_255] : memref<5120x160xf32, #tpu.memory_space<vmem>>, vector<160x160xf32>
    %cst_256 = arith.constant dense<0.000000e+00> : vector<1x160xf32>
    %709 = tpu.matmul %707, %708, %cst_256 {dimension_numbers = #tpu.dot_dimension_numbers<[1], [0], [0], [1], [0, 0, 1, 1], [], []>} : vector<1x160xf32>, vector<160x160xf32>, vector<1x160xf32> -> vector<1x160xf32>
    %710 = arith.addf %706, %709 : vector<1x160xf32>
    %c31 = arith.constant 31 : index
    %c0_257 = arith.constant 0 : index
    %711 = vector.load %arg8[%c31, %c0_257] : memref<32x160xf32, #tpu.memory_space<vmem>>, vector<1x160xf32>
    %c4960 = arith.constant 4960 : index
    %c0_258 = arith.constant 0 : index
    %712 = vector.load %arg4[%c4960, %c0_258] : memref<5120x160xf32, #tpu.memory_space<vmem>>, vector<160x160xf32>
    %cst_259 = arith.constant dense<0.000000e+00> : vector<1x160xf32>
    %713 = tpu.matmul %711, %712, %cst_259 {dimension_numbers = #tpu.dot_dimension_numbers<[1], [0], [0], [1], [0, 0, 1, 1], [], []>} : vector<1x160xf32>, vector<160x160xf32>, vector<1x160xf32> -> vector<1x160xf32>
    %714 = arith.addf %710, %713 : vector<1x160xf32>
    %c0_260 = arith.constant 0 : index
    %c0_261 = arith.constant 0 : index
    %c0_262 = arith.constant 0 : index
    %715 = vector.load %arg6[%c0_260, %c0_261, %c0_262] : memref<1x1x160xf32, #tpu.memory_space<vmem>>, vector<1x1x160xf32>
    %716 = vector.shape_cast %715 : vector<1x1x160xf32> to vector<1x160xf32>
    %717 = vector.shape_cast %714 : vector<1x160xf32> to vector<1x1x160xf32>
    tpu.vector_store %arg6[%c0_260, %c0_261, %c0_262], %717 {strides = array<i32>} : memref<1x1x160xf32, #tpu.memory_space<vmem>>, vector<1x1x160xf32>,
    return
  }
  func.func @transform_0(%arg0: i32) -> (i32, i32, i32, i32) {
    %c0_i32 = arith.constant 0 : i32
    %c0_i32_0 = arith.constant 0 : i32
    %c0_i32_1 = arith.constant 0 : i32
    %c0_i32_2 = arith.constant 0 : i32
    return %arg0, %c0_i32, %c0_i32_0, %c0_i32_1 : i32, i32, i32, i32
  }
  func.func @transform_1(%arg0: i32) -> (i32, i32) {
    %c0_i32 = arith.constant 0 : i32
    %c0_i32_0 = arith.constant 0 : i32
    %c0_i32_1 = arith.constant 0 : i32
    return %c0_i32, %c0_i32_0 : i32, i32
  }
  func.func @transform_2(%arg0: i32) -> (i32, i32) {
    %c0_i32 = arith.constant 0 : i32
    %c0_i32_0 = arith.constant 0 : i32
    %c0_i32_1 = arith.constant 0 : i32
    return %c0_i32, %c0_i32_0 : i32, i32
  }
  func.func @transform_3(%arg0: i32) -> (i32, i32) {
    %c0_i32 = arith.constant 0 : i32
    %c0_i32_0 = arith.constant 0 : i32
    %c0_i32_1 = arith.constant 0 : i32
    return %c0_i32, %c0_i32_0 : i32, i32
  }
  func.func @transform_4(%arg0: i32) -> (i32, i32) {
    %c0_i32 = arith.constant 0 : i32
    %c0_i32_0 = arith.constant 0 : i32
    %c0_i32_1 = arith.constant 0 : i32
    return %c0_i32, %c0_i32_0 : i32, i32
  }
  func.func @transform_5(%arg0: i32) -> (i32, i32, i32) {
    %c0_i32 = arith.constant 0 : i32
    %c0_i32_0 = arith.constant 0 : i32
    %c0_i32_1 = arith.constant 0 : i32
    return %arg0, %c0_i32, %c0_i32_0 : i32, i32, i32
  }
}

</mosaic_0001>

<llo_original>
// kernel: xnet_forward.1
$region0: #{xnet_forward.1}
  #allocation0 [shape = 'u32[]', space=smem, size = 0x4, offset = 0x4, fixed_abs, tag = 'smem constant byte address 0x4 - core index']
  #allocation1 [shape = 'u32[144,128]{1,0:T(1,128)}', space=vmem, size = 0x12000, scoped, tag = 'internal scratch']
  #allocation2 [shape = 'f32[8,416]{1,0:T(8,128)}', space=vmem, size = 0x4000, scoped, tag = 'scratch operand']
  #allocation3 [shape = 'f32[32,160]{1,0:T(8,128)}', space=vmem, size = 0x8000, scoped, tag = 'scratch operand']
  %s0 = inlined_call_operand.vmem [shape: f32[2,1,8,160], index: 0, kind: input, shape index: {}]
  %s1 = inlined_call_operand.vmem [shape: f32[32,9], index: 1, kind: input, shape index: {}]
  %s2 = inlined_call_operand.vmem [shape: f32[32,1], index: 2, kind: input, shape index: {}]
  %s3 = inlined_call_operand.vmem [shape: f32[5120,160], index: 3, kind: input, shape index: {}]
  %s4 = inlined_call_operand.vmem [shape: f32[1,160], index: 4, kind: input, shape index: {}]
  %s5 = inlined_call_operand.vmem [shape: f32[2,1,160], index: 5, kind: output, shape index: {}]
  %s6 = sld [smem:[#allocation0]]
  $region53: #{xnet_forward.1} parent=0
    _
  %s8 = ssub.s32 1, %s6
  %s9 = scalar_select 0, %s8, %s6
  loop: start=0, step=1, limit=4
  $region2: #{xnet_forward.1} parent=0 // loop_pre_header
    _
  $region3: #{xnet_forward.1} parent=0 // loop_header
    %s11 = sphi 0, %s15
    %p12 = scmp.ge.s32.totalorder %s11, 4
    %s21 = sphi 0, %s23
    %s24 = sphi 0, %s21
    %s25 = sphi 0, %s24
    %s41 = sphi 0, %s25
    %s45 = sphi 0, %s45
    %s47 = sphi 0, %s45
    %s48 = sphi 0, %s47
    %s62 = sphi 0, %s48
    %s66 = sphi 0, %s66
    %s68 = sphi 0, %s66
    %s69 = sphi 0, %s68
    %s83 = sphi 0, %s69
    %s87 = sphi 0, %s87
    %s89 = sphi 0, %s87
    %s90 = sphi 0, %s89
    %s104 = sphi 0, %s90
    %s108 = sphi 0, %s108
    %s110 = sphi 0, %s108
    %s111 = sphi 0, %s110
    %s125 = sphi 0, %s111
    %s131 = sphi 0, %s133
    %s134 = sphi 0, %s131
    %s135 = sphi 0, %s134
    %s151 = sphi 0, %s135
  $region4: #{xnet_forward.1} parent=0 // loop_header_branch
    %14 = sbr.rel (%p12) target = $region8
  $region5: #{xnet_forward.1} parent=0 // loop_body
    %s16 = ssub.s32 %s11, 1
    %s17 = ssub.s32 %s11, 2
    %s18 = sadd.s32 %s11, 1
    %s19 = ssub.s32 %s11, %s18
    %p20 = scmp.eq.s32.totalorder %s19, 0
    %s22 = sadd.s32 %s21, 1
    %s23 = scalar_select %p20, %s21, %s22
    %p26 = pneg %p20
    %p27 = scmp.eq.s32.totalorder %s11, 1
    %p28 = por %p26, %p27
    %p29 = scmp.ne.s32.totalorder %s21, %s24
    %p30 = scmp.eq.s32.totalorder %s11, 0
    %p31 = por %p29, %p30
    %p32 = scmp.ne.s32.totalorder %s21, %s24
    %p33 = scmp.eq.s32.totalorder %s16, 1
    %p34 = por %p32, %p33
    %p35 = scmp.ne.s32.totalorder %s24, %s25
    %p36 = scmp.eq.s32.totalorder %s16, 0
    %p37 = por %p35, %p36
    %p38 = scmp.ne.s32.totalorder %s24, %s25
    %p39 = scmp.eq.s32.totalorder %s17, 1
    %p40 = por %p38, %p39
    %p42 = scmp.ne.s32.totalorder %s25, %s41
    %p43 = scmp.eq.s32.totalorder %s17, 0
    %p44 = por %p42, %p43
    %s46 = sadd.s32 %s45, 1
    %p49 = scmp.eq.s32.totalorder %s11, 1
    %p50 = scmp.ne.s32.totalorder %s45, %s47
    %p51 = scmp.eq.s32.totalorder %s11, 0
    %p52 = por %p50, %p51
    %p53 = scmp.ne.s32.totalorder %s45, %s47
    %p54 = scmp.eq.s32.totalorder %s16, 1
    %p55 = por %p53, %p54
    %p56 = scmp.ne.s32.totalorder %s47, %s48
    %p57 = scmp.eq.s32.totalorder %s16, 0
    %p58 = por %p56, %p57
    %p59 = scmp.ne.s32.totalorder %s47, %s48
    %p60 = scmp.eq.s32.totalorder %s17, 1
    %p61 = por %p59, %p60
    %p63 = scmp.ne.s32.totalorder %s48, %s62
    %p64 = scmp.eq.s32.totalorder %s17, 0
    %p65 = por %p63, %p64
    %s67 = sadd.s32 %s66, 1
    %p70 = scmp.eq.s32.totalorder %s11, 1
    %p71 = scmp.ne.s32.totalorder %s66, %s68
    %p72 = scmp.eq.s32.totalorder %s11, 0
    %p73 = por %p71, %p72
    %p74 = scmp.ne.s32.totalorder %s66, %s68
    %p75 = scmp.eq.s32.totalorder %s16, 1
    %p76 = por %p74, %p75
    %p77 = scmp.ne.s32.totalorder %s68, %s69
    %p78 = scmp.eq.s32.totalorder %s16, 0
    %p79 = por %p77, %p78
    %p80 = scmp.ne.s32.totalorder %s68, %s69
    %p81 = scmp.eq.s32.totalorder %s17, 1
    %p82 = por %p80, %p81
    %p84 = scmp.ne.s32.totalorder %s69, %s83
    %p85 = scmp.eq.s32.totalorder %s17, 0
    %p86 = por %p84, %p85
    %s88 = sadd.s32 %s87, 1
    %p91 = scmp.eq.s32.totalorder %s11, 1
    %p92 = scmp.ne.s32.totalorder %s87, %s89
    %p93 = scmp.eq.s32.totalorder %s11, 0
    %p94 = por %p92, %p93
    %p95 = scmp.ne.s32.totalorder %s87, %s89
    %p96 = scmp.eq.s32.totalorder %s16, 1
    %p97 = por %p95, %p96
    %p98 = scmp.ne.s32.totalorder %s89, %s90
    %p99 = scmp.eq.s32.totalorder %s16, 0
    %p100 = por %p98, %p99
    %p101 = scmp.ne.s32.totalorder %s89, %s90
    %p102 = scmp.eq.s32.totalorder %s17, 1
    %p103 = por %p101, %p102
    %p105 = scmp.ne.s32.totalorder %s90, %s104
    %p106 = scmp.eq.s32.totalorder %s17, 0
    %p107 = por %p105, %p106
    %s109 = sadd.s32 %s108, 1
    %p112 = scmp.eq.s32.totalorder %s11, 1
    %p113 = scmp.ne.s32.totalorder %s108, %s110
    %p114 = scmp.eq.s32.totalorder %s11, 0
    %p115 = por %p113, %p114
    %p116 = scmp.ne.s32.totalorder %s108, %s110
    %p117 = scmp.eq.s32.totalorder %s16, 1
    %p118 = por %p116, %p117
    %p119 = scmp.ne.s32.totalorder %s110, %s111
    %p120 = scmp.eq.s32.totalorder %s16, 0
    %p121 = por %p119, %p120
    %p122 = scmp.ne.s32.totalorder %s110, %s111
    %p123 = scmp.eq.s32.totalorder %s17, 1
    %p124 = por %p122, %p123
    %p126 = scmp.ne.s32.totalorder %s111, %s125
    %p127 = scmp.eq.s32.totalorder %s17, 0
    %p128 = por %p126, %p127
    %s129 = ssub.s32 %s11, %s18
    %p130 = scmp.eq.s32.totalorder %s129, 0
    %s132 = sadd.s32 %s131, 1
    %s133 = scalar_select %p130, %s131, %s132
    %p136 = pneg %p130
    %p137 = scmp.eq.s32.totalorder %s11, 1
    %p138 = por %p136, %p137
    %p139 = scmp.ne.s32.totalorder %s131, %s134
    %p140 = scmp.eq.s32.totalorder %s11, 0
    %p141 = por %p139, %p140
    %p142 = scmp.ne.s32.totalorder %s131, %s134
    %p143 = scmp.eq.s32.totalorder %s16, 1
    %p144 = por %p142, %p143
    %p145 = scmp.ne.s32.totalorder %s134, %s135
    %p146 = scmp.eq.s32.totalorder %s16, 0
    %p147 = por %p145, %p146
    %p148 = scmp.ne.s32.totalorder %s134, %s135
    %p149 = scmp.eq.s32.totalorder %s17, 1
    %p150 = por %p148, %p149
    %p152 = scmp.ne.s32.totalorder %s135, %s151
    %p153 = scmp.eq.s32.totalorder %s17, 0
    %p154 = por %p152, %p153
    %p155 = scmp.le.s32.totalorder 1, %s11
    %p156 = scmp.lt.s32.totalorder %s11, 3
    %p157 = pnand %p155, %p156
    %p158 = pneg %p157
    // Predicated region
    $region9: #{xnet_forward.1} parent=5 // pred_check
      _
    $region10: #{xnet_forward.1} parent=5 // pred_check_branch
      %160 = sbr.rel (%p157) target = $region12
    $region11: #{xnet_forward.1} parent=5 // pred_region
      %s161 = ssub.s32 %s11, 1
      // Predicated region
      $region13: #{xnet_forward.1} parent=11 // pred_check
        %p162 = pneg %p58
      $region14: #{xnet_forward.1} parent=11 // pred_check_branch
        %164 = sbr.rel (%p162) target = $region16
      $region15: #{xnet_forward.1} parent=11 // pred_region
        _
      $region16: #{xnet_forward.1} parent=11 // pred_fallthru
        _
      // Predicated region
      $region17: #{xnet_forward.1} parent=11 // pred_check
        %p165 = pneg %p79
      $region18: #{xnet_forward.1} parent=11 // pred_check_branch
        %167 = sbr.rel (%p165) target = $region20
      $region19: #{xnet_forward.1} parent=11 // pred_region
        _
      $region20: #{xnet_forward.1} parent=11 // pred_fallthru
        _
      // Predicated region
      $region21: #{xnet_forward.1} parent=11 // pred_check
        %p168 = pneg %p100
      $region22: #{xnet_forward.1} parent=11 // pred_check_branch
        %170 = sbr.rel (%p168) target = $region24
      $region23: #{xnet_forward.1} parent=11 // pred_region
        _
      $region24: #{xnet_forward.1} parent=11 // pred_fallthru
        _
      // Predicated region
      $region25: #{xnet_forward.1} parent=11 // pred_check
        %p171 = pneg %p121
      $region26: #{xnet_forward.1} parent=11 // pred_check_branch
        %173 = sbr.rel (%p171) target = $region28
      $region27: #{xnet_forward.1} parent=11 // pred_region
        _
      $region28: #{xnet_forward.1} parent=11 // pred_fallthru
        _
    $region12: #{xnet_forward.1} parent=5 // pred_fallthru
      _
    %p174 = scmp.lt.s32.totalorder %s11, 2
    // Predicated region
    $region29: #{xnet_forward.1} parent=5 // pred_check
      %p175 = pneg %p174
    $region30: #{xnet_forward.1} parent=5 // pred_check_branch
      %177 = sbr.rel (%p175) target = $region32
    $region31: #{xnet_forward.1} parent=5 // pred_region
      // Predicated region
      $region33: #{xnet_forward.1} parent=31 // pred_check
        %p178 = pneg %p31
      $region34: #{xnet_forward.1} parent=31 // pred_check_branch
        %180 = sbr.rel (%p178) target = $region36
      $region35: #{xnet_forward.1} parent=31 // pred_region
        %p181 = scmp.lt.s32.totalorder %s11, 1
        %s182 = scalar_select %p181, %s11, 1
        %s183 = smul.addr %s182, 2
        %s184 = smul.addr %s183, 8
        %s185 = scalar_lea.vmem %s0, %s184
      $region36: #{xnet_forward.1} parent=31 // pred_fallthru
        _
    $region32: #{xnet_forward.1} parent=5 // pred_fallthru
      _
    %p186 = scmp.le.s32.totalorder 1, %s11
    %p187 = scmp.lt.s32.totalorder %s11, 3
    %p188 = pnand %p186, %p187
    %p189 = pneg %p188
    // Predicated region
    $region37: #{xnet_forward.1} parent=5 // pred_check
      _
    $region38: #{xnet_forward.1} parent=5 // pred_check_branch
      %191 = sbr.rel (%p188) target = $region40
    $region39: #{xnet_forward.1} parent=5 // pred_region
      %s192 = ssub.s32 %s11, 1
      %p193 = scmp.lt.s32.totalorder %s16, 1
      %s194 = scalar_select %p193, %s16, 1
      %s195 = smul.addr %s194, 2
      %s196 = smul.addr %s195, 8
      %s197 = scalar_lea.vmem %s0, %s196
      %p198 = pneg %p37
      %p199 = pneg %p34
      %p200 = pneg %p58
      %p201 = pneg %p55
      %p202 = pneg %p79
      %p203 = pneg %p76
      %p204 = pneg %p100
      %p205 = pneg %p97
      %p206 = pneg %p121
      %p207 = pneg %p118
      %p208 = pneg %p147
      %p209 = pneg %p144
      %p210 = scmp.lt.s32.totalorder %s16, 1
      %s211 = scalar_select %p210, %s16, 1
      %s212 = smul.addr %s211, 2
      %s213 = scalar_lea.vmem %s5, %s212
      %p214 = scmp.lt.s32.totalorder %s16, 1
      %s215 = scalar_select %p214, %s16, 1
      %s216 = smul.addr %s215, 2
      %s217 = smul.addr %s216, 8
      %s218 = scalar_lea.vmem %s0, %s217
      %p219 = scmp.lt.s32.totalorder %s16, 1
      %s220 = scalar_select %p219, %s16, 1
      %s221 = smul.addr %s220, 2
      %s222 = scalar_lea.vmem %s5, %s221
      %223 = vst [vmem:[#allocation2] sm:$0xff] 0.0
      %224 = vst [vmem:[#allocation2 + $0x8] sm:$0xff] 0.0
      %225 = vst [vmem:[#allocation2 + $0x10] sm:$0xff] 0.0
      %vm226 = vcmask 261120
      %227 = vst.msk [vmem:[#allocation2 + $0x18] sm:$0xff] %vm226, 0.0
      %v228 = vld [vmem:[%s218] sm:$0xff]
      %v229 = vld [vmem:[%s218 + $0x8] sm:$0xff]
      %230 = vst [vmem:[#allocation2 + $0x8] sm:$0xff] %v228
      %231 = vst.msk [vmem:[#allocation2 + $0x10] sm:$0xff] %vm226, %v229
      %v232 = vld [vmem:[#allocation2] sm:$0xff]
      %v233 = vld [vmem:[#allocation2 + $0x8] sm:$0xff]
      %v234 = vld [vmem:[#allocation2 + $0x10] sm:$0xff]
      %v235 = vld [vmem:[%s2] sm:$0xff]
      %v236 = vld [vmem:[%s2 + $0x8] sm:$0xff]
      %v237 = vld [vmem:[%s2 + $0x10] sm:$0xff]
      %v238 = vld [vmem:[%s2 + $0x18] sm:$0xff]
      %v239 = vld [vmem:[%s1] sm:$0xff]
      %v240 = vld [vmem:[%s1 + $0x8] sm:$0xff]
      %v241 = vld [vmem:[%s1 + $0x10] sm:$0xff]
      %v242 = vld [vmem:[%s1 + $0x18] sm:$0xff]
      %244 = vset.pattern.permute.xlu0 3
      %245 = vperm.xlu0 %244, %v239
      %v246 = vpop.permute.xlu0 %245
      %249 = vset.pattern.permute.xlu0 3
      %250 = vperm.xlu0 %249, %v240
      %v251 = vpop.permute.xlu0 %250
      %254 = vset.pattern.permute.xlu0 3
      %255 = vperm.xlu0 %254, %v241
      %v256 = vpop.permute.xlu0 %255
      %259 = vset.pattern.permute.xlu0 3
      %260 = vperm.xlu0 %259, %v242
      %v261 = vpop.permute.xlu0 %260
      %v263 = vlaneseq
      %v264 = vshrl.u32 %v263, 7
      %v265 = vsub.s32 0, %v264
      %v266 = vrot.slane %v232, %v265
      %v267 = vlaneseq
      %v268 = vshrl.u32 %v267, 7
      %v269 = vsub.s32 0, %v268
      %v270 = vrot.slane %v233, %v269
      %v271 = vlaneseq
      %v272 = vshrl.u32 %v271, 7
      %v273 = vsub.s32 0, %v272
      %v274 = vrot.slane %v234, %v273
      %v275 = vmul.f32 %v246, %v266
      %v276 = vmul.f32 %v246, %v270
      %v277 = vmul.f32 %v246, %v274
      %v278 = vmul.f32 %v251, %v266
      %v279 = vmul.f32 %v251, %v270
      %v280 = vmul.f32 %v251, %v274
      %v281 = vmul.f32 %v256, %v266
      %v282 = vmul.f32 %v256, %v270
      %v283 = vmul.f32 %v256, %v274
      %v284 = vmul.f32 %v261, %v266
      %v285 = vmul.f32 %v261, %v270
      %v286 = vmul.f32 %v261, %v274
      %v287 = vadd.f32 %v275, 0.0
      %v288 = vadd.f32 %v276, 0.0
      %v289 = vadd.f32 %v277, 0.0
      %v290 = vadd.f32 %v278, 0.0
      %v291 = vadd.f32 %v279, 0.0
      %v292 = vadd.f32 %v280, 0.0
      %v293 = vadd.f32 %v281, 0.0
      %v294 = vadd.f32 %v282, 0.0
      %v295 = vadd.f32 %v283, 0.0
      %v296 = vadd.f32 %v284, 0.0
      %v297 = vadd.f32 %v285, 0.0
      %v298 = vadd.f32 %v286, 0.0
      %299 = vset.pattern.permute.xlu0 4
      %300 = vperm.xlu0 %299, %v239
      %v301 = vpop.permute.xlu0 %300
      %303 = vset.pattern.permute.xlu0 4
      %304 = vperm.xlu0 %303, %v240
      %v305 = vpop.permute.xlu0 %304
      %307 = vset.pattern.permute.xlu0 4
      %308 = vperm.xlu0 %307, %v241
      %v309 = vpop.permute.xlu0 %308
      %311 = vset.pattern.permute.xlu0 4
      %312 = vperm.xlu0 %311, %v242
      %v313 = vpop.permute.xlu0 %312
      %v315 = vmul.f32 %v301, %v270
      %v316 = vmul.f32 %v301, %v274
      %v317 = vmul.f32 %v305, %v270
      %v318 = vmul.f32 %v305, %v274
      %v319 = vmul.f32 %v309, %v270
      %v320 = vmul.f32 %v309, %v274
      %v321 = vmul.f32 %v313, %v270
      %v322 = vmul.f32 %v313, %v274
      %331 = vrot.lane.b32.xlu0 %v315, 127
      %v332 = vpop.permute.xlu0 %331
      %333 = vrot.lane.b32.xlu0 %v316, 127
      %v334 = vpop.permute.xlu0 %333
      %335 = vrot.lane.b32.xlu0 %v317, 127
      %v336 = vpop.permute.xlu0 %335
      %337 = vrot.lane.b32.xlu0 %v318, 127
      %v338 = vpop.permute.xlu0 %337
      %339 = vrot.lane.b32.xlu0 %v319, 127
      %v340 = vpop.permute.xlu0 %339
      %341 = vrot.lane.b32.xlu0 %v320, 127
      %v342 = vpop.permute.xlu0 %341
      %343 = vrot.lane.b32.xlu0 %v321, 127
      %v344 = vpop.permute.xlu0 %343
      %345 = vrot.lane.b32.xlu0 %v322, 127
      %v346 = vpop.permute.xlu0 %345
      %vm347 = vcmask 1039360
      %v348 = vsel %vm347, %v332, %v334
      %v349 = vsel %vm347, %v336, %v338
      %v350 = vsel %vm347, %v340, %v342
      %v351 = vsel %vm347, %v344, %v346
      %v364 = vadd.f32 %v287, %v332
      %v365 = vadd.f32 %v288, %v348
      %v366 = vadd.f32 %v289, %v334
      %v367 = vadd.f32 %v290, %v336
      %v368 = vadd.f32 %v291, %v349
      %v369 = vadd.f32 %v292, %v338
      %v370 = vadd.f32 %v293, %v340
      %v371 = vadd.f32 %v294, %v350
      %v372 = vadd.f32 %v295, %v342
      %v373 = vadd.f32 %v296, %v344
      %v374 = vadd.f32 %v297, %v351
      %v375 = vadd.f32 %v298, %v346
      %376 = vset.pattern.permute.xlu0 5
      %377 = vperm.xlu0 %376, %v239
      %v378 = vpop.permute.xlu0 %377
      %380 = vset.pattern.permute.xlu0 5
      %381 = vperm.xlu0 %380, %v240
      %v382 = vpop.permute.xlu0 %381
      %384 = vset.pattern.permute.xlu0 5
      %385 = vperm.xlu0 %384, %v241
      %v386 = vpop.permute.xlu0 %385
      %388 = vset.pattern.permute.xlu0 5
      %389 = vperm.xlu0 %388, %v242
      %v390 = vpop.permute.xlu0 %389
      %v392 = vmul.f32 %v378, %v270
      %v393 = vmul.f32 %v378, %v274
      %v394 = vmul.f32 %v382, %v270
      %v395 = vmul.f32 %v382, %v274
      %v396 = vmul.f32 %v386, %v270
      %v397 = vmul.f32 %v386, %v274
      %v398 = vmul.f32 %v390, %v270
      %v399 = vmul.f32 %v390, %v274
      %408 = vrot.lane.b32.xlu0 %v392, 126
      %v409 = vpop.permute.xlu0 %408
      %410 = vrot.lane.b32.xlu0 %v393, 126
      %v411 = vpop.permute.xlu0 %410
      %412 = vrot.lane.b32.xlu0 %v394, 126
      %v413 = vpop.permute.xlu0 %412
      %414 = vrot.lane.b32.xlu0 %v395, 126
      %v415 = vpop.permute.xlu0 %414
      %416 = vrot.lane.b32.xlu0 %v396, 126
      %v417 = vpop.permute.xlu0 %416
      %418 = vrot.lane.b32.xlu0 %v397, 126
      %v419 = vpop.permute.xlu0 %418
      %420 = vrot.lane.b32.xlu0 %v398, 126
      %v421 = vpop.permute.xlu0 %420
      %422 = vrot.lane.b32.xlu0 %v399, 126
      %v423 = vpop.permute.xlu0 %422
      %vm424 = vcmask 1031168
      %v425 = vsel %vm424, %v409, %v411
      %v426 = vsel %vm424, %v413, %v415
      %v427 = vsel %vm424, %v417, %v419
      %v428 = vsel %vm424, %v421, %v423
      %v441 = vadd.f32 %v364, %v409
      %v442 = vadd.f32 %v365, %v425
      %v443 = vadd.f32 %v366, %v411
      %v444 = vadd.f32 %v367, %v413
      %v445 = vadd.f32 %v368, %v426
      %v446 = vadd.f32 %v369, %v415
      %v447 = vadd.f32 %v370, %v417
      %v448 = vadd.f32 %v371, %v427
      %v449 = vadd.f32 %v372, %v419
      %v450 = vadd.f32 %v373, %v421
      %v451 = vadd.f32 %v374, %v428
      %v452 = vadd.f32 %v375, %v423
      %453 = vset.pattern.permute.xlu0 6
      %454 = vperm.xlu0 %453, %v239
      %v455 = vpop.permute.xlu0 %454
      %457 = vset.pattern.permute.xlu0 6
      %458 = vperm.xlu0 %457, %v240
      %v459 = vpop.permute.xlu0 %458
      %461 = vset.pattern.permute.xlu0 6
      %462 = vperm.xlu0 %461, %v241
      %v463 = vpop.permute.xlu0 %462
      %465 = vset.pattern.permute.xlu0 6
      %466 = vperm.xlu0 %465, %v242
      %v467 = vpop.permute.xlu0 %466
      %v469 = vlaneseq
      %v470 = vshrl.u32 %v469, 7
      %v471 = vsub.s32 1, %v470
      %v472 = vrot.slane %v232, %v471
      %v473 = vlaneseq
      %v474 = vshrl.u32 %v473, 7
      %v475 = vsub.s32 1, %v474
      %v476 = vrot.slane %v233, %v475
      %v477 = vlaneseq
      %v478 = vshrl.u32 %v477, 7
      %v479 = vsub.s32 1, %v478
      %v480 = vrot.slane %v234, %v479
      %v481 = vmul.f32 %v455, %v472
      %v482 = vmul.f32 %v455, %v476
      %v483 = vmul.f32 %v455, %v480
      %v484 = vmul.f32 %v459, %v472
      %v485 = vmul.f32 %v459, %v476
      %v486 = vmul.f32 %v459, %v480
      %v487 = vmul.f32 %v463, %v472
      %v488 = vmul.f32 %v463, %v476
      %v489 = vmul.f32 %v463, %v480
      %v490 = vmul.f32 %v467, %v472
      %v491 = vmul.f32 %v467, %v476
      %v492 = vmul.f32 %v467, %v480
      %v493 = vadd.f32 %v441, %v481
      %v494 = vadd.f32 %v442, %v482
      %v495 = vadd.f32 %v443, %v483
      %v496 = vadd.f32 %v444, %v484
      %v497 = vadd.f32 %v445, %v485
      %v498 = vadd.f32 %v446, %v486
      %v499 = vadd.f32 %v447, %v487
      %v500 = vadd.f32 %v448, %v488
      %v501 = vadd.f32 %v449, %v489
      %v502 = vadd.f32 %v450, %v490
      %v503 = vadd.f32 %v451, %v491
      %v504 = vadd.f32 %v452, %v492
      %505 = vset.pattern.permute.xlu0 7
      %506 = vperm.xlu0 %505, %v239
      %v507 = vpop.permute.xlu0 %506
      %509 = vset.pattern.permute.xlu0 7
      %510 = vperm.xlu0 %509, %v240
      %v511 = vpop.permute.xlu0 %510
      %513 = vset.pattern.permute.xlu0 7
      %514 = vperm.xlu0 %513, %v241
      %v515 = vpop.permute.xlu0 %514
      %517 = vset.pattern.permute.xlu0 7
      %518 = vperm.xlu0 %517, %v242
      %v519 = vpop.permute.xlu0 %518
      %v521 = vmul.f32 %v507, %v476
      %v522 = vmul.f32 %v507, %v480
      %v523 = vmul.f32 %v511, %v476
      %v524 = vmul.f32 %v511, %v480
      %v525 = vmul.f32 %v515, %v476
      %v526 = vmul.f32 %v515, %v480
      %v527 = vmul.f32 %v519, %v476
      %v528 = vmul.f32 %v519, %v480
      %537 = vrot.lane.b32.xlu0 %v521, 127
      %v538 = vpop.permute.xlu0 %537
      %539 = vrot.lane.b32.xlu0 %v522, 127
      %v540 = vpop.permute.xlu0 %539
      %541 = vrot.lane.b32.xlu0 %v523, 127
      %v542 = vpop.permute.xlu0 %541
      %543 = vrot.lane.b32.xlu0 %v524, 127
      %v544 = vpop.permute.xlu0 %543
      %545 = vrot.lane.b32.xlu0 %v525, 127
      %v546 = vpop.permute.xlu0 %545
      %547 = vrot.lane.b32.xlu0 %v526, 127
      %v548 = vpop.permute.xlu0 %547
      %549 = vrot.lane.b32.xlu0 %v527, 127
      %v550 = vpop.permute.xlu0 %549
      %551 = vrot.lane.b32.xlu0 %v528, 127
      %v552 = vpop.permute.xlu0 %551
      %v553 = vsel %vm347, %v538, %v540
      %v554 = vsel %vm347, %v542, %v544
      %v555 = vsel %vm347, %v546, %v548
      %v556 = vsel %vm347, %v550, %v552
      %v569 = vadd.f32 %v493, %v538
      %v570 = vadd.f32 %v494, %v553
      %v571 = vadd.f32 %v495, %v540
      %v572 = vadd.f32 %v496, %v542
      %v573 = vadd.f32 %v497, %v554
      %v574 = vadd.f32 %v498, %v544
      %v575 = vadd.f32 %v499, %v546
      %v576 = vadd.f32 %v500, %v555
      %v577 = vadd.f32 %v501, %v548
      %v578 = vadd.f32 %v502, %v550
      %v579 = vadd.f32 %v503, %v556
      %v580 = vadd.f32 %v504, %v552
      %581 = vset.pattern.permute.xlu0 8
      %582 = vperm.xlu0 %581, %v239
      %v583 = vpop.permute.xlu0 %582
      %585 = vset.pattern.permute.xlu0 8
      %586 = vperm.xlu0 %585, %v240
      %v587 = vpop.permute.xlu0 %586
      %589 = vset.pattern.permute.xlu0 8
      %590 = vperm.xlu0 %589, %v241
      %v591 = vpop.permute.xlu0 %590
      %593 = vset.pattern.permute.xlu0 8
      %594 = vperm.xlu0 %593, %v242
      %v595 = vpop.permute.xlu0 %594
      %v597 = vmul.f32 %v583, %v476
      %v598 = vmul.f32 %v583, %v480
      %v599 = vmul.f32 %v587, %v476
      %v600 = vmul.f32 %v587, %v480
      %v601 = vmul.f32 %v591, %v476
      %v602 = vmul.f32 %v591, %v480
      %v603 = vmul.f32 %v595, %v476
      %v604 = vmul.f32 %v595, %v480
      %613 = vrot.lane.b32.xlu0 %v597, 126
      %v614 = vpop.permute.xlu0 %613
      %615 = vrot.lane.b32.xlu0 %v598, 126
      %v616 = vpop.permute.xlu0 %615
      %617 = vrot.lane.b32.xlu0 %v599, 126
      %v618 = vpop.permute.xlu0 %617
      %619 = vrot.lane.b32.xlu0 %v600, 126
      %v620 = vpop.permute.xlu0 %619
      %621 = vrot.lane.b32.xlu0 %v601, 126
      %v622 = vpop.permute.xlu0 %621
      %623 = vrot.lane.b32.xlu0 %v602, 126
      %v624 = vpop.permute.xlu0 %623
      %625 = vrot.lane.b32.xlu0 %v603, 126
      %v626 = vpop.permute.xlu0 %625
      %627 = vrot.lane.b32.xlu0 %v604, 126
      %v628 = vpop.permute.xlu0 %627
      %v629 = vsel %vm424, %v614, %v616
      %v630 = vsel %vm424, %v618, %v620
      %v631 = vsel %vm424, %v622, %v624
      %v632 = vsel %vm424, %v626, %v628
      %v645 = vadd.f32 %v569, %v614
      %v646 = vadd.f32 %v570, %v629
      %v647 = vadd.f32 %v571, %v616
      %v648 = vadd.f32 %v572, %v618
      %v649 = vadd.f32 %v573, %v630
      %v650 = vadd.f32 %v574, %v620
      %v651 = vadd.f32 %v575, %v622
      %v652 = vadd.f32 %v576, %v631
      %v653 = vadd.f32 %v577, %v624
      %v654 = vadd.f32 %v578, %v626
      %v655 = vadd.f32 %v579, %v632
      %v656 = vadd.f32 %v580, %v628
      %658 = vset.pattern.permute.xlu0 0
      %659 = vperm.xlu0 %658, %v235
      %v660 = vpop.permute.xlu0 %659
      %663 = vset.pattern.permute.xlu0 0
      %664 = vperm.xlu0 %663, %v236
      %v665 = vpop.permute.xlu0 %664
      %668 = vset.pattern.permute.xlu0 0
      %669 = vperm.xlu0 %668, %v237
      %v670 = vpop.permute.xlu0 %669
      %673 = vset.pattern.permute.xlu0 0
      %674 = vperm.xlu0 %673, %v238
      %v675 = vpop.permute.xlu0 %674
      %v677 = vadd.f32 %v645, %v660
      %v678 = vadd.f32 %v646, %v660
      %v679 = vadd.f32 %v647, %v660
      %v680 = vadd.f32 %v648, %v665
      %v681 = vadd.f32 %v649, %v665
      %v682 = vadd.f32 %v650, %v665
      %v683 = vadd.f32 %v651, %v670
      %v684 = vadd.f32 %v652, %v670
      %v685 = vadd.f32 %v653, %v670
      %v686 = vadd.f32 %v654, %v675
      %v687 = vadd.f32 %v655, %v675
      %v688 = vadd.f32 %v656, %v675
      %v689 = vmax.f32 %v677, 0.0
      %v690 = vmax.f32 %v678, 0.0
      %v691 = vmax.f32 %v679, 0.0
      %v692 = vmax.f32 %v680, 0.0
      %v693 = vmax.f32 %v681, 0.0
      %v694 = vmax.f32 %v682, 0.0
      %v695 = vmax.f32 %v683, 0.0
      %v696 = vmax.f32 %v684, 0.0
      %v697 = vmax.f32 %v685, 0.0
      %v698 = vmax.f32 %v686, 0.0
      %v699 = vmax.f32 %v687, 0.0
      %v700 = vmax.f32 %v688, 0.0
      %701 = vset.pattern.permute.xlu0 0
      %702 = vperm.xlu0 %701, %v239
      %v703 = vpop.permute.xlu0 %702
      %705 = vset.pattern.permute.xlu0 0
      %706 = vperm.xlu0 %705, %v240
      %v707 = vpop.permute.xlu0 %706
      %709 = vset.pattern.permute.xlu0 0
      %710 = vperm.xlu0 %709, %v241
      %v711 = vpop.permute.xlu0 %710
      %713 = vset.pattern.permute.xlu0 0
      %714 = vperm.xlu0 %713, %v242
      %v715 = vpop.permute.xlu0 %714
      %v717 = vmul.f32 %v703, %v266
      %v718 = vmul.f32 %v703, %v270
      %v719 = vmul.f32 %v703, %v274
      %v720 = vmul.f32 %v707, %v266
      %v721 = vmul.f32 %v707, %v270
      %v722 = vmul.f32 %v707, %v274
      %v723 = vmul.f32 %v711, %v266
      %v724 = vmul.f32 %v711, %v270
      %v725 = vmul.f32 %v711, %v274
      %v726 = vmul.f32 %v715, %v266
      %v727 = vmul.f32 %v715, %v270
      %v728 = vmul.f32 %v715, %v274
      %v729 = vadd.f32 %v717, 0.0
      %v730 = vadd.f32 %v718, 0.0
      %v731 = vadd.f32 %v719, 0.0
      %v732 = vadd.f32 %v720, 0.0
      %v733 = vadd.f32 %v721, 0.0
      %v734 = vadd.f32 %v722, 0.0
      %v735 = vadd.f32 %v723, 0.0
      %v736 = vadd.f32 %v724, 0.0
      %v737 = vadd.f32 %v725, 0.0
      %v738 = vadd.f32 %v726, 0.0
      %v739 = vadd.f32 %v727, 0.0
      %v740 = vadd.f32 %v728, 0.0
      %741 = vset.pattern.permute.xlu0 1
      %742 = vperm.xlu0 %741, %v239
      %v743 = vpop.permute.xlu0 %742
      %745 = vset.pattern.permute.xlu0 1
      %746 = vperm.xlu0 %745, %v240
      %v747 = vpop.permute.xlu0 %746
      %749 = vset.pattern.permute.xlu0 1
      %750 = vperm.xlu0 %749, %v241
      %v751 = vpop.permute.xlu0 %750
      %753 = vset.pattern.permute.xlu0 1
      %754 = vperm.xlu0 %753, %v242
      %v755 = vpop.permute.xlu0 %754
      %v757 = vmul.f32 %v743, %v270
      %v758 = vmul.f32 %v743, %v274
      %v759 = vmul.f32 %v747, %v270
      %v760 = vmul.f32 %v747, %v274
      %v761 = vmul.f32 %v751, %v270
      %v762 = vmul.f32 %v751, %v274
      %v763 = vmul.f32 %v755, %v270
      %v764 = vmul.f32 %v755, %v274
      %773 = vrot.lane.b32.xlu0 %v757, 127
      %v774 = vpop.permute.xlu0 %773
      %775 = vrot.lane.b32.xlu0 %v758, 127
      %v776 = vpop.permute.xlu0 %775
      %777 = vrot.lane.b32.xlu0 %v759, 127
      %v778 = vpop.permute.xlu0 %777
      %779 = vrot.lane.b32.xlu0 %v760, 127
      %v780 = vpop.permute.xlu0 %779
      %781 = vrot.lane.b32.xlu0 %v761, 127
      %v782 = vpop.permute.xlu0 %781
      %783 = vrot.lane.b32.xlu0 %v762, 127
      %v784 = vpop.permute.xlu0 %783
      %785 = vrot.lane.b32.xlu0 %v763, 127
      %v786 = vpop.permute.xlu0 %785
      %787 = vrot.lane.b32.xlu0 %v764, 127
      %v788 = vpop.permute.xlu0 %787
      %v789 = vsel %vm347, %v774, %v776
      %v790 = vsel %vm347, %v778, %v780
      %v791 = vsel %vm347, %v782, %v784
      %v792 = vsel %vm347, %v786, %v788
      %v805 = vadd.f32 %v729, %v774
      %v806 = vadd.f32 %v730, %v789
      %v807 = vadd.f32 %v731, %v776
      %v808 = vadd.f32 %v732, %v778
      %v809 = vadd.f32 %v733, %v790
      %v810 = vadd.f32 %v734, %v780
      %v811 = vadd.f32 %v735, %v782
      %v812 = vadd.f32 %v736, %v791
      %v813 = vadd.f32 %v737, %v784
      %v814 = vadd.f32 %v738, %v786
      %v815 = vadd.f32 %v739, %v792
      %v816 = vadd.f32 %v740, %v788
      %817 = vset.pattern.permute.xlu0 2
      %818 = vperm.xlu0 %817, %v239
      %v819 = vpop.permute.xlu0 %818
      %821 = vset.pattern.permute.xlu0 2
      %822 = vperm.xlu0 %821, %v240
      %v823 = vpop.permute.xlu0 %822
      %825 = vset.pattern.permute.xlu0 2
      %826 = vperm.xlu0 %825, %v241
      %v827 = vpop.permute.xlu0 %826
      %829 = vset.pattern.permute.xlu0 2
      %830 = vperm.xlu0 %829, %v242
      %v831 = vpop.permute.xlu0 %830
      %v833 = vmul.f32 %v819, %v270
      %v834 = vmul.f32 %v819, %v274
      %v835 = vmul.f32 %v823, %v270
      %v836 = vmul.f32 %v823, %v274
      %v837 = vmul.f32 %v827, %v270
      %v838 = vmul.f32 %v827, %v274
      %v839 = vmul.f32 %v831, %v270
      %v840 = vmul.f32 %v831, %v274
      %849 = vrot.lane.b32.xlu0 %v833, 126
      %v850 = vpop.permute.xlu0 %849
      %851 = vrot.lane.b32.xlu0 %v834, 126
      %v852 = vpop.permute.xlu0 %851
      %853 = vrot.lane.b32.xlu0 %v835, 126
      %v854 = vpop.permute.xlu0 %853
      %855 = vrot.lane.b32.xlu0 %v836, 126
      %v856 = vpop.permute.xlu0 %855
      %857 = vrot.lane.b32.xlu0 %v837, 126
      %v858 = vpop.permute.xlu0 %857
      %859 = vrot.lane.b32.xlu0 %v838, 126
      %v860 = vpop.permute.xlu0 %859
      %861 = vrot.lane.b32.xlu0 %v839, 126
      %v862 = vpop.permute.xlu0 %861
      %863 = vrot.lane.b32.xlu0 %v840, 126
      %v864 = vpop.permute.xlu0 %863
      %v865 = vsel %vm424, %v850, %v852
      %v866 = vsel %vm424, %v854, %v856
      %v867 = vsel %vm424, %v858, %v860
      %v868 = vsel %vm424, %v862, %v864
      %v881 = vadd.f32 %v805, %v850
      %v882 = vadd.f32 %v806, %v865
      %v883 = vadd.f32 %v807, %v852
      %v884 = vadd.f32 %v808, %v854
      %v885 = vadd.f32 %v809, %v866
      %v886 = vadd.f32 %v810, %v856
      %v887 = vadd.f32 %v811, %v858
      %v888 = vadd.f32 %v812, %v867
      %v889 = vadd.f32 %v813, %v860
      %v890 = vadd.f32 %v814, %v862
      %v891 = vadd.f32 %v815, %v868
      %v892 = vadd.f32 %v816, %v864
      %v893 = vmul.f32 %v246, %v472
      %v894 = vmul.f32 %v246, %v476
      %v895 = vmul.f32 %v246, %v480
      %v896 = vmul.f32 %v251, %v472
      %v897 = vmul.f32 %v251, %v476
      %v898 = vmul.f32 %v251, %v480
      %v899 = vmul.f32 %v256, %v472
      %v900 = vmul.f32 %v256, %v476
      %v901 = vmul.f32 %v256, %v480
      %v902 = vmul.f32 %v261, %v472
      %v903 = vmul.f32 %v261, %v476
      %v904 = vmul.f32 %v261, %v480
      %v905 = vadd.f32 %v881, %v893
      %v906 = vadd.f32 %v882, %v894
      %v907 = vadd.f32 %v883, %v895
      %v908 = vadd.f32 %v884, %v896
      %v909 = vadd.f32 %v885, %v897
      %v910 = vadd.f32 %v886, %v898
      %v911 = vadd.f32 %v887, %v899
      %v912 = vadd.f32 %v888, %v900
      %v913 = vadd.f32 %v889, %v901
      %v914 = vadd.f32 %v890, %v902
      %v915 = vadd.f32 %v891, %v903
      %v916 = vadd.f32 %v892, %v904
      %v917 = vmul.f32 %v301, %v476
      %v918 = vmul.f32 %v301, %v480
      %v919 = vmul.f32 %v305, %v476
      %v920 = vmul.f32 %v305, %v480
      %v921 = vmul.f32 %v309, %v476
      %v922 = vmul.f32 %v309, %v480
      %v923 = vmul.f32 %v313, %v476
      %v924 = vmul.f32 %v313, %v480
      %933 = vrot.lane.b32.xlu0 %v917, 127
      %v934 = vpop.permute.xlu0 %933
      %935 = vrot.lane.b32.xlu0 %v918, 127
      %v936 = vpop.permute.xlu0 %935
      %937 = vrot.lane.b32.xlu0 %v919, 127
      %v938 = vpop.permute.xlu0 %937
      %939 = vrot.lane.b32.xlu0 %v920, 127
      %v940 = vpop.permute.xlu0 %939
      %941 = vrot.lane.b32.xlu0 %v921, 127
      %v942 = vpop.permute.xlu0 %941
      %943 = vrot.lane.b32.xlu0 %v922, 127
      %v944 = vpop.permute.xlu0 %943
      %945 = vrot.lane.b32.xlu0 %v923, 127
      %v946 = vpop.permute.xlu0 %945
      %947 = vrot.lane.b32.xlu0 %v924, 127
      %v948 = vpop.permute.xlu0 %947
      %v949 = vsel %vm347, %v934, %v936
      %v950 = vsel %vm347, %v938, %v940
      %v951 = vsel %vm347, %v942, %v944
      %v952 = vsel %vm347, %v946, %v948
      %v965 = vadd.f32 %v905, %v934
      %v966 = vadd.f32 %v906, %v949
      %v967 = vadd.f32 %v907, %v936
      %v968 = vadd.f32 %v908, %v938
      %v969 = vadd.f32 %v909, %v950
      %v970 = vadd.f32 %v910, %v940
      %v971 = vadd.f32 %v911, %v942
      %v972 = vadd.f32 %v912, %v951
      %v973 = vadd.f32 %v913, %v944
      %v974 = vadd.f32 %v914, %v946
      %v975 = vadd.f32 %v915, %v952
      %v976 = vadd.f32 %v916, %v948
      %v977 = vmul.f32 %v378, %v476
      %v978 = vmul.f32 %v378, %v480
      %v979 = vmul.f32 %v382, %v476
      %v980 = vmul.f32 %v382, %v480
      %v981 = vmul.f32 %v386, %v476
      %v982 = vmul.f32 %v386, %v480
      %v983 = vmul.f32 %v390, %v476
      %v984 = vmul.f32 %v390, %v480
      %993 = vrot.lane.b32.xlu0 %v977, 126
      %v994 = vpop.permute.xlu0 %993
      %995 = vrot.lane.b32.xlu0 %v978, 126
      %v996 = vpop.permute.xlu0 %995
      %997 = vrot.lane.b32.xlu0 %v979, 126
      %v998 = vpop.permute.xlu0 %997
      %999 = vrot.lane.b32.xlu0 %v980, 126
      %v1000 = vpop.permute.xlu0 %999
      %1001 = vrot.lane.b32.xlu0 %v981, 126
      %v1002 = vpop.permute.xlu0 %1001
      %1003 = vrot.lane.b32.xlu0 %v982, 126
      %v1004 = vpop.permute.xlu0 %1003
      %1005 = vrot.lane.b32.xlu0 %v983, 126
      %v1006 = vpop.permute.xlu0 %1005
      %1007 = vrot.lane.b32.xlu0 %v984, 126
      %v1008 = vpop.permute.xlu0 %1007
      %v1009 = vsel %vm424, %v994, %v996
      %v1010 = vsel %vm424, %v998, %v1000
      %v1011 = vsel %vm424, %v1002, %v1004
      %v1012 = vsel %vm424, %v1006, %v1008
      %v1025 = vadd.f32 %v965, %v994
      %v1026 = vadd.f32 %v966, %v1009
      %v1027 = vadd.f32 %v967, %v996
      %v1028 = vadd.f32 %v968, %v998
      %v1029 = vadd.f32 %v969, %v1010
      %v1030 = vadd.f32 %v970, %v1000
      %v1031 = vadd.f32 %v971, %v1002
      %v1032 = vadd.f32 %v972, %v1011
      %v1033 = vadd.f32 %v973, %v1004
      %v1034 = vadd.f32 %v974, %v1006
      %v1035 = vadd.f32 %v975, %v1012
      %v1036 = vadd.f32 %v976, %v1008
      %v1037 = vlaneseq
      %v1038 = vshrl.u32 %v1037, 7
      %v1039 = vsub.s32 2, %v1038
      %v1040 = vrot.slane %v232, %v1039
      %v1041 = vlaneseq
      %v1042 = vshrl.u32 %v1041, 7
      %v1043 = vsub.s32 2, %v1042
      %v1044 = vrot.slane %v233, %v1043
      %v1045 = vlaneseq
      %v1046 = vshrl.u32 %v1045, 7
      %v1047 = vsub.s32 2, %v1046
      %v1048 = vrot.slane %v234, %v1047
      %v1049 = vmul.f32 %v455, %v1040
      %v1050 = vmul.f32 %v455, %v1044
      %v1051 = vmul.f32 %v455, %v1048
      %v1052 = vmul.f32 %v459, %v1040
      %v1053 = vmul.f32 %v459, %v1044
      %v1054 = vmul.f32 %v459, %v1048
      %v1055 = vmul.f32 %v463, %v1040
      %v1056 = vmul.f32 %v463, %v1044
      %v1057 = vmul.f32 %v463, %v1048
      %v1058 = vmul.f32 %v467, %v1040
      %v1059 = vmul.f32 %v467, %v1044
      %v1060 = vmul.f32 %v467, %v1048
      %v1061 = vadd.f32 %v1025, %v1049
      %v1062 = vadd.f32 %v1026, %v1050
      %v1063 = vadd.f32 %v1027, %v1051
      %v1064 = vadd.f32 %v1028, %v1052
      %v1065 = vadd.f32 %v1029, %v1053
      %v1066 = vadd.f32 %v1030, %v1054
      %v1067 = vadd.f32 %v1031, %v1055
      %v1068 = vadd.f32 %v1032, %v1056
      %v1069 = vadd.f32 %v1033, %v1057
      %v1070 = vadd.f32 %v1034, %v1058
      %v1071 = vadd.f32 %v1035, %v1059
      %v1072 = vadd.f32 %v1036, %v1060
      %v1073 = vmul.f32 %v507, %v1044
      %v1074 = vmul.f32 %v507, %v1048
      %v1075 = vmul.f32 %v511, %v1044
      %v1076 = vmul.f32 %v511, %v1048
      %v1077 = vmul.f32 %v515, %v1044
      %v1078 = vmul.f32 %v515, %v1048
      %v1079 = vmul.f32 %v519, %v1044
      %v1080 = vmul.f32 %v519, %v1048
      %1089 = vrot.lane.b32.xlu0 %v1073, 127
      %v1090 = vpop.permute.xlu0 %1089
      %1091 = vrot.lane.b32.xlu0 %v1074, 127
      %v1092 = vpop.permute.xlu0 %1091
      %1093 = vrot.lane.b32.xlu0 %v1075, 127
      %v1094 = vpop.permute.xlu0 %1093
      %1095 = vrot.lane.b32.xlu0 %v1076, 127
      %v1096 = vpop.permute.xlu0 %1095
      %1097 = vrot.lane.b32.xlu0 %v1077, 127
      %v1098 = vpop.permute.xlu0 %1097
      %1099 = vrot.lane.b32.xlu0 %v1078, 127
      %v1100 = vpop.permute.xlu0 %1099
      %1101 = vrot.lane.b32.xlu0 %v1079, 127
      %v1102 = vpop.permute.xlu0 %1101
      %1103 = vrot.lane.b32.xlu0 %v1080, 127
      %v1104 = vpop.permute.xlu0 %1103
      %v1105 = vsel %vm347, %v1090, %v1092
      %v1106 = vsel %vm347, %v1094, %v1096
      %v1107 = vsel %vm347, %v1098, %v1100
      %v1108 = vsel %vm347, %v1102, %v1104
      %v1121 = vadd.f32 %v1061, %v1090
      %v1122 = vadd.f32 %v1062, %v1105
      %v1123 = vadd.f32 %v1063, %v1092
      %v1124 = vadd.f32 %v1064, %v1094
      %v1125 = vadd.f32 %v1065, %v1106
      %v1126 = vadd.f32 %v1066, %v1096
      %v1127 = vadd.f32 %v1067, %v1098
      %v1128 = vadd.f32 %v1068, %v1107
      %v1129 = vadd.f32 %v1069, %v1100
      %v1130 = vadd.f32 %v1070, %v1102
      %v1131 = vadd.f32 %v1071, %v1108
      %v1132 = vadd.f32 %v1072, %v1104
      %v1133 = vmul.f32 %v583, %v1044
      %v1134 = vmul.f32 %v583, %v1048
      %v1135 = vmul.f32 %v587, %v1044
      %v1136 = vmul.f32 %v587, %v1048
      %v1137 = vmul.f32 %v591, %v1044
      %v1138 = vmul.f32 %v591, %v1048
      %v1139 = vmul.f32 %v595, %v1044
      %v1140 = vmul.f32 %v595, %v1048
      %1149 = vrot.lane.b32.xlu0 %v1133, 126
      %v1150 = vpop.permute.xlu0 %1149
      %1151 = vrot.lane.b32.xlu0 %v1134, 126
      %v1152 = vpop.permute.xlu0 %1151
      %1153 = vrot.lane.b32.xlu0 %v1135, 126
      %v1154 = vpop.permute.xlu0 %1153
      %1155 = vrot.lane.b32.xlu0 %v1136, 126
      %v1156 = vpop.permute.xlu0 %1155
      %1157 = vrot.lane.b32.xlu0 %v1137, 126
      %v1158 = vpop.permute.xlu0 %1157
      %1159 = vrot.lane.b32.xlu0 %v1138, 126
      %v1160 = vpop.permute.xlu0 %1159
      %1161 = vrot.lane.b32.xlu0 %v1139, 126
      %v1162 = vpop.permute.xlu0 %1161
      %1163 = vrot.lane.b32.xlu0 %v1140, 126
      %v1164 = vpop.permute.xlu0 %1163
      %v1165 = vsel %vm424, %v1150, %v1152
      %v1166 = vsel %vm424, %v1154, %v1156
      %v1167 = vsel %vm424, %v1158, %v1160
      %v1168 = vsel %vm424, %v1162, %v1164
      %v1181 = vadd.f32 %v1121, %v1150
      %v1182 = vadd.f32 %v1122, %v1165
      %v1183 = vadd.f32 %v1123, %v1152
      %v1184 = vadd.f32 %v1124, %v1154
      %v1185 = vadd.f32 %v1125, %v1166
      %v1186 = vadd.f32 %v1126, %v1156
      %v1187 = vadd.f32 %v1127, %v1158
      %v1188 = vadd.f32 %v1128, %v1167
      %v1189 = vadd.f32 %v1129, %v1160
      %v1190 = vadd.f32 %v1130, %v1162
      %v1191 = vadd.f32 %v1131, %v1168
      %v1192 = vadd.f32 %v1132, %v1164
      %v1193 = vadd.f32 %v1181, %v660
      %v1194 = vadd.f32 %v1182, %v660
      %v1195 = vadd.f32 %v1183, %v660
      %v1196 = vadd.f32 %v1184, %v665
      %v1197 = vadd.f32 %v1185, %v665
      %v1198 = vadd.f32 %v1186, %v665
      %v1199 = vadd.f32 %v1187, %v670
      %v1200 = vadd.f32 %v1188, %v670
      %v1201 = vadd.f32 %v1189, %v670
      %v1202 = vadd.f32 %v1190, %v675
      %v1203 = vadd.f32 %v1191, %v675
      %v1204 = vadd.f32 %v1192, %v675
      %v1205 = vmax.f32 %v1193, 0.0
      %v1206 = vmax.f32 %v1194, 0.0
      %v1207 = vmax.f32 %v1195, 0.0
      %v1208 = vmax.f32 %v1196, 0.0
      %v1209 = vmax.f32 %v1197, 0.0
      %v1210 = vmax.f32 %v1198, 0.0
      %v1211 = vmax.f32 %v1199, 0.0
      %v1212 = vmax.f32 %v1200, 0.0
      %v1213 = vmax.f32 %v1201, 0.0
      %v1214 = vmax.f32 %v1202, 0.0
      %v1215 = vmax.f32 %v1203, 0.0
      %v1216 = vmax.f32 %v1204, 0.0
      %v1217 = vmax.f32 %v689, %v1205
      %v1218 = vmax.f32 %v690, %v1206
      %v1219 = vmax.f32 %v691, %v1207
      %v1220 = vmax.f32 %v692, %v1208
      %v1221 = vmax.f32 %v693, %v1209
      %v1222 = vmax.f32 %v694, %v1210
      %v1223 = vmax.f32 %v695, %v1211
      %v1224 = vmax.f32 %v696, %v1212
      %v1225 = vmax.f32 %v697, %v1213
      %v1226 = vmax.f32 %v698, %v1214
      %v1227 = vmax.f32 %v699, %v1215
      %v1228 = vmax.f32 %v700, %v1216
      %v1229 = vmul.f32 %v703, %v472
      %v1230 = vmul.f32 %v703, %v476
      %v1231 = vmul.f32 %v703, %v480
      %v1232 = vmul.f32 %v707, %v472
      %v1233 = vmul.f32 %v707, %v476
      %v1234 = vmul.f32 %v707, %v480
      %v1235 = vmul.f32 %v711, %v472
      %v1236 = vmul.f32 %v711, %v476
      %v1237 = vmul.f32 %v711, %v480
      %v1238 = vmul.f32 %v715, %v472
      %v1239 = vmul.f32 %v715, %v476
      %v1240 = vmul.f32 %v715, %v480
      %v1241 = vadd.f32 %v1229, 0.0
      %v1242 = vadd.f32 %v1230, 0.0
      %v1243 = vadd.f32 %v1231, 0.0
      %v1244 = vadd.f32 %v1232, 0.0
      %v1245 = vadd.f32 %v1233, 0.0
      %v1246 = vadd.f32 %v1234, 0.0
      %v1247 = vadd.f32 %v1235, 0.0
      %v1248 = vadd.f32 %v1236, 0.0
      %v1249 = vadd.f32 %v1237, 0.0
      %v1250 = vadd.f32 %v1238, 0.0
      %v1251 = vadd.f32 %v1239, 0.0
      %v1252 = vadd.f32 %v1240, 0.0
      %v1253 = vmul.f32 %v743, %v476
      %v1254 = vmul.f32 %v743, %v480
      %v1255 = vmul.f32 %v747, %v476
      %v1256 = vmul.f32 %v747, %v480
      %v1257 = vmul.f32 %v751, %v476
      %v1258 = vmul.f32 %v751, %v480
      %v1259 = vmul.f32 %v755, %v476
      %v1260 = vmul.f32 %v755, %v480
      %1269 = vrot.lane.b32.xlu0 %v1253, 127
      %v1270 = vpop.permute.xlu0 %1269
      %1271 = vrot.lane.b32.xlu0 %v1254, 127
      %v1272 = vpop.permute.xlu0 %1271
      %1273 = vrot.lane.b32.xlu0 %v1255, 127
      %v1274 = vpop.permute.xlu0 %1273
      %1275 = vrot.lane.b32.xlu0 %v1256, 127
      %v1276 = vpop.permute.xlu0 %1275
      %1277 = vrot.lane.b32.xlu0 %v1257, 127
      %v1278 = vpop.permute.xlu0 %1277
      %1279 = vrot.lane.b32.xlu0 %v1258, 127
      %v1280 = vpop.permute.xlu0 %1279
      %1281 = vrot.lane.b32.xlu0 %v1259, 127
      %v1282 = vpop.permute.xlu0 %1281
      %1283 = vrot.lane.b32.xlu0 %v1260, 127
      %v1284 = vpop.permute.xlu0 %1283
      %v1285 = vsel %vm347, %v1270, %v1272
      %v1286 = vsel %vm347, %v1274, %v1276
      %v1287 = vsel %vm347, %v1278, %v1280
      %v1288 = vsel %vm347, %v1282, %v1284
      %v1301 = vadd.f32 %v1241, %v1270
      %v1302 = vadd.f32 %v1242, %v1285
      %v1303 = vadd.f32 %v1243, %v1272
      %v1304 = vadd.f32 %v1244, %v1274
      %v1305 = vadd.f32 %v1245, %v1286
      %v1306 = vadd.f32 %v1246, %v1276
      %v1307 = vadd.f32 %v1247, %v1278
      %v1308 = vadd.f32 %v1248, %v1287
      %v1309 = vadd.f32 %v1249, %v1280
      %v1310 = vadd.f32 %v1250, %v1282
      %v1311 = vadd.f32 %v1251, %v1288
      %v1312 = vadd.f32 %v1252, %v1284
      %v1313 = vmul.f32 %v819, %v476
      %v1314 = vmul.f32 %v819, %v480
      %v1315 = vmul.f32 %v823, %v476
      %v1316 = vmul.f32 %v823, %v480
      %v1317 = vmul.f32 %v827, %v476
      %v1318 = vmul.f32 %v827, %v480
      %v1319 = vmul.f32 %v831, %v476
      %v1320 = vmul.f32 %v831, %v480
      %1329 = vrot.lane.b32.xlu0 %v1313, 126
      %v1330 = vpop.permute.xlu0 %1329
      %1331 = vrot.lane.b32.xlu0 %v1314, 126
      %v1332 = vpop.permute.xlu0 %1331
      %1333 = vrot.lane.b32.xlu0 %v1315, 126
      %v1334 = vpop.permute.xlu0 %1333
      %1335 = vrot.lane.b32.xlu0 %v1316, 126
      %v1336 = vpop.permute.xlu0 %1335
      %1337 = vrot.lane.b32.xlu0 %v1317, 126
      %v1338 = vpop.permute.xlu0 %1337
      %1339 = vrot.lane.b32.xlu0 %v1318, 126
      %v1340 = vpop.permute.xlu0 %1339
      %1341 = vrot.lane.b32.xlu0 %v1319, 126
      %v1342 = vpop.permute.xlu0 %1341
      %1343 = vrot.lane.b32.xlu0 %v1320, 126
      %v1344 = vpop.permute.xlu0 %1343
      %v1345 = vsel %vm424, %v1330, %v1332
      %v1346 = vsel %vm424, %v1334, %v1336
      %v1347 = vsel %vm424, %v1338, %v1340
      %v1348 = vsel %vm424, %v1342, %v1344
      %v1361 = vadd.f32 %v1301, %v1330
      %v1362 = vadd.f32 %v1302, %v1345
      %v1363 = vadd.f32 %v1303, %v1332
      %v1364 = vadd.f32 %v1304, %v1334
      %v1365 = vadd.f32 %v1305, %v1346
      %v1366 = vadd.f32 %v1306, %v1336
      %v1367 = vadd.f32 %v1307, %v1338
      %v1368 = vadd.f32 %v1308, %v1347
      %v1369 = vadd.f32 %v1309, %v1340
      %v1370 = vadd.f32 %v1310, %v1342
      %v1371 = vadd.f32 %v1311, %v1348
      %v1372 = vadd.f32 %v1312, %v1344
      %v1373 = vmul.f32 %v246, %v1040
      %v1374 = vmul.f32 %v246, %v1044
      %v1375 = vmul.f32 %v246, %v1048
      %v1376 = vmul.f32 %v251, %v1040
      %v1377 = vmul.f32 %v251, %v1044
      %v1378 = vmul.f32 %v251, %v1048
      %v1379 = vmul.f32 %v256, %v1040
      %v1380 = vmul.f32 %v256, %v1044
      %v1381 = vmul.f32 %v256, %v1048
      %v1382 = vmul.f32 %v261, %v1040
      %v1383 = vmul.f32 %v261, %v1044
      %v1384 = vmul.f32 %v261, %v1048
      %v1385 = vadd.f32 %v1361, %v1373
      %v1386 = vadd.f32 %v1362, %v1374
      %v1387 = vadd.f32 %v1363, %v1375
      %v1388 = vadd.f32 %v1364, %v1376
      %v1389 = vadd.f32 %v1365, %v1377
      %v1390 = vadd.f32 %v1366, %v1378
      %v1391 = vadd.f32 %v1367, %v1379
      %v1392 = vadd.f32 %v1368, %v1380
      %v1393 = vadd.f32 %v1369, %v1381
      %v1394 = vadd.f32 %v1370, %v1382
      %v1395 = vadd.f32 %v1371, %v1383
      %v1396 = vadd.f32 %v1372, %v1384
      %v1397 = vmul.f32 %v301, %v1044
      %v1398 = vmul.f32 %v301, %v1048
      %v1399 = vmul.f32 %v305, %v1044
      %v1400 = vmul.f32 %v305, %v1048
      %v1401 = vmul.f32 %v309, %v1044
      %v1402 = vmul.f32 %v309, %v1048
      %v1403 = vmul.f32 %v313, %v1044
      %v1404 = vmul.f32 %v313, %v1048
      %1413 = vrot.lane.b32.xlu0 %v1397, 127
      %v1414 = vpop.permute.xlu0 %1413
      %1415 = vrot.lane.b32.xlu0 %v1398, 127
      %v1416 = vpop.permute.xlu0 %1415
      %1417 = vrot.lane.b32.xlu0 %v1399, 127
      %v1418 = vpop.permute.xlu0 %1417
      %1419 = vrot.lane.b32.xlu0 %v1400, 127
      %v1420 = vpop.permute.xlu0 %1419
      %1421 = vrot.lane.b32.xlu0 %v1401, 127
      %v1422 = vpop.permute.xlu0 %1421
      %1423 = vrot.lane.b32.xlu0 %v1402, 127
      %v1424 = vpop.permute.xlu0 %1423
      %1425 = vrot.lane.b32.xlu0 %v1403, 127
      %v1426 = vpop.permute.xlu0 %1425
      %1427 = vrot.lane.b32.xlu0 %v1404, 127
      %v1428 = vpop.permute.xlu0 %1427
      %v1429 = vsel %vm347, %v1414, %v1416
      %v1430 = vsel %vm347, %v1418, %v1420
      %v1431 = vsel %vm347, %v1422, %v1424
      %v1432 = vsel %vm347, %v1426, %v1428
      %v1445 = vadd.f32 %v1385, %v1414
      %v1446 = vadd.f32 %v1386, %v1429
      %v1447 = vadd.f32 %v1387, %v1416
      %v1448 = vadd.f32 %v1388, %v1418
      %v1449 = vadd.f32 %v1389, %v1430
      %v1450 = vadd.f32 %v1390, %v1420
      %v1451 = vadd.f32 %v1391, %v1422
      %v1452 = vadd.f32 %v1392, %v1431
      %v1453 = vadd.f32 %v1393, %v1424
      %v1454 = vadd.f32 %v1394, %v1426
      %v1455 = vadd.f32 %v1395, %v1432
      %v1456 = vadd.f32 %v1396, %v1428
      %v1457 = vmul.f32 %v378, %v1044
      %v1458 = vmul.f32 %v378, %v1048
      %v1459 = vmul.f32 %v382, %v1044
      %v1460 = vmul.f32 %v382, %v1048
      %v1461 = vmul.f32 %v386, %v1044
      %v1462 = vmul.f32 %v386, %v1048
      %v1463 = vmul.f32 %v390, %v1044
      %v1464 = vmul.f32 %v390, %v1048
      %1473 = vrot.lane.b32.xlu0 %v1457, 126
      %v1474 = vpop.permute.xlu0 %1473
      %1475 = vrot.lane.b32.xlu0 %v1458, 126
      %v1476 = vpop.permute.xlu0 %1475
      %1477 = vrot.lane.b32.xlu0 %v1459, 126
      %v1478 = vpop.permute.xlu0 %1477
      %1479 = vrot.lane.b32.xlu0 %v1460, 126
      %v1480 = vpop.permute.xlu0 %1479
      %1481 = vrot.lane.b32.xlu0 %v1461, 126
      %v1482 = vpop.permute.xlu0 %1481
      %1483 = vrot.lane.b32.xlu0 %v1462, 126
      %v1484 = vpop.permute.xlu0 %1483
      %1485 = vrot.lane.b32.xlu0 %v1463, 126
      %v1486 = vpop.permute.xlu0 %1485
      %1487 = vrot.lane.b32.xlu0 %v1464, 126
      %v1488 = vpop.permute.xlu0 %1487
      %v1489 = vsel %vm424, %v1474, %v1476
      %v1490 = vsel %vm424, %v1478, %v1480
      %v1491 = vsel %vm424, %v1482, %v1484
      %v1492 = vsel %vm424, %v1486, %v1488
      %v1505 = vadd.f32 %v1445, %v1474
      %v1506 = vadd.f32 %v1446, %v1489
      %v1507 = vadd.f32 %v1447, %v1476
      %v1508 = vadd.f32 %v1448, %v1478
      %v1509 = vadd.f32 %v1449, %v1490
      %v1510 = vadd.f32 %v1450, %v1480
      %v1511 = vadd.f32 %v1451, %v1482
      %v1512 = vadd.f32 %v1452, %v1491
      %v1513 = vadd.f32 %v1453, %v1484
      %v1514 = vadd.f32 %v1454, %v1486
      %v1515 = vadd.f32 %v1455, %v1492
      %v1516 = vadd.f32 %v1456, %v1488
      %v1517 = vlaneseq
      %v1518 = vshrl.u32 %v1517, 7
      %v1519 = vsub.s32 3, %v1518
      %v1520 = vrot.slane %v232, %v1519
      %v1521 = vlaneseq
      %v1522 = vshrl.u32 %v1521, 7
      %v1523 = vsub.s32 3, %v1522
      %v1524 = vrot.slane %v233, %v1523
      %v1525 = vlaneseq
      %v1526 = vshrl.u32 %v1525, 7
      %v1527 = vsub.s32 3, %v1526
      %v1528 = vrot.slane %v234, %v1527
      %v1529 = vmul.f32 %v455, %v1520
      %v1530 = vmul.f32 %v455, %v1524
      %v1531 = vmul.f32 %v455, %v1528
      %v1532 = vmul.f32 %v459, %v1520
      %v1533 = vmul.f32 %v459, %v1524
      %v1534 = vmul.f32 %v459, %v1528
      %v1535 = vmul.f32 %v463, %v1520
      %v1536 = vmul.f32 %v463, %v1524
      %v1537 = vmul.f32 %v463, %v1528
      %v1538 = vmul.f32 %v467, %v1520
      %v1539 = vmul.f32 %v467, %v1524
      %v1540 = vmul.f32 %v467, %v1528
      %v1541 = vadd.f32 %v1505, %v1529
      %v1542 = vadd.f32 %v1506, %v1530
      %v1543 = vadd.f32 %v1507, %v1531
      %v1544 = vadd.f32 %v1508, %v1532
      %v1545 = vadd.f32 %v1509, %v1533
      %v1546 = vadd.f32 %v1510, %v1534
      %v1547 = vadd.f32 %v1511, %v1535
      %v1548 = vadd.f32 %v1512, %v1536
      %v1549 = vadd.f32 %v1513, %v1537
      %v1550 = vadd.f32 %v1514, %v1538
      %v1551 = vadd.f32 %v1515, %v1539
      %v1552 = vadd.f32 %v1516, %v1540
      %v1553 = vmul.f32 %v507, %v1524
      %v1554 = vmul.f32 %v507, %v1528
      %v1555 = vmul.f32 %v511, %v1524
      %v1556 = vmul.f32 %v511, %v1528
      %v1557 = vmul.f32 %v515, %v1524
      %v1558 = vmul.f32 %v515, %v1528
      %v1559 = vmul.f32 %v519, %v1524
      %v1560 = vmul.f32 %v519, %v1528
      %1569 = vrot.lane.b32.xlu0 %v1553, 127
      %v1570 = vpop.permute.xlu0 %1569
      %1571 = vrot.lane.b32.xlu0 %v1554, 127
      %v1572 = vpop.permute.xlu0 %1571
      %1573 = vrot.lane.b32.xlu0 %v1555, 127
      %v1574 = vpop.permute.xlu0 %1573
      %1575 = vrot.lane.b32.xlu0 %v1556, 127
      %v1576 = vpop.permute.xlu0 %1575
      %1577 = vrot.lane.b32.xlu0 %v1557, 127
      %v1578 = vpop.permute.xlu0 %1577
      %1579 = vrot.lane.b32.xlu0 %v1558, 127
      %v1580 = vpop.permute.xlu0 %1579
      %1581 = vrot.lane.b32.xlu0 %v1559, 127
      %v1582 = vpop.permute.xlu0 %1581
      %1583 = vrot.lane.b32.xlu0 %v1560, 127
      %v1584 = vpop.permute.xlu0 %1583
      %v1585 = vsel %vm347, %v1570, %v1572
      %v1586 = vsel %vm347, %v1574, %v1576
      %v1587 = vsel %vm347, %v1578, %v1580
      %v1588 = vsel %vm347, %v1582, %v1584
      %v1601 = vadd.f32 %v1541, %v1570
      %v1602 = vadd.f32 %v1542, %v1585
      %v1603 = vadd.f32 %v1543, %v1572
      %v1604 = vadd.f32 %v1544, %v1574
      %v1605 = vadd.f32 %v1545, %v1586
      %v1606 = vadd.f32 %v1546, %v1576
      %v1607 = vadd.f32 %v1547, %v1578
      %v1608 = vadd.f32 %v1548, %v1587
      %v1609 = vadd.f32 %v1549, %v1580
      %v1610 = vadd.f32 %v1550, %v1582
      %v1611 = vadd.f32 %v1551, %v1588
      %v1612 = vadd.f32 %v1552, %v1584
      %v1613 = vmul.f32 %v583, %v1524
      %v1614 = vmul.f32 %v583, %v1528
      %v1615 = vmul.f32 %v587, %v1524
      %v1616 = vmul.f32 %v587, %v1528
      %v1617 = vmul.f32 %v591, %v1524
      %v1618 = vmul.f32 %v591, %v1528
      %v1619 = vmul.f32 %v595, %v1524
      %v1620 = vmul.f32 %v595, %v1528
      %1629 = vrot.lane.b32.xlu0 %v1613, 126
      %v1630 = vpop.permute.xlu0 %1629
      %1631 = vrot.lane.b32.xlu0 %v1614, 126
      %v1632 = vpop.permute.xlu0 %1631
      %1633 = vrot.lane.b32.xlu0 %v1615, 126
      %v1634 = vpop.permute.xlu0 %1633
      %1635 = vrot.lane.b32.xlu0 %v1616, 126
      %v1636 = vpop.permute.xlu0 %1635
      %1637 = vrot.lane.b32.xlu0 %v1617, 126
      %v1638 = vpop.permute.xlu0 %1637
      %1639 = vrot.lane.b32.xlu0 %v1618, 126
      %v1640 = vpop.permute.xlu0 %1639
      %1641 = vrot.lane.b32.xlu0 %v1619, 126
      %v1642 = vpop.permute.xlu0 %1641
      %1643 = vrot.lane.b32.xlu0 %v1620, 126
      %v1644 = vpop.permute.xlu0 %1643
      %v1645 = vsel %vm424, %v1630, %v1632
      %v1646 = vsel %vm424, %v1634, %v1636
      %v1647 = vsel %vm424, %v1638, %v1640
      %v1648 = vsel %vm424, %v1642, %v1644
      %v1661 = vadd.f32 %v1601, %v1630
      %v1662 = vadd.f32 %v1602, %v1645
      %v1663 = vadd.f32 %v1603, %v1632
      %v1664 = vadd.f32 %v1604, %v1634
      %v1665 = vadd.f32 %v1605, %v1646
      %v1666 = vadd.f32 %v1606, %v1636
      %v1667 = vadd.f32 %v1607, %v1638
      %v1668 = vadd.f32 %v1608, %v1647
      %v1669 = vadd.f32 %v1609, %v1640
      %v1670 = vadd.f32 %v1610, %v1642
      %v1671 = vadd.f32 %v1611, %v1648
      %v1672 = vadd.f32 %v1612, %v1644
      %v1673 = vadd.f32 %v1661, %v660
      %v1674 = vadd.f32 %v1662, %v660
      %v1675 = vadd.f32 %v1663, %v660
      %v1676 = vadd.f32 %v1664, %v665
      %v1677 = vadd.f32 %v1665, %v665
      %v1678 = vadd.f32 %v1666, %v665
      %v1679 = vadd.f32 %v1667, %v670
      %v1680 = vadd.f32 %v1668, %v670
      %v1681 = vadd.f32 %v1669, %v670
      %v1682 = vadd.f32 %v1670, %v675
      %v1683 = vadd.f32 %v1671, %v675
      %v1684 = vadd.f32 %v1672, %v675
      %v1685 = vmax.f32 %v1673, 0.0
      %v1686 = vmax.f32 %v1674, 0.0
      %v1687 = vmax.f32 %v1675, 0.0
      %v1688 = vmax.f32 %v1676, 0.0
      %v1689 = vmax.f32 %v1677, 0.0
      %v1690 = vmax.f32 %v1678, 0.0
      %v1691 = vmax.f32 %v1679, 0.0
      %v1692 = vmax.f32 %v1680, 0.0
      %v1693 = vmax.f32 %v1681, 0.0
      %v1694 = vmax.f32 %v1682, 0.0
      %v1695 = vmax.f32 %v1683, 0.0
      %v1696 = vmax.f32 %v1684, 0.0
      %v1697 = vmax.f32 %v1217, %v1685
      %v1698 = vmax.f32 %v1218, %v1686
      %v1699 = vmax.f32 %v1219, %v1687
      %v1700 = vmax.f32 %v1220, %v1688
      %v1701 = vmax.f32 %v1221, %v1689
      %v1702 = vmax.f32 %v1222, %v1690
      %v1703 = vmax.f32 %v1223, %v1691
      %v1704 = vmax.f32 %v1224, %v1692
      %v1705 = vmax.f32 %v1225, %v1693
      %v1706 = vmax.f32 %v1226, %v1694
      %v1707 = vmax.f32 %v1227, %v1695
      %v1708 = vmax.f32 %v1228, %v1696
      %v1709 = vmul.f32 %v703, %v1040
      %v1710 = vmul.f32 %v703, %v1044
      %v1711 = vmul.f32 %v703, %v1048
      %v1712 = vmul.f32 %v707, %v1040
      %v1713 = vmul.f32 %v707, %v1044
      %v1714 = vmul.f32 %v707, %v1048
      %v1715 = vmul.f32 %v711, %v1040
      %v1716 = vmul.f32 %v711, %v1044
      %v1717 = vmul.f32 %v711, %v1048
      %v1718 = vmul.f32 %v715, %v1040
      %v1719 = vmul.f32 %v715, %v1044
      %v1720 = vmul.f32 %v715, %v1048
      %v1721 = vadd.f32 %v1709, 0.0
      %v1722 = vadd.f32 %v1710, 0.0
      %v1723 = vadd.f32 %v1711, 0.0
      %v1724 = vadd.f32 %v1712, 0.0
      %v1725 = vadd.f32 %v1713, 0.0
      %v1726 = vadd.f32 %v1714, 0.0
      %v1727 = vadd.f32 %v1715, 0.0
      %v1728 = vadd.f32 %v1716, 0.0
      %v1729 = vadd.f32 %v1717, 0.0
      %v1730 = vadd.f32 %v1718, 0.0
      %v1731 = vadd.f32 %v1719, 0.0
      %v1732 = vadd.f32 %v1720, 0.0
      %v1733 = vmul.f32 %v743, %v1044
      %v1734 = vmul.f32 %v743, %v1048
      %v1735 = vmul.f32 %v747, %v1044
      %v1736 = vmul.f32 %v747, %v1048
      %v1737 = vmul.f32 %v751, %v1044
      %v1738 = vmul.f32 %v751, %v1048
      %v1739 = vmul.f32 %v755, %v1044
      %v1740 = vmul.f32 %v755, %v1048
      %1749 = vrot.lane.b32.xlu0 %v1733, 127
      %v1750 = vpop.permute.xlu0 %1749
      %1751 = vrot.lane.b32.xlu0 %v1734, 127
      %v1752 = vpop.permute.xlu0 %1751
      %1753 = vrot.lane.b32.xlu0 %v1735, 127
      %v1754 = vpop.permute.xlu0 %1753
      %1755 = vrot.lane.b32.xlu0 %v1736, 127
      %v1756 = vpop.permute.xlu0 %1755
      %1757 = vrot.lane.b32.xlu0 %v1737, 127
      %v1758 = vpop.permute.xlu0 %1757
      %1759 = vrot.lane.b32.xlu0 %v1738, 127
      %v1760 = vpop.permute.xlu0 %1759
      %1761 = vrot.lane.b32.xlu0 %v1739, 127
      %v1762 = vpop.permute.xlu0 %1761
      %1763 = vrot.lane.b32.xlu0 %v1740, 127
      %v1764 = vpop.permute.xlu0 %1763
      %v1765 = vsel %vm347, %v1750, %v1752
      %v1766 = vsel %vm347, %v1754, %v1756
      %v1767 = vsel %vm347, %v1758, %v1760
      %v1768 = vsel %vm347, %v1762, %v1764
      %v1781 = vadd.f32 %v1721, %v1750
      %v1782 = vadd.f32 %v1722, %v1765
      %v1783 = vadd.f32 %v1723, %v1752
      %v1784 = vadd.f32 %v1724, %v1754
      %v1785 = vadd.f32 %v1725, %v1766
      %v1786 = vadd.f32 %v1726, %v1756
      %v1787 = vadd.f32 %v1727, %v1758
      %v1788 = vadd.f32 %v1728, %v1767
      %v1789 = vadd.f32 %v1729, %v1760
      %v1790 = vadd.f32 %v1730, %v1762
      %v1791 = vadd.f32 %v1731, %v1768
      %v1792 = vadd.f32 %v1732, %v1764
      %v1793 = vmul.f32 %v819, %v1044
      %v1794 = vmul.f32 %v819, %v1048
      %v1795 = vmul.f32 %v823, %v1044
      %v1796 = vmul.f32 %v823, %v1048
      %v1797 = vmul.f32 %v827, %v1044
      %v1798 = vmul.f32 %v827, %v1048
      %v1799 = vmul.f32 %v831, %v1044
      %v1800 = vmul.f32 %v831, %v1048
      %1809 = vrot.lane.b32.xlu0 %v1793, 126
      %v1810 = vpop.permute.xlu0 %1809
      %1811 = vrot.lane.b32.xlu0 %v1794, 126
      %v1812 = vpop.permute.xlu0 %1811
      %1813 = vrot.lane.b32.xlu0 %v1795, 126
      %v1814 = vpop.permute.xlu0 %1813
      %1815 = vrot.lane.b32.xlu0 %v1796, 126
      %v1816 = vpop.permute.xlu0 %1815
      %1817 = vrot.lane.b32.xlu0 %v1797, 126
      %v1818 = vpop.permute.xlu0 %1817
      %1819 = vrot.lane.b32.xlu0 %v1798, 126
      %v1820 = vpop.permute.xlu0 %1819
      %1821 = vrot.lane.b32.xlu0 %v1799, 126
      %v1822 = vpop.permute.xlu0 %1821
      %1823 = vrot.lane.b32.xlu0 %v1800, 126
      %v1824 = vpop.permute.xlu0 %1823
      %v1825 = vsel %vm424, %v1810, %v1812
      %v1826 = vsel %vm424, %v1814, %v1816
      %v1827 = vsel %vm424, %v1818, %v1820
      %v1828 = vsel %vm424, %v1822, %v1824
      %v1841 = vadd.f32 %v1781, %v1810
      %v1842 = vadd.f32 %v1782, %v1825
      %v1843 = vadd.f32 %v1783, %v1812
      %v1844 = vadd.f32 %v1784, %v1814
      %v1845 = vadd.f32 %v1785, %v1826
      %v1846 = vadd.f32 %v1786, %v1816
      %v1847 = vadd.f32 %v1787, %v1818
      %v1848 = vadd.f32 %v1788, %v1827
      %v1849 = vadd.f32 %v1789, %v1820
      %v1850 = vadd.f32 %v1790, %v1822
      %v1851 = vadd.f32 %v1791, %v1828
      %v1852 = vadd.f32 %v1792, %v1824
      %v1853 = vmul.f32 %v246, %v1520
      %v1854 = vmul.f32 %v246, %v1524
      %v1855 = vmul.f32 %v246, %v1528
      %v1856 = vmul.f32 %v251, %v1520
      %v1857 = vmul.f32 %v251, %v1524
      %v1858 = vmul.f32 %v251, %v1528
      %v1859 = vmul.f32 %v256, %v1520
      %v1860 = vmul.f32 %v256, %v1524
      %v1861 = vmul.f32 %v256, %v1528
      %v1862 = vmul.f32 %v261, %v1520
      %v1863 = vmul.f32 %v261, %v1524
      %v1864 = vmul.f32 %v261, %v1528
      %v1865 = vadd.f32 %v1841, %v1853
      %v1866 = vadd.f32 %v1842, %v1854
      %v1867 = vadd.f32 %v1843, %v1855
      %v1868 = vadd.f32 %v1844, %v1856
      %v1869 = vadd.f32 %v1845, %v1857
      %v1870 = vadd.f32 %v1846, %v1858
      %v1871 = vadd.f32 %v1847, %v1859
      %v1872 = vadd.f32 %v1848, %v1860
      %v1873 = vadd.f32 %v1849, %v1861
      %v1874 = vadd.f32 %v1850, %v1862
      %v1875 = vadd.f32 %v1851, %v1863
      %v1876 = vadd.f32 %v1852, %v1864
      %v1877 = vmul.f32 %v301, %v1524
      %v1878 = vmul.f32 %v301, %v1528
      %v1879 = vmul.f32 %v305, %v1524
      %v1880 = vmul.f32 %v305, %v1528
      %v1881 = vmul.f32 %v309, %v1524
      %v1882 = vmul.f32 %v309, %v1528
      %v1883 = vmul.f32 %v313, %v1524
      %v1884 = vmul.f32 %v313, %v1528
      %1893 = vrot.lane.b32.xlu0 %v1877, 127
      %v1894 = vpop.permute.xlu0 %1893
      %1895 = vrot.lane.b32.xlu0 %v1878, 127
      %v1896 = vpop.permute.xlu0 %1895
      %1897 = vrot.lane.b32.xlu0 %v1879, 127
      %v1898 = vpop.permute.xlu0 %1897
      %1899 = vrot.lane.b32.xlu0 %v1880, 127
      %v1900 = vpop.permute.xlu0 %1899
      %1901 = vrot.lane.b32.xlu0 %v1881, 127
      %v1902 = vpop.permute.xlu0 %1901
      %1903 = vrot.lane.b32.xlu0 %v1882, 127
      %v1904 = vpop.permute.xlu0 %1903
      %1905 = vrot.lane.b32.xlu0 %v1883, 127
      %v1906 = vpop.permute.xlu0 %1905
      %1907 = vrot.lane.b32.xlu0 %v1884, 127
      %v1908 = vpop.permute.xlu0 %1907
      %v1909 = vsel %vm347, %v1894, %v1896
      %v1910 = vsel %vm347, %v1898, %v1900
      %v1911 = vsel %vm347, %v1902, %v1904
      %v1912 = vsel %vm347, %v1906, %v1908
      %v1925 = vadd.f32 %v1865, %v1894
      %v1926 = vadd.f32 %v1866, %v1909
      %v1927 = vadd.f32 %v1867, %v1896
      %v1928 = vadd.f32 %v1868, %v1898
      %v1929 = vadd.f32 %v1869, %v1910
      %v1930 = vadd.f32 %v1870, %v1900
      %v1931 = vadd.f32 %v1871, %v1902
      %v1932 = vadd.f32 %v1872, %v1911
      %v1933 = vadd.f32 %v1873, %v1904
      %v1934 = vadd.f32 %v1874, %v1906
      %v1935 = vadd.f32 %v1875, %v1912
      %v1936 = vadd.f32 %v1876, %v1908
      %v1937 = vmul.f32 %v378, %v1524
      %v1938 = vmul.f32 %v378, %v1528
      %v1939 = vmul.f32 %v382, %v1524
      %v1940 = vmul.f32 %v382, %v1528
      %v1941 = vmul.f32 %v386, %v1524
      %v1942 = vmul.f32 %v386, %v1528
      %v1943 = vmul.f32 %v390, %v1524
      %v1944 = vmul.f32 %v390, %v1528
      %1953 = vrot.lane.b32.xlu0 %v1937, 126
      %v1954 = vpop.permute.xlu0 %1953
      %1955 = vrot.lane.b32.xlu0 %v1938, 126
      %v1956 = vpop.permute.xlu0 %1955
      %1957 = vrot.lane.b32.xlu0 %v1939, 126
      %v1958 = vpop.permute.xlu0 %1957
      %1959 = vrot.lane.b32.xlu0 %v1940, 126
      %v1960 = vpop.permute.xlu0 %1959
      %1961 = vrot.lane.b32.xlu0 %v1941, 126
      %v1962 = vpop.permute.xlu0 %1961
      %1963 = vrot.lane.b32.xlu0 %v1942, 126
      %v1964 = vpop.permute.xlu0 %1963
      %1965 = vrot.lane.b32.xlu0 %v1943, 126
      %v1966 = vpop.permute.xlu0 %1965
      %1967 = vrot.lane.b32.xlu0 %v1944, 126
      %v1968 = vpop.permute.xlu0 %1967
      %v1969 = vsel %vm424, %v1954, %v1956
      %v1970 = vsel %vm424, %v1958, %v1960
      %v1971 = vsel %vm424, %v1962, %v1964
      %v1972 = vsel %vm424, %v1966, %v1968
      %v1985 = vadd.f32 %v1925, %v1954
      %v1986 = vadd.f32 %v1926, %v1969
      %v1987 = vadd.f32 %v1927, %v1956
      %v1988 = vadd.f32 %v1928, %v1958
      %v1989 = vadd.f32 %v1929, %v1970
      %v1990 = vadd.f32 %v1930, %v1960
      %v1991 = vadd.f32 %v1931, %v1962
      %v1992 = vadd.f32 %v1932, %v1971
      %v1993 = vadd.f32 %v1933, %v1964
      %v1994 = vadd.f32 %v1934, %v1966
      %v1995 = vadd.f32 %v1935, %v1972
      %v1996 = vadd.f32 %v1936, %v1968
      %v1997 = vlaneseq
      %v1998 = vshrl.u32 %v1997, 7
      %v1999 = vsub.s32 4, %v1998
      %v2000 = vrot.slane %v232, %v1999
      %v2001 = vlaneseq
      %v2002 = vshrl.u32 %v2001, 7
      %v2003 = vsub.s32 4, %v2002
      %v2004 = vrot.slane %v233, %v2003
      %v2005 = vlaneseq
      %v2006 = vshrl.u32 %v2005, 7
      %v2007 = vsub.s32 4, %v2006
      %v2008 = vrot.slane %v234, %v2007
      %v2009 = vmul.f32 %v455, %v2000
      %v2010 = vmul.f32 %v455, %v2004
      %v2011 = vmul.f32 %v455, %v2008
      %v2012 = vmul.f32 %v459, %v2000
      %v2013 = vmul.f32 %v459, %v2004
      %v2014 = vmul.f32 %v459, %v2008
      %v2015 = vmul.f32 %v463, %v2000
      %v2016 = vmul.f32 %v463, %v2004
      %v2017 = vmul.f32 %v463, %v2008
      %v2018 = vmul.f32 %v467, %v2000
      %v2019 = vmul.f32 %v467, %v2004
      %v2020 = vmul.f32 %v467, %v2008
      %v2021 = vadd.f32 %v1985, %v2009
      %v2022 = vadd.f32 %v1986, %v2010
      %v2023 = vadd.f32 %v1987, %v2011
      %v2024 = vadd.f32 %v1988, %v2012
      %v2025 = vadd.f32 %v1989, %v2013
      %v2026 = vadd.f32 %v1990, %v2014
      %v2027 = vadd.f32 %v1991, %v2015
      %v2028 = vadd.f32 %v1992, %v2016
      %v2029 = vadd.f32 %v1993, %v2017
      %v2030 = vadd.f32 %v1994, %v2018
      %v2031 = vadd.f32 %v1995, %v2019
      %v2032 = vadd.f32 %v1996, %v2020
      %v2033 = vmul.f32 %v507, %v2004
      %v2034 = vmul.f32 %v507, %v2008
      %v2035 = vmul.f32 %v511, %v2004
      %v2036 = vmul.f32 %v511, %v2008
      %v2037 = vmul.f32 %v515, %v2004
      %v2038 = vmul.f32 %v515, %v2008
      %v2039 = vmul.f32 %v519, %v2004
      %v2040 = vmul.f32 %v519, %v2008
      %2049 = vrot.lane.b32.xlu0 %v2033, 127
      %v2050 = vpop.permute.xlu0 %2049
      %2051 = vrot.lane.b32.xlu0 %v2034, 127
      %v2052 = vpop.permute.xlu0 %2051
      %2053 = vrot.lane.b32.xlu0 %v2035, 127
      %v2054 = vpop.permute.xlu0 %2053
      %2055 = vrot.lane.b32.xlu0 %v2036, 127
      %v2056 = vpop.permute.xlu0 %2055
      %2057 = vrot.lane.b32.xlu0 %v2037, 127
      %v2058 = vpop.permute.xlu0 %2057
      %2059 = vrot.lane.b32.xlu0 %v2038, 127
      %v2060 = vpop.permute.xlu0 %2059
      %2061 = vrot.lane.b32.xlu0 %v2039, 127
      %v2062 = vpop.permute.xlu0 %2061
      %2063 = vrot.lane.b32.xlu0 %v2040, 127
      %v2064 = vpop.permute.xlu0 %2063
      %v2065 = vsel %vm347, %v2050, %v2052
      %v2066 = vsel %vm347, %v2054, %v2056
      %v2067 = vsel %vm347, %v2058, %v2060
      %v2068 = vsel %vm347, %v2062, %v2064
      %v2081 = vadd.f32 %v2021, %v2050
      %v2082 = vadd.f32 %v2022, %v2065
      %v2083 = vadd.f32 %v2023, %v2052
      %v2084 = vadd.f32 %v2024, %v2054
      %v2085 = vadd.f32 %v2025, %v2066
      %v2086 = vadd.f32 %v2026, %v2056
      %v2087 = vadd.f32 %v2027, %v2058
      %v2088 = vadd.f32 %v2028, %v2067
      %v2089 = vadd.f32 %v2029, %v2060
      %v2090 = vadd.f32 %v2030, %v2062
      %v2091 = vadd.f32 %v2031, %v2068
      %v2092 = vadd.f32 %v2032, %v2064
      %v2093 = vmul.f32 %v583, %v2004
      %v2094 = vmul.f32 %v583, %v2008
      %v2095 = vmul.f32 %v587, %v2004
      %v2096 = vmul.f32 %v587, %v2008
      %v2097 = vmul.f32 %v591, %v2004
      %v2098 = vmul.f32 %v591, %v2008
      %v2099 = vmul.f32 %v595, %v2004
      %v2100 = vmul.f32 %v595, %v2008
      %2109 = vrot.lane.b32.xlu0 %v2093, 126
      %v2110 = vpop.permute.xlu0 %2109
      %2111 = vrot.lane.b32.xlu0 %v2094, 126
      %v2112 = vpop.permute.xlu0 %2111
      %2113 = vrot.lane.b32.xlu0 %v2095, 126
      %v2114 = vpop.permute.xlu0 %2113
      %2115 = vrot.lane.b32.xlu0 %v2096, 126
      %v2116 = vpop.permute.xlu0 %2115
      %2117 = vrot.lane.b32.xlu0 %v2097, 126
      %v2118 = vpop.permute.xlu0 %2117
      %2119 = vrot.lane.b32.xlu0 %v2098, 126
      %v2120 = vpop.permute.xlu0 %2119
      %2121 = vrot.lane.b32.xlu0 %v2099, 126
      %v2122 = vpop.permute.xlu0 %2121
      %2123 = vrot.lane.b32.xlu0 %v2100, 126
      %v2124 = vpop.permute.xlu0 %2123
      %v2125 = vsel %vm424, %v2110, %v2112
      %v2126 = vsel %vm424, %v2114, %v2116
      %v2127 = vsel %vm424, %v2118, %v2120
      %v2128 = vsel %vm424, %v2122, %v2124
      %v2141 = vadd.f32 %v2081, %v2110
      %v2142 = vadd.f32 %v2082, %v2125
      %v2143 = vadd.f32 %v2083, %v2112
      %v2144 = vadd.f32 %v2084, %v2114
      %v2145 = vadd.f32 %v2085, %v2126
      %v2146 = vadd.f32 %v2086, %v2116
      %v2147 = vadd.f32 %v2087, %v2118
      %v2148 = vadd.f32 %v2088, %v2127
      %v2149 = vadd.f32 %v2089, %v2120
      %v2150 = vadd.f32 %v2090, %v2122
      %v2151 = vadd.f32 %v2091, %v2128
      %v2152 = vadd.f32 %v2092, %v2124
      %v2153 = vadd.f32 %v2141, %v660
      %v2154 = vadd.f32 %v2142, %v660
      %v2155 = vadd.f32 %v2143, %v660
      %v2156 = vadd.f32 %v2144, %v665
      %v2157 = vadd.f32 %v2145, %v665
      %v2158 = vadd.f32 %v2146, %v665
      %v2159 = vadd.f32 %v2147, %v670
      %v2160 = vadd.f32 %v2148, %v670
      %v2161 = vadd.f32 %v2149, %v670
      %v2162 = vadd.f32 %v2150, %v675
      %v2163 = vadd.f32 %v2151, %v675
      %v2164 = vadd.f32 %v2152, %v675
      %v2165 = vmax.f32 %v2153, 0.0
      %v2166 = vmax.f32 %v2154, 0.0
      %v2167 = vmax.f32 %v2155, 0.0
      %v2168 = vmax.f32 %v2156, 0.0
      %v2169 = vmax.f32 %v2157, 0.0
      %v2170 = vmax.f32 %v2158, 0.0
      %v2171 = vmax.f32 %v2159, 0.0
      %v2172 = vmax.f32 %v2160, 0.0
      %v2173 = vmax.f32 %v2161, 0.0
      %v2174 = vmax.f32 %v2162, 0.0
      %v2175 = vmax.f32 %v2163, 0.0
      %v2176 = vmax.f32 %v2164, 0.0
      %v2177 = vmax.f32 %v1697, %v2165
      %v2178 = vmax.f32 %v1698, %v2166
      %v2179 = vmax.f32 %v1699, %v2167
      %v2180 = vmax.f32 %v1700, %v2168
      %v2181 = vmax.f32 %v1701, %v2169
      %v2182 = vmax.f32 %v1702, %v2170
      %v2183 = vmax.f32 %v1703, %v2171
      %v2184 = vmax.f32 %v1704, %v2172
      %v2185 = vmax.f32 %v1705, %v2173
      %v2186 = vmax.f32 %v1706, %v2174
      %v2187 = vmax.f32 %v1707, %v2175
      %v2188 = vmax.f32 %v1708, %v2176
      %v2189 = vmul.f32 %v703, %v1520
      %v2190 = vmul.f32 %v703, %v1524
      %v2191 = vmul.f32 %v703, %v1528
      %v2192 = vmul.f32 %v707, %v1520
      %v2193 = vmul.f32 %v707, %v1524
      %v2194 = vmul.f32 %v707, %v1528
      %v2195 = vmul.f32 %v711, %v1520
      %v2196 = vmul.f32 %v711, %v1524
      %v2197 = vmul.f32 %v711, %v1528
      %v2198 = vmul.f32 %v715, %v1520
      %v2199 = vmul.f32 %v715, %v1524
      %v2200 = vmul.f32 %v715, %v1528
      %v2201 = vadd.f32 %v2189, 0.0
      %v2202 = vadd.f32 %v2190, 0.0
      %v2203 = vadd.f32 %v2191, 0.0
      %v2204 = vadd.f32 %v2192, 0.0
      %v2205 = vadd.f32 %v2193, 0.0
      %v2206 = vadd.f32 %v2194, 0.0
      %v2207 = vadd.f32 %v2195, 0.0
      %v2208 = vadd.f32 %v2196, 0.0
      %v2209 = vadd.f32 %v2197, 0.0
      %v2210 = vadd.f32 %v2198, 0.0
      %v2211 = vadd.f32 %v2199, 0.0
      %v2212 = vadd.f32 %v2200, 0.0
      %v2213 = vmul.f32 %v743, %v1524
      %v2214 = vmul.f32 %v743, %v1528
      %v2215 = vmul.f32 %v747, %v1524
      %v2216 = vmul.f32 %v747, %v1528
      %v2217 = vmul.f32 %v751, %v1524
      %v2218 = vmul.f32 %v751, %v1528
      %v2219 = vmul.f32 %v755, %v1524
      %v2220 = vmul.f32 %v755, %v1528
      %2229 = vrot.lane.b32.xlu0 %v2213, 127
      %v2230 = vpop.permute.xlu0 %2229
      %2231 = vrot.lane.b32.xlu0 %v2214, 127
      %v2232 = vpop.permute.xlu0 %2231
      %2233 = vrot.lane.b32.xlu0 %v2215, 127
      %v2234 = vpop.permute.xlu0 %2233
      %2235 = vrot.lane.b32.xlu0 %v2216, 127
      %v2236 = vpop.permute.xlu0 %2235
      %2237 = vrot.lane.b32.xlu0 %v2217, 127
      %v2238 = vpop.permute.xlu0 %2237
      %2239 = vrot.lane.b32.xlu0 %v2218, 127
      %v2240 = vpop.permute.xlu0 %2239
      %2241 = vrot.lane.b32.xlu0 %v2219, 127
      %v2242 = vpop.permute.xlu0 %2241
      %2243 = vrot.lane.b32.xlu0 %v2220, 127
      %v2244 = vpop.permute.xlu0 %2243
      %v2245 = vsel %vm347, %v2230, %v2232
      %v2246 = vsel %vm347, %v2234, %v2236
      %v2247 = vsel %vm347, %v2238, %v2240
      %v2248 = vsel %vm347, %v2242, %v2244
      %v2261 = vadd.f32 %v2201, %v2230
      %v2262 = vadd.f32 %v2202, %v2245
      %v2263 = vadd.f32 %v2203, %v2232
      %v2264 = vadd.f32 %v2204, %v2234
      %v2265 = vadd.f32 %v2205, %v2246
      %v2266 = vadd.f32 %v2206, %v2236
      %v2267 = vadd.f32 %v2207, %v2238
      %v2268 = vadd.f32 %v2208, %v2247
      %v2269 = vadd.f32 %v2209, %v2240
      %v2270 = vadd.f32 %v2210, %v2242
      %v2271 = vadd.f32 %v2211, %v2248
      %v2272 = vadd.f32 %v2212, %v2244
      %v2273 = vmul.f32 %v819, %v1524
      %v2274 = vmul.f32 %v819, %v1528
      %v2275 = vmul.f32 %v823, %v1524
      %v2276 = vmul.f32 %v823, %v1528
      %v2277 = vmul.f32 %v827, %v1524
      %v2278 = vmul.f32 %v827, %v1528
      %v2279 = vmul.f32 %v831, %v1524
      %v2280 = vmul.f32 %v831, %v1528
      %2289 = vrot.lane.b32.xlu0 %v2273, 126
      %v2290 = vpop.permute.xlu0 %2289
      %2291 = vrot.lane.b32.xlu0 %v2274, 126
      %v2292 = vpop.permute.xlu0 %2291
      %2293 = vrot.lane.b32.xlu0 %v2275, 126
      %v2294 = vpop.permute.xlu0 %2293
      %2295 = vrot.lane.b32.xlu0 %v2276, 126
      %v2296 = vpop.permute.xlu0 %2295
      %2297 = vrot.lane.b32.xlu0 %v2277, 126
      %v2298 = vpop.permute.xlu0 %2297
      %2299 = vrot.lane.b32.xlu0 %v2278, 126
      %v2300 = vpop.permute.xlu0 %2299
      %2301 = vrot.lane.b32.xlu0 %v2279, 126
      %v2302 = vpop.permute.xlu0 %2301
      %2303 = vrot.lane.b32.xlu0 %v2280, 126
      %v2304 = vpop.permute.xlu0 %2303
      %v2305 = vsel %vm424, %v2290, %v2292
      %v2306 = vsel %vm424, %v2294, %v2296
      %v2307 = vsel %vm424, %v2298, %v2300
      %v2308 = vsel %vm424, %v2302, %v2304
      %v2321 = vadd.f32 %v2261, %v2290
      %v2322 = vadd.f32 %v2262, %v2305
      %v2323 = vadd.f32 %v2263, %v2292
      %v2324 = vadd.f32 %v2264, %v2294
      %v2325 = vadd.f32 %v2265, %v2306
      %v2326 = vadd.f32 %v2266, %v2296
      %v2327 = vadd.f32 %v2267, %v2298
      %v2328 = vadd.f32 %v2268, %v2307
      %v2329 = vadd.f32 %v2269, %v2300
      %v2330 = vadd.f32 %v2270, %v2302
      %v2331 = vadd.f32 %v2271, %v2308
      %v2332 = vadd.f32 %v2272, %v2304
      %v2333 = vmul.f32 %v246, %v2000
      %v2334 = vmul.f32 %v246, %v2004
      %v2335 = vmul.f32 %v246, %v2008
      %v2336 = vmul.f32 %v251, %v2000
      %v2337 = vmul.f32 %v251, %v2004
      %v2338 = vmul.f32 %v251, %v2008
      %v2339 = vmul.f32 %v256, %v2000
      %v2340 = vmul.f32 %v256, %v2004
      %v2341 = vmul.f32 %v256, %v2008
      %v2342 = vmul.f32 %v261, %v2000
      %v2343 = vmul.f32 %v261, %v2004
      %v2344 = vmul.f32 %v261, %v2008
      %v2345 = vadd.f32 %v2321, %v2333
      %v2346 = vadd.f32 %v2322, %v2334
      %v2347 = vadd.f32 %v2323, %v2335
      %v2348 = vadd.f32 %v2324, %v2336
      %v2349 = vadd.f32 %v2325, %v2337
      %v2350 = vadd.f32 %v2326, %v2338
      %v2351 = vadd.f32 %v2327, %v2339
      %v2352 = vadd.f32 %v2328, %v2340
      %v2353 = vadd.f32 %v2329, %v2341
      %v2354 = vadd.f32 %v2330, %v2342
      %v2355 = vadd.f32 %v2331, %v2343
      %v2356 = vadd.f32 %v2332, %v2344
      %v2357 = vmul.f32 %v301, %v2004
      %v2358 = vmul.f32 %v301, %v2008
      %v2359 = vmul.f32 %v305, %v2004
      %v2360 = vmul.f32 %v305, %v2008
      %v2361 = vmul.f32 %v309, %v2004
      %v2362 = vmul.f32 %v309, %v2008
      %v2363 = vmul.f32 %v313, %v2004
      %v2364 = vmul.f32 %v313, %v2008
      %2373 = vrot.lane.b32.xlu0 %v2357, 127
      %v2374 = vpop.permute.xlu0 %2373
      %2375 = vrot.lane.b32.xlu0 %v2358, 127
      %v2376 = vpop.permute.xlu0 %2375
      %2377 = vrot.lane.b32.xlu0 %v2359, 127
      %v2378 = vpop.permute.xlu0 %2377
      %2379 = vrot.lane.b32.xlu0 %v2360, 127
      %v2380 = vpop.permute.xlu0 %2379
      %2381 = vrot.lane.b32.xlu0 %v2361, 127
      %v2382 = vpop.permute.xlu0 %2381
      %2383 = vrot.lane.b32.xlu0 %v2362, 127
      %v2384 = vpop.permute.xlu0 %2383
      %2385 = vrot.lane.b32.xlu0 %v2363, 127
      %v2386 = vpop.permute.xlu0 %2385
      %2387 = vrot.lane.b32.xlu0 %v2364, 127
      %v2388 = vpop.permute.xlu0 %2387
      %v2389 = vsel %vm347, %v2374, %v2376
      %v2390 = vsel %vm347, %v2378, %v2380
      %v2391 = vsel %vm347, %v2382, %v2384
      %v2392 = vsel %vm347, %v2386, %v2388
      %v2405 = vadd.f32 %v2345, %v2374
      %v2406 = vadd.f32 %v2346, %v2389
      %v2407 = vadd.f32 %v2347, %v2376
      %v2408 = vadd.f32 %v2348, %v2378
      %v2409 = vadd.f32 %v2349, %v2390
      %v2410 = vadd.f32 %v2350, %v2380
      %v2411 = vadd.f32 %v2351, %v2382
      %v2412 = vadd.f32 %v2352, %v2391
      %v2413 = vadd.f32 %v2353, %v2384
      %v2414 = vadd.f32 %v2354, %v2386
      %v2415 = vadd.f32 %v2355, %v2392
      %v2416 = vadd.f32 %v2356, %v2388
      %v2417 = vmul.f32 %v378, %v2004
      %v2418 = vmul.f32 %v378, %v2008
      %v2419 = vmul.f32 %v382, %v2004
      %v2420 = vmul.f32 %v382, %v2008
      %v2421 = vmul.f32 %v386, %v2004
      %v2422 = vmul.f32 %v386, %v2008
      %v2423 = vmul.f32 %v390, %v2004
      %v2424 = vmul.f32 %v390, %v2008
      %2433 = vrot.lane.b32.xlu0 %v2417, 126
      %v2434 = vpop.permute.xlu0 %2433
      %2435 = vrot.lane.b32.xlu0 %v2418, 126
      %v2436 = vpop.permute.xlu0 %2435
      %2437 = vrot.lane.b32.xlu0 %v2419, 126
      %v2438 = vpop.permute.xlu0 %2437
      %2439 = vrot.lane.b32.xlu0 %v2420, 126
      %v2440 = vpop.permute.xlu0 %2439
      %2441 = vrot.lane.b32.xlu0 %v2421, 126
      %v2442 = vpop.permute.xlu0 %2441
      %2443 = vrot.lane.b32.xlu0 %v2422, 126
      %v2444 = vpop.permute.xlu0 %2443
      %2445 = vrot.lane.b32.xlu0 %v2423, 126
      %v2446 = vpop.permute.xlu0 %2445
      %2447 = vrot.lane.b32.xlu0 %v2424, 126
      %v2448 = vpop.permute.xlu0 %2447
      %v2449 = vsel %vm424, %v2434, %v2436
      %v2450 = vsel %vm424, %v2438, %v2440
      %v2451 = vsel %vm424, %v2442, %v2444
      %v2452 = vsel %vm424, %v2446, %v2448
      %v2465 = vadd.f32 %v2405, %v2434
      %v2466 = vadd.f32 %v2406, %v2449
      %v2467 = vadd.f32 %v2407, %v2436
      %v2468 = vadd.f32 %v2408, %v2438
      %v2469 = vadd.f32 %v2409, %v2450
      %v2470 = vadd.f32 %v2410, %v2440
      %v2471 = vadd.f32 %v2411, %v2442
      %v2472 = vadd.f32 %v2412, %v2451
      %v2473 = vadd.f32 %v2413, %v2444
      %v2474 = vadd.f32 %v2414, %v2446
      %v2475 = vadd.f32 %v2415, %v2452
      %v2476 = vadd.f32 %v2416, %v2448
      %v2477 = vlaneseq
      %v2478 = vshrl.u32 %v2477, 7
      %v2479 = vsub.s32 5, %v2478
      %v2480 = vrot.slane %v232, %v2479
      %v2481 = vlaneseq
      %v2482 = vshrl.u32 %v2481, 7
      %v2483 = vsub.s32 5, %v2482
      %v2484 = vrot.slane %v233, %v2483
      %v2485 = vlaneseq
      %v2486 = vshrl.u32 %v2485, 7
      %v2487 = vsub.s32 5, %v2486
      %v2488 = vrot.slane %v234, %v2487
      %v2489 = vmul.f32 %v455, %v2480
      %v2490 = vmul.f32 %v455, %v2484
      %v2491 = vmul.f32 %v455, %v2488
      %v2492 = vmul.f32 %v459, %v2480
      %v2493 = vmul.f32 %v459, %v2484
      %v2494 = vmul.f32 %v459, %v2488
      %v2495 = vmul.f32 %v463, %v2480
      %v2496 = vmul.f32 %v463, %v2484
      %v2497 = vmul.f32 %v463, %v2488
      %v2498 = vmul.f32 %v467, %v2480
      %v2499 = vmul.f32 %v467, %v2484
      %v2500 = vmul.f32 %v467, %v2488
      %v2501 = vadd.f32 %v2465, %v2489
      %v2502 = vadd.f32 %v2466, %v2490
      %v2503 = vadd.f32 %v2467, %v2491
      %v2504 = vadd.f32 %v2468, %v2492
      %v2505 = vadd.f32 %v2469, %v2493
      %v2506 = vadd.f32 %v2470, %v2494
      %v2507 = vadd.f32 %v2471, %v2495
      %v2508 = vadd.f32 %v2472, %v2496
      %v2509 = vadd.f32 %v2473, %v2497
      %v2510 = vadd.f32 %v2474, %v2498
      %v2511 = vadd.f32 %v2475, %v2499
      %v2512 = vadd.f32 %v2476, %v2500
      %v2513 = vmul.f32 %v507, %v2484
      %v2514 = vmul.f32 %v507, %v2488
      %v2515 = vmul.f32 %v511, %v2484
      %v2516 = vmul.f32 %v511, %v2488
      %v2517 = vmul.f32 %v515, %v2484
      %v2518 = vmul.f32 %v515, %v2488
      %v2519 = vmul.f32 %v519, %v2484
      %v2520 = vmul.f32 %v519, %v2488
      %2529 = vrot.lane.b32.xlu0 %v2513, 127
      %v2530 = vpop.permute.xlu0 %2529
      %2531 = vrot.lane.b32.xlu0 %v2514, 127
      %v2532 = vpop.permute.xlu0 %2531
      %2533 = vrot.lane.b32.xlu0 %v2515, 127
      %v2534 = vpop.permute.xlu0 %2533
      %2535 = vrot.lane.b32.xlu0 %v2516, 127
      %v2536 = vpop.permute.xlu0 %2535
      %2537 = vrot.lane.b32.xlu0 %v2517, 127
      %v2538 = vpop.permute.xlu0 %2537
      %2539 = vrot.lane.b32.xlu0 %v2518, 127
      %v2540 = vpop.permute.xlu0 %2539
      %2541 = vrot.lane.b32.xlu0 %v2519, 127
      %v2542 = vpop.permute.xlu0 %2541
      %2543 = vrot.lane.b32.xlu0 %v2520, 127
      %v2544 = vpop.permute.xlu0 %2543
      %v2545 = vsel %vm347, %v2530, %v2532
      %v2546 = vsel %vm347, %v2534, %v2536
      %v2547 = vsel %vm347, %v2538, %v2540
      %v2548 = vsel %vm347, %v2542, %v2544
      %v2561 = vadd.f32 %v2501, %v2530
      %v2562 = vadd.f32 %v2502, %v2545
      %v2563 = vadd.f32 %v2503, %v2532
      %v2564 = vadd.f32 %v2504, %v2534
      %v2565 = vadd.f32 %v2505, %v2546
      %v2566 = vadd.f32 %v2506, %v2536
      %v2567 = vadd.f32 %v2507, %v2538
      %v2568 = vadd.f32 %v2508, %v2547
      %v2569 = vadd.f32 %v2509, %v2540
      %v2570 = vadd.f32 %v2510, %v2542
      %v2571 = vadd.f32 %v2511, %v2548
      %v2572 = vadd.f32 %v2512, %v2544
      %v2573 = vmul.f32 %v583, %v2484
      %v2574 = vmul.f32 %v583, %v2488
      %v2575 = vmul.f32 %v587, %v2484
      %v2576 = vmul.f32 %v587, %v2488
      %v2577 = vmul.f32 %v591, %v2484
      %v2578 = vmul.f32 %v591, %v2488
      %v2579 = vmul.f32 %v595, %v2484
      %v2580 = vmul.f32 %v595, %v2488
      %2589 = vrot.lane.b32.xlu0 %v2573, 126
      %v2590 = vpop.permute.xlu0 %2589
      %2591 = vrot.lane.b32.xlu0 %v2574, 126
      %v2592 = vpop.permute.xlu0 %2591
      %2593 = vrot.lane.b32.xlu0 %v2575, 126
      %v2594 = vpop.permute.xlu0 %2593
      %2595 = vrot.lane.b32.xlu0 %v2576, 126
      %v2596 = vpop.permute.xlu0 %2595
      %2597 = vrot.lane.b32.xlu0 %v2577, 126
      %v2598 = vpop.permute.xlu0 %2597
      %2599 = vrot.lane.b32.xlu0 %v2578, 126
      %v2600 = vpop.permute.xlu0 %2599
      %2601 = vrot.lane.b32.xlu0 %v2579, 126
      %v2602 = vpop.permute.xlu0 %2601
      %2603 = vrot.lane.b32.xlu0 %v2580, 126
      %v2604 = vpop.permute.xlu0 %2603
      %v2605 = vsel %vm424, %v2590, %v2592
      %v2606 = vsel %vm424, %v2594, %v2596
      %v2607 = vsel %vm424, %v2598, %v2600
      %v2608 = vsel %vm424, %v2602, %v2604
      %v2621 = vadd.f32 %v2561, %v2590
      %v2622 = vadd.f32 %v2562, %v2605
      %v2623 = vadd.f32 %v2563, %v2592
      %v2624 = vadd.f32 %v2564, %v2594
      %v2625 = vadd.f32 %v2565, %v2606
      %v2626 = vadd.f32 %v2566, %v2596
      %v2627 = vadd.f32 %v2567, %v2598
      %v2628 = vadd.f32 %v2568, %v2607
      %v2629 = vadd.f32 %v2569, %v2600
      %v2630 = vadd.f32 %v2570, %v2602
      %v2631 = vadd.f32 %v2571, %v2608
      %v2632 = vadd.f32 %v2572, %v2604
      %v2633 = vadd.f32 %v2621, %v660
      %v2634 = vadd.f32 %v2622, %v660
      %v2635 = vadd.f32 %v2623, %v660
      %v2636 = vadd.f32 %v2624, %v665
      %v2637 = vadd.f32 %v2625, %v665
      %v2638 = vadd.f32 %v2626, %v665
      %v2639 = vadd.f32 %v2627, %v670
      %v2640 = vadd.f32 %v2628, %v670
      %v2641 = vadd.f32 %v2629, %v670
      %v2642 = vadd.f32 %v2630, %v675
      %v2643 = vadd.f32 %v2631, %v675
      %v2644 = vadd.f32 %v2632, %v675
      %v2645 = vmax.f32 %v2633, 0.0
      %v2646 = vmax.f32 %v2634, 0.0
      %v2647 = vmax.f32 %v2635, 0.0
      %v2648 = vmax.f32 %v2636, 0.0
      %v2649 = vmax.f32 %v2637, 0.0
      %v2650 = vmax.f32 %v2638, 0.0
      %v2651 = vmax.f32 %v2639, 0.0
      %v2652 = vmax.f32 %v2640, 0.0
      %v2653 = vmax.f32 %v2641, 0.0
      %v2654 = vmax.f32 %v2642, 0.0
      %v2655 = vmax.f32 %v2643, 0.0
      %v2656 = vmax.f32 %v2644, 0.0
      %v2657 = vmax.f32 %v2177, %v2645
      %v2658 = vmax.f32 %v2178, %v2646
      %v2659 = vmax.f32 %v2179, %v2647
      %v2660 = vmax.f32 %v2180, %v2648
      %v2661 = vmax.f32 %v2181, %v2649
      %v2662 = vmax.f32 %v2182, %v2650
      %v2663 = vmax.f32 %v2183, %v2651
      %v2664 = vmax.f32 %v2184, %v2652
      %v2665 = vmax.f32 %v2185, %v2653
      %v2666 = vmax.f32 %v2186, %v2654
      %v2667 = vmax.f32 %v2187, %v2655
      %v2668 = vmax.f32 %v2188, %v2656
      %v2669 = vmul.f32 %v703, %v2000
      %v2670 = vmul.f32 %v703, %v2004
      %v2671 = vmul.f32 %v703, %v2008
      %v2672 = vmul.f32 %v707, %v2000
      %v2673 = vmul.f32 %v707, %v2004
      %v2674 = vmul.f32 %v707, %v2008
      %v2675 = vmul.f32 %v711, %v2000
      %v2676 = vmul.f32 %v711, %v2004
      %v2677 = vmul.f32 %v711, %v2008
      %v2678 = vmul.f32 %v715, %v2000
      %v2679 = vmul.f32 %v715, %v2004
      %v2680 = vmul.f32 %v715, %v2008
      %v2681 = vadd.f32 %v2669, 0.0
      %v2682 = vadd.f32 %v2670, 0.0
      %v2683 = vadd.f32 %v2671, 0.0
      %v2684 = vadd.f32 %v2672, 0.0
      %v2685 = vadd.f32 %v2673, 0.0
      %v2686 = vadd.f32 %v2674, 0.0
      %v2687 = vadd.f32 %v2675, 0.0
      %v2688 = vadd.f32 %v2676, 0.0
      %v2689 = vadd.f32 %v2677, 0.0
      %v2690 = vadd.f32 %v2678, 0.0
      %v2691 = vadd.f32 %v2679, 0.0
      %v2692 = vadd.f32 %v2680, 0.0
      %v2693 = vmul.f32 %v743, %v2004
      %v2694 = vmul.f32 %v743, %v2008
      %v2695 = vmul.f32 %v747, %v2004
      %v2696 = vmul.f32 %v747, %v2008
      %v2697 = vmul.f32 %v751, %v2004
      %v2698 = vmul.f32 %v751, %v2008
      %v2699 = vmul.f32 %v755, %v2004
      %v2700 = vmul.f32 %v755, %v2008
      %2709 = vrot.lane.b32.xlu0 %v2693, 127
      %v2710 = vpop.permute.xlu0 %2709
      %2711 = vrot.lane.b32.xlu0 %v2694, 127
      %v2712 = vpop.permute.xlu0 %2711
      %2713 = vrot.lane.b32.xlu0 %v2695, 127
      %v2714 = vpop.permute.xlu0 %2713
      %2715 = vrot.lane.b32.xlu0 %v2696, 127
      %v2716 = vpop.permute.xlu0 %2715
      %2717 = vrot.lane.b32.xlu0 %v2697, 127
      %v2718 = vpop.permute.xlu0 %2717
      %2719 = vrot.lane.b32.xlu0 %v2698, 127
      %v2720 = vpop.permute.xlu0 %2719
      %2721 = vrot.lane.b32.xlu0 %v2699, 127
      %v2722 = vpop.permute.xlu0 %2721
      %2723 = vrot.lane.b32.xlu0 %v2700, 127
      %v2724 = vpop.permute.xlu0 %2723
      %v2725 = vsel %vm347, %v2710, %v2712
      %v2726 = vsel %vm347, %v2714, %v2716
      %v2727 = vsel %vm347, %v2718, %v2720
      %v2728 = vsel %vm347, %v2722, %v2724
      %v2741 = vadd.f32 %v2681, %v2710
      %v2742 = vadd.f32 %v2682, %v2725
      %v2743 = vadd.f32 %v2683, %v2712
      %v2744 = vadd.f32 %v2684, %v2714
      %v2745 = vadd.f32 %v2685, %v2726
      %v2746 = vadd.f32 %v2686, %v2716
      %v2747 = vadd.f32 %v2687, %v2718
      %v2748 = vadd.f32 %v2688, %v2727
      %v2749 = vadd.f32 %v2689, %v2720
      %v2750 = vadd.f32 %v2690, %v2722
      %v2751 = vadd.f32 %v2691, %v2728
      %v2752 = vadd.f32 %v2692, %v2724
      %v2753 = vmul.f32 %v819, %v2004
      %v2754 = vmul.f32 %v819, %v2008
      %v2755 = vmul.f32 %v823, %v2004
      %v2756 = vmul.f32 %v823, %v2008
      %v2757 = vmul.f32 %v827, %v2004
      %v2758 = vmul.f32 %v827, %v2008
      %v2759 = vmul.f32 %v831, %v2004
      %v2760 = vmul.f32 %v831, %v2008
      %2769 = vrot.lane.b32.xlu0 %v2753, 126
      %v2770 = vpop.permute.xlu0 %2769
      %2771 = vrot.lane.b32.xlu0 %v2754, 126
      %v2772 = vpop.permute.xlu0 %2771
      %2773 = vrot.lane.b32.xlu0 %v2755, 126
      %v2774 = vpop.permute.xlu0 %2773
      %2775 = vrot.lane.b32.xlu0 %v2756, 126
      %v2776 = vpop.permute.xlu0 %2775
      %2777 = vrot.lane.b32.xlu0 %v2757, 126
      %v2778 = vpop.permute.xlu0 %2777
      %2779 = vrot.lane.b32.xlu0 %v2758, 126
      %v2780 = vpop.permute.xlu0 %2779
      %2781 = vrot.lane.b32.xlu0 %v2759, 126
      %v2782 = vpop.permute.xlu0 %2781
      %2783 = vrot.lane.b32.xlu0 %v2760, 126
      %v2784 = vpop.permute.xlu0 %2783
      %v2785 = vsel %vm424, %v2770, %v2772
      %v2786 = vsel %vm424, %v2774, %v2776
      %v2787 = vsel %vm424, %v2778, %v2780
      %v2788 = vsel %vm424, %v2782, %v2784
      %v2801 = vadd.f32 %v2741, %v2770
      %v2802 = vadd.f32 %v2742, %v2785
      %v2803 = vadd.f32 %v2743, %v2772
      %v2804 = vadd.f32 %v2744, %v2774
      %v2805 = vadd.f32 %v2745, %v2786
      %v2806 = vadd.f32 %v2746, %v2776
      %v2807 = vadd.f32 %v2747, %v2778
      %v2808 = vadd.f32 %v2748, %v2787
      %v2809 = vadd.f32 %v2749, %v2780
      %v2810 = vadd.f32 %v2750, %v2782
      %v2811 = vadd.f32 %v2751, %v2788
      %v2812 = vadd.f32 %v2752, %v2784
      %v2813 = vmul.f32 %v246, %v2480
      %v2814 = vmul.f32 %v246, %v2484
      %v2815 = vmul.f32 %v246, %v2488
      %v2816 = vmul.f32 %v251, %v2480
      %v2817 = vmul.f32 %v251, %v2484
      %v2818 = vmul.f32 %v251, %v2488
      %v2819 = vmul.f32 %v256, %v2480
      %v2820 = vmul.f32 %v256, %v2484
      %v2821 = vmul.f32 %v256, %v2488
      %v2822 = vmul.f32 %v261, %v2480
      %v2823 = vmul.f32 %v261, %v2484
      %v2824 = vmul.f32 %v261, %v2488
      %v2825 = vadd.f32 %v2801, %v2813
      %v2826 = vadd.f32 %v2802, %v2814
      %v2827 = vadd.f32 %v2803, %v2815
      %v2828 = vadd.f32 %v2804, %v2816
      %v2829 = vadd.f32 %v2805, %v2817
      %v2830 = vadd.f32 %v2806, %v2818
      %v2831 = vadd.f32 %v2807, %v2819
      %v2832 = vadd.f32 %v2808, %v2820
      %v2833 = vadd.f32 %v2809, %v2821
      %v2834 = vadd.f32 %v2810, %v2822
      %v2835 = vadd.f32 %v2811, %v2823
      %v2836 = vadd.f32 %v2812, %v2824
      %v2837 = vmul.f32 %v301, %v2484
      %v2838 = vmul.f32 %v301, %v2488
      %v2839 = vmul.f32 %v305, %v2484
      %v2840 = vmul.f32 %v305, %v2488
      %v2841 = vmul.f32 %v309, %v2484
      %v2842 = vmul.f32 %v309, %v2488
      %v2843 = vmul.f32 %v313, %v2484
      %v2844 = vmul.f32 %v313, %v2488
      %2853 = vrot.lane.b32.xlu0 %v2837, 127
      %v2854 = vpop.permute.xlu0 %2853
      %2855 = vrot.lane.b32.xlu0 %v2838, 127
      %v2856 = vpop.permute.xlu0 %2855
      %2857 = vrot.lane.b32.xlu0 %v2839, 127
      %v2858 = vpop.permute.xlu0 %2857
      %2859 = vrot.lane.b32.xlu0 %v2840, 127
      %v2860 = vpop.permute.xlu0 %2859
      %2861 = vrot.lane.b32.xlu0 %v2841, 127
      %v2862 = vpop.permute.xlu0 %2861
      %2863 = vrot.lane.b32.xlu0 %v2842, 127
      %v2864 = vpop.permute.xlu0 %2863
      %2865 = vrot.lane.b32.xlu0 %v2843, 127
      %v2866 = vpop.permute.xlu0 %2865
      %2867 = vrot.lane.b32.xlu0 %v2844, 127
      %v2868 = vpop.permute.xlu0 %2867
      %v2869 = vsel %vm347, %v2854, %v2856
      %v2870 = vsel %vm347, %v2858, %v2860
      %v2871 = vsel %vm347, %v2862, %v2864
      %v2872 = vsel %vm347, %v2866, %v2868
      %v2885 = vadd.f32 %v2825, %v2854
      %v2886 = vadd.f32 %v2826, %v2869
      %v2887 = vadd.f32 %v2827, %v2856
      %v2888 = vadd.f32 %v2828, %v2858
      %v2889 = vadd.f32 %v2829, %v2870
      %v2890 = vadd.f32 %v2830, %v2860
      %v2891 = vadd.f32 %v2831, %v2862
      %v2892 = vadd.f32 %v2832, %v2871
      %v2893 = vadd.f32 %v2833, %v2864
      %v2894 = vadd.f32 %v2834, %v2866
      %v2895 = vadd.f32 %v2835, %v2872
      %v2896 = vadd.f32 %v2836, %v2868
      %v2897 = vmul.f32 %v378, %v2484
      %v2898 = vmul.f32 %v378, %v2488
      %v2899 = vmul.f32 %v382, %v2484
      %v2900 = vmul.f32 %v382, %v2488
      %v2901 = vmul.f32 %v386, %v2484
      %v2902 = vmul.f32 %v386, %v2488
      %v2903 = vmul.f32 %v390, %v2484
      %v2904 = vmul.f32 %v390, %v2488
      %2913 = vrot.lane.b32.xlu0 %v2897, 126
      %v2914 = vpop.permute.xlu0 %2913
      %2915 = vrot.lane.b32.xlu0 %v2898, 126
      %v2916 = vpop.permute.xlu0 %2915
      %2917 = vrot.lane.b32.xlu0 %v2899, 126
      %v2918 = vpop.permute.xlu0 %2917
      %2919 = vrot.lane.b32.xlu0 %v2900, 126
      %v2920 = vpop.permute.xlu0 %2919
      %2921 = vrot.lane.b32.xlu0 %v2901, 126
      %v2922 = vpop.permute.xlu0 %2921
      %2923 = vrot.lane.b32.xlu0 %v2902, 126
      %v2924 = vpop.permute.xlu0 %2923
      %2925 = vrot.lane.b32.xlu0 %v2903, 126
      %v2926 = vpop.permute.xlu0 %2925
      %2927 = vrot.lane.b32.xlu0 %v2904, 126
      %v2928 = vpop.permute.xlu0 %2927
      %v2929 = vsel %vm424, %v2914, %v2916
      %v2930 = vsel %vm424, %v2918, %v2920
      %v2931 = vsel %vm424, %v2922, %v2924
      %v2932 = vsel %vm424, %v2926, %v2928
      %v2945 = vadd.f32 %v2885, %v2914
      %v2946 = vadd.f32 %v2886, %v2929
      %v2947 = vadd.f32 %v2887, %v2916
      %v2948 = vadd.f32 %v2888, %v2918
      %v2949 = vadd.f32 %v2889, %v2930
      %v2950 = vadd.f32 %v2890, %v2920
      %v2951 = vadd.f32 %v2891, %v2922
      %v2952 = vadd.f32 %v2892, %v2931
      %v2953 = vadd.f32 %v2893, %v2924
      %v2954 = vadd.f32 %v2894, %v2926
      %v2955 = vadd.f32 %v2895, %v2932
      %v2956 = vadd.f32 %v2896, %v2928
      %v2957 = vlaneseq
      %v2958 = vshrl.u32 %v2957, 7
      %v2959 = vsub.s32 6, %v2958
      %v2960 = vrot.slane %v232, %v2959
      %v2961 = vlaneseq
      %v2962 = vshrl.u32 %v2961, 7
      %v2963 = vsub.s32 6, %v2962
      %v2964 = vrot.slane %v233, %v2963
      %v2965 = vlaneseq
      %v2966 = vshrl.u32 %v2965, 7
      %v2967 = vsub.s32 6, %v2966
      %v2968 = vrot.slane %v234, %v2967
      %v2969 = vmul.f32 %v455, %v2960
      %v2970 = vmul.f32 %v455, %v2964
      %v2971 = vmul.f32 %v455, %v2968
      %v2972 = vmul.f32 %v459, %v2960
      %v2973 = vmul.f32 %v459, %v2964
      %v2974 = vmul.f32 %v459, %v2968
      %v2975 = vmul.f32 %v463, %v2960
      %v2976 = vmul.f32 %v463, %v2964
      %v2977 = vmul.f32 %v463, %v2968
      %v2978 = vmul.f32 %v467, %v2960
      %v2979 = vmul.f32 %v467, %v2964
      %v2980 = vmul.f32 %v467, %v2968
      %v2981 = vadd.f32 %v2945, %v2969
      %v2982 = vadd.f32 %v2946, %v2970
      %v2983 = vadd.f32 %v2947, %v2971
      %v2984 = vadd.f32 %v2948, %v2972
      %v2985 = vadd.f32 %v2949, %v2973
      %v2986 = vadd.f32 %v2950, %v2974
      %v2987 = vadd.f32 %v2951, %v2975
      %v2988 = vadd.f32 %v2952, %v2976
      %v2989 = vadd.f32 %v2953, %v2977
      %v2990 = vadd.f32 %v2954, %v2978
      %v2991 = vadd.f32 %v2955, %v2979
      %v2992 = vadd.f32 %v2956, %v2980
      %v2993 = vmul.f32 %v507, %v2964
      %v2994 = vmul.f32 %v507, %v2968
      %v2995 = vmul.f32 %v511, %v2964
      %v2996 = vmul.f32 %v511, %v2968
      %v2997 = vmul.f32 %v515, %v2964
      %v2998 = vmul.f32 %v515, %v2968
      %v2999 = vmul.f32 %v519, %v2964
      %v3000 = vmul.f32 %v519, %v2968
      %3009 = vrot.lane.b32.xlu0 %v2993, 127
      %v3010 = vpop.permute.xlu0 %3009
      %3011 = vrot.lane.b32.xlu0 %v2994, 127
      %v3012 = vpop.permute.xlu0 %3011
      %3013 = vrot.lane.b32.xlu0 %v2995, 127
      %v3014 = vpop.permute.xlu0 %3013
      %3015 = vrot.lane.b32.xlu0 %v2996, 127
      %v3016 = vpop.permute.xlu0 %3015
      %3017 = vrot.lane.b32.xlu0 %v2997, 127
      %v3018 = vpop.permute.xlu0 %3017
      %3019 = vrot.lane.b32.xlu0 %v2998, 127
      %v3020 = vpop.permute.xlu0 %3019
      %3021 = vrot.lane.b32.xlu0 %v2999, 127
      %v3022 = vpop.permute.xlu0 %3021
      %3023 = vrot.lane.b32.xlu0 %v3000, 127
      %v3024 = vpop.permute.xlu0 %3023
      %v3025 = vsel %vm347, %v3010, %v3012
      %v3026 = vsel %vm347, %v3014, %v3016
      %v3027 = vsel %vm347, %v3018, %v3020
      %v3028 = vsel %vm347, %v3022, %v3024
      %v3041 = vadd.f32 %v2981, %v3010
      %v3042 = vadd.f32 %v2982, %v3025
      %v3043 = vadd.f32 %v2983, %v3012
      %v3044 = vadd.f32 %v2984, %v3014
      %v3045 = vadd.f32 %v2985, %v3026
      %v3046 = vadd.f32 %v2986, %v3016
      %v3047 = vadd.f32 %v2987, %v3018
      %v3048 = vadd.f32 %v2988, %v3027
      %v3049 = vadd.f32 %v2989, %v3020
      %v3050 = vadd.f32 %v2990, %v3022
      %v3051 = vadd.f32 %v2991, %v3028
      %v3052 = vadd.f32 %v2992, %v3024
      %v3053 = vmul.f32 %v583, %v2964
      %v3054 = vmul.f32 %v583, %v2968
      %v3055 = vmul.f32 %v587, %v2964
      %v3056 = vmul.f32 %v587, %v2968
      %v3057 = vmul.f32 %v591, %v2964
      %v3058 = vmul.f32 %v591, %v2968
      %v3059 = vmul.f32 %v595, %v2964
      %v3060 = vmul.f32 %v595, %v2968
      %3069 = vrot.lane.b32.xlu0 %v3053, 126
      %v3070 = vpop.permute.xlu0 %3069
      %3071 = vrot.lane.b32.xlu0 %v3054, 126
      %v3072 = vpop.permute.xlu0 %3071
      %3073 = vrot.lane.b32.xlu0 %v3055, 126
      %v3074 = vpop.permute.xlu0 %3073
      %3075 = vrot.lane.b32.xlu0 %v3056, 126
      %v3076 = vpop.permute.xlu0 %3075
      %3077 = vrot.lane.b32.xlu0 %v3057, 126
      %v3078 = vpop.permute.xlu0 %3077
      %3079 = vrot.lane.b32.xlu0 %v3058, 126
      %v3080 = vpop.permute.xlu0 %3079
      %3081 = vrot.lane.b32.xlu0 %v3059, 126
      %v3082 = vpop.permute.xlu0 %3081
      %3083 = vrot.lane.b32.xlu0 %v3060, 126
      %v3084 = vpop.permute.xlu0 %3083
      %v3085 = vsel %vm424, %v3070, %v3072
      %v3086 = vsel %vm424, %v3074, %v3076
      %v3087 = vsel %vm424, %v3078, %v3080
      %v3088 = vsel %vm424, %v3082, %v3084
      %v3101 = vadd.f32 %v3041, %v3070
      %v3102 = vadd.f32 %v3042, %v3085
      %v3103 = vadd.f32 %v3043, %v3072
      %v3104 = vadd.f32 %v3044, %v3074
      %v3105 = vadd.f32 %v3045, %v3086
      %v3106 = vadd.f32 %v3046, %v3076
      %v3107 = vadd.f32 %v3047, %v3078
      %v3108 = vadd.f32 %v3048, %v3087
      %v3109 = vadd.f32 %v3049, %v3080
      %v3110 = vadd.f32 %v3050, %v3082
      %v3111 = vadd.f32 %v3051, %v3088
      %v3112 = vadd.f32 %v3052, %v3084
      %v3113 = vadd.f32 %v3101, %v660
      %v3114 = vadd.f32 %v3102, %v660
      %v3115 = vadd.f32 %v3103, %v660
      %v3116 = vadd.f32 %v3104, %v665
      %v3117 = vadd.f32 %v3105, %v665
      %v3118 = vadd.f32 %v3106, %v665
      %v3119 = vadd.f32 %v3107, %v670
      %v3120 = vadd.f32 %v3108, %v670
      %v3121 = vadd.f32 %v3109, %v670
      %v3122 = vadd.f32 %v3110, %v675
      %v3123 = vadd.f32 %v3111, %v675
      %v3124 = vadd.f32 %v3112, %v675
      %v3125 = vmax.f32 %v3113, 0.0
      %v3126 = vmax.f32 %v3114, 0.0
      %v3127 = vmax.f32 %v3115, 0.0
      %v3128 = vmax.f32 %v3116, 0.0
      %v3129 = vmax.f32 %v3117, 0.0
      %v3130 = vmax.f32 %v3118, 0.0
      %v3131 = vmax.f32 %v3119, 0.0
      %v3132 = vmax.f32 %v3120, 0.0
      %v3133 = vmax.f32 %v3121, 0.0
      %v3134 = vmax.f32 %v3122, 0.0
      %v3135 = vmax.f32 %v3123, 0.0
      %v3136 = vmax.f32 %v3124, 0.0
      %v3137 = vmax.f32 %v2657, %v3125
      %v3138 = vmax.f32 %v2658, %v3126
      %v3139 = vmax.f32 %v2659, %v3127
      %v3140 = vmax.f32 %v2660, %v3128
      %v3141 = vmax.f32 %v2661, %v3129
      %v3142 = vmax.f32 %v2662, %v3130
      %v3143 = vmax.f32 %v2663, %v3131
      %v3144 = vmax.f32 %v2664, %v3132
      %v3145 = vmax.f32 %v2665, %v3133
      %v3146 = vmax.f32 %v2666, %v3134
      %v3147 = vmax.f32 %v2667, %v3135
      %v3148 = vmax.f32 %v2668, %v3136
      %v3149 = vmul.f32 %v703, %v2480
      %v3150 = vmul.f32 %v703, %v2484
      %v3151 = vmul.f32 %v703, %v2488
      %v3152 = vmul.f32 %v707, %v2480
      %v3153 = vmul.f32 %v707, %v2484
      %v3154 = vmul.f32 %v707, %v2488
      %v3155 = vmul.f32 %v711, %v2480
      %v3156 = vmul.f32 %v711, %v2484
      %v3157 = vmul.f32 %v711, %v2488
      %v3158 = vmul.f32 %v715, %v2480
      %v3159 = vmul.f32 %v715, %v2484
      %v3160 = vmul.f32 %v715, %v2488
      %v3161 = vadd.f32 %v3149, 0.0
      %v3162 = vadd.f32 %v3150, 0.0
      %v3163 = vadd.f32 %v3151, 0.0
      %v3164 = vadd.f32 %v3152, 0.0
      %v3165 = vadd.f32 %v3153, 0.0
      %v3166 = vadd.f32 %v3154, 0.0
      %v3167 = vadd.f32 %v3155, 0.0
      %v3168 = vadd.f32 %v3156, 0.0
      %v3169 = vadd.f32 %v3157, 0.0
      %v3170 = vadd.f32 %v3158, 0.0
      %v3171 = vadd.f32 %v3159, 0.0
      %v3172 = vadd.f32 %v3160, 0.0
      %v3173 = vmul.f32 %v743, %v2484
      %v3174 = vmul.f32 %v743, %v2488
      %v3175 = vmul.f32 %v747, %v2484
      %v3176 = vmul.f32 %v747, %v2488
      %v3177 = vmul.f32 %v751, %v2484
      %v3178 = vmul.f32 %v751, %v2488
      %v3179 = vmul.f32 %v755, %v2484
      %v3180 = vmul.f32 %v755, %v2488
      %3189 = vrot.lane.b32.xlu0 %v3173, 127
      %v3190 = vpop.permute.xlu0 %3189
      %3191 = vrot.lane.b32.xlu0 %v3174, 127
      %v3192 = vpop.permute.xlu0 %3191
      %3193 = vrot.lane.b32.xlu0 %v3175, 127
      %v3194 = vpop.permute.xlu0 %3193
      %3195 = vrot.lane.b32.xlu0 %v3176, 127
      %v3196 = vpop.permute.xlu0 %3195
      %3197 = vrot.lane.b32.xlu0 %v3177, 127
      %v3198 = vpop.permute.xlu0 %3197
      %3199 = vrot.lane.b32.xlu0 %v3178, 127
      %v3200 = vpop.permute.xlu0 %3199
      %3201 = vrot.lane.b32.xlu0 %v3179, 127
      %v3202 = vpop.permute.xlu0 %3201
      %3203 = vrot.lane.b32.xlu0 %v3180, 127
      %v3204 = vpop.permute.xlu0 %3203
      %v3205 = vsel %vm347, %v3190, %v3192
      %v3206 = vsel %vm347, %v3194, %v3196
      %v3207 = vsel %vm347, %v3198, %v3200
      %v3208 = vsel %vm347, %v3202, %v3204
      %v3221 = vadd.f32 %v3161, %v3190
      %v3222 = vadd.f32 %v3162, %v3205
      %v3223 = vadd.f32 %v3163, %v3192
      %v3224 = vadd.f32 %v3164, %v3194
      %v3225 = vadd.f32 %v3165, %v3206
      %v3226 = vadd.f32 %v3166, %v3196
      %v3227 = vadd.f32 %v3167, %v3198
      %v3228 = vadd.f32 %v3168, %v3207
      %v3229 = vadd.f32 %v3169, %v3200
      %v3230 = vadd.f32 %v3170, %v3202
      %v3231 = vadd.f32 %v3171, %v3208
      %v3232 = vadd.f32 %v3172, %v3204
      %v3233 = vmul.f32 %v819, %v2484
      %v3234 = vmul.f32 %v819, %v2488
      %v3235 = vmul.f32 %v823, %v2484
      %v3236 = vmul.f32 %v823, %v2488
      %v3237 = vmul.f32 %v827, %v2484
      %v3238 = vmul.f32 %v827, %v2488
      %v3239 = vmul.f32 %v831, %v2484
      %v3240 = vmul.f32 %v831, %v2488
      %3249 = vrot.lane.b32.xlu0 %v3233, 126
      %v3250 = vpop.permute.xlu0 %3249
      %3251 = vrot.lane.b32.xlu0 %v3234, 126
      %v3252 = vpop.permute.xlu0 %3251
      %3253 = vrot.lane.b32.xlu0 %v3235, 126
      %v3254 = vpop.permute.xlu0 %3253
      %3255 = vrot.lane.b32.xlu0 %v3236, 126
      %v3256 = vpop.permute.xlu0 %3255
      %3257 = vrot.lane.b32.xlu0 %v3237, 126
      %v3258 = vpop.permute.xlu0 %3257
      %3259 = vrot.lane.b32.xlu0 %v3238, 126
      %v3260 = vpop.permute.xlu0 %3259
      %3261 = vrot.lane.b32.xlu0 %v3239, 126
      %v3262 = vpop.permute.xlu0 %3261
      %3263 = vrot.lane.b32.xlu0 %v3240, 126
      %v3264 = vpop.permute.xlu0 %3263
      %v3265 = vsel %vm424, %v3250, %v3252
      %v3266 = vsel %vm424, %v3254, %v3256
      %v3267 = vsel %vm424, %v3258, %v3260
      %v3268 = vsel %vm424, %v3262, %v3264
      %v3281 = vadd.f32 %v3221, %v3250
      %v3282 = vadd.f32 %v3222, %v3265
      %v3283 = vadd.f32 %v3223, %v3252
      %v3284 = vadd.f32 %v3224, %v3254
      %v3285 = vadd.f32 %v3225, %v3266
      %v3286 = vadd.f32 %v3226, %v3256
      %v3287 = vadd.f32 %v3227, %v3258
      %v3288 = vadd.f32 %v3228, %v3267
      %v3289 = vadd.f32 %v3229, %v3260
      %v3290 = vadd.f32 %v3230, %v3262
      %v3291 = vadd.f32 %v3231, %v3268
      %v3292 = vadd.f32 %v3232, %v3264
      %v3293 = vmul.f32 %v246, %v2960
      %v3294 = vmul.f32 %v246, %v2964
      %v3295 = vmul.f32 %v246, %v2968
      %v3296 = vmul.f32 %v251, %v2960
      %v3297 = vmul.f32 %v251, %v2964
      %v3298 = vmul.f32 %v251, %v2968
      %v3299 = vmul.f32 %v256, %v2960
      %v3300 = vmul.f32 %v256, %v2964
      %v3301 = vmul.f32 %v256, %v2968
      %v3302 = vmul.f32 %v261, %v2960
      %v3303 = vmul.f32 %v261, %v2964
      %v3304 = vmul.f32 %v261, %v2968
      %v3305 = vadd.f32 %v3281, %v3293
      %v3306 = vadd.f32 %v3282, %v3294
      %v3307 = vadd.f32 %v3283, %v3295
      %v3308 = vadd.f32 %v3284, %v3296
      %v3309 = vadd.f32 %v3285, %v3297
      %v3310 = vadd.f32 %v3286, %v3298
      %v3311 = vadd.f32 %v3287, %v3299
      %v3312 = vadd.f32 %v3288, %v3300
      %v3313 = vadd.f32 %v3289, %v3301
      %v3314 = vadd.f32 %v3290, %v3302
      %v3315 = vadd.f32 %v3291, %v3303
      %v3316 = vadd.f32 %v3292, %v3304
      %v3317 = vmul.f32 %v301, %v2964
      %v3318 = vmul.f32 %v301, %v2968
      %v3319 = vmul.f32 %v305, %v2964
      %v3320 = vmul.f32 %v305, %v2968
      %v3321 = vmul.f32 %v309, %v2964
      %v3322 = vmul.f32 %v309, %v2968
      %v3323 = vmul.f32 %v313, %v2964
      %v3324 = vmul.f32 %v313, %v2968
      %3333 = vrot.lane.b32.xlu0 %v3317, 127
      %v3334 = vpop.permute.xlu0 %3333
      %3335 = vrot.lane.b32.xlu0 %v3318, 127
      %v3336 = vpop.permute.xlu0 %3335
      %3337 = vrot.lane.b32.xlu0 %v3319, 127
      %v3338 = vpop.permute.xlu0 %3337
      %3339 = vrot.lane.b32.xlu0 %v3320, 127
      %v3340 = vpop.permute.xlu0 %3339
      %3341 = vrot.lane.b32.xlu0 %v3321, 127
      %v3342 = vpop.permute.xlu0 %3341
      %3343 = vrot.lane.b32.xlu0 %v3322, 127
      %v3344 = vpop.permute.xlu0 %3343
      %3345 = vrot.lane.b32.xlu0 %v3323, 127
      %v3346 = vpop.permute.xlu0 %3345
      %3347 = vrot.lane.b32.xlu0 %v3324, 127
      %v3348 = vpop.permute.xlu0 %3347
      %v3349 = vsel %vm347, %v3334, %v3336
      %v3350 = vsel %vm347, %v3338, %v3340
      %v3351 = vsel %vm347, %v3342, %v3344
      %v3352 = vsel %vm347, %v3346, %v3348
      %v3365 = vadd.f32 %v3305, %v3334
      %v3366 = vadd.f32 %v3306, %v3349
      %v3367 = vadd.f32 %v3307, %v3336
      %v3368 = vadd.f32 %v3308, %v3338
      %v3369 = vadd.f32 %v3309, %v3350
      %v3370 = vadd.f32 %v3310, %v3340
      %v3371 = vadd.f32 %v3311, %v3342
      %v3372 = vadd.f32 %v3312, %v3351
      %v3373 = vadd.f32 %v3313, %v3344
      %v3374 = vadd.f32 %v3314, %v3346
      %v3375 = vadd.f32 %v3315, %v3352
      %v3376 = vadd.f32 %v3316, %v3348
      %v3377 = vmul.f32 %v378, %v2964
      %v3378 = vmul.f32 %v378, %v2968
      %v3379 = vmul.f32 %v382, %v2964
      %v3380 = vmul.f32 %v382, %v2968
      %v3381 = vmul.f32 %v386, %v2964
      %v3382 = vmul.f32 %v386, %v2968
      %v3383 = vmul.f32 %v390, %v2964
      %v3384 = vmul.f32 %v390, %v2968
      %3393 = vrot.lane.b32.xlu0 %v3377, 126
      %v3394 = vpop.permute.xlu0 %3393
      %3395 = vrot.lane.b32.xlu0 %v3378, 126
      %v3396 = vpop.permute.xlu0 %3395
      %3397 = vrot.lane.b32.xlu0 %v3379, 126
      %v3398 = vpop.permute.xlu0 %3397
      %3399 = vrot.lane.b32.xlu0 %v3380, 126
      %v3400 = vpop.permute.xlu0 %3399
      %3401 = vrot.lane.b32.xlu0 %v3381, 126
      %v3402 = vpop.permute.xlu0 %3401
      %3403 = vrot.lane.b32.xlu0 %v3382, 126
      %v3404 = vpop.permute.xlu0 %3403
      %3405 = vrot.lane.b32.xlu0 %v3383, 126
      %v3406 = vpop.permute.xlu0 %3405
      %3407 = vrot.lane.b32.xlu0 %v3384, 126
      %v3408 = vpop.permute.xlu0 %3407
      %v3409 = vsel %vm424, %v3394, %v3396
      %v3410 = vsel %vm424, %v3398, %v3400
      %v3411 = vsel %vm424, %v3402, %v3404
      %v3412 = vsel %vm424, %v3406, %v3408
      %v3425 = vadd.f32 %v3365, %v3394
      %v3426 = vadd.f32 %v3366, %v3409
      %v3427 = vadd.f32 %v3367, %v3396
      %v3428 = vadd.f32 %v3368, %v3398
      %v3429 = vadd.f32 %v3369, %v3410
      %v3430 = vadd.f32 %v3370, %v3400
      %v3431 = vadd.f32 %v3371, %v3402
      %v3432 = vadd.f32 %v3372, %v3411
      %v3433 = vadd.f32 %v3373, %v3404
      %v3434 = vadd.f32 %v3374, %v3406
      %v3435 = vadd.f32 %v3375, %v3412
      %v3436 = vadd.f32 %v3376, %v3408
      %v3437 = vlaneseq
      %v3438 = vshrl.u32 %v3437, 7
      %v3439 = vsub.s32 7, %v3438
      %v3440 = vrot.slane %v232, %v3439
      %v3441 = vlaneseq
      %v3442 = vshrl.u32 %v3441, 7
      %v3443 = vsub.s32 7, %v3442
      %v3444 = vrot.slane %v233, %v3443
      %v3445 = vlaneseq
      %v3446 = vshrl.u32 %v3445, 7
      %v3447 = vsub.s32 7, %v3446
      %v3448 = vrot.slane %v234, %v3447
      %v3449 = vmul.f32 %v455, %v3440
      %v3450 = vmul.f32 %v455, %v3444
      %v3451 = vmul.f32 %v455, %v3448
      %v3452 = vmul.f32 %v459, %v3440
      %v3453 = vmul.f32 %v459, %v3444
      %v3454 = vmul.f32 %v459, %v3448
      %v3455 = vmul.f32 %v463, %v3440
      %v3456 = vmul.f32 %v463, %v3444
      %v3457 = vmul.f32 %v463, %v3448
      %v3458 = vmul.f32 %v467, %v3440
      %v3459 = vmul.f32 %v467, %v3444
      %v3460 = vmul.f32 %v467, %v3448
      %v3461 = vadd.f32 %v3425, %v3449
      %v3462 = vadd.f32 %v3426, %v3450
      %v3463 = vadd.f32 %v3427, %v3451
      %v3464 = vadd.f32 %v3428, %v3452
      %v3465 = vadd.f32 %v3429, %v3453
      %v3466 = vadd.f32 %v3430, %v3454
      %v3467 = vadd.f32 %v3431, %v3455
      %v3468 = vadd.f32 %v3432, %v3456
      %v3469 = vadd.f32 %v3433, %v3457
      %v3470 = vadd.f32 %v3434, %v3458
      %v3471 = vadd.f32 %v3435, %v3459
      %v3472 = vadd.f32 %v3436, %v3460
      %v3473 = vmul.f32 %v507, %v3444
      %v3474 = vmul.f32 %v507, %v3448
      %v3475 = vmul.f32 %v511, %v3444
      %v3476 = vmul.f32 %v511, %v3448
      %v3477 = vmul.f32 %v515, %v3444
      %v3478 = vmul.f32 %v515, %v3448
      %v3479 = vmul.f32 %v519, %v3444
      %v3480 = vmul.f32 %v519, %v3448
      %3489 = vrot.lane.b32.xlu0 %v3473, 127
      %v3490 = vpop.permute.xlu0 %3489
      %3491 = vrot.lane.b32.xlu0 %v3474, 127
      %v3492 = vpop.permute.xlu0 %3491
      %3493 = vrot.lane.b32.xlu0 %v3475, 127
      %v3494 = vpop.permute.xlu0 %3493
      %3495 = vrot.lane.b32.xlu0 %v3476, 127
      %v3496 = vpop.permute.xlu0 %3495
      %3497 = vrot.lane.b32.xlu0 %v3477, 127
      %v3498 = vpop.permute.xlu0 %3497
      %3499 = vrot.lane.b32.xlu0 %v3478, 127
      %v3500 = vpop.permute.xlu0 %3499
      %3501 = vrot.lane.b32.xlu0 %v3479, 127
      %v3502 = vpop.permute.xlu0 %3501
      %3503 = vrot.lane.b32.xlu0 %v3480, 127
      %v3504 = vpop.permute.xlu0 %3503
      %v3505 = vsel %vm347, %v3490, %v3492
      %v3506 = vsel %vm347, %v3494, %v3496
      %v3507 = vsel %vm347, %v3498, %v3500
      %v3508 = vsel %vm347, %v3502, %v3504
      %v3521 = vadd.f32 %v3461, %v3490
      %v3522 = vadd.f32 %v3462, %v3505
      %v3523 = vadd.f32 %v3463, %v3492
      %v3524 = vadd.f32 %v3464, %v3494
      %v3525 = vadd.f32 %v3465, %v3506
      %v3526 = vadd.f32 %v3466, %v3496
      %v3527 = vadd.f32 %v3467, %v3498
      %v3528 = vadd.f32 %v3468, %v3507
      %v3529 = vadd.f32 %v3469, %v3500
      %v3530 = vadd.f32 %v3470, %v3502
      %v3531 = vadd.f32 %v3471, %v3508
      %v3532 = vadd.f32 %v3472, %v3504
      %v3533 = vmul.f32 %v583, %v3444
      %v3534 = vmul.f32 %v583, %v3448
      %v3535 = vmul.f32 %v587, %v3444
      %v3536 = vmul.f32 %v587, %v3448
      %v3537 = vmul.f32 %v591, %v3444
      %v3538 = vmul.f32 %v591, %v3448
      %v3539 = vmul.f32 %v595, %v3444
      %v3540 = vmul.f32 %v595, %v3448
      %3549 = vrot.lane.b32.xlu0 %v3533, 126
      %v3550 = vpop.permute.xlu0 %3549
      %3551 = vrot.lane.b32.xlu0 %v3534, 126
      %v3552 = vpop.permute.xlu0 %3551
      %3553 = vrot.lane.b32.xlu0 %v3535, 126
      %v3554 = vpop.permute.xlu0 %3553
      %3555 = vrot.lane.b32.xlu0 %v3536, 126
      %v3556 = vpop.permute.xlu0 %3555
      %3557 = vrot.lane.b32.xlu0 %v3537, 126
      %v3558 = vpop.permute.xlu0 %3557
      %3559 = vrot.lane.b32.xlu0 %v3538, 126
      %v3560 = vpop.permute.xlu0 %3559
      %3561 = vrot.lane.b32.xlu0 %v3539, 126
      %v3562 = vpop.permute.xlu0 %3561
      %3563 = vrot.lane.b32.xlu0 %v3540, 126
      %v3564 = vpop.permute.xlu0 %3563
      %v3565 = vsel %vm424, %v3550, %v3552
      %v3566 = vsel %vm424, %v3554, %v3556
      %v3567 = vsel %vm424, %v3558, %v3560
      %v3568 = vsel %vm424, %v3562, %v3564
      %v3581 = vadd.f32 %v3521, %v3550
      %v3582 = vadd.f32 %v3522, %v3565
      %v3583 = vadd.f32 %v3523, %v3552
      %v3584 = vadd.f32 %v3524, %v3554
      %v3585 = vadd.f32 %v3525, %v3566
      %v3586 = vadd.f32 %v3526, %v3556
      %v3587 = vadd.f32 %v3527, %v3558
      %v3588 = vadd.f32 %v3528, %v3567
      %v3589 = vadd.f32 %v3529, %v3560
      %v3590 = vadd.f32 %v3530, %v3562
      %v3591 = vadd.f32 %v3531, %v3568
      %v3592 = vadd.f32 %v3532, %v3564
      %v3593 = vadd.f32 %v3581, %v660
      %v3594 = vadd.f32 %v3582, %v660
      %v3595 = vadd.f32 %v3583, %v660
      %v3596 = vadd.f32 %v3584, %v665
      %v3597 = vadd.f32 %v3585, %v665
      %v3598 = vadd.f32 %v3586, %v665
      %v3599 = vadd.f32 %v3587, %v670
      %v3600 = vadd.f32 %v3588, %v670
      %v3601 = vadd.f32 %v3589, %v670
      %v3602 = vadd.f32 %v3590, %v675
      %v3603 = vadd.f32 %v3591, %v675
      %v3604 = vadd.f32 %v3592, %v675
      %v3605 = vmax.f32 %v3593, 0.0
      %v3606 = vmax.f32 %v3594, 0.0
      %v3607 = vmax.f32 %v3595, 0.0
      %v3608 = vmax.f32 %v3596, 0.0
      %v3609 = vmax.f32 %v3597, 0.0
      %v3610 = vmax.f32 %v3598, 0.0
      %v3611 = vmax.f32 %v3599, 0.0
      %v3612 = vmax.f32 %v3600, 0.0
      %v3613 = vmax.f32 %v3601, 0.0
      %v3614 = vmax.f32 %v3602, 0.0
      %v3615 = vmax.f32 %v3603, 0.0
      %v3616 = vmax.f32 %v3604, 0.0
      %v3617 = vmax.f32 %v3137, %v3605
      %v3618 = vmax.f32 %v3138, %v3606
      %v3619 = vmax.f32 %v3139, %v3607
      %v3620 = vmax.f32 %v3140, %v3608
      %v3621 = vmax.f32 %v3141, %v3609
      %v3622 = vmax.f32 %v3142, %v3610
      %v3623 = vmax.f32 %v3143, %v3611
      %v3624 = vmax.f32 %v3144, %v3612
      %v3625 = vmax.f32 %v3145, %v3613
      %v3626 = vmax.f32 %v3146, %v3614
      %v3627 = vmax.f32 %v3147, %v3615
      %v3628 = vmax.f32 %v3148, %v3616
      %v3629 = vmul.f32 %v703, %v2960
      %v3630 = vmul.f32 %v703, %v2964
      %v3631 = vmul.f32 %v703, %v2968
      %v3632 = vmul.f32 %v707, %v2960
      %v3633 = vmul.f32 %v707, %v2964
      %v3634 = vmul.f32 %v707, %v2968
      %v3635 = vmul.f32 %v711, %v2960
      %v3636 = vmul.f32 %v711, %v2964
      %v3637 = vmul.f32 %v711, %v2968
      %v3638 = vmul.f32 %v715, %v2960
      %v3639 = vmul.f32 %v715, %v2964
      %v3640 = vmul.f32 %v715, %v2968
      %v3641 = vadd.f32 %v3629, 0.0
      %v3642 = vadd.f32 %v3630, 0.0
      %v3643 = vadd.f32 %v3631, 0.0
      %v3644 = vadd.f32 %v3632, 0.0
      %v3645 = vadd.f32 %v3633, 0.0
      %v3646 = vadd.f32 %v3634, 0.0
      %v3647 = vadd.f32 %v3635, 0.0
      %v3648 = vadd.f32 %v3636, 0.0
      %v3649 = vadd.f32 %v3637, 0.0
      %v3650 = vadd.f32 %v3638, 0.0
      %v3651 = vadd.f32 %v3639, 0.0
      %v3652 = vadd.f32 %v3640, 0.0
      %v3653 = vmul.f32 %v743, %v2964
      %v3654 = vmul.f32 %v743, %v2968
      %v3655 = vmul.f32 %v747, %v2964
      %v3656 = vmul.f32 %v747, %v2968
      %v3657 = vmul.f32 %v751, %v2964
      %v3658 = vmul.f32 %v751, %v2968
      %v3659 = vmul.f32 %v755, %v2964
      %v3660 = vmul.f32 %v755, %v2968
      %3669 = vrot.lane.b32.xlu0 %v3653, 127
      %v3670 = vpop.permute.xlu0 %3669
      %3671 = vrot.lane.b32.xlu0 %v3654, 127
      %v3672 = vpop.permute.xlu0 %3671
      %3673 = vrot.lane.b32.xlu0 %v3655, 127
      %v3674 = vpop.permute.xlu0 %3673
      %3675 = vrot.lane.b32.xlu0 %v3656, 127
      %v3676 = vpop.permute.xlu0 %3675
      %3677 = vrot.lane.b32.xlu0 %v3657, 127
      %v3678 = vpop.permute.xlu0 %3677
      %3679 = vrot.lane.b32.xlu0 %v3658, 127
      %v3680 = vpop.permute.xlu0 %3679
      %3681 = vrot.lane.b32.xlu0 %v3659, 127
      %v3682 = vpop.permute.xlu0 %3681
      %3683 = vrot.lane.b32.xlu0 %v3660, 127
      %v3684 = vpop.permute.xlu0 %3683
      %v3685 = vsel %vm347, %v3670, %v3672
      %v3686 = vsel %vm347, %v3674, %v3676
      %v3687 = vsel %vm347, %v3678, %v3680
      %v3688 = vsel %vm347, %v3682, %v3684
      %v3701 = vadd.f32 %v3641, %v3670
      %v3702 = vadd.f32 %v3642, %v3685
      %v3703 = vadd.f32 %v3643, %v3672
      %v3704 = vadd.f32 %v3644, %v3674
      %v3705 = vadd.f32 %v3645, %v3686
      %v3706 = vadd.f32 %v3646, %v3676
      %v3707 = vadd.f32 %v3647, %v3678
      %v3708 = vadd.f32 %v3648, %v3687
      %v3709 = vadd.f32 %v3649, %v3680
      %v3710 = vadd.f32 %v3650, %v3682
      %v3711 = vadd.f32 %v3651, %v3688
      %v3712 = vadd.f32 %v3652, %v3684
      %v3713 = vmul.f32 %v819, %v2964
      %v3714 = vmul.f32 %v819, %v2968
      %v3715 = vmul.f32 %v823, %v2964
      %v3716 = vmul.f32 %v823, %v2968
      %v3717 = vmul.f32 %v827, %v2964
      %v3718 = vmul.f32 %v827, %v2968
      %v3719 = vmul.f32 %v831, %v2964
      %v3720 = vmul.f32 %v831, %v2968
      %3729 = vrot.lane.b32.xlu0 %v3713, 126
      %v3730 = vpop.permute.xlu0 %3729
      %3731 = vrot.lane.b32.xlu0 %v3714, 126
      %v3732 = vpop.permute.xlu0 %3731
      %3733 = vrot.lane.b32.xlu0 %v3715, 126
      %v3734 = vpop.permute.xlu0 %3733
      %3735 = vrot.lane.b32.xlu0 %v3716, 126
      %v3736 = vpop.permute.xlu0 %3735
      %3737 = vrot.lane.b32.xlu0 %v3717, 126
      %v3738 = vpop.permute.xlu0 %3737
      %3739 = vrot.lane.b32.xlu0 %v3718, 126
      %v3740 = vpop.permute.xlu0 %3739
      %3741 = vrot.lane.b32.xlu0 %v3719, 126
      %v3742 = vpop.permute.xlu0 %3741
      %3743 = vrot.lane.b32.xlu0 %v3720, 126
      %v3744 = vpop.permute.xlu0 %3743
      %v3745 = vsel %vm424, %v3730, %v3732
      %v3746 = vsel %vm424, %v3734, %v3736
      %v3747 = vsel %vm424, %v3738, %v3740
      %v3748 = vsel %vm424, %v3742, %v3744
      %v3761 = vadd.f32 %v3701, %v3730
      %v3762 = vadd.f32 %v3702, %v3745
      %v3763 = vadd.f32 %v3703, %v3732
      %v3764 = vadd.f32 %v3704, %v3734
      %v3765 = vadd.f32 %v3705, %v3746
      %v3766 = vadd.f32 %v3706, %v3736
      %v3767 = vadd.f32 %v3707, %v3738
      %v3768 = vadd.f32 %v3708, %v3747
      %v3769 = vadd.f32 %v3709, %v3740
      %v3770 = vadd.f32 %v3710, %v3742
      %v3771 = vadd.f32 %v3711, %v3748
      %v3772 = vadd.f32 %v3712, %v3744
      %v3773 = vmul.f32 %v246, %v3440
      %v3774 = vmul.f32 %v246, %v3444
      %v3775 = vmul.f32 %v246, %v3448
      %v3776 = vmul.f32 %v251, %v3440
      %v3777 = vmul.f32 %v251, %v3444
      %v3778 = vmul.f32 %v251, %v3448
      %v3779 = vmul.f32 %v256, %v3440
      %v3780 = vmul.f32 %v256, %v3444
      %v3781 = vmul.f32 %v256, %v3448
      %v3782 = vmul.f32 %v261, %v3440
      %v3783 = vmul.f32 %v261, %v3444
      %v3784 = vmul.f32 %v261, %v3448
      %v3785 = vadd.f32 %v3761, %v3773
      %v3786 = vadd.f32 %v3762, %v3774
      %v3787 = vadd.f32 %v3763, %v3775
      %v3788 = vadd.f32 %v3764, %v3776
      %v3789 = vadd.f32 %v3765, %v3777
      %v3790 = vadd.f32 %v3766, %v3778
      %v3791 = vadd.f32 %v3767, %v3779
      %v3792 = vadd.f32 %v3768, %v3780
      %v3793 = vadd.f32 %v3769, %v3781
      %v3794 = vadd.f32 %v3770, %v3782
      %v3795 = vadd.f32 %v3771, %v3783
      %v3796 = vadd.f32 %v3772, %v3784
      %v3797 = vmul.f32 %v301, %v3444
      %v3798 = vmul.f32 %v301, %v3448
      %v3799 = vmul.f32 %v305, %v3444
      %v3800 = vmul.f32 %v305, %v3448
      %v3801 = vmul.f32 %v309, %v3444
      %v3802 = vmul.f32 %v309, %v3448
      %v3803 = vmul.f32 %v313, %v3444
      %v3804 = vmul.f32 %v313, %v3448
      %3813 = vrot.lane.b32.xlu0 %v3797, 127
      %v3814 = vpop.permute.xlu0 %3813
      %3815 = vrot.lane.b32.xlu0 %v3798, 127
      %v3816 = vpop.permute.xlu0 %3815
      %3817 = vrot.lane.b32.xlu0 %v3799, 127
      %v3818 = vpop.permute.xlu0 %3817
      %3819 = vrot.lane.b32.xlu0 %v3800, 127
      %v3820 = vpop.permute.xlu0 %3819
      %3821 = vrot.lane.b32.xlu0 %v3801, 127
      %v3822 = vpop.permute.xlu0 %3821
      %3823 = vrot.lane.b32.xlu0 %v3802, 127
      %v3824 = vpop.permute.xlu0 %3823
      %3825 = vrot.lane.b32.xlu0 %v3803, 127
      %v3826 = vpop.permute.xlu0 %3825
      %3827 = vrot.lane.b32.xlu0 %v3804, 127
      %v3828 = vpop.permute.xlu0 %3827
      %v3829 = vsel %vm347, %v3814, %v3816
      %v3830 = vsel %vm347, %v3818, %v3820
      %v3831 = vsel %vm347, %v3822, %v3824
      %v3832 = vsel %vm347, %v3826, %v3828
      %v3845 = vadd.f32 %v3785, %v3814
      %v3846 = vadd.f32 %v3786, %v3829
      %v3847 = vadd.f32 %v3787, %v3816
      %v3848 = vadd.f32 %v3788, %v3818
      %v3849 = vadd.f32 %v3789, %v3830
      %v3850 = vadd.f32 %v3790, %v3820
      %v3851 = vadd.f32 %v3791, %v3822
      %v3852 = vadd.f32 %v3792, %v3831
      %v3853 = vadd.f32 %v3793, %v3824
      %v3854 = vadd.f32 %v3794, %v3826
      %v3855 = vadd.f32 %v3795, %v3832
      %v3856 = vadd.f32 %v3796, %v3828
      %v3857 = vmul.f32 %v378, %v3444
      %v3858 = vmul.f32 %v378, %v3448
      %v3859 = vmul.f32 %v382, %v3444
      %v3860 = vmul.f32 %v382, %v3448
      %v3861 = vmul.f32 %v386, %v3444
      %v3862 = vmul.f32 %v386, %v3448
      %v3863 = vmul.f32 %v390, %v3444
      %v3864 = vmul.f32 %v390, %v3448
      %3873 = vrot.lane.b32.xlu0 %v3857, 126
      %v3874 = vpop.permute.xlu0 %3873
      %3875 = vrot.lane.b32.xlu0 %v3858, 126
      %v3876 = vpop.permute.xlu0 %3875
      %3877 = vrot.lane.b32.xlu0 %v3859, 126
      %v3878 = vpop.permute.xlu0 %3877
      %3879 = vrot.lane.b32.xlu0 %v3860, 126
      %v3880 = vpop.permute.xlu0 %3879
      %3881 = vrot.lane.b32.xlu0 %v3861, 126
      %v3882 = vpop.permute.xlu0 %3881
      %3883 = vrot.lane.b32.xlu0 %v3862, 126
      %v3884 = vpop.permute.xlu0 %3883
      %3885 = vrot.lane.b32.xlu0 %v3863, 126
      %v3886 = vpop.permute.xlu0 %3885
      %3887 = vrot.lane.b32.xlu0 %v3864, 126
      %v3888 = vpop.permute.xlu0 %3887
      %v3889 = vsel %vm424, %v3874, %v3876
      %v3890 = vsel %vm424, %v3878, %v3880
      %v3891 = vsel %vm424, %v3882, %v3884
      %v3892 = vsel %vm424, %v3886, %v3888
      %v3905 = vadd.f32 %v3845, %v3874
      %v3906 = vadd.f32 %v3846, %v3889
      %v3907 = vadd.f32 %v3847, %v3876
      %v3908 = vadd.f32 %v3848, %v3878
      %v3909 = vadd.f32 %v3849, %v3890
      %v3910 = vadd.f32 %v3850, %v3880
      %v3911 = vadd.f32 %v3851, %v3882
      %v3912 = vadd.f32 %v3852, %v3891
      %v3913 = vadd.f32 %v3853, %v3884
      %v3914 = vadd.f32 %v3854, %v3886
      %v3915 = vadd.f32 %v3855, %v3892
      %v3916 = vadd.f32 %v3856, %v3888
      %v3917 = vadd.f32 %v3905, %v660
      %v3918 = vadd.f32 %v3906, %v660
      %v3919 = vadd.f32 %v3907, %v660
      %v3920 = vadd.f32 %v3908, %v665
      %v3921 = vadd.f32 %v3909, %v665
      %v3922 = vadd.f32 %v3910, %v665
      %v3923 = vadd.f32 %v3911, %v670
      %v3924 = vadd.f32 %v3912, %v670
      %v3925 = vadd.f32 %v3913, %v670
      %v3926 = vadd.f32 %v3914, %v675
      %v3927 = vadd.f32 %v3915, %v675
      %v3928 = vadd.f32 %v3916, %v675
      %v3929 = vmax.f32 %v3917, 0.0
      %v3930 = vmax.f32 %v3918, 0.0
      %v3931 = vmax.f32 %v3919, 0.0
      %v3932 = vmax.f32 %v3920, 0.0
      %v3933 = vmax.f32 %v3921, 0.0
      %v3934 = vmax.f32 %v3922, 0.0
      %v3935 = vmax.f32 %v3923, 0.0
      %v3936 = vmax.f32 %v3924, 0.0
      %v3937 = vmax.f32 %v3925, 0.0
      %v3938 = vmax.f32 %v3926, 0.0
      %v3939 = vmax.f32 %v3927, 0.0
      %v3940 = vmax.f32 %v3928, 0.0
      %v3941 = vmax.f32 %v3617, %v3929
      %v3942 = vmax.f32 %v3618, %v3930
      %v3943 = vmax.f32 %v3619, %v3931
      %v3944 = vmax.f32 %v3620, %v3932
      %v3945 = vmax.f32 %v3621, %v3933
      %v3946 = vmax.f32 %v3622, %v3934
      %v3947 = vmax.f32 %v3623, %v3935
      %v3948 = vmax.f32 %v3624, %v3936
      %v3949 = vmax.f32 %v3625, %v3937
      %v3950 = vmax.f32 %v3626, %v3938
      %v3951 = vmax.f32 %v3627, %v3939
      %v3952 = vmax.f32 %v3628, %v3940
      %3965 = vrot.lane.b32.xlu0 %v3941, 1
      %v3966 = vpop.permute.xlu0 %3965
      %3967 = vrot.lane.b32.xlu0 %v3942, 1
      %v3968 = vpop.permute.xlu0 %3967
      %3969 = vrot.lane.b32.xlu0 %v3943, 1
      %v3970 = vpop.permute.xlu0 %3969
      %3971 = vrot.lane.b32.xlu0 %v3944, 1
      %v3972 = vpop.permute.xlu0 %3971
      %3973 = vrot.lane.b32.xlu0 %v3945, 1
      %v3974 = vpop.permute.xlu0 %3973
      %3975 = vrot.lane.b32.xlu0 %v3946, 1
      %v3976 = vpop.permute.xlu0 %3975
      %3977 = vrot.lane.b32.xlu0 %v3947, 1
      %v3978 = vpop.permute.xlu0 %3977
      %3979 = vrot.lane.b32.xlu0 %v3948, 1
      %v3980 = vpop.permute.xlu0 %3979
      %3981 = vrot.lane.b32.xlu0 %v3949, 1
      %v3982 = vpop.permute.xlu0 %3981
      %3983 = vrot.lane.b32.xlu0 %v3950, 1
      %v3984 = vpop.permute.xlu0 %3983
      %3985 = vrot.lane.b32.xlu0 %v3951, 1
      %v3986 = vpop.permute.xlu0 %3985
      %3987 = vrot.lane.b32.xlu0 %v3952, 1
      %v3988 = vpop.permute.xlu0 %3987
      %vm3989 = vcmask 7168
      %v3990 = vsel %vm3989, %v3966, %v3968
      %v3991 = vsel %vm3989, %v3968, %v3970
      %v3992 = vsel %vm3989, %v3972, %v3974
      %v3993 = vsel %vm3989, %v3974, %v3976
      %v3994 = vsel %vm3989, %v3978, %v3980
      %v3995 = vsel %vm3989, %v3980, %v3982
      %v3996 = vsel %vm3989, %v3984, %v3986
      %v3997 = vsel %vm3989, %v3986, %v3988
      %4006 = vst [vmem:[#allocation3] sm:$0xff] %v3990
      %4007 = vst.msk [vmem:[#allocation3 + $0x8] sm:$0xff] %vm226, %v3991
      %4008 = vst [vmem:[#allocation3 + $0x10] sm:$0xff] %v3992
      %4009 = vst.msk [vmem:[#allocation3 + $0x18] sm:$0xff] %vm226, %v3993
      %4010 = vst [vmem:[#allocation3 + $0x20] sm:$0xff] %v3994
      %4011 = vst.msk [vmem:[#allocation3 + $0x28] sm:$0xff] %vm226, %v3995
      %4012 = vst [vmem:[#allocation3 + $0x30] sm:$0xff] %v3996
      %4013 = vst.msk [vmem:[#allocation3 + $0x38] sm:$0xff] %vm226, %v3997
      %v4014 = vld [vmem:[%s4] sm:$0x3]
      %v4015 = vld [vmem:[#allocation3] ss:$8 sm:$0x3]
      %v4016 = vld [vmem:[%s3] sm:$0xff]
      %v4017 = vld [vmem:[%s3 + $0x8] sm:$0xff]
      %v4018 = vld [vmem:[%s3 + $0x10] sm:$0xff]
      %v4019 = vld [vmem:[%s3 + $0x18] sm:$0xff]
      %v4020 = vld [vmem:[%s3 + $0x20] sm:$0xff]
      %v4021 = vld [vmem:[%s3 + $0x28] sm:$0xff]
      %v4022 = vld [vmem:[%s3 + $0x30] sm:$0xff]
      %v4023 = vld [vmem:[%s3 + $0x38] sm:$0xff]
      %v4024 = vld [vmem:[%s3 + $0x40] sm:$0xff]
      %v4025 = vld [vmem:[%s3 + $0x48] sm:$0xff]
      %v4026 = vld [vmem:[%s3 + $0x50] sm:$0xff]
      %v4027 = vld [vmem:[%s3 + $0x58] sm:$0xff]
      %v4028 = vld [vmem:[%s3 + $0x60] sm:$0xff]
      %v4029 = vld [vmem:[%s3 + $0x68] sm:$0xff]
      %v4030 = vld [vmem:[%s3 + $0x70] sm:$0xff]
      %v4031 = vld [vmem:[%s3 + $0x78] sm:$0xff]
      %v4032 = vld [vmem:[%s3 + $0x80] sm:$0xff]
      %v4033 = vld [vmem:[%s3 + $0x88] sm:$0xff]
      %v4034 = vld [vmem:[%s3 + $0x90] sm:$0xff]
      %v4035 = vld [vmem:[%s3 + $0x98] sm:$0xff]
      %v4036 = vld [vmem:[%s3 + $0xa0] sm:$0xff]
      %v4037 = vld [vmem:[%s3 + $0xa8] sm:$0xff]
      %v4038 = vld [vmem:[%s3 + $0xb0] sm:$0xff]
      %v4039 = vld [vmem:[%s3 + $0xb8] sm:$0xff]
      %v4040 = vld [vmem:[%s3 + $0xc0] sm:$0xff]
      %v4041 = vld [vmem:[%s3 + $0xc8] sm:$0xff]
      %v4042 = vld [vmem:[%s3 + $0xd0] sm:$0xff]
      %v4043 = vld [vmem:[%s3 + $0xd8] sm:$0xff]
      %v4044 = vld [vmem:[%s3 + $0xe0] sm:$0xff]
      %v4045 = vld [vmem:[%s3 + $0xe8] sm:$0xff]
      %v4046 = vld [vmem:[%s3 + $0xf0] sm:$0xff]
      %v4047 = vld [vmem:[%s3 + $0xf8] sm:$0xff]
      %v4048 = vld [vmem:[%s3 + $0x100] sm:$0xff]
      %v4049 = vld [vmem:[%s3 + $0x108] sm:$0xff]
      %v4050 = vld [vmem:[%s3 + $0x110] sm:$0xff]
      %v4051 = vld [vmem:[%s3 + $0x118] sm:$0xff]
      %v4052 = vld [vmem:[%s3 + $0x120] sm:$0xff]
      %v4053 = vld [vmem:[%s3 + $0x128] sm:$0xff]
      %v4054 = vld [vmem:[%s3 + $0x130] sm:$0xff]
      %v4055 = vld [vmem:[%s3 + $0x138] sm:$0xff]
      %v4057 = vlaneseq
      %v4058 = vshrl.u32 %v4057, 7
      %v4059 = vsub.s32 0, %v4058
      %v4060 = vrot.slane %v4015, %v4059
      %v4061 = vlaneseq
      %v4062 = vshrl.u32 %v4061, 7
      %v4063 = vsub.s32 1, %v4062
      %v4064 = vrot.slane %v4015, %v4063
      %v4066 = vsel %vm226, %v4064, 0
      %4068 = vmatprep.subr.mxu0 %v4017
      %4069 = vmatpush1.msra.mxu0 %v4016
      %4070 = vmatprep.subr.mxu0 %v4019
      %4071 = vmatpush1.msra.mxu0 %v4018
      %4072 = vmatprep.subr.mxu0 %v4021
      %4073 = vmatpush1.msra.mxu0 %v4020
      %4074 = vmatprep.subr.mxu0 %v4023
      %4075 = vmatpush1.msra.mxu0 %v4022
      %4076 = vmatprep.subr.mxu0 %v4025
      %4077 = vmatpush1.msra.mxu0 %v4024
      %4078 = vmatprep.subr.mxu0 %v4027
      %4079 = vmatpush1.msra.mxu0 %v4026
      %4080 = vmatprep.subr.mxu0 %v4029
      %4081 = vmatpush1.msra.mxu0 %v4028
      %4082 = vmatprep.subr.mxu0 %v4031
      %4083 = vmatpush1.msra.mxu0 %v4030
      %4084 = vmatprep.subr.mxu0 %v4033
      %4085 = vmatpush1.msra.mxu0 %v4032
      %4086 = vmatprep.subr.mxu0 %v4035
      %4087 = vmatpush1.msra.mxu0 %v4034
      %4088 = vmatprep.subr.mxu0 %v4037
      %4089 = vmatpush1.msra.mxu0 %v4036
      %4090 = vmatprep.subr.mxu0 %v4039
      %4091 = vmatpush1.msra.mxu0 %v4038
      %4092 = vmatprep.subr.mxu0 %v4041
      %4093 = vmatpush1.msra.mxu0 %v4040
      %4094 = vmatprep.subr.mxu0 %v4043
      %4095 = vmatpush1.msra.mxu0 %v4042
      %4096 = vmatprep.subr.mxu0 %v4045
      %4097 = vmatpush1.msra.mxu0 %v4044
      %4098 = vmatprep.subr.mxu0 %v4047
      %4099 = vmatpush1.msra.mxu0 %v4046
      %4100 = vmatprep.subr.mxu0 %v4049
      %4101 = vmatpush1.msra.mxu0 %v4048
      %4102 = vmatprep.subr.mxu0 %v4051
      %4103 = vmatpush1.msra.mxu0 %v4050
      %4104 = vmatprep.subr.mxu0 %v4053
      %4105 = vmatpush1.msra.mxu0 %v4052
      %4106 = vmatprep.subr.mxu0 %v4055
      %4107 = vmatpush1.msra.mxu0 %v4054
      %4108 = vmatprep.subr.mxu0 0.0
      %4109 = vmatpush1.msra.mxu0 0.0
      %4110 = vmatprep.subr.mxu0 0.0
      %4111 = vmatpush1.msra.mxu0 0.0
      %4112 = vmatprep.subr.mxu0 0.0
      %4113 = vmatpush1.msra.mxu0 0.0
      %4114 = vmatprep.subr.mxu0 0.0
      %4115 = vmatpush1.msra.mxu0 0.0
      %4116 = vmatprep.subr.mxu0 0.0
      %4117 = vmatpush1.msra.mxu0 0.0
      %4118 = vmatprep.subr.mxu0 0.0
      %4119 = vmatpush1.msra.mxu0 0.0
      %4120 = vmatprep.subr.mxu0 0.0
      %4121 = vmatpush1.msra.mxu0 0.0
      %4122 = vmatprep.subr.mxu0 0.0
      %4123 = vmatpush1.msra.mxu0 0.0
      %4124 = vmatprep.subr.mxu0 0.0
      %4125 = vmatpush1.msra.mxu0 0.0
      %4126 = vmatprep.subr.mxu0 0.0
      %4127 = vmatpush1.msra.mxu0 0.0
      %4128 = vmatprep.subr.mxu0 0.0
      %4129 = vmatpush1.msra.mxu0 0.0
      %4130 = vmatprep.subr.mxu0 0.0
      %4131 = vmatpush1.msra.mxu0 0.0
      %4132 = vmatprep.mubr.f32.mxu0 %v4066
      %4133 = vmatmul.mubr.f32.gmra.mrb[0].mxu0 %v4060
      %v4134 = vpop.f32.mrb[0].mxu0
      %v4135 = vadd.f32 0.0, %v4134
      %v4136 = vpop.f32.mrb[0].mxu0
      %v4137 = vadd.f32 0.0, %v4136
      %4138 = vdwg.mxu0
      %v4141 = vcombine.low %v4135, %v4137
      %v4143 = vunpack.c.l.s4 1966171168
      %v4144 = vunpack.c.0.s8 %v4143
      %v4145 = vlaneseq
      %v4146 = vshrl.u32 %v4145, 7
      %v4147 = vsub.s32 %v4144, %v4146
      %v4148 = vrot.slane %v4141, %v4147
      %v4150 = vunpack.c.l.s4 1966171168
      %v4151 = vunpack.c.0.s8 %v4150
      %v4152 = vlaneseq
      %v4153 = vshrl.u32 %v4152, 7
      %v4154 = vsub.s32 %v4151, %v4153
      %v4155 = vrot.slane %v4148, %v4154
      %v4157 = vadd.f32 %v4014, %v4155
      %s4158 = scalar_lea.vmem [#allocation3], 1
      %v4159 = vld [vmem:[%s4158] ss:$8 sm:$0x3]
      %v4160 = vld [vmem:[%s3 + $0x140] sm:$0xff]
      %v4161 = vld [vmem:[%s3 + $0x148] sm:$0xff]
      %v4162 = vld [vmem:[%s3 + $0x150] sm:$0xff]
      %v4163 = vld [vmem:[%s3 + $0x158] sm:$0xff]
      %v4164 = vld [vmem:[%s3 + $0x160] sm:$0xff]
      %v4165 = vld [vmem:[%s3 + $0x168] sm:$0xff]
      %v4166 = vld [vmem:[%s3 + $0x170] sm:$0xff]
      %v4167 = vld [vmem:[%s3 + $0x178] sm:$0xff]
      %v4168 = vld [vmem:[%s3 + $0x180] sm:$0xff]
      %v4169 = vld [vmem:[%s3 + $0x188] sm:$0xff]
      %v4170 = vld [vmem:[%s3 + $0x190] sm:$0xff]
      %v4171 = vld [vmem:[%s3 + $0x198] sm:$0xff]
      %v4172 = vld [vmem:[%s3 + $0x1a0] sm:$0xff]
      %v4173 = vld [vmem:[%s3 + $0x1a8] sm:$0xff]
      %v4174 = vld [vmem:[%s3 + $0x1b0] sm:$0xff]
      %v4175 = vld [vmem:[%s3 + $0x1b8] sm:$0xff]
      %v4176 = vld [vmem:[%s3 + $0x1c0] sm:$0xff]
      %v4177 = vld [vmem:[%s3 + $0x1c8] sm:$0xff]
      %v4178 = vld [vmem:[%s3 + $0x1d0] sm:$0xff]
      %v4179 = vld [vmem:[%s3 + $0x1d8] sm:$0xff]
      %v4180 = vld [vmem:[%s3 + $0x1e0] sm:$0xff]
      %v4181 = vld [vmem:[%s3 + $0x1e8] sm:$0xff]
      %v4182 = vld [vmem:[%s3 + $0x1f0] sm:$0xff]
      %v4183 = vld [vmem:[%s3 + $0x1f8] sm:$0xff]
      %v4184 = vld [vmem:[%s3 + $0x200] sm:$0xff]
      %v4185 = vld [vmem:[%s3 + $0x208] sm:$0xff]
      %v4186 = vld [vmem:[%s3 + $0x210] sm:$0xff]
      %v4187 = vld [vmem:[%s3 + $0x218] sm:$0xff]
      %v4188 = vld [vmem:[%s3 + $0x220] sm:$0xff]
      %v4189 = vld [vmem:[%s3 + $0x228] sm:$0xff]
      %v4190 = vld [vmem:[%s3 + $0x230] sm:$0xff]
      %v4191 = vld [vmem:[%s3 + $0x238] sm:$0xff]
      %v4192 = vld [vmem:[%s3 + $0x240] sm:$0xff]
      %v4193 = vld [vmem:[%s3 + $0x248] sm:$0xff]
      %v4194 = vld [vmem:[%s3 + $0x250] sm:$0xff]
      %v4195 = vld [vmem:[%s3 + $0x258] sm:$0xff]
      %v4196 = vld [vmem:[%s3 + $0x260] sm:$0xff]
      %v4197 = vld [vmem:[%s3 + $0x268] sm:$0xff]
      %v4198 = vld [vmem:[%s3 + $0x270] sm:$0xff]
      %v4199 = vld [vmem:[%s3 + $0x278] sm:$0xff]
      %v4201 = vlaneseq
      %v4202 = vshrl.u32 %v4201, 7
      %v4203 = vsub.s32 0, %v4202
      %v4204 = vrot.slane %v4159, %v4203
      %v4205 = vlaneseq
      %v4206 = vshrl.u32 %v4205, 7
      %v4207 = vsub.s32 1, %v4206
      %v4208 = vrot.slane %v4159, %v4207
      %v4210 = vsel %vm226, %v4208, 0
      %4212 = vmatprep.subr.mxu0 %v4161
      %4213 = vmatpush1.msra.mxu0 %v4160
      %4214 = vmatprep.subr.mxu0 %v4163
      %4215 = vmatpush1.msra.mxu0 %v4162
      %4216 = vmatprep.subr.mxu0 %v4165
      %4217 = vmatpush1.msra.mxu0 %v4164
      %4218 = vmatprep.subr.mxu0 %v4167
      %4219 = vmatpush1.msra.mxu0 %v4166
      %4220 = vmatprep.subr.mxu0 %v4169
      %4221 = vmatpush1.msra.mxu0 %v4168
      %4222 = vmatprep.subr.mxu0 %v4171
      %4223 = vmatpush1.msra.mxu0 %v4170
      %4224 = vmatprep.subr.mxu0 %v4173
      %4225 = vmatpush1.msra.mxu0 %v4172
      %4226 = vmatprep.subr.mxu0 %v4175
      %4227 = vmatpush1.msra.mxu0 %v4174
      %4228 = vmatprep.subr.mxu0 %v4177
      %4229 = vmatpush1.msra.mxu0 %v4176
      %4230 = vmatprep.subr.mxu0 %v4179
      %4231 = vmatpush1.msra.mxu0 %v4178
      %4232 = vmatprep.subr.mxu0 %v4181
      %4233 = vmatpush1.msra.mxu0 %v4180
      %4234 = vmatprep.subr.mxu0 %v4183
      %4235 = vmatpush1.msra.mxu0 %v4182
      %4236 = vmatprep.subr.mxu0 %v4185
      %4237 = vmatpush1.msra.mxu0 %v4184
      %4238 = vmatprep.subr.mxu0 %v4187
      %4239 = vmatpush1.msra.mxu0 %v4186
      %4240 = vmatprep.subr.mxu0 %v4189
      %4241 = vmatpush1.msra.mxu0 %v4188
      %4242 = vmatprep.subr.mxu0 %v4191
      %4243 = vmatpush1.msra.mxu0 %v4190
      %4244 = vmatprep.subr.mxu0 %v4193
      %4245 = vmatpush1.msra.mxu0 %v4192
      %4246 = vmatprep.subr.mxu0 %v4195
      %4247 = vmatpush1.msra.mxu0 %v4194
      %4248 = vmatprep.subr.mxu0 %v4197
      %4249 = vmatpush1.msra.mxu0 %v4196
      %4250 = vmatprep.subr.mxu0 %v4199
      %4251 = vmatpush1.msra.mxu0 %v4198
      %4252 = vmatprep.subr.mxu0 0.0
      %4253 = vmatpush1.msra.mxu0 0.0
      %4254 = vmatprep.subr.mxu0 0.0
      %4255 = vmatpush1.msra.mxu0 0.0
      %4256 = vmatprep.subr.mxu0 0.0
      %4257 = vmatpush1.msra.mxu0 0.0
      %4258 = vmatprep.subr.mxu0 0.0
      %4259 = vmatpush1.msra.mxu0 0.0
      %4260 = vmatprep.subr.mxu0 0.0
      %4261 = vmatpush1.msra.mxu0 0.0
      %4262 = vmatprep.subr.mxu0 0.0
      %4263 = vmatpush1.msra.mxu0 0.0
      %4264 = vmatprep.subr.mxu0 0.0
      %4265 = vmatpush1.msra.mxu0 0.0
      %4266 = vmatprep.subr.mxu0 0.0
      %4267 = vmatpush1.msra.mxu0 0.0
      %4268 = vmatprep.subr.mxu0 0.0
      %4269 = vmatpush1.msra.mxu0 0.0
      %4270 = vmatprep.subr.mxu0 0.0
      %4271 = vmatpush1.msra.mxu0 0.0
      %4272 = vmatprep.subr.mxu0 0.0
      %4273 = vmatpush1.msra.mxu0 0.0
      %4274 = vmatprep.subr.mxu0 0.0
      %4275 = vmatpush1.msra.mxu0 0.0
      %4276 = vmatprep.mubr.f32.mxu0 %v4210
      %4277 = vmatmul.mubr.f32.gmra.mrb[0].mxu0 %v4204
      %v4278 = vpop.f32.mrb[0].mxu0
      %v4279 = vadd.f32 0.0, %v4278
      %v4280 = vpop.f32.mrb[0].mxu0
      %v4281 = vadd.f32 0.0, %v4280
      %4282 = vdwg.mxu0
      %v4285 = vcombine.low %v4279, %v4281
      %v4287 = vunpack.c.l.s4 1966171168
      %v4288 = vunpack.c.0.s8 %v4287
      %v4289 = vlaneseq
      %v4290 = vshrl.u32 %v4289, 7
      %v4291 = vsub.s32 %v4288, %v4290
      %v4292 = vrot.slane %v4285, %v4291
      %v4294 = vunpack.c.l.s4 1966171168
      %v4295 = vunpack.c.0.s8 %v4294
      %v4296 = vlaneseq
      %v4297 = vshrl.u32 %v4296, 7
      %v4298 = vsub.s32 %v4295, %v4297
      %v4299 = vrot.slane %v4292, %v4298
      %v4301 = vadd.f32 %v4157, %v4299
      %s4302 = scalar_lea.vmem [#allocation3], 2
      %v4303 = vld [vmem:[%s4302] ss:$8 sm:$0x3]
      %v4304 = vld [vmem:[%s3 + $0x280] sm:$0xff]
      %v4305 = vld [vmem:[%s3 + $0x288] sm:$0xff]
      %v4306 = vld [vmem:[%s3 + $0x290] sm:$0xff]
      %v4307 = vld [vmem:[%s3 + $0x298] sm:$0xff]
      %v4308 = vld [vmem:[%s3 + $0x2a0] sm:$0xff]
      %v4309 = vld [vmem:[%s3 + $0x2a8] sm:$0xff]
      %v4310 = vld [vmem:[%s3 + $0x2b0] sm:$0xff]
      %v4311 = vld [vmem:[%s3 + $0x2b8] sm:$0xff]
      %v4312 = vld [vmem:[%s3 + $0x2c0] sm:$0xff]
      %v4313 = vld [vmem:[%s3 + $0x2c8] sm:$0xff]
      %v4314 = vld [vmem:[%s3 + $0x2d0] sm:$0xff]
      %v4315 = vld [vmem:[%s3 + $0x2d8] sm:$0xff]
      %v4316 = vld [vmem:[%s3 + $0x2e0] sm:$0xff]
      %v4317 = vld [vmem:[%s3 + $0x2e8] sm:$0xff]
      %v4318 = vld [vmem:[%s3 + $0x2f0] sm:$0xff]
      %v4319 = vld [vmem:[%s3 + $0x2f8] sm:$0xff]
      %v4320 = vld [vmem:[%s3 + $0x300] sm:$0xff]
      %v4321 = vld [vmem:[%s3 + $0x308] sm:$0xff]
      %v4322 = vld [vmem:[%s3 + $0x310] sm:$0xff]
      %v4323 = vld [vmem:[%s3 + $0x318] sm:$0xff]
      %v4324 = vld [vmem:[%s3 + $0x320] sm:$0xff]
      %v4325 = vld [vmem:[%s3 + $0x328] sm:$0xff]
      %v4326 = vld [vmem:[%s3 + $0x330] sm:$0xff]
      %v4327 = vld [vmem:[%s3 + $0x338] sm:$0xff]
      %v4328 = vld [vmem:[%s3 + $0x340] sm:$0xff]
      %v4329 = vld [vmem:[%s3 + $0x348] sm:$0xff]
      %v4330 = vld [vmem:[%s3 + $0x350] sm:$0xff]
      %v4331 = vld [vmem:[%s3 + $0x358] sm:$0xff]
      %v4332 = vld [vmem:[%s3 + $0x360] sm:$0xff]
      %v4333 = vld [vmem:[%s3 + $0x368] sm:$0xff]
      %v4334 = vld [vmem:[%s3 + $0x370] sm:$0xff]
      %v4335 = vld [vmem:[%s3 + $0x378] sm:$0xff]
      %v4336 = vld [vmem:[%s3 + $0x380] sm:$0xff]
      %v4337 = vld [vmem:[%s3 + $0x388] sm:$0xff]
      %v4338 = vld [vmem:[%s3 + $0x390] sm:$0xff]
      %v4339 = vld [vmem:[%s3 + $0x398] sm:$0xff]
      %v4340 = vld [vmem:[%s3 + $0x3a0] sm:$0xff]
      %v4341 = vld [vmem:[%s3 + $0x3a8] sm:$0xff]
      %v4342 = vld [vmem:[%s3 + $0x3b0] sm:$0xff]
      %v4343 = vld [vmem:[%s3 + $0x3b8] sm:$0xff]
      %v4345 = vlaneseq
      %v4346 = vshrl.u32 %v4345, 7
      %v4347 = vsub.s32 0, %v4346
      %v4348 = vrot.slane %v4303, %v4347
      %v4349 = vlaneseq
      %v4350 = vshrl.u32 %v4349, 7
      %v4351 = vsub.s32 1, %v4350
      %v4352 = vrot.slane %v4303, %v4351
      %v4354 = vsel %vm226, %v4352, 0
      %4356 = vmatprep.subr.mxu0 %v4305
      %4357 = vmatpush1.msra.mxu0 %v4304
      %4358 = vmatprep.subr.mxu0 %v4307
      %4359 = vmatpush1.msra.mxu0 %v4306
      %4360 = vmatprep.subr.mxu0 %v4309
      %4361 = vmatpush1.msra.mxu0 %v4308
      %4362 = vmatprep.subr.mxu0 %v4311
      %4363 = vmatpush1.msra.mxu0 %v4310
      %4364 = vmatprep.subr.mxu0 %v4313
      %4365 = vmatpush1.msra.mxu0 %v4312
      %4366 = vmatprep.subr.mxu0 %v4315
      %4367 = vmatpush1.msra.mxu0 %v4314
      %4368 = vmatprep.subr.mxu0 %v4317
      %4369 = vmatpush1.msra.mxu0 %v4316
      %4370 = vmatprep.subr.mxu0 %v4319
      %4371 = vmatpush1.msra.mxu0 %v4318
      %4372 = vmatprep.subr.mxu0 %v4321
      %4373 = vmatpush1.msra.mxu0 %v4320
      %4374 = vmatprep.subr.mxu0 %v4323
      %4375 = vmatpush1.msra.mxu0 %v4322
      %4376 = vmatprep.subr.mxu0 %v4325
      %4377 = vmatpush1.msra.mxu0 %v4324
      %4378 = vmatprep.subr.mxu0 %v4327
      %4379 = vmatpush1.msra.mxu0 %v4326
      %4380 = vmatprep.subr.mxu0 %v4329
      %4381 = vmatpush1.msra.mxu0 %v4328
      %4382 = vmatprep.subr.mxu0 %v4331
      %4383 = vmatpush1.msra.mxu0 %v4330
      %4384 = vmatprep.subr.mxu0 %v4333
      %4385 = vmatpush1.msra.mxu0 %v4332
      %4386 = vmatprep.subr.mxu0 %v4335
      %4387 = vmatpush1.msra.mxu0 %v4334
      %4388 = vmatprep.subr.mxu0 %v4337
      %4389 = vmatpush1.msra.mxu0 %v4336
      %4390 = vmatprep.subr.mxu0 %v4339
      %4391 = vmatpush1.msra.mxu0 %v4338
      %4392 = vmatprep.subr.mxu0 %v4341
      %4393 = vmatpush1.msra.mxu0 %v4340
      %4394 = vmatprep.subr.mxu0 %v4343
      %4395 = vmatpush1.msra.mxu0 %v4342
      %4396 = vmatprep.subr.mxu0 0.0
      %4397 = vmatpush1.msra.mxu0 0.0
      %4398 = vmatprep.subr.mxu0 0.0
      %4399 = vmatpush1.msra.mxu0 0.0
      %4400 = vmatprep.subr.mxu0 0.0
      %4401 = vmatpush1.msra.mxu0 0.0
      %4402 = vmatprep.subr.mxu0 0.0
      %4403 = vmatpush1.msra.mxu0 0.0
      %4404 = vmatprep.subr.mxu0 0.0
      %4405 = vmatpush1.msra.mxu0 0.0
      %4406 = vmatprep.subr.mxu0 0.0
      %4407 = vmatpush1.msra.mxu0 0.0
      %4408 = vmatprep.subr.mxu0 0.0
      %4409 = vmatpush1.msra.mxu0 0.0
      %4410 = vmatprep.subr.mxu0 0.0
      %4411 = vmatpush1.msra.mxu0 0.0
      %4412 = vmatprep.subr.mxu0 0.0
      %4413 = vmatpush1.msra.mxu0 0.0
      %4414 = vmatprep.subr.mxu0 0.0
      %4415 = vmatpush1.msra.mxu0 0.0
      %4416 = vmatprep.subr.mxu0 0.0
      %4417 = vmatpush1.msra.mxu0 0.0
      %4418 = vmatprep.subr.mxu0 0.0
      %4419 = vmatpush1.msra.mxu0 0.0
      %4420 = vmatprep.mubr.f32.mxu0 %v4354
      %4421 = vmatmul.mubr.f32.gmra.mrb[0].mxu0 %v4348
      %v4422 = vpop.f32.mrb[0].mxu0
      %v4423 = vadd.f32 0.0, %v4422
      %v4424 = vpop.f32.mrb[0].mxu0
      %v4425 = vadd.f32 0.0, %v4424
      %4426 = vdwg.mxu0
      %v4429 = vcombine.low %v4423, %v4425
      %v4431 = vunpack.c.l.s4 1966171168
      %v4432 = vunpack.c.0.s8 %v4431
      %v4433 = vlaneseq
      %v4434 = vshrl.u32 %v4433, 7
      %v4435 = vsub.s32 %v4432, %v4434
      %v4436 = vrot.slane %v4429, %v4435
      %v4438 = vunpack.c.l.s4 1966171168
      %v4439 = vunpack.c.0.s8 %v4438
      %v4440 = vlaneseq
      %v4441 = vshrl.u32 %v4440, 7
      %v4442 = vsub.s32 %v4439, %v4441
      %v4443 = vrot.slane %v4436, %v4442
      %v4445 = vadd.f32 %v4301, %v4443
      %s4446 = scalar_lea.vmem [#allocation3], 3
      %v4447 = vld [vmem:[%s4446] ss:$8 sm:$0x3]
      %v4448 = vld [vmem:[%s3 + $0x3c0] sm:$0xff]
      %v4449 = vld [vmem:[%s3 + $0x3c8] sm:$0xff]
      %v4450 = vld [vmem:[%s3 + $0x3d0] sm:$0xff]
      %v4451 = vld [vmem:[%s3 + $0x3d8] sm:$0xff]
      %v4452 = vld [vmem:[%s3 + $0x3e0] sm:$0xff]
      %v4453 = vld [vmem:[%s3 + $0x3e8] sm:$0xff]
      %v4454 = vld [vmem:[%s3 + $0x3f0] sm:$0xff]
      %v4455 = vld [vmem:[%s3 + $0x3f8] sm:$0xff]
      %v4456 = vld [vmem:[%s3 + $0x400] sm:$0xff]
      %v4457 = vld [vmem:[%s3 + $0x408] sm:$0xff]
      %v4458 = vld [vmem:[%s3 + $0x410] sm:$0xff]
      %v4459 = vld [vmem:[%s3 + $0x418] sm:$0xff]
      %v4460 = vld [vmem:[%s3 + $0x420] sm:$0xff]
      %v4461 = vld [vmem:[%s3 + $0x428] sm:$0xff]
      %v4462 = vld [vmem:[%s3 + $0x430] sm:$0xff]
      %v4463 = vld [vmem:[%s3 + $0x438] sm:$0xff]
      %v4464 = vld [vmem:[%s3 + $0x440] sm:$0xff]
      %v4465 = vld [vmem:[%s3 + $0x448] sm:$0xff]
      %v4466 = vld [vmem:[%s3 + $0x450] sm:$0xff]
      %v4467 = vld [vmem:[%s3 + $0x458] sm:$0xff]
      %v4468 = vld [vmem:[%s3 + $0x460] sm:$0xff]
      %v4469 = vld [vmem:[%s3 + $0x468] sm:$0xff]
      %v4470 = vld [vmem:[%s3 + $0x470] sm:$0xff]
      %v4471 = vld [vmem:[%s3 + $0x478] sm:$0xff]
      %v4472 = vld [vmem:[%s3 + $0x480] sm:$0xff]
      %v4473 = vld [vmem:[%s3 + $0x488] sm:$0xff]
      %v4474 = vld [vmem:[%s3 + $0x490] sm:$0xff]
      %v4475 = vld [vmem:[%s3 + $0x498] sm:$0xff]
      %v4476 = vld [vmem:[%s3 + $0x4a0] sm:$0xff]
      %v4477 = vld [vmem:[%s3 + $0x4a8] sm:$0xff]
      %v4478 = vld [vmem:[%s3 + $0x4b0] sm:$0xff]
      %v4479 = vld [vmem:[%s3 + $0x4b8] sm:$0xff]
      %v4480 = vld [vmem:[%s3 + $0x4c0] sm:$0xff]
      %v4481 = vld [vmem:[%s3 + $0x4c8] sm:$0xff]
      %v4482 = vld [vmem:[%s3 + $0x4d0] sm:$0xff]
      %v4483 = vld [vmem:[%s3 + $0x4d8] sm:$0xff]
      %v4484 = vld [vmem:[%s3 + $0x4e0] sm:$0xff]
      %v4485 = vld [vmem:[%s3 + $0x4e8] sm:$0xff]
      %v4486 = vld [vmem:[%s3 + $0x4f0] sm:$0xff]
      %v4487 = vld [vmem:[%s3 + $0x4f8] sm:$0xff]
      %v4489 = vlaneseq
      %v4490 = vshrl.u32 %v4489, 7
      %v4491 = vsub.s32 0, %v4490
      %v4492 = vrot.slane %v4447, %v4491
      %v4493 = vlaneseq
      %v4494 = vshrl.u32 %v4493, 7
      %v4495 = vsub.s32 1, %v4494
      %v4496 = vrot.slane %v4447, %v4495
      %v4498 = vsel %vm226, %v4496, 0
      %4500 = vmatprep.subr.mxu0 %v4449
      %4501 = vmatpush1.msra.mxu0 %v4448
      %4502 = vmatprep.subr.mxu0 %v4451
      %4503 = vmatpush1.msra.mxu0 %v4450
      %4504 = vmatprep.subr.mxu0 %v4453
      %4505 = vmatpush1.msra.mxu0 %v4452
      %4506 = vmatprep.subr.mxu0 %v4455
      %4507 = vmatpush1.msra.mxu0 %v4454
      %4508 = vmatprep.subr.mxu0 %v4457
      %4509 = vmatpush1.msra.mxu0 %v4456
      %4510 = vmatprep.subr.mxu0 %v4459
      %4511 = vmatpush1.msra.mxu0 %v4458
      %4512 = vmatprep.subr.mxu0 %v4461
      %4513 = vmatpush1.msra.mxu0 %v4460
      %4514 = vmatprep.subr.mxu0 %v4463
      %4515 = vmatpush1.msra.mxu0 %v4462
      %4516 = vmatprep.subr.mxu0 %v4465
      %4517 = vmatpush1.msra.mxu0 %v4464
      %4518 = vmatprep.subr.mxu0 %v4467
      %4519 = vmatpush1.msra.mxu0 %v4466
      %4520 = vmatprep.subr.mxu0 %v4469
      %4521 = vmatpush1.msra.mxu0 %v4468
      %4522 = vmatprep.subr.mxu0 %v4471
      %4523 = vmatpush1.msra.mxu0 %v4470
      %4524 = vmatprep.subr.mxu0 %v4473
      %4525 = vmatpush1.msra.mxu0 %v4472
      %4526 = vmatprep.subr.mxu0 %v4475
      %4527 = vmatpush1.msra.mxu0 %v4474
      %4528 = vmatprep.subr.mxu0 %v4477
      %4529 = vmatpush1.msra.mxu0 %v4476
      %4530 = vmatprep.subr.mxu0 %v4479
      %4531 = vmatpush1.msra.mxu0 %v4478
      %4532 = vmatprep.subr.mxu0 %v4481
      %4533 = vmatpush1.msra.mxu0 %v4480
      %4534 = vmatprep.subr.mxu0 %v4483
      %4535 = vmatpush1.msra.mxu0 %v4482
      %4536 = vmatprep.subr.mxu0 %v4485
      %4537 = vmatpush1.msra.mxu0 %v4484
      %4538 = vmatprep.subr.mxu0 %v4487
      %4539 = vmatpush1.msra.mxu0 %v4486
      %4540 = vmatprep.subr.mxu0 0.0
      %4541 = vmatpush1.msra.mxu0 0.0
      %4542 = vmatprep.subr.mxu0 0.0
      %4543 = vmatpush1.msra.mxu0 0.0
      %4544 = vmatprep.subr.mxu0 0.0
      %4545 = vmatpush1.msra.mxu0 0.0
      %4546 = vmatprep.subr.mxu0 0.0
      %4547 = vmatpush1.msra.mxu0 0.0
      %4548 = vmatprep.subr.mxu0 0.0
      %4549 = vmatpush1.msra.mxu0 0.0
      %4550 = vmatprep.subr.mxu0 0.0
      %4551 = vmatpush1.msra.mxu0 0.0
      %4552 = vmatprep.subr.mxu0 0.0
      %4553 = vmatpush1.msra.mxu0 0.0
      %4554 = vmatprep.subr.mxu0 0.0
      %4555 = vmatpush1.msra.mxu0 0.0
      %4556 = vmatprep.subr.mxu0 0.0
      %4557 = vmatpush1.msra.mxu0 0.0
      %4558 = vmatprep.subr.mxu0 0.0
      %4559 = vmatpush1.msra.mxu0 0.0
      %4560 = vmatprep.subr.mxu0 0.0
      %4561 = vmatpush1.msra.mxu0 0.0
      %4562 = vmatprep.subr.mxu0 0.0
      %4563 = vmatpush1.msra.mxu0 0.0
      %4564 = vmatprep.mubr.f32.mxu0 %v4498
      %4565 = vmatmul.mubr.f32.gmra.mrb[0].mxu0 %v4492
      %v4566 = vpop.f32.mrb[0].mxu0
      %v4567 = vadd.f32 0.0, %v4566
      %v4568 = vpop.f32.mrb[0].mxu0
      %v4569 = vadd.f32 0.0, %v4568
      %4570 = vdwg.mxu0
      %v4573 = vcombine.low %v4567, %v4569
      %v4575 = vunpack.c.l.s4 1966171168
      %v4576 = vunpack.c.0.s8 %v4575
      %v4577 = vlaneseq
      %v4578 = vshrl.u32 %v4577, 7
      %v4579 = vsub.s32 %v4576, %v4578
      %v4580 = vrot.slane %v4573, %v4579
      %v4582 = vunpack.c.l.s4 1966171168
      %v4583 = vunpack.c.0.s8 %v4582
      %v4584 = vlaneseq
      %v4585 = vshrl.u32 %v4584, 7
      %v4586 = vsub.s32 %v4583, %v4585
      %v4587 = vrot.slane %v4580, %v4586
      %v4589 = vadd.f32 %v4445, %v4587
      %s4590 = scalar_lea.vmem [#allocation3], 4
      %v4591 = vld [vmem:[%s4590] ss:$8 sm:$0x3]
      %v4592 = vld [vmem:[%s3 + $0x500] sm:$0xff]
      %v4593 = vld [vmem:[%s3 + $0x508] sm:$0xff]
      %v4594 = vld [vmem:[%s3 + $0x510] sm:$0xff]
      %v4595 = vld [vmem:[%s3 + $0x518] sm:$0xff]
      %v4596 = vld [vmem:[%s3 + $0x520] sm:$0xff]
      %v4597 = vld [vmem:[%s3 + $0x528] sm:$0xff]
      %v4598 = vld [vmem:[%s3 + $0x530] sm:$0xff]
      %v4599 = vld [vmem:[%s3 + $0x538] sm:$0xff]
      %v4600 = vld [vmem:[%s3 + $0x540] sm:$0xff]
      %v4601 = vld [vmem:[%s3 + $0x548] sm:$0xff]
      %v4602 = vld [vmem:[%s3 + $0x550] sm:$0xff]
      %v4603 = vld [vmem:[%s3 + $0x558] sm:$0xff]
      %v4604 = vld [vmem:[%s3 + $0x560] sm:$0xff]
      %v4605 = vld [vmem:[%s3 + $0x568] sm:$0xff]
      %v4606 = vld [vmem:[%s3 + $0x570] sm:$0xff]
      %v4607 = vld [vmem:[%s3 + $0x578] sm:$0xff]
      %v4608 = vld [vmem:[%s3 + $0x580] sm:$0xff]
      %v4609 = vld [vmem:[%s3 + $0x588] sm:$0xff]
      %v4610 = vld [vmem:[%s3 + $0x590] sm:$0xff]
      %v4611 = vld [vmem:[%s3 + $0x598] sm:$0xff]
      %v4612 = vld [vmem:[%s3 + $0x5a0] sm:$0xff]
      %v4613 = vld [vmem:[%s3 + $0x5a8] sm:$0xff]
      %v4614 = vld [vmem:[%s3 + $0x5b0] sm:$0xff]
      %v4615 = vld [vmem:[%s3 + $0x5b8] sm:$0xff]
      %v4616 = vld [vmem:[%s3 + $0x5c0] sm:$0xff]
      %v4617 = vld [vmem:[%s3 + $0x5c8] sm:$0xff]
      %v4618 = vld [vmem:[%s3 + $0x5d0] sm:$0xff]
      %v4619 = vld [vmem:[%s3 + $0x5d8] sm:$0xff]
      %v4620 = vld [vmem:[%s3 + $0x5e0] sm:$0xff]
      %v4621 = vld [vmem:[%s3 + $0x5e8] sm:$0xff]
      %v4622 = vld [vmem:[%s3 + $0x5f0] sm:$0xff]
      %v4623 = vld [vmem:[%s3 + $0x5f8] sm:$0xff]
      %v4624 = vld [vmem:[%s3 + $0x600] sm:$0xff]
      %v4625 = vld [vmem:[%s3 + $0x608] sm:$0xff]
      %v4626 = vld [vmem:[%s3 + $0x610] sm:$0xff]
      %v4627 = vld [vmem:[%s3 + $0x618] sm:$0xff]
      %v4628 = vld [vmem:[%s3 + $0x620] sm:$0xff]
      %v4629 = vld [vmem:[%s3 + $0x628] sm:$0xff]
      %v4630 = vld [vmem:[%s3 + $0x630] sm:$0xff]
      %v4631 = vld [vmem:[%s3 + $0x638] sm:$0xff]
      %v4633 = vlaneseq
      %v4634 = vshrl.u32 %v4633, 7
      %v4635 = vsub.s32 0, %v4634
      %v4636 = vrot.slane %v4591, %v4635
      %v4637 = vlaneseq
      %v4638 = vshrl.u32 %v4637, 7
      %v4639 = vsub.s32 1, %v4638
      %v4640 = vrot.slane %v4591, %v4639
      %v4642 = vsel %vm226, %v4640, 0
      %4644 = vmatprep.subr.mxu0 %v4593
      %4645 = vmatpush1.msra.mxu0 %v4592
      %4646 = vmatprep.subr.mxu0 %v4595
      %4647 = vmatpush1.msra.mxu0 %v4594
      %4648 = vmatprep.subr.mxu0 %v4597
      %4649 = vmatpush1.msra.mxu0 %v4596
      %4650 = vmatprep.subr.mxu0 %v4599
      %4651 = vmatpush1.msra.mxu0 %v4598
      %4652 = vmatprep.subr.mxu0 %v4601
      %4653 = vmatpush1.msra.mxu0 %v4600
      %4654 = vmatprep.subr.mxu0 %v4603
      %4655 = vmatpush1.msra.mxu0 %v4602
      %4656 = vmatprep.subr.mxu0 %v4605
      %4657 = vmatpush1.msra.mxu0 %v4604
      %4658 = vmatprep.subr.mxu0 %v4607
      %4659 = vmatpush1.msra.mxu0 %v4606
      %4660 = vmatprep.subr.mxu0 %v4609
      %4661 = vmatpush1.msra.mxu0 %v4608
      %4662 = vmatprep.subr.mxu0 %v4611
      %4663 = vmatpush1.msra.mxu0 %v4610
      %4664 = vmatprep.subr.mxu0 %v4613
      %4665 = vmatpush1.msra.mxu0 %v4612
      %4666 = vmatprep.subr.mxu0 %v4615
      %4667 = vmatpush1.msra.mxu0 %v4614
      %4668 = vmatprep.subr.mxu0 %v4617
      %4669 = vmatpush1.msra.mxu0 %v4616
      %4670 = vmatprep.subr.mxu0 %v4619
      %4671 = vmatpush1.msra.mxu0 %v4618
      %4672 = vmatprep.subr.mxu0 %v4621
      %4673 = vmatpush1.msra.mxu0 %v4620
      %4674 = vmatprep.subr.mxu0 %v4623
      %4675 = vmatpush1.msra.mxu0 %v4622
      %4676 = vmatprep.subr.mxu0 %v4625
      %4677 = vmatpush1.msra.mxu0 %v4624
      %4678 = vmatprep.subr.mxu0 %v4627
      %4679 = vmatpush1.msra.mxu0 %v4626
      %4680 = vmatprep.subr.mxu0 %v4629
      %4681 = vmatpush1.msra.mxu0 %v4628
      %4682 = vmatprep.subr.mxu0 %v4631
      %4683 = vmatpush1.msra.mxu0 %v4630
      %4684 = vmatprep.subr.mxu0 0.0
      %4685 = vmatpush1.msra.mxu0 0.0
      %4686 = vmatprep.subr.mxu0 0.0
      %4687 = vmatpush1.msra.mxu0 0.0
      %4688 = vmatprep.subr.mxu0 0.0
      %4689 = vmatpush1.msra.mxu0 0.0
      %4690 = vmatprep.subr.mxu0 0.0
      %4691 = vmatpush1.msra.mxu0 0.0
      %4692 = vmatprep.subr.mxu0 0.0
      %4693 = vmatpush1.msra.mxu0 0.0
      %4694 = vmatprep.subr.mxu0 0.0
      %4695 = vmatpush1.msra.mxu0 0.0
      %4696 = vmatprep.subr.mxu0 0.0
      %4697 = vmatpush1.msra.mxu0 0.0
      %4698 = vmatprep.subr.mxu0 0.0
      %4699 = vmatpush1.msra.mxu0 0.0
      %4700 = vmatprep.subr.mxu0 0.0
      %4701 = vmatpush1.msra.mxu0 0.0
      %4702 = vmatprep.subr.mxu0 0.0
      %4703 = vmatpush1.msra.mxu0 0.0
      %4704 = vmatprep.subr.mxu0 0.0
      %4705 = vmatpush1.msra.mxu0 0.0
      %4706 = vmatprep.subr.mxu0 0.0
      %4707 = vmatpush1.msra.mxu0 0.0
      %4708 = vmatprep.mubr.f32.mxu0 %v4642
      %4709 = vmatmul.mubr.f32.gmra.mrb[0].mxu0 %v4636
      %v4710 = vpop.f32.mrb[0].mxu0
      %v4711 = vadd.f32 0.0, %v4710
      %v4712 = vpop.f32.mrb[0].mxu0
      %v4713 = vadd.f32 0.0, %v4712
      %4714 = vdwg.mxu0
      %v4717 = vcombine.low %v4711, %v4713
      %v4719 = vunpack.c.l.s4 1966171168
      %v4720 = vunpack.c.0.s8 %v4719
      %v4721 = vlaneseq
      %v4722 = vshrl.u32 %v4721, 7
      %v4723 = vsub.s32 %v4720, %v4722
      %v4724 = vrot.slane %v4717, %v4723
      %v4726 = vunpack.c.l.s4 1966171168
      %v4727 = vunpack.c.0.s8 %v4726
      %v4728 = vlaneseq
      %v4729 = vshrl.u32 %v4728, 7
      %v4730 = vsub.s32 %v4727, %v4729
      %v4731 = vrot.slane %v4724, %v4730
      %v4733 = vadd.f32 %v4589, %v4731
      %s4734 = scalar_lea.vmem [#allocation3], 5
      %v4735 = vld [vmem:[%s4734] ss:$8 sm:$0x3]
      %v4736 = vld [vmem:[%s3 + $0x640] sm:$0xff]
      %v4737 = vld [vmem:[%s3 + $0x648] sm:$0xff]
      %v4738 = vld [vmem:[%s3 + $0x650] sm:$0xff]
      %v4739 = vld [vmem:[%s3 + $0x658] sm:$0xff]
      %v4740 = vld [vmem:[%s3 + $0x660] sm:$0xff]
      %v4741 = vld [vmem:[%s3 + $0x668] sm:$0xff]
      %v4742 = vld [vmem:[%s3 + $0x670] sm:$0xff]
      %v4743 = vld [vmem:[%s3 + $0x678] sm:$0xff]
      %v4744 = vld [vmem:[%s3 + $0x680] sm:$0xff]
      %v4745 = vld [vmem:[%s3 + $0x688] sm:$0xff]
      %v4746 = vld [vmem:[%s3 + $0x690] sm:$0xff]
      %v4747 = vld [vmem:[%s3 + $0x698] sm:$0xff]
      %v4748 = vld [vmem:[%s3 + $0x6a0] sm:$0xff]
      %v4749 = vld [vmem:[%s3 + $0x6a8] sm:$0xff]
      %v4750 = vld [vmem:[%s3 + $0x6b0] sm:$0xff]
      %v4751 = vld [vmem:[%s3 + $0x6b8] sm:$0xff]
      %v4752 = vld [vmem:[%s3 + $0x6c0] sm:$0xff]
      %v4753 = vld [vmem:[%s3 + $0x6c8] sm:$0xff]
      %v4754 = vld [vmem:[%s3 + $0x6d0] sm:$0xff]
      %v4755 = vld [vmem:[%s3 + $0x6d8] sm:$0xff]
      %v4756 = vld [vmem:[%s3 + $0x6e0] sm:$0xff]
      %v4757 = vld [vmem:[%s3 + $0x6e8] sm:$0xff]
      %v4758 = vld [vmem:[%s3 + $0x6f0] sm:$0xff]
      %v4759 = vld [vmem:[%s3 + $0x6f8] sm:$0xff]
      %v4760 = vld [vmem:[%s3 + $0x700] sm:$0xff]
      %v4761 = vld [vmem:[%s3 + $0x708] sm:$0xff]
      %v4762 = vld [vmem:[%s3 + $0x710] sm:$0xff]
      %v4763 = vld [vmem:[%s3 + $0x718] sm:$0xff]
      %v4764 = vld [vmem:[%s3 + $0x720] sm:$0xff]
      %v4765 = vld [vmem:[%s3 + $0x728] sm:$0xff]
      %v4766 = vld [vmem:[%s3 + $0x730] sm:$0xff]
      %v4767 = vld [vmem:[%s3 + $0x738] sm:$0xff]
      %v4768 = vld [vmem:[%s3 + $0x740] sm:$0xff]
      %v4769 = vld [vmem:[%s3 + $0x748] sm:$0xff]
      %v4770 = vld [vmem:[%s3 + $0x750] sm:$0xff]
      %v4771 = vld [vmem:[%s3 + $0x758] sm:$0xff]
      %v4772 = vld [vmem:[%s3 + $0x760] sm:$0xff]
      %v4773 = vld [vmem:[%s3 + $0x768] sm:$0xff]
      %v4774 = vld [vmem:[%s3 + $0x770] sm:$0xff]
      %v4775 = vld [vmem:[%s3 + $0x778] sm:$0xff]
      %v4777 = vlaneseq
      %v4778 = vshrl.u32 %v4777, 7
      %v4779 = vsub.s32 0, %v4778
      %v4780 = vrot.slane %v4735, %v4779
      %v4781 = vlaneseq
      %v4782 = vshrl.u32 %v4781, 7
      %v4783 = vsub.s32 1, %v4782
      %v4784 = vrot.slane %v4735, %v4783
      %v4786 = vsel %vm226, %v4784, 0
      %4788 = vmatprep.subr.mxu0 %v4737
      %4789 = vmatpush1.msra.mxu0 %v4736
      %4790 = vmatprep.subr.mxu0 %v4739
      %4791 = vmatpush1.msra.mxu0 %v4738
      %4792 = vmatprep.subr.mxu0 %v4741
      %4793 = vmatpush1.msra.mxu0 %v4740
      %4794 = vmatprep.subr.mxu0 %v4743
      %4795 = vmatpush1.msra.mxu0 %v4742
      %4796 = vmatprep.subr.mxu0 %v4745
      %4797 = vmatpush1.msra.mxu0 %v4744
      %4798 = vmatprep.subr.mxu0 %v4747
      %4799 = vmatpush1.msra.mxu0 %v4746
      %4800 = vmatprep.subr.mxu0 %v4749
      %4801 = vmatpush1.msra.mxu0 %v4748
      %4802 = vmatprep.subr.mxu0 %v4751
      %4803 = vmatpush1.msra.mxu0 %v4750
      %4804 = vmatprep.subr.mxu0 %v4753
      %4805 = vmatpush1.msra.mxu0 %v4752
      %4806 = vmatprep.subr.mxu0 %v4755
      %4807 = vmatpush1.msra.mxu0 %v4754
      %4808 = vmatprep.subr.mxu0 %v4757
      %4809 = vmatpush1.msra.mxu0 %v4756
      %4810 = vmatprep.subr.mxu0 %v4759
      %4811 = vmatpush1.msra.mxu0 %v4758
      %4812 = vmatprep.subr.mxu0 %v4761
      %4813 = vmatpush1.msra.mxu0 %v4760
      %4814 = vmatprep.subr.mxu0 %v4763
      %4815 = vmatpush1.msra.mxu0 %v4762
      %4816 = vmatprep.subr.mxu0 %v4765
      %4817 = vmatpush1.msra.mxu0 %v4764
      %4818 = vmatprep.subr.mxu0 %v4767
      %4819 = vmatpush1.msra.mxu0 %v4766
      %4820 = vmatprep.subr.mxu0 %v4769
      %4821 = vmatpush1.msra.mxu0 %v4768
      %4822 = vmatprep.subr.mxu0 %v4771
      %4823 = vmatpush1.msra.mxu0 %v4770
      %4824 = vmatprep.subr.mxu0 %v4773
      %4825 = vmatpush1.msra.mxu0 %v4772
      %4826 = vmatprep.subr.mxu0 %v4775
      %4827 = vmatpush1.msra.mxu0 %v4774
      %4828 = vmatprep.subr.mxu0 0.0
      %4829 = vmatpush1.msra.mxu0 0.0
      %4830 = vmatprep.subr.mxu0 0.0
      %4831 = vmatpush1.msra.mxu0 0.0
      %4832 = vmatprep.subr.mxu0 0.0
      %4833 = vmatpush1.msra.mxu0 0.0
      %4834 = vmatprep.subr.mxu0 0.0
      %4835 = vmatpush1.msra.mxu0 0.0
      %4836 = vmatprep.subr.mxu0 0.0
      %4837 = vmatpush1.msra.mxu0 0.0
      %4838 = vmatprep.subr.mxu0 0.0
      %4839 = vmatpush1.msra.mxu0 0.0
      %4840 = vmatprep.subr.mxu0 0.0
      %4841 = vmatpush1.msra.mxu0 0.0
      %4842 = vmatprep.subr.mxu0 0.0
      %4843 = vmatpush1.msra.mxu0 0.0
      %4844 = vmatprep.subr.mxu0 0.0
      %4845 = vmatpush1.msra.mxu0 0.0
      %4846 = vmatprep.subr.mxu0 0.0
      %4847 = vmatpush1.msra.mxu0 0.0
      %4848 = vmatprep.subr.mxu0 0.0
      %4849 = vmatpush1.msra.mxu0 0.0
      %4850 = vmatprep.subr.mxu0 0.0
      %4851 = vmatpush1.msra.mxu0 0.0
      %4852 = vmatprep.mubr.f32.mxu0 %v4786
      %4853 = vmatmul.mubr.f32.gmra.mrb[0].mxu0 %v4780
      %v4854 = vpop.f32.mrb[0].mxu0
      %v4855 = vadd.f32 0.0, %v4854
      %v4856 = vpop.f32.mrb[0].mxu0
      %v4857 = vadd.f32 0.0, %v4856
      %4858 = vdwg.mxu0
      %v4861 = vcombine.low %v4855, %v4857
      %v4863 = vunpack.c.l.s4 1966171168
      %v4864 = vunpack.c.0.s8 %v4863
      %v4865 = vlaneseq
      %v4866 = vshrl.u32 %v4865, 7
      %v4867 = vsub.s32 %v4864, %v4866
      %v4868 = vrot.slane %v4861, %v4867
      %v4870 = vunpack.c.l.s4 1966171168
      %v4871 = vunpack.c.0.s8 %v4870
      %v4872 = vlaneseq
      %v4873 = vshrl.u32 %v4872, 7
      %v4874 = vsub.s32 %v4871, %v4873
      %v4875 = vrot.slane %v4868, %v4874
      %v4877 = vadd.f32 %v4733, %v4875
      %s4878 = scalar_lea.vmem [#allocation3], 6
      %v4879 = vld [vmem:[%s4878] ss:$8 sm:$0x3]
      %v4880 = vld [vmem:[%s3 + $0x780] sm:$0xff]
      %v4881 = vld [vmem:[%s3 + $0x788] sm:$0xff]
      %v4882 = vld [vmem:[%s3 + $0x790] sm:$0xff]
      %v4883 = vld [vmem:[%s3 + $0x798] sm:$0xff]
      %v4884 = vld [vmem:[%s3 + $0x7a0] sm:$0xff]
      %v4885 = vld [vmem:[%s3 + $0x7a8] sm:$0xff]
      %v4886 = vld [vmem:[%s3 + $0x7b0] sm:$0xff]
      %v4887 = vld [vmem:[%s3 + $0x7b8] sm:$0xff]
      %v4888 = vld [vmem:[%s3 + $0x7c0] sm:$0xff]
      %v4889 = vld [vmem:[%s3 + $0x7c8] sm:$0xff]
      %v4890 = vld [vmem:[%s3 + $0x7d0] sm:$0xff]
      %v4891 = vld [vmem:[%s3 + $0x7d8] sm:$0xff]
      %v4892 = vld [vmem:[%s3 + $0x7e0] sm:$0xff]
      %v4893 = vld [vmem:[%s3 + $0x7e8] sm:$0xff]
      %v4894 = vld [vmem:[%s3 + $0x7f0] sm:$0xff]
      %v4895 = vld [vmem:[%s3 + $0x7f8] sm:$0xff]
      %v4896 = vld [vmem:[%s3 + $0x800] sm:$0xff]
      %v4897 = vld [vmem:[%s3 + $0x808] sm:$0xff]
      %v4898 = vld [vmem:[%s3 + $0x810] sm:$0xff]
      %v4899 = vld [vmem:[%s3 + $0x818] sm:$0xff]
      %v4900 = vld [vmem:[%s3 + $0x820] sm:$0xff]
      %v4901 = vld [vmem:[%s3 + $0x828] sm:$0xff]
      %v4902 = vld [vmem:[%s3 + $0x830] sm:$0xff]
      %v4903 = vld [vmem:[%s3 + $0x838] sm:$0xff]
      %v4904 = vld [vmem:[%s3 + $0x840] sm:$0xff]
      %v4905 = vld [vmem:[%s3 + $0x848] sm:$0xff]
      %v4906 = vld [vmem:[%s3 + $0x850] sm:$0xff]
      %v4907 = vld [vmem:[%s3 + $0x858] sm:$0xff]
      %v4908 = vld [vmem:[%s3 + $0x860] sm:$0xff]
      %v4909 = vld [vmem:[%s3 + $0x868] sm:$0xff]
      %v4910 = vld [vmem:[%s3 + $0x870] sm:$0xff]
      %v4911 = vld [vmem:[%s3 + $0x878] sm:$0xff]
      %v4912 = vld [vmem:[%s3 + $0x880] sm:$0xff]
      %v4913 = vld [vmem:[%s3 + $0x888] sm:$0xff]
      %v4914 = vld [vmem:[%s3 + $0x890] sm:$0xff]
      %v4915 = vld [vmem:[%s3 + $0x898] sm:$0xff]
      %v4916 = vld [vmem:[%s3 + $0x8a0] sm:$0xff]
      %v4917 = vld [vmem:[%s3 + $0x8a8] sm:$0xff]
      %v4918 = vld [vmem:[%s3 + $0x8b0] sm:$0xff]
      %v4919 = vld [vmem:[%s3 + $0x8b8] sm:$0xff]
      %v4921 = vlaneseq
      %v4922 = vshrl.u32 %v4921, 7
      %v4923 = vsub.s32 0, %v4922
      %v4924 = vrot.slane %v4879, %v4923
      %v4925 = vlaneseq
      %v4926 = vshrl.u32 %v4925, 7
      %v4927 = vsub.s32 1, %v4926
      %v4928 = vrot.slane %v4879, %v4927
      %v4930 = vsel %vm226, %v4928, 0
      %4932 = vmatprep.subr.mxu0 %v4881
      %4933 = vmatpush1.msra.mxu0 %v4880
      %4934 = vmatprep.subr.mxu0 %v4883
      %4935 = vmatpush1.msra.mxu0 %v4882
      %4936 = vmatprep.subr.mxu0 %v4885
      %4937 = vmatpush1.msra.mxu0 %v4884
      %4938 = vmatprep.subr.mxu0 %v4887
      %4939 = vmatpush1.msra.mxu0 %v4886
      %4940 = vmatprep.subr.mxu0 %v4889
      %4941 = vmatpush1.msra.mxu0 %v4888
      %4942 = vmatprep.subr.mxu0 %v4891
      %4943 = vmatpush1.msra.mxu0 %v4890
      %4944 = vmatprep.subr.mxu0 %v4893
      %4945 = vmatpush1.msra.mxu0 %v4892
      %4946 = vmatprep.subr.mxu0 %v4895
      %4947 = vmatpush1.msra.mxu0 %v4894
      %4948 = vmatprep.subr.mxu0 %v4897
      %4949 = vmatpush1.msra.mxu0 %v4896
      %4950 = vmatprep.subr.mxu0 %v4899
      %4951 = vmatpush1.msra.mxu0 %v4898
      %4952 = vmatprep.subr.mxu0 %v4901
      %4953 = vmatpush1.msra.mxu0 %v4900
      %4954 = vmatprep.subr.mxu0 %v4903
      %4955 = vmatpush1.msra.mxu0 %v4902
      %4956 = vmatprep.subr.mxu0 %v4905
      %4957 = vmatpush1.msra.mxu0 %v4904
      %4958 = vmatprep.subr.mxu0 %v4907
      %4959 = vmatpush1.msra.mxu0 %v4906
      %4960 = vmatprep.subr.mxu0 %v4909
      %4961 = vmatpush1.msra.mxu0 %v4908
      %4962 = vmatprep.subr.mxu0 %v4911
      %4963 = vmatpush1.msra.mxu0 %v4910
      %4964 = vmatprep.subr.mxu0 %v4913
      %4965 = vmatpush1.msra.mxu0 %v4912
      %4966 = vmatprep.subr.mxu0 %v4915
      %4967 = vmatpush1.msra.mxu0 %v4914
      %4968 = vmatprep.subr.mxu0 %v4917
      %4969 = vmatpush1.msra.mxu0 %v4916
      %4970 = vmatprep.subr.mxu0 %v4919
      %4971 = vmatpush1.msra.mxu0 %v4918
      %4972 = vmatprep.subr.mxu0 0.0
      %4973 = vmatpush1.msra.mxu0 0.0
      %4974 = vmatprep.subr.mxu0 0.0
      %4975 = vmatpush1.msra.mxu0 0.0
      %4976 = vmatprep.subr.mxu0 0.0
      %4977 = vmatpush1.msra.mxu0 0.0
      %4978 = vmatprep.subr.mxu0 0.0
      %4979 = vmatpush1.msra.mxu0 0.0
      %4980 = vmatprep.subr.mxu0 0.0
      %4981 = vmatpush1.msra.mxu0 0.0
      %4982 = vmatprep.subr.mxu0 0.0
      %4983 = vmatpush1.msra.mxu0 0.0
      %4984 = vmatprep.subr.mxu0 0.0
      %4985 = vmatpush1.msra.mxu0 0.0
      %4986 = vmatprep.subr.mxu0 0.0
      %4987 = vmatpush1.msra.mxu0 0.0
      %4988 = vmatprep.subr.mxu0 0.0
      %4989 = vmatpush1.msra.mxu0 0.0
      %4990 = vmatprep.subr.mxu0 0.0
      %4991 = vmatpush1.msra.mxu0 0.0
      %4992 = vmatprep.subr.mxu0 0.0
      %4993 = vmatpush1.msra.mxu0 0.0
      %4994 = vmatprep.subr.mxu0 0.0
      %4995 = vmatpush1.msra.mxu0 0.0
      %4996 = vmatprep.mubr.f32.mxu0 %v4930
      %4997 = vmatmul.mubr.f32.gmra.mrb[0].mxu0 %v4924
      %v4998 = vpop.f32.mrb[0].mxu0
      %v4999 = vadd.f32 0.0, %v4998
      %v5000 = vpop.f32.mrb[0].mxu0
      %v5001 = vadd.f32 0.0, %v5000
      %5002 = vdwg.mxu0
      %v5005 = vcombine.low %v4999, %v5001
      %v5007 = vunpack.c.l.s4 1966171168
      %v5008 = vunpack.c.0.s8 %v5007
      %v5009 = vlaneseq
      %v5010 = vshrl.u32 %v5009, 7
      %v5011 = vsub.s32 %v5008, %v5010
      %v5012 = vrot.slane %v5005, %v5011
      %v5014 = vunpack.c.l.s4 1966171168
      %v5015 = vunpack.c.0.s8 %v5014
      %v5016 = vlaneseq
      %v5017 = vshrl.u32 %v5016, 7
      %v5018 = vsub.s32 %v5015, %v5017
      %v5019 = vrot.slane %v5012, %v5018
      %v5021 = vadd.f32 %v4877, %v5019
      %s5022 = scalar_lea.vmem [#allocation3], 7
      %v5023 = vld [vmem:[%s5022] ss:$8 sm:$0x3]
      %v5024 = vld [vmem:[%s3 + $0x8c0] sm:$0xff]
      %v5025 = vld [vmem:[%s3 + $0x8c8] sm:$0xff]
      %v5026 = vld [vmem:[%s3 + $0x8d0] sm:$0xff]
      %v5027 = vld [vmem:[%s3 + $0x8d8] sm:$0xff]
      %v5028 = vld [vmem:[%s3 + $0x8e0] sm:$0xff]
      %v5029 = vld [vmem:[%s3 + $0x8e8] sm:$0xff]
      %v5030 = vld [vmem:[%s3 + $0x8f0] sm:$0xff]
      %v5031 = vld [vmem:[%s3 + $0x8f8] sm:$0xff]
      %v5032 = vld [vmem:[%s3 + $0x900] sm:$0xff]
      %v5033 = vld [vmem:[%s3 + $0x908] sm:$0xff]
      %v5034 = vld [vmem:[%s3 + $0x910] sm:$0xff]
      %v5035 = vld [vmem:[%s3 + $0x918] sm:$0xff]
      %v5036 = vld [vmem:[%s3 + $0x920] sm:$0xff]
      %v5037 = vld [vmem:[%s3 + $0x928] sm:$0xff]
      %v5038 = vld [vmem:[%s3 + $0x930] sm:$0xff]
      %v5039 = vld [vmem:[%s3 + $0x938] sm:$0xff]
      %v5040 = vld [vmem:[%s3 + $0x940] sm:$0xff]
      %v5041 = vld [vmem:[%s3 + $0x948] sm:$0xff]
      %v5042 = vld [vmem:[%s3 + $0x950] sm:$0xff]
      %v5043 = vld [vmem:[%s3 + $0x958] sm:$0xff]
      %v5044 = vld [vmem:[%s3 + $0x960] sm:$0xff]
      %v5045 = vld [vmem:[%s3 + $0x968] sm:$0xff]
      %v5046 = vld [vmem:[%s3 + $0x970] sm:$0xff]
      %v5047 = vld [vmem:[%s3 + $0x978] sm:$0xff]
      %v5048 = vld [vmem:[%s3 + $0x980] sm:$0xff]
      %v5049 = vld [vmem:[%s3 + $0x988] sm:$0xff]
      %v5050 = vld [vmem:[%s3 + $0x990] sm:$0xff]
      %v5051 = vld [vmem:[%s3 + $0x998] sm:$0xff]
      %v5052 = vld [vmem:[%s3 + $0x9a0] sm:$0xff]
      %v5053 = vld [vmem:[%s3 + $0x9a8] sm:$0xff]
      %v5054 = vld [vmem:[%s3 + $0x9b0] sm:$0xff]
      %v5055 = vld [vmem:[%s3 + $0x9b8] sm:$0xff]
      %v5056 = vld [vmem:[%s3 + $0x9c0] sm:$0xff]
      %v5057 = vld [vmem:[%s3 + $0x9c8] sm:$0xff]
      %v5058 = vld [vmem:[%s3 + $0x9d0] sm:$0xff]
      %v5059 = vld [vmem:[%s3 + $0x9d8] sm:$0xff]
      %v5060 = vld [vmem:[%s3 + $0x9e0] sm:$0xff]
      %v5061 = vld [vmem:[%s3 + $0x9e8] sm:$0xff]
      %v5062 = vld [vmem:[%s3 + $0x9f0] sm:$0xff]
      %v5063 = vld [vmem:[%s3 + $0x9f8] sm:$0xff]
      %v5065 = vlaneseq
      %v5066 = vshrl.u32 %v5065, 7
      %v5067 = vsub.s32 0, %v5066
      %v5068 = vrot.slane %v5023, %v5067
      %v5069 = vlaneseq
      %v5070 = vshrl.u32 %v5069, 7
      %v5071 = vsub.s32 1, %v5070
      %v5072 = vrot.slane %v5023, %v5071
      %v5074 = vsel %vm226, %v5072, 0
      %5076 = vmatprep.subr.mxu0 %v5025
      %5077 = vmatpush1.msra.mxu0 %v5024
      %5078 = vmatprep.subr.mxu0 %v5027
      %5079 = vmatpush1.msra.mxu0 %v5026
      %5080 = vmatprep.subr.mxu0 %v5029
      %5081 = vmatpush1.msra.mxu0 %v5028
      %5082 = vmatprep.subr.mxu0 %v5031
      %5083 = vmatpush1.msra.mxu0 %v5030
      %5084 = vmatprep.subr.mxu0 %v5033
      %5085 = vmatpush1.msra.mxu0 %v5032
      %5086 = vmatprep.subr.mxu0 %v5035
      %5087 = vmatpush1.msra.mxu0 %v5034
      %5088 = vmatprep.subr.mxu0 %v5037
      %5089 = vmatpush1.msra.mxu0 %v5036
      %5090 = vmatprep.subr.mxu0 %v5039
      %5091 = vmatpush1.msra.mxu0 %v5038
      %5092 = vmatprep.subr.mxu0 %v5041
      %5093 = vmatpush1.msra.mxu0 %v5040
      %5094 = vmatprep.subr.mxu0 %v5043
      %5095 = vmatpush1.msra.mxu0 %v5042
      %5096 = vmatprep.subr.mxu0 %v5045
      %5097 = vmatpush1.msra.mxu0 %v5044
      %5098 = vmatprep.subr.mxu0 %v5047
      %5099 = vmatpush1.msra.mxu0 %v5046
      %5100 = vmatprep.subr.mxu0 %v5049
      %5101 = vmatpush1.msra.mxu0 %v5048
      %5102 = vmatprep.subr.mxu0 %v5051
      %5103 = vmatpush1.msra.mxu0 %v5050
      %5104 = vmatprep.subr.mxu0 %v5053
      %5105 = vmatpush1.msra.mxu0 %v5052
      %5106 = vmatprep.subr.mxu0 %v5055
      %5107 = vmatpush1.msra.mxu0 %v5054
      %5108 = vmatprep.subr.mxu0 %v5057
      %5109 = vmatpush1.msra.mxu0 %v5056
      %5110 = vmatprep.subr.mxu0 %v5059
      %5111 = vmatpush1.msra.mxu0 %v5058
      %5112 = vmatprep.subr.mxu0 %v5061
      %5113 = vmatpush1.msra.mxu0 %v5060
      %5114 = vmatprep.subr.mxu0 %v5063
      %5115 = vmatpush1.msra.mxu0 %v5062
      %5116 = vmatprep.subr.mxu0 0.0
      %5117 = vmatpush1.msra.mxu0 0.0
      %5118 = vmatprep.subr.mxu0 0.0
      %5119 = vmatpush1.msra.mxu0 0.0
      %5120 = vmatprep.subr.mxu0 0.0
      %5121 = vmatpush1.msra.mxu0 0.0
      %5122 = vmatprep.subr.mxu0 0.0
      %5123 = vmatpush1.msra.mxu0 0.0
      %5124 = vmatprep.subr.mxu0 0.0
      %5125 = vmatpush1.msra.mxu0 0.0
      %5126 = vmatprep.subr.mxu0 0.0
      %5127 = vmatpush1.msra.mxu0 0.0
      %5128 = vmatprep.subr.mxu0 0.0
      %5129 = vmatpush1.msra.mxu0 0.0
      %5130 = vmatprep.subr.mxu0 0.0
      %5131 = vmatpush1.msra.mxu0 0.0
      %5132 = vmatprep.subr.mxu0 0.0
      %5133 = vmatpush1.msra.mxu0 0.0
      %5134 = vmatprep.subr.mxu0 0.0
      %5135 = vmatpush1.msra.mxu0 0.0
      %5136 = vmatprep.subr.mxu0 0.0
      %5137 = vmatpush1.msra.mxu0 0.0
      %5138 = vmatprep.subr.mxu0 0.0
      %5139 = vmatpush1.msra.mxu0 0.0
      %5140 = vmatprep.mubr.f32.mxu0 %v5074
      %5141 = vmatmul.mubr.f32.gmra.mrb[0].mxu0 %v5068
      %v5142 = vpop.f32.mrb[0].mxu0
      %v5143 = vadd.f32 0.0, %v5142
      %v5144 = vpop.f32.mrb[0].mxu0
      %v5145 = vadd.f32 0.0, %v5144
      %5146 = vdwg.mxu0
      %v5149 = vcombine.low %v5143, %v5145
      %v5151 = vunpack.c.l.s4 1966171168
      %v5152 = vunpack.c.0.s8 %v5151
      %v5153 = vlaneseq
      %v5154 = vshrl.u32 %v5153, 7
      %v5155 = vsub.s32 %v5152, %v5154
      %v5156 = vrot.slane %v5149, %v5155
      %v5158 = vunpack.c.l.s4 1966171168
      %v5159 = vunpack.c.0.s8 %v5158
      %v5160 = vlaneseq
      %v5161 = vshrl.u32 %v5160, 7
      %v5162 = vsub.s32 %v5159, %v5161
      %v5163 = vrot.slane %v5156, %v5162
      %v5165 = vadd.f32 %v5021, %v5163
      %s5166 = scalar_lea.vmem [#allocation3], 16
      %v5167 = vld [vmem:[%s5166] ss:$8 sm:$0x3]
      %v5168 = vld [vmem:[%s3 + $0xa00] sm:$0xff]
      %v5169 = vld [vmem:[%s3 + $0xa08] sm:$0xff]
      %v5170 = vld [vmem:[%s3 + $0xa10] sm:$0xff]
      %v5171 = vld [vmem:[%s3 + $0xa18] sm:$0xff]
      %v5172 = vld [vmem:[%s3 + $0xa20] sm:$0xff]
      %v5173 = vld [vmem:[%s3 + $0xa28] sm:$0xff]
      %v5174 = vld [vmem:[%s3 + $0xa30] sm:$0xff]
      %v5175 = vld [vmem:[%s3 + $0xa38] sm:$0xff]
      %v5176 = vld [vmem:[%s3 + $0xa40] sm:$0xff]
      %v5177 = vld [vmem:[%s3 + $0xa48] sm:$0xff]
      %v5178 = vld [vmem:[%s3 + $0xa50] sm:$0xff]
      %v5179 = vld [vmem:[%s3 + $0xa58] sm:$0xff]
      %v5180 = vld [vmem:[%s3 + $0xa60] sm:$0xff]
      %v5181 = vld [vmem:[%s3 + $0xa68] sm:$0xff]
      %v5182 = vld [vmem:[%s3 + $0xa70] sm:$0xff]
      %v5183 = vld [vmem:[%s3 + $0xa78] sm:$0xff]
      %v5184 = vld [vmem:[%s3 + $0xa80] sm:$0xff]
      %v5185 = vld [vmem:[%s3 + $0xa88] sm:$0xff]
      %v5186 = vld [vmem:[%s3 + $0xa90] sm:$0xff]
      %v5187 = vld [vmem:[%s3 + $0xa98] sm:$0xff]
      %v5188 = vld [vmem:[%s3 + $0xaa0] sm:$0xff]
      %v5189 = vld [vmem:[%s3 + $0xaa8] sm:$0xff]
      %v5190 = vld [vmem:[%s3 + $0xab0] sm:$0xff]
      %v5191 = vld [vmem:[%s3 + $0xab8] sm:$0xff]
      %v5192 = vld [vmem:[%s3 + $0xac0] sm:$0xff]
      %v5193 = vld [vmem:[%s3 + $0xac8] sm:$0xff]
      %v5194 = vld [vmem:[%s3 + $0xad0] sm:$0xff]
      %v5195 = vld [vmem:[%s3 + $0xad8] sm:$0xff]
      %v5196 = vld [vmem:[%s3 + $0xae0] sm:$0xff]
      %v5197 = vld [vmem:[%s3 + $0xae8] sm:$0xff]
      %v5198 = vld [vmem:[%s3 + $0xaf0] sm:$0xff]
      %v5199 = vld [vmem:[%s3 + $0xaf8] sm:$0xff]
      %v5200 = vld [vmem:[%s3 + $0xb00] sm:$0xff]
      %v5201 = vld [vmem:[%s3 + $0xb08] sm:$0xff]
      %v5202 = vld [vmem:[%s3 + $0xb10] sm:$0xff]
      %v5203 = vld [vmem:[%s3 + $0xb18] sm:$0xff]
      %v5204 = vld [vmem:[%s3 + $0xb20] sm:$0xff]
      %v5205 = vld [vmem:[%s3 + $0xb28] sm:$0xff]
      %v5206 = vld [vmem:[%s3 + $0xb30] sm:$0xff]
      %v5207 = vld [vmem:[%s3 + $0xb38] sm:$0xff]
      %v5209 = vlaneseq
      %v5210 = vshrl.u32 %v5209, 7
      %v5211 = vsub.s32 0, %v5210
      %v5212 = vrot.slane %v5167, %v5211
      %v5213 = vlaneseq
      %v5214 = vshrl.u32 %v5213, 7
      %v5215 = vsub.s32 1, %v5214
      %v5216 = vrot.slane %v5167, %v5215
      %v5218 = vsel %vm226, %v5216, 0
      %5220 = vmatprep.subr.mxu0 %v5169
      %5221 = vmatpush1.msra.mxu0 %v5168
      %5222 = vmatprep.subr.mxu0 %v5171
      %5223 = vmatpush1.msra.mxu0 %v5170
      %5224 = vmatprep.subr.mxu0 %v5173
      %5225 = vmatpush1.msra.mxu0 %v5172
      %5226 = vmatprep.subr.mxu0 %v5175
      %5227 = vmatpush1.msra.mxu0 %v5174
      %5228 = vmatprep.subr.mxu0 %v5177
      %5229 = vmatpush1.msra.mxu0 %v5176
      %5230 = vmatprep.subr.mxu0 %v5179
      %5231 = vmatpush1.msra.mxu0 %v5178
      %5232 = vmatprep.subr.mxu0 %v5181
      %5233 = vmatpush1.msra.mxu0 %v5180
      %5234 = vmatprep.subr.mxu0 %v5183
      %5235 = vmatpush1.msra.mxu0 %v5182
      %5236 = vmatprep.subr.mxu0 %v5185
      %5237 = vmatpush1.msra.mxu0 %v5184
      %5238 = vmatprep.subr.mxu0 %v5187
      %5239 = vmatpush1.msra.mxu0 %v5186
      %5240 = vmatprep.subr.mxu0 %v5189
      %5241 = vmatpush1.msra.mxu0 %v5188
      %5242 = vmatprep.subr.mxu0 %v5191
      %5243 = vmatpush1.msra.mxu0 %v5190
      %5244 = vmatprep.subr.mxu0 %v5193
      %5245 = vmatpush1.msra.mxu0 %v5192
      %5246 = vmatprep.subr.mxu0 %v5195
      %5247 = vmatpush1.msra.mxu0 %v5194
      %5248 = vmatprep.subr.mxu0 %v5197
      %5249 = vmatpush1.msra.mxu0 %v5196
      %5250 = vmatprep.subr.mxu0 %v5199
      %5251 = vmatpush1.msra.mxu0 %v5198
      %5252 = vmatprep.subr.mxu0 %v5201
      %5253 = vmatpush1.msra.mxu0 %v5200
      %5254 = vmatprep.subr.mxu0 %v5203
      %5255 = vmatpush1.msra.mxu0 %v5202
      %5256 = vmatprep.subr.mxu0 %v5205
      %5257 = vmatpush1.msra.mxu0 %v5204
      %5258 = vmatprep.subr.mxu0 %v5207
      %5259 = vmatpush1.msra.mxu0 %v5206
      %5260 = vmatprep.subr.mxu0 0.0
      %5261 = vmatpush1.msra.mxu0 0.0
      %5262 = vmatprep.subr.mxu0 0.0
      %5263 = vmatpush1.msra.mxu0 0.0
      %5264 = vmatprep.subr.mxu0 0.0
      %5265 = vmatpush1.msra.mxu0 0.0
      %5266 = vmatprep.subr.mxu0 0.0
      %5267 = vmatpush1.msra.mxu0 0.0
      %5268 = vmatprep.subr.mxu0 0.0
      %5269 = vmatpush1.msra.mxu0 0.0
      %5270 = vmatprep.subr.mxu0 0.0
      %5271 = vmatpush1.msra.mxu0 0.0
      %5272 = vmatprep.subr.mxu0 0.0
      %5273 = vmatpush1.msra.mxu0 0.0
      %5274 = vmatprep.subr.mxu0 0.0
      %5275 = vmatpush1.msra.mxu0 0.0
      %5276 = vmatprep.subr.mxu0 0.0
      %5277 = vmatpush1.msra.mxu0 0.0
      %5278 = vmatprep.subr.mxu0 0.0
      %5279 = vmatpush1.msra.mxu0 0.0
      %5280 = vmatprep.subr.mxu0 0.0
      %5281 = vmatpush1.msra.mxu0 0.0
      %5282 = vmatprep.subr.mxu0 0.0
      %5283 = vmatpush1.msra.mxu0 0.0
      %5284 = vmatprep.mubr.f32.mxu0 %v5218
      %5285 = vmatmul.mubr.f32.gmra.mrb[0].mxu0 %v5212
      %v5286 = vpop.f32.mrb[0].mxu0
      %v5287 = vadd.f32 0.0, %v5286
      %v5288 = vpop.f32.mrb[0].mxu0
      %v5289 = vadd.f32 0.0, %v5288
      %5290 = vdwg.mxu0
      %v5293 = vcombine.low %v5287, %v5289
      %v5295 = vunpack.c.l.s4 1966171168
      %v5296 = vunpack.c.0.s8 %v5295
      %v5297 = vlaneseq
      %v5298 = vshrl.u32 %v5297, 7
      %v5299 = vsub.s32 %v5296, %v5298
      %v5300 = vrot.slane %v5293, %v5299
      %v5302 = vunpack.c.l.s4 1966171168
      %v5303 = vunpack.c.0.s8 %v5302
      %v5304 = vlaneseq
      %v5305 = vshrl.u32 %v5304, 7
      %v5306 = vsub.s32 %v5303, %v5305
      %v5307 = vrot.slane %v5300, %v5306
      %v5309 = vadd.f32 %v5165, %v5307
      %s5310 = scalar_lea.vmem [#allocation3], 17
      %v5311 = vld [vmem:[%s5310] ss:$8 sm:$0x3]
      %v5312 = vld [vmem:[%s3 + $0xb40] sm:$0xff]
      %v5313 = vld [vmem:[%s3 + $0xb48] sm:$0xff]
      %v5314 = vld [vmem:[%s3 + $0xb50] sm:$0xff]
      %v5315 = vld [vmem:[%s3 + $0xb58] sm:$0xff]
      %v5316 = vld [vmem:[%s3 + $0xb60] sm:$0xff]
      %v5317 = vld [vmem:[%s3 + $0xb68] sm:$0xff]
      %v5318 = vld [vmem:[%s3 + $0xb70] sm:$0xff]
      %v5319 = vld [vmem:[%s3 + $0xb78] sm:$0xff]
      %v5320 = vld [vmem:[%s3 + $0xb80] sm:$0xff]
      %v5321 = vld [vmem:[%s3 + $0xb88] sm:$0xff]
      %v5322 = vld [vmem:[%s3 + $0xb90] sm:$0xff]
      %v5323 = vld [vmem:[%s3 + $0xb98] sm:$0xff]
      %v5324 = vld [vmem:[%s3 + $0xba0] sm:$0xff]
      %v5325 = vld [vmem:[%s3 + $0xba8] sm:$0xff]
      %v5326 = vld [vmem:[%s3 + $0xbb0] sm:$0xff]
      %v5327 = vld [vmem:[%s3 + $0xbb8] sm:$0xff]
      %v5328 = vld [vmem:[%s3 + $0xbc0] sm:$0xff]
      %v5329 = vld [vmem:[%s3 + $0xbc8] sm:$0xff]
      %v5330 = vld [vmem:[%s3 + $0xbd0] sm:$0xff]
      %v5331 = vld [vmem:[%s3 + $0xbd8] sm:$0xff]
      %v5332 = vld [vmem:[%s3 + $0xbe0] sm:$0xff]
      %v5333 = vld [vmem:[%s3 + $0xbe8] sm:$0xff]
      %v5334 = vld [vmem:[%s3 + $0xbf0] sm:$0xff]
      %v5335 = vld [vmem:[%s3 + $0xbf8] sm:$0xff]
      %v5336 = vld [vmem:[%s3 + $0xc00] sm:$0xff]
      %v5337 = vld [vmem:[%s3 + $0xc08] sm:$0xff]
      %v5338 = vld [vmem:[%s3 + $0xc10] sm:$0xff]
      %v5339 = vld [vmem:[%s3 + $0xc18] sm:$0xff]
      %v5340 = vld [vmem:[%s3 + $0xc20] sm:$0xff]
      %v5341 = vld [vmem:[%s3 + $0xc28] sm:$0xff]
      %v5342 = vld [vmem:[%s3 + $0xc30] sm:$0xff]
      %v5343 = vld [vmem:[%s3 + $0xc38] sm:$0xff]
      %v5344 = vld [vmem:[%s3 + $0xc40] sm:$0xff]
      %v5345 = vld [vmem:[%s3 + $0xc48] sm:$0xff]
      %v5346 = vld [vmem:[%s3 + $0xc50] sm:$0xff]
      %v5347 = vld [vmem:[%s3 + $0xc58] sm:$0xff]
      %v5348 = vld [vmem:[%s3 + $0xc60] sm:$0xff]
      %v5349 = vld [vmem:[%s3 + $0xc68] sm:$0xff]
      %v5350 = vld [vmem:[%s3 + $0xc70] sm:$0xff]
      %v5351 = vld [vmem:[%s3 + $0xc78] sm:$0xff]
      %v5353 = vlaneseq
      %v5354 = vshrl.u32 %v5353, 7
      %v5355 = vsub.s32 0, %v5354
      %v5356 = vrot.slane %v5311, %v5355
      %v5357 = vlaneseq
      %v5358 = vshrl.u32 %v5357, 7
      %v5359 = vsub.s32 1, %v5358
      %v5360 = vrot.slane %v5311, %v5359
      %v5362 = vsel %vm226, %v5360, 0
      %5364 = vmatprep.subr.mxu0 %v5313
      %5365 = vmatpush1.msra.mxu0 %v5312
      %5366 = vmatprep.subr.mxu0 %v5315
      %5367 = vmatpush1.msra.mxu0 %v5314
      %5368 = vmatprep.subr.mxu0 %v5317
      %5369 = vmatpush1.msra.mxu0 %v5316
      %5370 = vmatprep.subr.mxu0 %v5319
      %5371 = vmatpush1.msra.mxu0 %v5318
      %5372 = vmatprep.subr.mxu0 %v5321
      %5373 = vmatpush1.msra.mxu0 %v5320
      %5374 = vmatprep.subr.mxu0 %v5323
      %5375 = vmatpush1.msra.mxu0 %v5322
      %5376 = vmatprep.subr.mxu0 %v5325
      %5377 = vmatpush1.msra.mxu0 %v5324
      %5378 = vmatprep.subr.mxu0 %v5327
      %5379 = vmatpush1.msra.mxu0 %v5326
      %5380 = vmatprep.subr.mxu0 %v5329
      %5381 = vmatpush1.msra.mxu0 %v5328
      %5382 = vmatprep.subr.mxu0 %v5331
      %5383 = vmatpush1.msra.mxu0 %v5330
      %5384 = vmatprep.subr.mxu0 %v5333
      %5385 = vmatpush1.msra.mxu0 %v5332
      %5386 = vmatprep.subr.mxu0 %v5335
      %5387 = vmatpush1.msra.mxu0 %v5334
      %5388 = vmatprep.subr.mxu0 %v5337
      %5389 = vmatpush1.msra.mxu0 %v5336
      %5390 = vmatprep.subr.mxu0 %v5339
      %5391 = vmatpush1.msra.mxu0 %v5338
      %5392 = vmatprep.subr.mxu0 %v5341
      %5393 = vmatpush1.msra.mxu0 %v5340
      %5394 = vmatprep.subr.mxu0 %v5343
      %5395 = vmatpush1.msra.mxu0 %v5342
      %5396 = vmatprep.subr.mxu0 %v5345
      %5397 = vmatpush1.msra.mxu0 %v5344
      %5398 = vmatprep.subr.mxu0 %v5347
      %5399 = vmatpush1.msra.mxu0 %v5346
      %5400 = vmatprep.subr.mxu0 %v5349
      %5401 = vmatpush1.msra.mxu0 %v5348
      %5402 = vmatprep.subr.mxu0 %v5351
      %5403 = vmatpush1.msra.mxu0 %v5350
      %5404 = vmatprep.subr.mxu0 0.0
      %5405 = vmatpush1.msra.mxu0 0.0
      %5406 = vmatprep.subr.mxu0 0.0
      %5407 = vmatpush1.msra.mxu0 0.0
      %5408 = vmatprep.subr.mxu0 0.0
      %5409 = vmatpush1.msra.mxu0 0.0
      %5410 = vmatprep.subr.mxu0 0.0
      %5411 = vmatpush1.msra.mxu0 0.0
      %5412 = vmatprep.subr.mxu0 0.0
      %5413 = vmatpush1.msra.mxu0 0.0
      %5414 = vmatprep.subr.mxu0 0.0
      %5415 = vmatpush1.msra.mxu0 0.0
      %5416 = vmatprep.subr.mxu0 0.0
      %5417 = vmatpush1.msra.mxu0 0.0
      %5418 = vmatprep.subr.mxu0 0.0
      %5419 = vmatpush1.msra.mxu0 0.0
      %5420 = vmatprep.subr.mxu0 0.0
      %5421 = vmatpush1.msra.mxu0 0.0
      %5422 = vmatprep.subr.mxu0 0.0
      %5423 = vmatpush1.msra.mxu0 0.0
      %5424 = vmatprep.subr.mxu0 0.0
      %5425 = vmatpush1.msra.mxu0 0.0
      %5426 = vmatprep.subr.mxu0 0.0
      %5427 = vmatpush1.msra.mxu0 0.0
      %5428 = vmatprep.mubr.f32.mxu0 %v5362
      %5429 = vmatmul.mubr.f32.gmra.mrb[0].mxu0 %v5356
      %v5430 = vpop.f32.mrb[0].mxu0
      %v5431 = vadd.f32 0.0, %v5430
      %v5432 = vpop.f32.mrb[0].mxu0
      %v5433 = vadd.f32 0.0, %v5432
      %5434 = vdwg.mxu0
      %v5437 = vcombine.low %v5431, %v5433
      %v5439 = vunpack.c.l.s4 1966171168
      %v5440 = vunpack.c.0.s8 %v5439
      %v5441 = vlaneseq
      %v5442 = vshrl.u32 %v5441, 7
      %v5443 = vsub.s32 %v5440, %v5442
      %v5444 = vrot.slane %v5437, %v5443
      %v5446 = vunpack.c.l.s4 1966171168
      %v5447 = vunpack.c.0.s8 %v5446
      %v5448 = vlaneseq
      %v5449 = vshrl.u32 %v5448, 7
      %v5450 = vsub.s32 %v5447, %v5449
      %v5451 = vrot.slane %v5444, %v5450
      %v5453 = vadd.f32 %v5309, %v5451
      %s5454 = scalar_lea.vmem [#allocation3], 18
      %v5455 = vld [vmem:[%s5454] ss:$8 sm:$0x3]
      %v5456 = vld [vmem:[%s3 + $0xc80] sm:$0xff]
      %v5457 = vld [vmem:[%s3 + $0xc88] sm:$0xff]
      %v5458 = vld [vmem:[%s3 + $0xc90] sm:$0xff]
      %v5459 = vld [vmem:[%s3 + $0xc98] sm:$0xff]
      %v5460 = vld [vmem:[%s3 + $0xca0] sm:$0xff]
      %v5461 = vld [vmem:[%s3 + $0xca8] sm:$0xff]
      %v5462 = vld [vmem:[%s3 + $0xcb0] sm:$0xff]
      %v5463 = vld [vmem:[%s3 + $0xcb8] sm:$0xff]
      %v5464 = vld [vmem:[%s3 + $0xcc0] sm:$0xff]
      %v5465 = vld [vmem:[%s3 + $0xcc8] sm:$0xff]
      %v5466 = vld [vmem:[%s3 + $0xcd0] sm:$0xff]
      %v5467 = vld [vmem:[%s3 + $0xcd8] sm:$0xff]
      %v5468 = vld [vmem:[%s3 + $0xce0] sm:$0xff]
      %v5469 = vld [vmem:[%s3 + $0xce8] sm:$0xff]
      %v5470 = vld [vmem:[%s3 + $0xcf0] sm:$0xff]
      %v5471 = vld [vmem:[%s3 + $0xcf8] sm:$0xff]
      %v5472 = vld [vmem:[%s3 + $0xd00] sm:$0xff]
      %v5473 = vld [vmem:[%s3 + $0xd08] sm:$0xff]
      %v5474 = vld [vmem:[%s3 + $0xd10] sm:$0xff]
      %v5475 = vld [vmem:[%s3 + $0xd18] sm:$0xff]
      %v5476 = vld [vmem:[%s3 + $0xd20] sm:$0xff]
      %v5477 = vld [vmem:[%s3 + $0xd28] sm:$0xff]
      %v5478 = vld [vmem:[%s3 + $0xd30] sm:$0xff]
      %v5479 = vld [vmem:[%s3 + $0xd38] sm:$0xff]
      %v5480 = vld [vmem:[%s3 + $0xd40] sm:$0xff]
      %v5481 = vld [vmem:[%s3 + $0xd48] sm:$0xff]
      %v5482 = vld [vmem:[%s3 + $0xd50] sm:$0xff]
      %v5483 = vld [vmem:[%s3 + $0xd58] sm:$0xff]
      %v5484 = vld [vmem:[%s3 + $0xd60] sm:$0xff]
      %v5485 = vld [vmem:[%s3 + $0xd68] sm:$0xff]
      %v5486 = vld [vmem:[%s3 + $0xd70] sm:$0xff]
      %v5487 = vld [vmem:[%s3 + $0xd78] sm:$0xff]
      %v5488 = vld [vmem:[%s3 + $0xd80] sm:$0xff]
      %v5489 = vld [vmem:[%s3 + $0xd88] sm:$0xff]
      %v5490 = vld [vmem:[%s3 + $0xd90] sm:$0xff]
      %v5491 = vld [vmem:[%s3 + $0xd98] sm:$0xff]
      %v5492 = vld [vmem:[%s3 + $0xda0] sm:$0xff]
      %v5493 = vld [vmem:[%s3 + $0xda8] sm:$0xff]
      %v5494 = vld [vmem:[%s3 + $0xdb0] sm:$0xff]
      %v5495 = vld [vmem:[%s3 + $0xdb8] sm:$0xff]
      %v5497 = vlaneseq
      %v5498 = vshrl.u32 %v5497, 7
      %v5499 = vsub.s32 0, %v5498
      %v5500 = vrot.slane %v5455, %v5499
      %v5501 = vlaneseq
      %v5502 = vshrl.u32 %v5501, 7
      %v5503 = vsub.s32 1, %v5502
      %v5504 = vrot.slane %v5455, %v5503
      %v5506 = vsel %vm226, %v5504, 0
      %5508 = vmatprep.subr.mxu0 %v5457
      %5509 = vmatpush1.msra.mxu0 %v5456
      %5510 = vmatprep.subr.mxu0 %v5459
      %5511 = vmatpush1.msra.mxu0 %v5458
      %5512 = vmatprep.subr.mxu0 %v5461
      %5513 = vmatpush1.msra.mxu0 %v5460
      %5514 = vmatprep.subr.mxu0 %v5463
      %5515 = vmatpush1.msra.mxu0 %v5462
      %5516 = vmatprep.subr.mxu0 %v5465
      %5517 = vmatpush1.msra.mxu0 %v5464
      %5518 = vmatprep.subr.mxu0 %v5467
      %5519 = vmatpush1.msra.mxu0 %v5466
      %5520 = vmatprep.subr.mxu0 %v5469
      %5521 = vmatpush1.msra.mxu0 %v5468
      %5522 = vmatprep.subr.mxu0 %v5471
      %5523 = vmatpush1.msra.mxu0 %v5470
      %5524 = vmatprep.subr.mxu0 %v5473
      %5525 = vmatpush1.msra.mxu0 %v5472
      %5526 = vmatprep.subr.mxu0 %v5475
      %5527 = vmatpush1.msra.mxu0 %v5474
      %5528 = vmatprep.subr.mxu0 %v5477
      %5529 = vmatpush1.msra.mxu0 %v5476
      %5530 = vmatprep.subr.mxu0 %v5479
      %5531 = vmatpush1.msra.mxu0 %v5478
      %5532 = vmatprep.subr.mxu0 %v5481
      %5533 = vmatpush1.msra.mxu0 %v5480
      %5534 = vmatprep.subr.mxu0 %v5483
      %5535 = vmatpush1.msra.mxu0 %v5482
      %5536 = vmatprep.subr.mxu0 %v5485
      %5537 = vmatpush1.msra.mxu0 %v5484
      %5538 = vmatprep.subr.mxu0 %v5487
      %5539 = vmatpush1.msra.mxu0 %v5486
      %5540 = vmatprep.subr.mxu0 %v5489
      %5541 = vmatpush1.msra.mxu0 %v5488
      %5542 = vmatprep.subr.mxu0 %v5491
      %5543 = vmatpush1.msra.mxu0 %v5490
      %5544 = vmatprep.subr.mxu0 %v5493
      %5545 = vmatpush1.msra.mxu0 %v5492
      %5546 = vmatprep.subr.mxu0 %v5495
      %5547 = vmatpush1.msra.mxu0 %v5494
      %5548 = vmatprep.subr.mxu0 0.0
      %5549 = vmatpush1.msra.mxu0 0.0
      %5550 = vmatprep.subr.mxu0 0.0
      %5551 = vmatpush1.msra.mxu0 0.0
      %5552 = vmatprep.subr.mxu0 0.0
      %5553 = vmatpush1.msra.mxu0 0.0
      %5554 = vmatprep.subr.mxu0 0.0
      %5555 = vmatpush1.msra.mxu0 0.0
      %5556 = vmatprep.subr.mxu0 0.0
      %5557 = vmatpush1.msra.mxu0 0.0
      %5558 = vmatprep.subr.mxu0 0.0
      %5559 = vmatpush1.msra.mxu0 0.0
      %5560 = vmatprep.subr.mxu0 0.0
      %5561 = vmatpush1.msra.mxu0 0.0
      %5562 = vmatprep.subr.mxu0 0.0
      %5563 = vmatpush1.msra.mxu0 0.0
      %5564 = vmatprep.subr.mxu0 0.0
      %5565 = vmatpush1.msra.mxu0 0.0
      %5566 = vmatprep.subr.mxu0 0.0
      %5567 = vmatpush1.msra.mxu0 0.0
      %5568 = vmatprep.subr.mxu0 0.0
      %5569 = vmatpush1.msra.mxu0 0.0
      %5570 = vmatprep.subr.mxu0 0.0
      %5571 = vmatpush1.msra.mxu0 0.0
      %5572 = vmatprep.mubr.f32.mxu0 %v5506
      %5573 = vmatmul.mubr.f32.gmra.mrb[0].mxu0 %v5500
      %v5574 = vpop.f32.mrb[0].mxu0
      %v5575 = vadd.f32 0.0, %v5574
      %v5576 = vpop.f32.mrb[0].mxu0
      %v5577 = vadd.f32 0.0, %v5576
      %5578 = vdwg.mxu0
      %v5581 = vcombine.low %v5575, %v5577
      %v5583 = vunpack.c.l.s4 1966171168
      %v5584 = vunpack.c.0.s8 %v5583
      %v5585 = vlaneseq
      %v5586 = vshrl.u32 %v5585, 7
      %v5587 = vsub.s32 %v5584, %v5586
      %v5588 = vrot.slane %v5581, %v5587
      %v5590 = vunpack.c.l.s4 1966171168
      %v5591 = vunpack.c.0.s8 %v5590
      %v5592 = vlaneseq
      %v5593 = vshrl.u32 %v5592, 7
      %v5594 = vsub.s32 %v5591, %v5593
      %v5595 = vrot.slane %v5588, %v5594
      %v5597 = vadd.f32 %v5453, %v5595
      %s5598 = scalar_lea.vmem [#allocation3], 19
      %v5599 = vld [vmem:[%s5598] ss:$8 sm:$0x3]
      %v5600 = vld [vmem:[%s3 + $0xdc0] sm:$0xff]
      %v5601 = vld [vmem:[%s3 + $0xdc8] sm:$0xff]
      %v5602 = vld [vmem:[%s3 + $0xdd0] sm:$0xff]
      %v5603 = vld [vmem:[%s3 + $0xdd8] sm:$0xff]
      %v5604 = vld [vmem:[%s3 + $0xde0] sm:$0xff]
      %v5605 = vld [vmem:[%s3 + $0xde8] sm:$0xff]
      %v5606 = vld [vmem:[%s3 + $0xdf0] sm:$0xff]
      %v5607 = vld [vmem:[%s3 + $0xdf8] sm:$0xff]
      %v5608 = vld [vmem:[%s3 + $0xe00] sm:$0xff]
      %v5609 = vld [vmem:[%s3 + $0xe08] sm:$0xff]
      %v5610 = vld [vmem:[%s3 + $0xe10] sm:$0xff]
      %v5611 = vld [vmem:[%s3 + $0xe18] sm:$0xff]
      %v5612 = vld [vmem:[%s3 + $0xe20] sm:$0xff]
      %v5613 = vld [vmem:[%s3 + $0xe28] sm:$0xff]
      %v5614 = vld [vmem:[%s3 + $0xe30] sm:$0xff]
      %v5615 = vld [vmem:[%s3 + $0xe38] sm:$0xff]
      %v5616 = vld [vmem:[%s3 + $0xe40] sm:$0xff]
      %v5617 = vld [vmem:[%s3 + $0xe48] sm:$0xff]
      %v5618 = vld [vmem:[%s3 + $0xe50] sm:$0xff]
      %v5619 = vld [vmem:[%s3 + $0xe58] sm:$0xff]
      %v5620 = vld [vmem:[%s3 + $0xe60] sm:$0xff]
      %v5621 = vld [vmem:[%s3 + $0xe68] sm:$0xff]
      %v5622 = vld [vmem:[%s3 + $0xe70] sm:$0xff]
      %v5623 = vld [vmem:[%s3 + $0xe78] sm:$0xff]
      %v5624 = vld [vmem:[%s3 + $0xe80] sm:$0xff]
      %v5625 = vld [vmem:[%s3 + $0xe88] sm:$0xff]
      %v5626 = vld [vmem:[%s3 + $0xe90] sm:$0xff]
      %v5627 = vld [vmem:[%s3 + $0xe98] sm:$0xff]
      %v5628 = vld [vmem:[%s3 + $0xea0] sm:$0xff]
      %v5629 = vld [vmem:[%s3 + $0xea8] sm:$0xff]
      %v5630 = vld [vmem:[%s3 + $0xeb0] sm:$0xff]
      %v5631 = vld [vmem:[%s3 + $0xeb8] sm:$0xff]
      %v5632 = vld [vmem:[%s3 + $0xec0] sm:$0xff]
      %v5633 = vld [vmem:[%s3 + $0xec8] sm:$0xff]
      %v5634 = vld [vmem:[%s3 + $0xed0] sm:$0xff]
      %v5635 = vld [vmem:[%s3 + $0xed8] sm:$0xff]
      %v5636 = vld [vmem:[%s3 + $0xee0] sm:$0xff]
      %v5637 = vld [vmem:[%s3 + $0xee8] sm:$0xff]
      %v5638 = vld [vmem:[%s3 + $0xef0] sm:$0xff]
      %v5639 = vld [vmem:[%s3 + $0xef8] sm:$0xff]
      %v5641 = vlaneseq
      %v5642 = vshrl.u32 %v5641, 7
      %v5643 = vsub.s32 0, %v5642
      %v5644 = vrot.slane %v5599, %v5643
      %v5645 = vlaneseq
      %v5646 = vshrl.u32 %v5645, 7
      %v5647 = vsub.s32 1, %v5646
      %v5648 = vrot.slane %v5599, %v5647
      %v5650 = vsel %vm226, %v5648, 0
      %5652 = vmatprep.subr.mxu0 %v5601
      %5653 = vmatpush1.msra.mxu0 %v5600
      %5654 = vmatprep.subr.mxu0 %v5603
      %5655 = vmatpush1.msra.mxu0 %v5602
      %5656 = vmatprep.subr.mxu0 %v5605
      %5657 = vmatpush1.msra.mxu0 %v5604
      %5658 = vmatprep.subr.mxu0 %v5607
      %5659 = vmatpush1.msra.mxu0 %v5606
      %5660 = vmatprep.subr.mxu0 %v5609
      %5661 = vmatpush1.msra.mxu0 %v5608
      %5662 = vmatprep.subr.mxu0 %v5611
      %5663 = vmatpush1.msra.mxu0 %v5610
      %5664 = vmatprep.subr.mxu0 %v5613
      %5665 = vmatpush1.msra.mxu0 %v5612
      %5666 = vmatprep.subr.mxu0 %v5615
      %5667 = vmatpush1.msra.mxu0 %v5614
      %5668 = vmatprep.subr.mxu0 %v5617
      %5669 = vmatpush1.msra.mxu0 %v5616
      %5670 = vmatprep.subr.mxu0 %v5619
      %5671 = vmatpush1.msra.mxu0 %v5618
      %5672 = vmatprep.subr.mxu0 %v5621
      %5673 = vmatpush1.msra.mxu0 %v5620
      %5674 = vmatprep.subr.mxu0 %v5623
      %5675 = vmatpush1.msra.mxu0 %v5622
      %5676 = vmatprep.subr.mxu0 %v5625
      %5677 = vmatpush1.msra.mxu0 %v5624
      %5678 = vmatprep.subr.mxu0 %v5627
      %5679 = vmatpush1.msra.mxu0 %v5626
      %5680 = vmatprep.subr.mxu0 %v5629
      %5681 = vmatpush1.msra.mxu0 %v5628
      %5682 = vmatprep.subr.mxu0 %v5631
      %5683 = vmatpush1.msra.mxu0 %v5630
      %5684 = vmatprep.subr.mxu0 %v5633
      %5685 = vmatpush1.msra.mxu0 %v5632
      %5686 = vmatprep.subr.mxu0 %v5635
      %5687 = vmatpush1.msra.mxu0 %v5634
      %5688 = vmatprep.subr.mxu0 %v5637
      %5689 = vmatpush1.msra.mxu0 %v5636
      %5690 = vmatprep.subr.mxu0 %v5639
      %5691 = vmatpush1.msra.mxu0 %v5638
      %5692 = vmatprep.subr.mxu0 0.0
      %5693 = vmatpush1.msra.mxu0 0.0
      %5694 = vmatprep.subr.mxu0 0.0
      %5695 = vmatpush1.msra.mxu0 0.0
      %5696 = vmatprep.subr.mxu0 0.0
      %5697 = vmatpush1.msra.mxu0 0.0
      %5698 = vmatprep.subr.mxu0 0.0
      %5699 = vmatpush1.msra.mxu0 0.0
      %5700 = vmatprep.subr.mxu0 0.0
      %5701 = vmatpush1.msra.mxu0 0.0
      %5702 = vmatprep.subr.mxu0 0.0
      %5703 = vmatpush1.msra.mxu0 0.0
      %5704 = vmatprep.subr.mxu0 0.0
      %5705 = vmatpush1.msra.mxu0 0.0
      %5706 = vmatprep.subr.mxu0 0.0
      %5707 = vmatpush1.msra.mxu0 0.0
      %5708 = vmatprep.subr.mxu0 0.0
      %5709 = vmatpush1.msra.mxu0 0.0
      %5710 = vmatprep.subr.mxu0 0.0
      %5711 = vmatpush1.msra.mxu0 0.0
      %5712 = vmatprep.subr.mxu0 0.0
      %5713 = vmatpush1.msra.mxu0 0.0
      %5714 = vmatprep.subr.mxu0 0.0
      %5715 = vmatpush1.msra.mxu0 0.0
      %5716 = vmatprep.mubr.f32.mxu0 %v5650
      %5717 = vmatmul.mubr.f32.gmra.mrb[0].mxu0 %v5644
      %v5718 = vpop.f32.mrb[0].mxu0
      %v5719 = vadd.f32 0.0, %v5718
      %v5720 = vpop.f32.mrb[0].mxu0
      %v5721 = vadd.f32 0.0, %v5720
      %5722 = vdwg.mxu0
      %v5725 = vcombine.low %v5719, %v5721
      %v5727 = vunpack.c.l.s4 1966171168
      %v5728 = vunpack.c.0.s8 %v5727
      %v5729 = vlaneseq
      %v5730 = vshrl.u32 %v5729, 7
      %v5731 = vsub.s32 %v5728, %v5730
      %v5732 = vrot.slane %v5725, %v5731
      %v5734 = vunpack.c.l.s4 1966171168
      %v5735 = vunpack.c.0.s8 %v5734
      %v5736 = vlaneseq
      %v5737 = vshrl.u32 %v5736, 7
      %v5738 = vsub.s32 %v5735, %v5737
      %v5739 = vrot.slane %v5732, %v5738
      %v5741 = vadd.f32 %v5597, %v5739
      %s5742 = scalar_lea.vmem [#allocation3], 20
      %v5743 = vld [vmem:[%s5742] ss:$8 sm:$0x3]
      %v5744 = vld [vmem:[%s3 + $0xf00] sm:$0xff]
      %v5745 = vld [vmem:[%s3 + $0xf08] sm:$0xff]
      %v5746 = vld [vmem:[%s3 + $0xf10] sm:$0xff]
      %v5747 = vld [vmem:[%s3 + $0xf18] sm:$0xff]
      %v5748 = vld [vmem:[%s3 + $0xf20] sm:$0xff]
      %v5749 = vld [vmem:[%s3 + $0xf28] sm:$0xff]
      %v5750 = vld [vmem:[%s3 + $0xf30] sm:$0xff]
      %v5751 = vld [vmem:[%s3 + $0xf38] sm:$0xff]
      %v5752 = vld [vmem:[%s3 + $0xf40] sm:$0xff]
      %v5753 = vld [vmem:[%s3 + $0xf48] sm:$0xff]
      %v5754 = vld [vmem:[%s3 + $0xf50] sm:$0xff]
      %v5755 = vld [vmem:[%s3 + $0xf58] sm:$0xff]
      %v5756 = vld [vmem:[%s3 + $0xf60] sm:$0xff]
      %v5757 = vld [vmem:[%s3 + $0xf68] sm:$0xff]
      %v5758 = vld [vmem:[%s3 + $0xf70] sm:$0xff]
      %v5759 = vld [vmem:[%s3 + $0xf78] sm:$0xff]
      %v5760 = vld [vmem:[%s3 + $0xf80] sm:$0xff]
      %v5761 = vld [vmem:[%s3 + $0xf88] sm:$0xff]
      %v5762 = vld [vmem:[%s3 + $0xf90] sm:$0xff]
      %v5763 = vld [vmem:[%s3 + $0xf98] sm:$0xff]
      %v5764 = vld [vmem:[%s3 + $0xfa0] sm:$0xff]
      %v5765 = vld [vmem:[%s3 + $0xfa8] sm:$0xff]
      %v5766 = vld [vmem:[%s3 + $0xfb0] sm:$0xff]
      %v5767 = vld [vmem:[%s3 + $0xfb8] sm:$0xff]
      %v5768 = vld [vmem:[%s3 + $0xfc0] sm:$0xff]
      %v5769 = vld [vmem:[%s3 + $0xfc8] sm:$0xff]
      %v5770 = vld [vmem:[%s3 + $0xfd0] sm:$0xff]
      %v5771 = vld [vmem:[%s3 + $0xfd8] sm:$0xff]
      %v5772 = vld [vmem:[%s3 + $0xfe0] sm:$0xff]
      %v5773 = vld [vmem:[%s3 + $0xfe8] sm:$0xff]
      %v5774 = vld [vmem:[%s3 + $0xff0] sm:$0xff]
      %v5775 = vld [vmem:[%s3 + $0xff8] sm:$0xff]
      %v5776 = vld [vmem:[%s3 + $0x1000] sm:$0xff]
      %v5777 = vld [vmem:[%s3 + $0x1008] sm:$0xff]
      %v5778 = vld [vmem:[%s3 + $0x1010] sm:$0xff]
      %v5779 = vld [vmem:[%s3 + $0x1018] sm:$0xff]
      %v5780 = vld [vmem:[%s3 + $0x1020] sm:$0xff]
      %v5781 = vld [vmem:[%s3 + $0x1028] sm:$0xff]
      %v5782 = vld [vmem:[%s3 + $0x1030] sm:$0xff]
      %v5783 = vld [vmem:[%s3 + $0x1038] sm:$0xff]
      %v5785 = vlaneseq
      %v5786 = vshrl.u32 %v5785, 7
      %v5787 = vsub.s32 0, %v5786
      %v5788 = vrot.slane %v5743, %v5787
      %v5789 = vlaneseq
      %v5790 = vshrl.u32 %v5789, 7
      %v5791 = vsub.s32 1, %v5790
      %v5792 = vrot.slane %v5743, %v5791
      %v5794 = vsel %vm226, %v5792, 0
      %5796 = vmatprep.subr.mxu0 %v5745
      %5797 = vmatpush1.msra.mxu0 %v5744
      %5798 = vmatprep.subr.mxu0 %v5747
      %5799 = vmatpush1.msra.mxu0 %v5746
      %5800 = vmatprep.subr.mxu0 %v5749
      %5801 = vmatpush1.msra.mxu0 %v5748
      %5802 = vmatprep.subr.mxu0 %v5751
      %5803 = vmatpush1.msra.mxu0 %v5750
      %5804 = vmatprep.subr.mxu0 %v5753
      %5805 = vmatpush1.msra.mxu0 %v5752
      %5806 = vmatprep.subr.mxu0 %v5755
      %5807 = vmatpush1.msra.mxu0 %v5754
      %5808 = vmatprep.subr.mxu0 %v5757
      %5809 = vmatpush1.msra.mxu0 %v5756
      %5810 = vmatprep.subr.mxu0 %v5759
      %5811 = vmatpush1.msra.mxu0 %v5758
      %5812 = vmatprep.subr.mxu0 %v5761
      %5813 = vmatpush1.msra.mxu0 %v5760
      %5814 = vmatprep.subr.mxu0 %v5763
      %5815 = vmatpush1.msra.mxu0 %v5762
      %5816 = vmatprep.subr.mxu0 %v5765
      %5817 = vmatpush1.msra.mxu0 %v5764
      %5818 = vmatprep.subr.mxu0 %v5767
      %5819 = vmatpush1.msra.mxu0 %v5766
      %5820 = vmatprep.subr.mxu0 %v5769
      %5821 = vmatpush1.msra.mxu0 %v5768
      %5822 = vmatprep.subr.mxu0 %v5771
      %5823 = vmatpush1.msra.mxu0 %v5770
      %5824 = vmatprep.subr.mxu0 %v5773
      %5825 = vmatpush1.msra.mxu0 %v5772
      %5826 = vmatprep.subr.mxu0 %v5775
      %5827 = vmatpush1.msra.mxu0 %v5774
      %5828 = vmatprep.subr.mxu0 %v5777
      %5829 = vmatpush1.msra.mxu0 %v5776
      %5830 = vmatprep.subr.mxu0 %v5779
      %5831 = vmatpush1.msra.mxu0 %v5778
      %5832 = vmatprep.subr.mxu0 %v5781
      %5833 = vmatpush1.msra.mxu0 %v5780
      %5834 = vmatprep.subr.mxu0 %v5783
      %5835 = vmatpush1.msra.mxu0 %v5782
      %5836 = vmatprep.subr.mxu0 0.0
      %5837 = vmatpush1.msra.mxu0 0.0
      %5838 = vmatprep.subr.mxu0 0.0
      %5839 = vmatpush1.msra.mxu0 0.0
      %5840 = vmatprep.subr.mxu0 0.0
      %5841 = vmatpush1.msra.mxu0 0.0
      %5842 = vmatprep.subr.mxu0 0.0
      %5843 = vmatpush1.msra.mxu0 0.0
      %5844 = vmatprep.subr.mxu0 0.0
      %5845 = vmatpush1.msra.mxu0 0.0
      %5846 = vmatprep.subr.mxu0 0.0
      %5847 = vmatpush1.msra.mxu0 0.0
      %5848 = vmatprep.subr.mxu0 0.0
      %5849 = vmatpush1.msra.mxu0 0.0
      %5850 = vmatprep.subr.mxu0 0.0
      %5851 = vmatpush1.msra.mxu0 0.0
      %5852 = vmatprep.subr.mxu0 0.0
      %5853 = vmatpush1.msra.mxu0 0.0
      %5854 = vmatprep.subr.mxu0 0.0
      %5855 = vmatpush1.msra.mxu0 0.0
      %5856 = vmatprep.subr.mxu0 0.0
      %5857 = vmatpush1.msra.mxu0 0.0
      %5858 = vmatprep.subr.mxu0 0.0
      %5859 = vmatpush1.msra.mxu0 0.0
      %5860 = vmatprep.mubr.f32.mxu0 %v5794
      %5861 = vmatmul.mubr.f32.gmra.mrb[0].mxu0 %v5788
      %v5862 = vpop.f32.mrb[0].mxu0
      %v5863 = vadd.f32 0.0, %v5862
      %v5864 = vpop.f32.mrb[0].mxu0
      %v5865 = vadd.f32 0.0, %v5864
      %5866 = vdwg.mxu0
      %v5869 = vcombine.low %v5863, %v5865
      %v5871 = vunpack.c.l.s4 1966171168
      %v5872 = vunpack.c.0.s8 %v5871
      %v5873 = vlaneseq
      %v5874 = vshrl.u32 %v5873, 7
      %v5875 = vsub.s32 %v5872, %v5874
      %v5876 = vrot.slane %v5869, %v5875
      %v5878 = vunpack.c.l.s4 1966171168
      %v5879 = vunpack.c.0.s8 %v5878
      %v5880 = vlaneseq
      %v5881 = vshrl.u32 %v5880, 7
      %v5882 = vsub.s32 %v5879, %v5881
      %v5883 = vrot.slane %v5876, %v5882
      %v5885 = vadd.f32 %v5741, %v5883
      %s5886 = scalar_lea.vmem [#allocation3], 21
      %v5887 = vld [vmem:[%s5886] ss:$8 sm:$0x3]
      %v5888 = vld [vmem:[%s3 + $0x1040] sm:$0xff]
      %v5889 = vld [vmem:[%s3 + $0x1048] sm:$0xff]
      %v5890 = vld [vmem:[%s3 + $0x1050] sm:$0xff]
      %v5891 = vld [vmem:[%s3 + $0x1058] sm:$0xff]
      %v5892 = vld [vmem:[%s3 + $0x1060] sm:$0xff]
      %v5893 = vld [vmem:[%s3 + $0x1068] sm:$0xff]
      %v5894 = vld [vmem:[%s3 + $0x1070] sm:$0xff]
      %v5895 = vld [vmem:[%s3 + $0x1078] sm:$0xff]
      %v5896 = vld [vmem:[%s3 + $0x1080] sm:$0xff]
      %v5897 = vld [vmem:[%s3 + $0x1088] sm:$0xff]
      %v5898 = vld [vmem:[%s3 + $0x1090] sm:$0xff]
      %v5899 = vld [vmem:[%s3 + $0x1098] sm:$0xff]
      %v5900 = vld [vmem:[%s3 + $0x10a0] sm:$0xff]
      %v5901 = vld [vmem:[%s3 + $0x10a8] sm:$0xff]
      %v5902 = vld [vmem:[%s3 + $0x10b0] sm:$0xff]
      %v5903 = vld [vmem:[%s3 + $0x10b8] sm:$0xff]
      %v5904 = vld [vmem:[%s3 + $0x10c0] sm:$0xff]
      %v5905 = vld [vmem:[%s3 + $0x10c8] sm:$0xff]
      %v5906 = vld [vmem:[%s3 + $0x10d0] sm:$0xff]
      %v5907 = vld [vmem:[%s3 + $0x10d8] sm:$0xff]
      %v5908 = vld [vmem:[%s3 + $0x10e0] sm:$0xff]
      %v5909 = vld [vmem:[%s3 + $0x10e8] sm:$0xff]
      %v5910 = vld [vmem:[%s3 + $0x10f0] sm:$0xff]
      %v5911 = vld [vmem:[%s3 + $0x10f8] sm:$0xff]
      %v5912 = vld [vmem:[%s3 + $0x1100] sm:$0xff]
      %v5913 = vld [vmem:[%s3 + $0x1108] sm:$0xff]
      %v5914 = vld [vmem:[%s3 + $0x1110] sm:$0xff]
      %v5915 = vld [vmem:[%s3 + $0x1118] sm:$0xff]
      %v5916 = vld [vmem:[%s3 + $0x1120] sm:$0xff]
      %v5917 = vld [vmem:[%s3 + $0x1128] sm:$0xff]
      %v5918 = vld [vmem:[%s3 + $0x1130] sm:$0xff]
      %v5919 = vld [vmem:[%s3 + $0x1138] sm:$0xff]
      %v5920 = vld [vmem:[%s3 + $0x1140] sm:$0xff]
      %v5921 = vld [vmem:[%s3 + $0x1148] sm:$0xff]
      %v5922 = vld [vmem:[%s3 + $0x1150] sm:$0xff]
      %v5923 = vld [vmem:[%s3 + $0x1158] sm:$0xff]
      %v5924 = vld [vmem:[%s3 + $0x1160] sm:$0xff]
      %v5925 = vld [vmem:[%s3 + $0x1168] sm:$0xff]
      %v5926 = vld [vmem:[%s3 + $0x1170] sm:$0xff]
      %v5927 = vld [vmem:[%s3 + $0x1178] sm:$0xff]
      %v5929 = vlaneseq
      %v5930 = vshrl.u32 %v5929, 7
      %v5931 = vsub.s32 0, %v5930
      %v5932 = vrot.slane %v5887, %v5931
      %v5933 = vlaneseq
      %v5934 = vshrl.u32 %v5933, 7
      %v5935 = vsub.s32 1, %v5934
      %v5936 = vrot.slane %v5887, %v5935
      %v5938 = vsel %vm226, %v5936, 0
      %5940 = vmatprep.subr.mxu0 %v5889
      %5941 = vmatpush1.msra.mxu0 %v5888
      %5942 = vmatprep.subr.mxu0 %v5891
      %5943 = vmatpush1.msra.mxu0 %v5890
      %5944 = vmatprep.subr.mxu0 %v5893
      %5945 = vmatpush1.msra.mxu0 %v5892
      %5946 = vmatprep.subr.mxu0 %v5895
      %5947 = vmatpush1.msra.mxu0 %v5894
      %5948 = vmatprep.subr.mxu0 %v5897
      %5949 = vmatpush1.msra.mxu0 %v5896
      %5950 = vmatprep.subr.mxu0 %v5899
      %5951 = vmatpush1.msra.mxu0 %v5898
      %5952 = vmatprep.subr.mxu0 %v5901
      %5953 = vmatpush1.msra.mxu0 %v5900
      %5954 = vmatprep.subr.mxu0 %v5903
      %5955 = vmatpush1.msra.mxu0 %v5902
      %5956 = vmatprep.subr.mxu0 %v5905
      %5957 = vmatpush1.msra.mxu0 %v5904
      %5958 = vmatprep.subr.mxu0 %v5907
      %5959 = vmatpush1.msra.mxu0 %v5906
      %5960 = vmatprep.subr.mxu0 %v5909
      %5961 = vmatpush1.msra.mxu0 %v5908
      %5962 = vmatprep.subr.mxu0 %v5911
      %5963 = vmatpush1.msra.mxu0 %v5910
      %5964 = vmatprep.subr.mxu0 %v5913
      %5965 = vmatpush1.msra.mxu0 %v5912
      %5966 = vmatprep.subr.mxu0 %v5915
      %5967 = vmatpush1.msra.mxu0 %v5914
      %5968 = vmatprep.subr.mxu0 %v5917
      %5969 = vmatpush1.msra.mxu0 %v5916
      %5970 = vmatprep.subr.mxu0 %v5919
      %5971 = vmatpush1.msra.mxu0 %v5918
      %5972 = vmatprep.subr.mxu0 %v5921
      %5973 = vmatpush1.msra.mxu0 %v5920
      %5974 = vmatprep.subr.mxu0 %v5923
      %5975 = vmatpush1.msra.mxu0 %v5922
      %5976 = vmatprep.subr.mxu0 %v5925
      %5977 = vmatpush1.msra.mxu0 %v5924
      %5978 = vmatprep.subr.mxu0 %v5927
      %5979 = vmatpush1.msra.mxu0 %v5926
      %5980 = vmatprep.subr.mxu0 0.0
      %5981 = vmatpush1.msra.mxu0 0.0
      %5982 = vmatprep.subr.mxu0 0.0
      %5983 = vmatpush1.msra.mxu0 0.0
      %5984 = vmatprep.subr.mxu0 0.0
      %5985 = vmatpush1.msra.mxu0 0.0
      %5986 = vmatprep.subr.mxu0 0.0
      %5987 = vmatpush1.msra.mxu0 0.0
      %5988 = vmatprep.subr.mxu0 0.0
      %5989 = vmatpush1.msra.mxu0 0.0
      %5990 = vmatprep.subr.mxu0 0.0
      %5991 = vmatpush1.msra.mxu0 0.0
      %5992 = vmatprep.subr.mxu0 0.0
      %5993 = vmatpush1.msra.mxu0 0.0
      %5994 = vmatprep.subr.mxu0 0.0
      %5995 = vmatpush1.msra.mxu0 0.0
      %5996 = vmatprep.subr.mxu0 0.0
      %5997 = vmatpush1.msra.mxu0 0.0
      %5998 = vmatprep.subr.mxu0 0.0
      %5999 = vmatpush1.msra.mxu0 0.0
      %6000 = vmatprep.subr.mxu0 0.0
      %6001 = vmatpush1.msra.mxu0 0.0
      %6002 = vmatprep.subr.mxu0 0.0
      %6003 = vmatpush1.msra.mxu0 0.0
      %6004 = vmatprep.mubr.f32.mxu0 %v5938
      %6005 = vmatmul.mubr.f32.gmra.mrb[0].mxu0 %v5932
      %v6006 = vpop.f32.mrb[0].mxu0
      %v6007 = vadd.f32 0.0, %v6006
      %v6008 = vpop.f32.mrb[0].mxu0
      %v6009 = vadd.f32 0.0, %v6008
      %6010 = vdwg.mxu0
      %v6013 = vcombine.low %v6007, %v6009
      %v6015 = vunpack.c.l.s4 1966171168
      %v6016 = vunpack.c.0.s8 %v6015
      %v6017 = vlaneseq
      %v6018 = vshrl.u32 %v6017, 7
      %v6019 = vsub.s32 %v6016, %v6018
      %v6020 = vrot.slane %v6013, %v6019
      %v6022 = vunpack.c.l.s4 1966171168
      %v6023 = vunpack.c.0.s8 %v6022
      %v6024 = vlaneseq
      %v6025 = vshrl.u32 %v6024, 7
      %v6026 = vsub.s32 %v6023, %v6025
      %v6027 = vrot.slane %v6020, %v6026
      %v6029 = vadd.f32 %v5885, %v6027
      %s6030 = scalar_lea.vmem [#allocation3], 22
      %v6031 = vld [vmem:[%s6030] ss:$8 sm:$0x3]
      %v6032 = vld [vmem:[%s3 + $0x1180] sm:$0xff]
      %v6033 = vld [vmem:[%s3 + $0x1188] sm:$0xff]
      %v6034 = vld [vmem:[%s3 + $0x1190] sm:$0xff]
      %v6035 = vld [vmem:[%s3 + $0x1198] sm:$0xff]
      %v6036 = vld [vmem:[%s3 + $0x11a0] sm:$0xff]
      %v6037 = vld [vmem:[%s3 + $0x11a8] sm:$0xff]
      %v6038 = vld [vmem:[%s3 + $0x11b0] sm:$0xff]
      %v6039 = vld [vmem:[%s3 + $0x11b8] sm:$0xff]
      %v6040 = vld [vmem:[%s3 + $0x11c0] sm:$0xff]
      %v6041 = vld [vmem:[%s3 + $0x11c8] sm:$0xff]
      %v6042 = vld [vmem:[%s3 + $0x11d0] sm:$0xff]
      %v6043 = vld [vmem:[%s3 + $0x11d8] sm:$0xff]
      %v6044 = vld [vmem:[%s3 + $0x11e0] sm:$0xff]
      %v6045 = vld [vmem:[%s3 + $0x11e8] sm:$0xff]
      %v6046 = vld [vmem:[%s3 + $0x11f0] sm:$0xff]
      %v6047 = vld [vmem:[%s3 + $0x11f8] sm:$0xff]
      %v6048 = vld [vmem:[%s3 + $0x1200] sm:$0xff]
      %v6049 = vld [vmem:[%s3 + $0x1208] sm:$0xff]
      %v6050 = vld [vmem:[%s3 + $0x1210] sm:$0xff]
      %v6051 = vld [vmem:[%s3 + $0x1218] sm:$0xff]
      %v6052 = vld [vmem:[%s3 + $0x1220] sm:$0xff]
      %v6053 = vld [vmem:[%s3 + $0x1228] sm:$0xff]
      %v6054 = vld [vmem:[%s3 + $0x1230] sm:$0xff]
      %v6055 = vld [vmem:[%s3 + $0x1238] sm:$0xff]
      %v6056 = vld [vmem:[%s3 + $0x1240] sm:$0xff]
      %v6057 = vld [vmem:[%s3 + $0x1248] sm:$0xff]
      %v6058 = vld [vmem:[%s3 + $0x1250] sm:$0xff]
      %v6059 = vld [vmem:[%s3 + $0x1258] sm:$0xff]
      %v6060 = vld [vmem:[%s3 + $0x1260] sm:$0xff]
      %v6061 = vld [vmem:[%s3 + $0x1268] sm:$0xff]
      %v6062 = vld [vmem:[%s3 + $0x1270] sm:$0xff]
      %v6063 = vld [vmem:[%s3 + $0x1278] sm:$0xff]
      %v6064 = vld [vmem:[%s3 + $0x1280] sm:$0xff]
      %v6065 = vld [vmem:[%s3 + $0x1288] sm:$0xff]
      %v6066 = vld [vmem:[%s3 + $0x1290] sm:$0xff]
      %v6067 = vld [vmem:[%s3 + $0x1298] sm:$0xff]
      %v6068 = vld [vmem:[%s3 + $0x12a0] sm:$0xff]
      %v6069 = vld [vmem:[%s3 + $0x12a8] sm:$0xff]
      %v6070 = vld [vmem:[%s3 + $0x12b0] sm:$0xff]
      %v6071 = vld [vmem:[%s3 + $0x12b8] sm:$0xff]
      %v6073 = vlaneseq
      %v6074 = vshrl.u32 %v6073, 7
      %v6075 = vsub.s32 0, %v6074
      %v6076 = vrot.slane %v6031, %v6075
      %v6077 = vlaneseq
      %v6078 = vshrl.u32 %v6077, 7
      %v6079 = vsub.s32 1, %v6078
      %v6080 = vrot.slane %v6031, %v6079
      %v6082 = vsel %vm226, %v6080, 0
      %6084 = vmatprep.subr.mxu0 %v6033
      %6085 = vmatpush1.msra.mxu0 %v6032
      %6086 = vmatprep.subr.mxu0 %v6035
      %6087 = vmatpush1.msra.mxu0 %v6034
      %6088 = vmatprep.subr.mxu0 %v6037
      %6089 = vmatpush1.msra.mxu0 %v6036
      %6090 = vmatprep.subr.mxu0 %v6039
      %6091 = vmatpush1.msra.mxu0 %v6038
      %6092 = vmatprep.subr.mxu0 %v6041
      %6093 = vmatpush1.msra.mxu0 %v6040
      %6094 = vmatprep.subr.mxu0 %v6043
      %6095 = vmatpush1.msra.mxu0 %v6042
      %6096 = vmatprep.subr.mxu0 %v6045
      %6097 = vmatpush1.msra.mxu0 %v6044
      %6098 = vmatprep.subr.mxu0 %v6047
      %6099 = vmatpush1.msra.mxu0 %v6046
      %6100 = vmatprep.subr.mxu0 %v6049
      %6101 = vmatpush1.msra.mxu0 %v6048
      %6102 = vmatprep.subr.mxu0 %v6051
      %6103 = vmatpush1.msra.mxu0 %v6050
      %6104 = vmatprep.subr.mxu0 %v6053
      %6105 = vmatpush1.msra.mxu0 %v6052
      %6106 = vmatprep.subr.mxu0 %v6055
      %6107 = vmatpush1.msra.mxu0 %v6054
      %6108 = vmatprep.subr.mxu0 %v6057
      %6109 = vmatpush1.msra.mxu0 %v6056
      %6110 = vmatprep.subr.mxu0 %v6059
      %6111 = vmatpush1.msra.mxu0 %v6058
      %6112 = vmatprep.subr.mxu0 %v6061
      %6113 = vmatpush1.msra.mxu0 %v6060
      %6114 = vmatprep.subr.mxu0 %v6063
      %6115 = vmatpush1.msra.mxu0 %v6062
      %6116 = vmatprep.subr.mxu0 %v6065
      %6117 = vmatpush1.msra.mxu0 %v6064
      %6118 = vmatprep.subr.mxu0 %v6067
      %6119 = vmatpush1.msra.mxu0 %v6066
      %6120 = vmatprep.subr.mxu0 %v6069
      %6121 = vmatpush1.msra.mxu0 %v6068
      %6122 = vmatprep.subr.mxu0 %v6071
      %6123 = vmatpush1.msra.mxu0 %v6070
      %6124 = vmatprep.subr.mxu0 0.0
      %6125 = vmatpush1.msra.mxu0 0.0
      %6126 = vmatprep.subr.mxu0 0.0
      %6127 = vmatpush1.msra.mxu0 0.0
      %6128 = vmatprep.subr.mxu0 0.0
      %6129 = vmatpush1.msra.mxu0 0.0
      %6130 = vmatprep.subr.mxu0 0.0
      %6131 = vmatpush1.msra.mxu0 0.0
      %6132 = vmatprep.subr.mxu0 0.0
      %6133 = vmatpush1.msra.mxu0 0.0
      %6134 = vmatprep.subr.mxu0 0.0
      %6135 = vmatpush1.msra.mxu0 0.0
      %6136 = vmatprep.subr.mxu0 0.0
      %6137 = vmatpush1.msra.mxu0 0.0
      %6138 = vmatprep.subr.mxu0 0.0
      %6139 = vmatpush1.msra.mxu0 0.0
      %6140 = vmatprep.subr.mxu0 0.0
      %6141 = vmatpush1.msra.mxu0 0.0
      %6142 = vmatprep.subr.mxu0 0.0
      %6143 = vmatpush1.msra.mxu0 0.0
      %6144 = vmatprep.subr.mxu0 0.0
      %6145 = vmatpush1.msra.mxu0 0.0
      %6146 = vmatprep.subr.mxu0 0.0
      %6147 = vmatpush1.msra.mxu0 0.0
      %6148 = vmatprep.mubr.f32.mxu0 %v6082
      %6149 = vmatmul.mubr.f32.gmra.mrb[0].mxu0 %v6076
      %v6150 = vpop.f32.mrb[0].mxu0
      %v6151 = vadd.f32 0.0, %v6150
      %v6152 = vpop.f32.mrb[0].mxu0
      %v6153 = vadd.f32 0.0, %v6152
      %6154 = vdwg.mxu0
      %v6157 = vcombine.low %v6151, %v6153
      %v6159 = vunpack.c.l.s4 1966171168
      %v6160 = vunpack.c.0.s8 %v6159
      %v6161 = vlaneseq
      %v6162 = vshrl.u32 %v6161, 7
      %v6163 = vsub.s32 %v6160, %v6162
      %v6164 = vrot.slane %v6157, %v6163
      %v6166 = vunpack.c.l.s4 1966171168
      %v6167 = vunpack.c.0.s8 %v6166
      %v6168 = vlaneseq
      %v6169 = vshrl.u32 %v6168, 7
      %v6170 = vsub.s32 %v6167, %v6169
      %v6171 = vrot.slane %v6164, %v6170
      %v6173 = vadd.f32 %v6029, %v6171
      %s6174 = scalar_lea.vmem [#allocation3], 23
      %v6175 = vld [vmem:[%s6174] ss:$8 sm:$0x3]
      %v6176 = vld [vmem:[%s3 + $0x12c0] sm:$0xff]
      %v6177 = vld [vmem:[%s3 + $0x12c8] sm:$0xff]
      %v6178 = vld [vmem:[%s3 + $0x12d0] sm:$0xff]
      %v6179 = vld [vmem:[%s3 + $0x12d8] sm:$0xff]
      %v6180 = vld [vmem:[%s3 + $0x12e0] sm:$0xff]
      %v6181 = vld [vmem:[%s3 + $0x12e8] sm:$0xff]
      %v6182 = vld [vmem:[%s3 + $0x12f0] sm:$0xff]
      %v6183 = vld [vmem:[%s3 + $0x12f8] sm:$0xff]
      %v6184 = vld [vmem:[%s3 + $0x1300] sm:$0xff]
      %v6185 = vld [vmem:[%s3 + $0x1308] sm:$0xff]
      %v6186 = vld [vmem:[%s3 + $0x1310] sm:$0xff]
      %v6187 = vld [vmem:[%s3 + $0x1318] sm:$0xff]
      %v6188 = vld [vmem:[%s3 + $0x1320] sm:$0xff]
      %v6189 = vld [vmem:[%s3 + $0x1328] sm:$0xff]
      %v6190 = vld [vmem:[%s3 + $0x1330] sm:$0xff]
      %v6191 = vld [vmem:[%s3 + $0x1338] sm:$0xff]
      %v6192 = vld [vmem:[%s3 + $0x1340] sm:$0xff]
      %v6193 = vld [vmem:[%s3 + $0x1348] sm:$0xff]
      %v6194 = vld [vmem:[%s3 + $0x1350] sm:$0xff]
      %v6195 = vld [vmem:[%s3 + $0x1358] sm:$0xff]
      %v6196 = vld [vmem:[%s3 + $0x1360] sm:$0xff]
      %v6197 = vld [vmem:[%s3 + $0x1368] sm:$0xff]
      %v6198 = vld [vmem:[%s3 + $0x1370] sm:$0xff]
      %v6199 = vld [vmem:[%s3 + $0x1378] sm:$0xff]
      %v6200 = vld [vmem:[%s3 + $0x1380] sm:$0xff]
      %v6201 = vld [vmem:[%s3 + $0x1388] sm:$0xff]
      %v6202 = vld [vmem:[%s3 + $0x1390] sm:$0xff]
      %v6203 = vld [vmem:[%s3 + $0x1398] sm:$0xff]
      %v6204 = vld [vmem:[%s3 + $0x13a0] sm:$0xff]
      %v6205 = vld [vmem:[%s3 + $0x13a8] sm:$0xff]
      %v6206 = vld [vmem:[%s3 + $0x13b0] sm:$0xff]
      %v6207 = vld [vmem:[%s3 + $0x13b8] sm:$0xff]
      %v6208 = vld [vmem:[%s3 + $0x13c0] sm:$0xff]
      %v6209 = vld [vmem:[%s3 + $0x13c8] sm:$0xff]
      %v6210 = vld [vmem:[%s3 + $0x13d0] sm:$0xff]
      %v6211 = vld [vmem:[%s3 + $0x13d8] sm:$0xff]
      %v6212 = vld [vmem:[%s3 + $0x13e0] sm:$0xff]
      %v6213 = vld [vmem:[%s3 + $0x13e8] sm:$0xff]
      %v6214 = vld [vmem:[%s3 + $0x13f0] sm:$0xff]
      %v6215 = vld [vmem:[%s3 + $0x13f8] sm:$0xff]
      %v6217 = vlaneseq
      %v6218 = vshrl.u32 %v6217, 7
      %v6219 = vsub.s32 0, %v6218
      %v6220 = vrot.slane %v6175, %v6219
      %v6221 = vlaneseq
      %v6222 = vshrl.u32 %v6221, 7
      %v6223 = vsub.s32 1, %v6222
      %v6224 = vrot.slane %v6175, %v6223
      %v6226 = vsel %vm226, %v6224, 0
      %6228 = vmatprep.subr.mxu0 %v6177
      %6229 = vmatpush1.msra.mxu0 %v6176
      %6230 = vmatprep.subr.mxu0 %v6179
      %6231 = vmatpush1.msra.mxu0 %v6178
      %6232 = vmatprep.subr.mxu0 %v6181
      %6233 = vmatpush1.msra.mxu0 %v6180
      %6234 = vmatprep.subr.mxu0 %v6183
      %6235 = vmatpush1.msra.mxu0 %v6182
      %6236 = vmatprep.subr.mxu0 %v6185
      %6237 = vmatpush1.msra.mxu0 %v6184
      %6238 = vmatprep.subr.mxu0 %v6187
      %6239 = vmatpush1.msra.mxu0 %v6186
      %6240 = vmatprep.subr.mxu0 %v6189
      %6241 = vmatpush1.msra.mxu0 %v6188
      %6242 = vmatprep.subr.mxu0 %v6191
      %6243 = vmatpush1.msra.mxu0 %v6190
      %6244 = vmatprep.subr.mxu0 %v6193
      %6245 = vmatpush1.msra.mxu0 %v6192
      %6246 = vmatprep.subr.mxu0 %v6195
      %6247 = vmatpush1.msra.mxu0 %v6194
      %6248 = vmatprep.subr.mxu0 %v6197
      %6249 = vmatpush1.msra.mxu0 %v6196
      %6250 = vmatprep.subr.mxu0 %v6199
      %6251 = vmatpush1.msra.mxu0 %v6198
      %6252 = vmatprep.subr.mxu0 %v6201
      %6253 = vmatpush1.msra.mxu0 %v6200
      %6254 = vmatprep.subr.mxu0 %v6203
      %6255 = vmatpush1.msra.mxu0 %v6202
      %6256 = vmatprep.subr.mxu0 %v6205
      %6257 = vmatpush1.msra.mxu0 %v6204
      %6258 = vmatprep.subr.mxu0 %v6207
      %6259 = vmatpush1.msra.mxu0 %v6206
      %6260 = vmatprep.subr.mxu0 %v6209
      %6261 = vmatpush1.msra.mxu0 %v6208
      %6262 = vmatprep.subr.mxu0 %v6211
      %6263 = vmatpush1.msra.mxu0 %v6210
      %6264 = vmatprep.subr.mxu0 %v6213
      %6265 = vmatpush1.msra.mxu0 %v6212
      %6266 = vmatprep.subr.mxu0 %v6215
      %6267 = vmatpush1.msra.mxu0 %v6214
      %6268 = vmatprep.subr.mxu0 0.0
      %6269 = vmatpush1.msra.mxu0 0.0
      %6270 = vmatprep.subr.mxu0 0.0
      %6271 = vmatpush1.msra.mxu0 0.0
      %6272 = vmatprep.subr.mxu0 0.0
      %6273 = vmatpush1.msra.mxu0 0.0
      %6274 = vmatprep.subr.mxu0 0.0
      %6275 = vmatpush1.msra.mxu0 0.0
      %6276 = vmatprep.subr.mxu0 0.0
      %6277 = vmatpush1.msra.mxu0 0.0
      %6278 = vmatprep.subr.mxu0 0.0
      %6279 = vmatpush1.msra.mxu0 0.0
      %6280 = vmatprep.subr.mxu0 0.0
      %6281 = vmatpush1.msra.mxu0 0.0
      %6282 = vmatprep.subr.mxu0 0.0
      %6283 = vmatpush1.msra.mxu0 0.0
      %6284 = vmatprep.subr.mxu0 0.0
      %6285 = vmatpush1.msra.mxu0 0.0
      %6286 = vmatprep.subr.mxu0 0.0
      %6287 = vmatpush1.msra.mxu0 0.0
      %6288 = vmatprep.subr.mxu0 0.0
      %6289 = vmatpush1.msra.mxu0 0.0
      %6290 = vmatprep.subr.mxu0 0.0
      %6291 = vmatpush1.msra.mxu0 0.0
      %6292 = vmatprep.mubr.f32.mxu0 %v6226
      %6293 = vmatmul.mubr.f32.gmra.mrb[0].mxu0 %v6220
      %v6294 = vpop.f32.mrb[0].mxu0
      %v6295 = vadd.f32 0.0, %v6294
      %v6296 = vpop.f32.mrb[0].mxu0
      %v6297 = vadd.f32 0.0, %v6296
      %6298 = vdwg.mxu0
      %v6301 = vcombine.low %v6295, %v6297
      %v6303 = vunpack.c.l.s4 1966171168
      %v6304 = vunpack.c.0.s8 %v6303
      %v6305 = vlaneseq
      %v6306 = vshrl.u32 %v6305, 7
      %v6307 = vsub.s32 %v6304, %v6306
      %v6308 = vrot.slane %v6301, %v6307
      %v6310 = vunpack.c.l.s4 1966171168
      %v6311 = vunpack.c.0.s8 %v6310
      %v6312 = vlaneseq
      %v6313 = vshrl.u32 %v6312, 7
      %v6314 = vsub.s32 %v6311, %v6313
      %v6315 = vrot.slane %v6308, %v6314
      %v6317 = vadd.f32 %v6173, %v6315
      %s6318 = scalar_lea.vmem [#allocation3], 32
      %v6319 = vld [vmem:[%s6318] ss:$8 sm:$0x3]
      %v6320 = vld [vmem:[%s3 + $0x1400] sm:$0xff]
      %v6321 = vld [vmem:[%s3 + $0x1408] sm:$0xff]
      %v6322 = vld [vmem:[%s3 + $0x1410] sm:$0xff]
      %v6323 = vld [vmem:[%s3 + $0x1418] sm:$0xff]
      %v6324 = vld [vmem:[%s3 + $0x1420] sm:$0xff]
      %v6325 = vld [vmem:[%s3 + $0x1428] sm:$0xff]
      %v6326 = vld [vmem:[%s3 + $0x1430] sm:$0xff]
      %v6327 = vld [vmem:[%s3 + $0x1438] sm:$0xff]
      %v6328 = vld [vmem:[%s3 + $0x1440] sm:$0xff]
      %v6329 = vld [vmem:[%s3 + $0x1448] sm:$0xff]
      %v6330 = vld [vmem:[%s3 + $0x1450] sm:$0xff]
      %v6331 = vld [vmem:[%s3 + $0x1458] sm:$0xff]
      %v6332 = vld [vmem:[%s3 + $0x1460] sm:$0xff]
      %v6333 = vld [vmem:[%s3 + $0x1468] sm:$0xff]
      %v6334 = vld [vmem:[%s3 + $0x1470] sm:$0xff]
      %v6335 = vld [vmem:[%s3 + $0x1478] sm:$0xff]
      %v6336 = vld [vmem:[%s3 + $0x1480] sm:$0xff]
      %v6337 = vld [vmem:[%s3 + $0x1488] sm:$0xff]
      %v6338 = vld [vmem:[%s3 + $0x1490] sm:$0xff]
      %v6339 = vld [vmem:[%s3 + $0x1498] sm:$0xff]
      %v6340 = vld [vmem:[%s3 + $0x14a0] sm:$0xff]
      %v6341 = vld [vmem:[%s3 + $0x14a8] sm:$0xff]
      %v6342 = vld [vmem:[%s3 + $0x14b0] sm:$0xff]
      %v6343 = vld [vmem:[%s3 + $0x14b8] sm:$0xff]
      %v6344 = vld [vmem:[%s3 + $0x14c0] sm:$0xff]
      %v6345 = vld [vmem:[%s3 + $0x14c8] sm:$0xff]
      %v6346 = vld [vmem:[%s3 + $0x14d0] sm:$0xff]
      %v6347 = vld [vmem:[%s3 + $0x14d8] sm:$0xff]
      %v6348 = vld [vmem:[%s3 + $0x14e0] sm:$0xff]
      %v6349 = vld [vmem:[%s3 + $0x14e8] sm:$0xff]
      %v6350 = vld [vmem:[%s3 + $0x14f0] sm:$0xff]
      %v6351 = vld [vmem:[%s3 + $0x14f8] sm:$0xff]
      %v6352 = vld [vmem:[%s3 + $0x1500] sm:$0xff]
      %v6353 = vld [vmem:[%s3 + $0x1508] sm:$0xff]
      %v6354 = vld [vmem:[%s3 + $0x1510] sm:$0xff]
      %v6355 = vld [vmem:[%s3 + $0x1518] sm:$0xff]
      %v6356 = vld [vmem:[%s3 + $0x1520] sm:$0xff]
      %v6357 = vld [vmem:[%s3 + $0x1528] sm:$0xff]
      %v6358 = vld [vmem:[%s3 + $0x1530] sm:$0xff]
      %v6359 = vld [vmem:[%s3 + $0x1538] sm:$0xff]
      %v6361 = vlaneseq
      %v6362 = vshrl.u32 %v6361, 7
      %v6363 = vsub.s32 0, %v6362
      %v6364 = vrot.slane %v6319, %v6363
      %v6365 = vlaneseq
      %v6366 = vshrl.u32 %v6365, 7
      %v6367 = vsub.s32 1, %v6366
      %v6368 = vrot.slane %v6319, %v6367
      %v6370 = vsel %vm226, %v6368, 0
      %6372 = vmatprep.subr.mxu0 %v6321
      %6373 = vmatpush1.msra.mxu0 %v6320
      %6374 = vmatprep.subr.mxu0 %v6323
      %6375 = vmatpush1.msra.mxu0 %v6322
      %6376 = vmatprep.subr.mxu0 %v6325
      %6377 = vmatpush1.msra.mxu0 %v6324
      %6378 = vmatprep.subr.mxu0 %v6327
      %6379 = vmatpush1.msra.mxu0 %v6326
      %6380 = vmatprep.subr.mxu0 %v6329
      %6381 = vmatpush1.msra.mxu0 %v6328
      %6382 = vmatprep.subr.mxu0 %v6331
      %6383 = vmatpush1.msra.mxu0 %v6330
      %6384 = vmatprep.subr.mxu0 %v6333
      %6385 = vmatpush1.msra.mxu0 %v6332
      %6386 = vmatprep.subr.mxu0 %v6335
      %6387 = vmatpush1.msra.mxu0 %v6334
      %6388 = vmatprep.subr.mxu0 %v6337
      %6389 = vmatpush1.msra.mxu0 %v6336
      %6390 = vmatprep.subr.mxu0 %v6339
      %6391 = vmatpush1.msra.mxu0 %v6338
      %6392 = vmatprep.subr.mxu0 %v6341
      %6393 = vmatpush1.msra.mxu0 %v6340
      %6394 = vmatprep.subr.mxu0 %v6343
      %6395 = vmatpush1.msra.mxu0 %v6342
      %6396 = vmatprep.subr.mxu0 %v6345
      %6397 = vmatpush1.msra.mxu0 %v6344
      %6398 = vmatprep.subr.mxu0 %v6347
      %6399 = vmatpush1.msra.mxu0 %v6346
      %6400 = vmatprep.subr.mxu0 %v6349
      %6401 = vmatpush1.msra.mxu0 %v6348
      %6402 = vmatprep.subr.mxu0 %v6351
      %6403 = vmatpush1.msra.mxu0 %v6350
      %6404 = vmatprep.subr.mxu0 %v6353
      %6405 = vmatpush1.msra.mxu0 %v6352
      %6406 = vmatprep.subr.mxu0 %v6355
      %6407 = vmatpush1.msra.mxu0 %v6354
      %6408 = vmatprep.subr.mxu0 %v6357
      %6409 = vmatpush1.msra.mxu0 %v6356
      %6410 = vmatprep.subr.mxu0 %v6359
      %6411 = vmatpush1.msra.mxu0 %v6358
      %6412 = vmatprep.subr.mxu0 0.0
      %6413 = vmatpush1.msra.mxu0 0.0
      %6414 = vmatprep.subr.mxu0 0.0
      %6415 = vmatpush1.msra.mxu0 0.0
      %6416 = vmatprep.subr.mxu0 0.0
      %6417 = vmatpush1.msra.mxu0 0.0
      %6418 = vmatprep.subr.mxu0 0.0
      %6419 = vmatpush1.msra.mxu0 0.0
      %6420 = vmatprep.subr.mxu0 0.0
      %6421 = vmatpush1.msra.mxu0 0.0
      %6422 = vmatprep.subr.mxu0 0.0
      %6423 = vmatpush1.msra.mxu0 0.0
      %6424 = vmatprep.subr.mxu0 0.0
      %6425 = vmatpush1.msra.mxu0 0.0
      %6426 = vmatprep.subr.mxu0 0.0
      %6427 = vmatpush1.msra.mxu0 0.0
      %6428 = vmatprep.subr.mxu0 0.0
      %6429 = vmatpush1.msra.mxu0 0.0
      %6430 = vmatprep.subr.mxu0 0.0
      %6431 = vmatpush1.msra.mxu0 0.0
      %6432 = vmatprep.subr.mxu0 0.0
      %6433 = vmatpush1.msra.mxu0 0.0
      %6434 = vmatprep.subr.mxu0 0.0
      %6435 = vmatpush1.msra.mxu0 0.0
      %6436 = vmatprep.mubr.f32.mxu0 %v6370
      %6437 = vmatmul.mubr.f32.gmra.mrb[0].mxu0 %v6364
      %v6438 = vpop.f32.mrb[0].mxu0
      %v6439 = vadd.f32 0.0, %v6438
      %v6440 = vpop.f32.mrb[0].mxu0
      %v6441 = vadd.f32 0.0, %v6440
      %6442 = vdwg.mxu0
      %v6445 = vcombine.low %v6439, %v6441
      %v6447 = vunpack.c.l.s4 1966171168
      %v6448 = vunpack.c.0.s8 %v6447
      %v6449 = vlaneseq
      %v6450 = vshrl.u32 %v6449, 7
      %v6451 = vsub.s32 %v6448, %v6450
      %v6452 = vrot.slane %v6445, %v6451
      %v6454 = vunpack.c.l.s4 1966171168
      %v6455 = vunpack.c.0.s8 %v6454
      %v6456 = vlaneseq
      %v6457 = vshrl.u32 %v6456, 7
      %v6458 = vsub.s32 %v6455, %v6457
      %v6459 = vrot.slane %v6452, %v6458
      %v6461 = vadd.f32 %v6317, %v6459
      %s6462 = scalar_lea.vmem [#allocation3], 33
      %v6463 = vld [vmem:[%s6462] ss:$8 sm:$0x3]
      %v6464 = vld [vmem:[%s3 + $0x1540] sm:$0xff]
      %v6465 = vld [vmem:[%s3 + $0x1548] sm:$0xff]
      %v6466 = vld [vmem:[%s3 + $0x1550] sm:$0xff]
      %v6467 = vld [vmem:[%s3 + $0x1558] sm:$0xff]
      %v6468 = vld [vmem:[%s3 + $0x1560] sm:$0xff]
      %v6469 = vld [vmem:[%s3 + $0x1568] sm:$0xff]
      %v6470 = vld [vmem:[%s3 + $0x1570] sm:$0xff]
      %v6471 = vld [vmem:[%s3 + $0x1578] sm:$0xff]
      %v6472 = vld [vmem:[%s3 + $0x1580] sm:$0xff]
      %v6473 = vld [vmem:[%s3 + $0x1588] sm:$0xff]
      %v6474 = vld [vmem:[%s3 + $0x1590] sm:$0xff]
      %v6475 = vld [vmem:[%s3 + $0x1598] sm:$0xff]
      %v6476 = vld [vmem:[%s3 + $0x15a0] sm:$0xff]
      %v6477 = vld [vmem:[%s3 + $0x15a8] sm:$0xff]
      %v6478 = vld [vmem:[%s3 + $0x15b0] sm:$0xff]
      %v6479 = vld [vmem:[%s3 + $0x15b8] sm:$0xff]
      %v6480 = vld [vmem:[%s3 + $0x15c0] sm:$0xff]
      %v6481 = vld [vmem:[%s3 + $0x15c8] sm:$0xff]
      %v6482 = vld [vmem:[%s3 + $0x15d0] sm:$0xff]
      %v6483 = vld [vmem:[%s3 + $0x15d8] sm:$0xff]
      %v6484 = vld [vmem:[%s3 + $0x15e0] sm:$0xff]
      %v6485 = vld [vmem:[%s3 + $0x15e8] sm:$0xff]
      %v6486 = vld [vmem:[%s3 + $0x15f0] sm:$0xff]
      %v6487 = vld [vmem:[%s3 + $0x15f8] sm:$0xff]
      %v6488 = vld [vmem:[%s3 + $0x1600] sm:$0xff]
      %v6489 = vld [vmem:[%s3 + $0x1608] sm:$0xff]
      %v6490 = vld [vmem:[%s3 + $0x1610] sm:$0xff]
      %v6491 = vld [vmem:[%s3 + $0x1618] sm:$0xff]
      %v6492 = vld [vmem:[%s3 + $0x1620] sm:$0xff]
      %v6493 = vld [vmem:[%s3 + $0x1628] sm:$0xff]
      %v6494 = vld [vmem:[%s3 + $0x1630] sm:$0xff]
      %v6495 = vld [vmem:[%s3 + $0x1638] sm:$0xff]
      %v6496 = vld [vmem:[%s3 + $0x1640] sm:$0xff]
      %v6497 = vld [vmem:[%s3 + $0x1648] sm:$0xff]
      %v6498 = vld [vmem:[%s3 + $0x1650] sm:$0xff]
      %v6499 = vld [vmem:[%s3 + $0x1658] sm:$0xff]
      %v6500 = vld [vmem:[%s3 + $0x1660] sm:$0xff]
      %v6501 = vld [vmem:[%s3 + $0x1668] sm:$0xff]
      %v6502 = vld [vmem:[%s3 + $0x1670] sm:$0xff]
      %v6503 = vld [vmem:[%s3 + $0x1678] sm:$0xff]
      %v6505 = vlaneseq
      %v6506 = vshrl.u32 %v6505, 7
      %v6507 = vsub.s32 0, %v6506
      %v6508 = vrot.slane %v6463, %v6507
      %v6509 = vlaneseq
      %v6510 = vshrl.u32 %v6509, 7
      %v6511 = vsub.s32 1, %v6510
      %v6512 = vrot.slane %v6463, %v6511
      %v6514 = vsel %vm226, %v6512, 0
      %6516 = vmatprep.subr.mxu0 %v6465
      %6517 = vmatpush1.msra.mxu0 %v6464
      %6518 = vmatprep.subr.mxu0 %v6467
      %6519 = vmatpush1.msra.mxu0 %v6466
      %6520 = vmatprep.subr.mxu0 %v6469
      %6521 = vmatpush1.msra.mxu0 %v6468
      %6522 = vmatprep.subr.mxu0 %v6471
      %6523 = vmatpush1.msra.mxu0 %v6470
      %6524 = vmatprep.subr.mxu0 %v6473
      %6525 = vmatpush1.msra.mxu0 %v6472
      %6526 = vmatprep.subr.mxu0 %v6475
      %6527 = vmatpush1.msra.mxu0 %v6474
      %6528 = vmatprep.subr.mxu0 %v6477
      %6529 = vmatpush1.msra.mxu0 %v6476
      %6530 = vmatprep.subr.mxu0 %v6479
      %6531 = vmatpush1.msra.mxu0 %v6478
      %6532 = vmatprep.subr.mxu0 %v6481
      %6533 = vmatpush1.msra.mxu0 %v6480
      %6534 = vmatprep.subr.mxu0 %v6483
      %6535 = vmatpush1.msra.mxu0 %v6482
      %6536 = vmatprep.subr.mxu0 %v6485
      %6537 = vmatpush1.msra.mxu0 %v6484
      %6538 = vmatprep.subr.mxu0 %v6487
      %6539 = vmatpush1.msra.mxu0 %v6486
      %6540 = vmatprep.subr.mxu0 %v6489
      %6541 = vmatpush1.msra.mxu0 %v6488
      %6542 = vmatprep.subr.mxu0 %v6491
      %6543 = vmatpush1.msra.mxu0 %v6490
      %6544 = vmatprep.subr.mxu0 %v6493
      %6545 = vmatpush1.msra.mxu0 %v6492
      %6546 = vmatprep.subr.mxu0 %v6495
      %6547 = vmatpush1.msra.mxu0 %v6494
      %6548 = vmatprep.subr.mxu0 %v6497
      %6549 = vmatpush1.msra.mxu0 %v6496
      %6550 = vmatprep.subr.mxu0 %v6499
      %6551 = vmatpush1.msra.mxu0 %v6498
      %6552 = vmatprep.subr.mxu0 %v6501
      %6553 = vmatpush1.msra.mxu0 %v6500
      %6554 = vmatprep.subr.mxu0 %v6503
      %6555 = vmatpush1.msra.mxu0 %v6502
      %6556 = vmatprep.subr.mxu0 0.0
      %6557 = vmatpush1.msra.mxu0 0.0
      %6558 = vmatprep.subr.mxu0 0.0
      %6559 = vmatpush1.msra.mxu0 0.0
      %6560 = vmatprep.subr.mxu0 0.0
      %6561 = vmatpush1.msra.mxu0 0.0
      %6562 = vmatprep.subr.mxu0 0.0
      %6563 = vmatpush1.msra.mxu0 0.0
      %6564 = vmatprep.subr.mxu0 0.0
      %6565 = vmatpush1.msra.mxu0 0.0
      %6566 = vmatprep.subr.mxu0 0.0
      %6567 = vmatpush1.msra.mxu0 0.0
      %6568 = vmatprep.subr.mxu0 0.0
      %6569 = vmatpush1.msra.mxu0 0.0
      %6570 = vmatprep.subr.mxu0 0.0
      %6571 = vmatpush1.msra.mxu0 0.0
      %6572 = vmatprep.subr.mxu0 0.0
      %6573 = vmatpush1.msra.mxu0 0.0
      %6574 = vmatprep.subr.mxu0 0.0
      %6575 = vmatpush1.msra.mxu0 0.0
      %6576 = vmatprep.subr.mxu0 0.0
      %6577 = vmatpush1.msra.mxu0 0.0
      %6578 = vmatprep.subr.mxu0 0.0
      %6579 = vmatpush1.msra.mxu0 0.0
      %6580 = vmatprep.mubr.f32.mxu0 %v6514
      %6581 = vmatmul.mubr.f32.gmra.mrb[0].mxu0 %v6508
      %v6582 = vpop.f32.mrb[0].mxu0
      %v6583 = vadd.f32 0.0, %v6582
      %v6584 = vpop.f32.mrb[0].mxu0
      %v6585 = vadd.f32 0.0, %v6584
      %6586 = vdwg.mxu0
      %v6589 = vcombine.low %v6583, %v6585
      %v6591 = vunpack.c.l.s4 1966171168
      %v6592 = vunpack.c.0.s8 %v6591
      %v6593 = vlaneseq
      %v6594 = vshrl.u32 %v6593, 7
      %v6595 = vsub.s32 %v6592, %v6594
      %v6596 = vrot.slane %v6589, %v6595
      %v6598 = vunpack.c.l.s4 1966171168
      %v6599 = vunpack.c.0.s8 %v6598
      %v6600 = vlaneseq
      %v6601 = vshrl.u32 %v6600, 7
      %v6602 = vsub.s32 %v6599, %v6601
      %v6603 = vrot.slane %v6596, %v6602
      %v6605 = vadd.f32 %v6461, %v6603
      %s6606 = scalar_lea.vmem [#allocation3], 34
      %v6607 = vld [vmem:[%s6606] ss:$8 sm:$0x3]
      %v6608 = vld [vmem:[%s3 + $0x1680] sm:$0xff]
      %v6609 = vld [vmem:[%s3 + $0x1688] sm:$0xff]
      %v6610 = vld [vmem:[%s3 + $0x1690] sm:$0xff]
      %v6611 = vld [vmem:[%s3 + $0x1698] sm:$0xff]
      %v6612 = vld [vmem:[%s3 + $0x16a0] sm:$0xff]
      %v6613 = vld [vmem:[%s3 + $0x16a8] sm:$0xff]
      %v6614 = vld [vmem:[%s3 + $0x16b0] sm:$0xff]
      %v6615 = vld [vmem:[%s3 + $0x16b8] sm:$0xff]
      %v6616 = vld [vmem:[%s3 + $0x16c0] sm:$0xff]
      %v6617 = vld [vmem:[%s3 + $0x16c8] sm:$0xff]
      %v6618 = vld [vmem:[%s3 + $0x16d0] sm:$0xff]
      %v6619 = vld [vmem:[%s3 + $0x16d8] sm:$0xff]
      %v6620 = vld [vmem:[%s3 + $0x16e0] sm:$0xff]
      %v6621 = vld [vmem:[%s3 + $0x16e8] sm:$0xff]
      %v6622 = vld [vmem:[%s3 + $0x16f0] sm:$0xff]
      %v6623 = vld [vmem:[%s3 + $0x16f8] sm:$0xff]
      %v6624 = vld [vmem:[%s3 + $0x1700] sm:$0xff]
      %v6625 = vld [vmem:[%s3 + $0x1708] sm:$0xff]
      %v6626 = vld [vmem:[%s3 + $0x1710] sm:$0xff]
      %v6627 = vld [vmem:[%s3 + $0x1718] sm:$0xff]
      %v6628 = vld [vmem:[%s3 + $0x1720] sm:$0xff]
      %v6629 = vld [vmem:[%s3 + $0x1728] sm:$0xff]
      %v6630 = vld [vmem:[%s3 + $0x1730] sm:$0xff]
      %v6631 = vld [vmem:[%s3 + $0x1738] sm:$0xff]
      %v6632 = vld [vmem:[%s3 + $0x1740] sm:$0xff]
      %v6633 = vld [vmem:[%s3 + $0x1748] sm:$0xff]
      %v6634 = vld [vmem:[%s3 + $0x1750] sm:$0xff]
      %v6635 = vld [vmem:[%s3 + $0x1758] sm:$0xff]
      %v6636 = vld [vmem:[%s3 + $0x1760] sm:$0xff]
      %v6637 = vld [vmem:[%s3 + $0x1768] sm:$0xff]
      %v6638 = vld [vmem:[%s3 + $0x1770] sm:$0xff]
      %v6639 = vld [vmem:[%s3 + $0x1778] sm:$0xff]
      %v6640 = vld [vmem:[%s3 + $0x1780] sm:$0xff]
      %v6641 = vld [vmem:[%s3 + $0x1788] sm:$0xff]
      %v6642 = vld [vmem:[%s3 + $0x1790] sm:$0xff]
      %v6643 = vld [vmem:[%s3 + $0x1798] sm:$0xff]
      %v6644 = vld [vmem:[%s3 + $0x17a0] sm:$0xff]
      %v6645 = vld [vmem:[%s3 + $0x17a8] sm:$0xff]
      %v6646 = vld [vmem:[%s3 + $0x17b0] sm:$0xff]
      %v6647 = vld [vmem:[%s3 + $0x17b8] sm:$0xff]
      %v6649 = vlaneseq
      %v6650 = vshrl.u32 %v6649, 7
      %v6651 = vsub.s32 0, %v6650
      %v6652 = vrot.slane %v6607, %v6651
      %v6653 = vlaneseq
      %v6654 = vshrl.u32 %v6653, 7
      %v6655 = vsub.s32 1, %v6654
      %v6656 = vrot.slane %v6607, %v6655
      %v6658 = vsel %vm226, %v6656, 0
      %6660 = vmatprep.subr.mxu0 %v6609
      %6661 = vmatpush1.msra.mxu0 %v6608
      %6662 = vmatprep.subr.mxu0 %v6611
      %6663 = vmatpush1.msra.mxu0 %v6610
      %6664 = vmatprep.subr.mxu0 %v6613
      %6665 = vmatpush1.msra.mxu0 %v6612
      %6666 = vmatprep.subr.mxu0 %v6615
      %6667 = vmatpush1.msra.mxu0 %v6614
      %6668 = vmatprep.subr.mxu0 %v6617
      %6669 = vmatpush1.msra.mxu0 %v6616
      %6670 = vmatprep.subr.mxu0 %v6619
      %6671 = vmatpush1.msra.mxu0 %v6618
      %6672 = vmatprep.subr.mxu0 %v6621
      %6673 = vmatpush1.msra.mxu0 %v6620
      %6674 = vmatprep.subr.mxu0 %v6623
      %6675 = vmatpush1.msra.mxu0 %v6622
      %6676 = vmatprep.subr.mxu0 %v6625
      %6677 = vmatpush1.msra.mxu0 %v6624
      %6678 = vmatprep.subr.mxu0 %v6627
      %6679 = vmatpush1.msra.mxu0 %v6626
      %6680 = vmatprep.subr.mxu0 %v6629
      %6681 = vmatpush1.msra.mxu0 %v6628
      %6682 = vmatprep.subr.mxu0 %v6631
      %6683 = vmatpush1.msra.mxu0 %v6630
      %6684 = vmatprep.subr.mxu0 %v6633
      %6685 = vmatpush1.msra.mxu0 %v6632
      %6686 = vmatprep.subr.mxu0 %v6635
      %6687 = vmatpush1.msra.mxu0 %v6634
      %6688 = vmatprep.subr.mxu0 %v6637
      %6689 = vmatpush1.msra.mxu0 %v6636
      %6690 = vmatprep.subr.mxu0 %v6639
      %6691 = vmatpush1.msra.mxu0 %v6638
      %6692 = vmatprep.subr.mxu0 %v6641
      %6693 = vmatpush1.msra.mxu0 %v6640
      %6694 = vmatprep.subr.mxu0 %v6643
      %6695 = vmatpush1.msra.mxu0 %v6642
      %6696 = vmatprep.subr.mxu0 %v6645
      %6697 = vmatpush1.msra.mxu0 %v6644
      %6698 = vmatprep.subr.mxu0 %v6647
      %6699 = vmatpush1.msra.mxu0 %v6646
      %6700 = vmatprep.subr.mxu0 0.0
      %6701 = vmatpush1.msra.mxu0 0.0
      %6702 = vmatprep.subr.mxu0 0.0
      %6703 = vmatpush1.msra.mxu0 0.0
      %6704 = vmatprep.subr.mxu0 0.0
      %6705 = vmatpush1.msra.mxu0 0.0
      %6706 = vmatprep.subr.mxu0 0.0
      %6707 = vmatpush1.msra.mxu0 0.0
      %6708 = vmatprep.subr.mxu0 0.0
      %6709 = vmatpush1.msra.mxu0 0.0
      %6710 = vmatprep.subr.mxu0 0.0
      %6711 = vmatpush1.msra.mxu0 0.0
      %6712 = vmatprep.subr.mxu0 0.0
      %6713 = vmatpush1.msra.mxu0 0.0
      %6714 = vmatprep.subr.mxu0 0.0
      %6715 = vmatpush1.msra.mxu0 0.0
      %6716 = vmatprep.subr.mxu0 0.0
      %6717 = vmatpush1.msra.mxu0 0.0
      %6718 = vmatprep.subr.mxu0 0.0
      %6719 = vmatpush1.msra.mxu0 0.0
      %6720 = vmatprep.subr.mxu0 0.0
      %6721 = vmatpush1.msra.mxu0 0.0
      %6722 = vmatprep.subr.mxu0 0.0
      %6723 = vmatpush1.msra.mxu0 0.0
      %6724 = vmatprep.mubr.f32.mxu0 %v6658
      %6725 = vmatmul.mubr.f32.gmra.mrb[0].mxu0 %v6652
      %v6726 = vpop.f32.mrb[0].mxu0
      %v6727 = vadd.f32 0.0, %v6726
      %v6728 = vpop.f32.mrb[0].mxu0
      %v6729 = vadd.f32 0.0, %v6728
      %6730 = vdwg.mxu0
      %v6733 = vcombine.low %v6727, %v6729
      %v6735 = vunpack.c.l.s4 1966171168
      %v6736 = vunpack.c.0.s8 %v6735
      %v6737 = vlaneseq
      %v6738 = vshrl.u32 %v6737, 7
      %v6739 = vsub.s32 %v6736, %v6738
      %v6740 = vrot.slane %v6733, %v6739
      %v6742 = vunpack.c.l.s4 1966171168
      %v6743 = vunpack.c.0.s8 %v6742
      %v6744 = vlaneseq
      %v6745 = vshrl.u32 %v6744, 7
      %v6746 = vsub.s32 %v6743, %v6745
      %v6747 = vrot.slane %v6740, %v6746
      %v6749 = vadd.f32 %v6605, %v6747
      %s6750 = scalar_lea.vmem [#allocation3], 35
      %v6751 = vld [vmem:[%s6750] ss:$8 sm:$0x3]
      %v6752 = vld [vmem:[%s3 + $0x17c0] sm:$0xff]
      %v6753 = vld [vmem:[%s3 + $0x17c8] sm:$0xff]
      %v6754 = vld [vmem:[%s3 + $0x17d0] sm:$0xff]
      %v6755 = vld [vmem:[%s3 + $0x17d8] sm:$0xff]
      %v6756 = vld [vmem:[%s3 + $0x17e0] sm:$0xff]
      %v6757 = vld [vmem:[%s3 + $0x17e8] sm:$0xff]
      %v6758 = vld [vmem:[%s3 + $0x17f0] sm:$0xff]
      %v6759 = vld [vmem:[%s3 + $0x17f8] sm:$0xff]
      %v6760 = vld [vmem:[%s3 + $0x1800] sm:$0xff]
      %v6761 = vld [vmem:[%s3 + $0x1808] sm:$0xff]
      %v6762 = vld [vmem:[%s3 + $0x1810] sm:$0xff]
      %v6763 = vld [vmem:[%s3 + $0x1818] sm:$0xff]
      %v6764 = vld [vmem:[%s3 + $0x1820] sm:$0xff]
      %v6765 = vld [vmem:[%s3 + $0x1828] sm:$0xff]
      %v6766 = vld [vmem:[%s3 + $0x1830] sm:$0xff]
      %v6767 = vld [vmem:[%s3 + $0x1838] sm:$0xff]
      %v6768 = vld [vmem:[%s3 + $0x1840] sm:$0xff]
      %v6769 = vld [vmem:[%s3 + $0x1848] sm:$0xff]
      %v6770 = vld [vmem:[%s3 + $0x1850] sm:$0xff]
      %v6771 = vld [vmem:[%s3 + $0x1858] sm:$0xff]
      %v6772 = vld [vmem:[%s3 + $0x1860] sm:$0xff]
      %v6773 = vld [vmem:[%s3 + $0x1868] sm:$0xff]
      %v6774 = vld [vmem:[%s3 + $0x1870] sm:$0xff]
      %v6775 = vld [vmem:[%s3 + $0x1878] sm:$0xff]
      %v6776 = vld [vmem:[%s3 + $0x1880] sm:$0xff]
      %v6777 = vld [vmem:[%s3 + $0x1888] sm:$0xff]
      %v6778 = vld [vmem:[%s3 + $0x1890] sm:$0xff]
      %v6779 = vld [vmem:[%s3 + $0x1898] sm:$0xff]
      %v6780 = vld [vmem:[%s3 + $0x18a0] sm:$0xff]
      %v6781 = vld [vmem:[%s3 + $0x18a8] sm:$0xff]
      %v6782 = vld [vmem:[%s3 + $0x18b0] sm:$0xff]
      %v6783 = vld [vmem:[%s3 + $0x18b8] sm:$0xff]
      %v6784 = vld [vmem:[%s3 + $0x18c0] sm:$0xff]
      %v6785 = vld [vmem:[%s3 + $0x18c8] sm:$0xff]
      %v6786 = vld [vmem:[%s3 + $0x18d0] sm:$0xff]
      %v6787 = vld [vmem:[%s3 + $0x18d8] sm:$0xff]
      %v6788 = vld [vmem:[%s3 + $0x18e0] sm:$0xff]
      %v6789 = vld [vmem:[%s3 + $0x18e8] sm:$0xff]
      %v6790 = vld [vmem:[%s3 + $0x18f0] sm:$0xff]
      %v6791 = vld [vmem:[%s3 + $0x18f8] sm:$0xff]
      %v6793 = vlaneseq
      %v6794 = vshrl.u32 %v6793, 7
      %v6795 = vsub.s32 0, %v6794
      %v6796 = vrot.slane %v6751, %v6795
      %v6797 = vlaneseq
      %v6798 = vshrl.u32 %v6797, 7
      %v6799 = vsub.s32 1, %v6798
      %v6800 = vrot.slane %v6751, %v6799
      %v6802 = vsel %vm226, %v6800, 0
      %6804 = vmatprep.subr.mxu0 %v6753
      %6805 = vmatpush1.msra.mxu0 %v6752
      %6806 = vmatprep.subr.mxu0 %v6755
      %6807 = vmatpush1.msra.mxu0 %v6754
      %6808 = vmatprep.subr.mxu0 %v6757
      %6809 = vmatpush1.msra.mxu0 %v6756
      %6810 = vmatprep.subr.mxu0 %v6759
      %6811 = vmatpush1.msra.mxu0 %v6758
      %6812 = vmatprep.subr.mxu0 %v6761
      %6813 = vmatpush1.msra.mxu0 %v6760
      %6814 = vmatprep.subr.mxu0 %v6763
      %6815 = vmatpush1.msra.mxu0 %v6762
      %6816 = vmatprep.subr.mxu0 %v6765
      %6817 = vmatpush1.msra.mxu0 %v6764
      %6818 = vmatprep.subr.mxu0 %v6767
      %6819 = vmatpush1.msra.mxu0 %v6766
      %6820 = vmatprep.subr.mxu0 %v6769
      %6821 = vmatpush1.msra.mxu0 %v6768
      %6822 = vmatprep.subr.mxu0 %v6771
      %6823 = vmatpush1.msra.mxu0 %v6770
      %6824 = vmatprep.subr.mxu0 %v6773
      %6825 = vmatpush1.msra.mxu0 %v6772
      %6826 = vmatprep.subr.mxu0 %v6775
      %6827 = vmatpush1.msra.mxu0 %v6774
      %6828 = vmatprep.subr.mxu0 %v6777
      %6829 = vmatpush1.msra.mxu0 %v6776
      %6830 = vmatprep.subr.mxu0 %v6779
      %6831 = vmatpush1.msra.mxu0 %v6778
      %6832 = vmatprep.subr.mxu0 %v6781
      %6833 = vmatpush1.msra.mxu0 %v6780
      %6834 = vmatprep.subr.mxu0 %v6783
      %6835 = vmatpush1.msra.mxu0 %v6782
      %6836 = vmatprep.subr.mxu0 %v6785
      %6837 = vmatpush1.msra.mxu0 %v6784
      %6838 = vmatprep.subr.mxu0 %v6787
      %6839 = vmatpush1.msra.mxu0 %v6786
      %6840 = vmatprep.subr.mxu0 %v6789
      %6841 = vmatpush1.msra.mxu0 %v6788
      %6842 = vmatprep.subr.mxu0 %v6791
      %6843 = vmatpush1.msra.mxu0 %v6790
      %6844 = vmatprep.subr.mxu0 0.0
      %6845 = vmatpush1.msra.mxu0 0.0
      %6846 = vmatprep.subr.mxu0 0.0
      %6847 = vmatpush1.msra.mxu0 0.0
      %6848 = vmatprep.subr.mxu0 0.0
      %6849 = vmatpush1.msra.mxu0 0.0
      %6850 = vmatprep.subr.mxu0 0.0
      %6851 = vmatpush1.msra.mxu0 0.0
      %6852 = vmatprep.subr.mxu0 0.0
      %6853 = vmatpush1.msra.mxu0 0.0
      %6854 = vmatprep.subr.mxu0 0.0
      %6855 = vmatpush1.msra.mxu0 0.0
      %6856 = vmatprep.subr.mxu0 0.0
      %6857 = vmatpush1.msra.mxu0 0.0
      %6858 = vmatprep.subr.mxu0 0.0
      %6859 = vmatpush1.msra.mxu0 0.0
      %6860 = vmatprep.subr.mxu0 0.0
      %6861 = vmatpush1.msra.mxu0 0.0
      %6862 = vmatprep.subr.mxu0 0.0
      %6863 = vmatpush1.msra.mxu0 0.0
      %6864 = vmatprep.subr.mxu0 0.0
      %6865 = vmatpush1.msra.mxu0 0.0
      %6866 = vmatprep.subr.mxu0 0.0
      %6867 = vmatpush1.msra.mxu0 0.0
      %6868 = vmatprep.mubr.f32.mxu0 %v6802
      %6869 = vmatmul.mubr.f32.gmra.mrb[0].mxu0 %v6796
      %v6870 = vpop.f32.mrb[0].mxu0
      %v6871 = vadd.f32 0.0, %v6870
      %v6872 = vpop.f32.mrb[0].mxu0
      %v6873 = vadd.f32 0.0, %v6872
      %6874 = vdwg.mxu0
      %v6877 = vcombine.low %v6871, %v6873
      %v6879 = vunpack.c.l.s4 1966171168
      %v6880 = vunpack.c.0.s8 %v6879
      %v6881 = vlaneseq
      %v6882 = vshrl.u32 %v6881, 7
      %v6883 = vsub.s32 %v6880, %v6882
      %v6884 = vrot.slane %v6877, %v6883
      %v6886 = vunpack.c.l.s4 1966171168
      %v6887 = vunpack.c.0.s8 %v6886
      %v6888 = vlaneseq
      %v6889 = vshrl.u32 %v6888, 7
      %v6890 = vsub.s32 %v6887, %v6889
      %v6891 = vrot.slane %v6884, %v6890
      %v6893 = vadd.f32 %v6749, %v6891
      %s6894 = scalar_lea.vmem [#allocation3], 36
      %v6895 = vld [vmem:[%s6894] ss:$8 sm:$0x3]
      %v6896 = vld [vmem:[%s3 + $0x1900] sm:$0xff]
      %v6897 = vld [vmem:[%s3 + $0x1908] sm:$0xff]
      %v6898 = vld [vmem:[%s3 + $0x1910] sm:$0xff]
      %v6899 = vld [vmem:[%s3 + $0x1918] sm:$0xff]
      %v6900 = vld [vmem:[%s3 + $0x1920] sm:$0xff]
      %v6901 = vld [vmem:[%s3 + $0x1928] sm:$0xff]
      %v6902 = vld [vmem:[%s3 + $0x1930] sm:$0xff]
      %v6903 = vld [vmem:[%s3 + $0x1938] sm:$0xff]
      %v6904 = vld [vmem:[%s3 + $0x1940] sm:$0xff]
      %v6905 = vld [vmem:[%s3 + $0x1948] sm:$0xff]
      %v6906 = vld [vmem:[%s3 + $0x1950] sm:$0xff]
      %v6907 = vld [vmem:[%s3 + $0x1958] sm:$0xff]
      %v6908 = vld [vmem:[%s3 + $0x1960] sm:$0xff]
      %v6909 = vld [vmem:[%s3 + $0x1968] sm:$0xff]
      %v6910 = vld [vmem:[%s3 + $0x1970] sm:$0xff]
      %v6911 = vld [vmem:[%s3 + $0x1978] sm:$0xff]
      %v6912 = vld [vmem:[%s3 + $0x1980] sm:$0xff]
      %v6913 = vld [vmem:[%s3 + $0x1988] sm:$0xff]
      %v6914 = vld [vmem:[%s3 + $0x1990] sm:$0xff]
      %v6915 = vld [vmem:[%s3 + $0x1998] sm:$0xff]
      %v6916 = vld [vmem:[%s3 + $0x19a0] sm:$0xff]
      %v6917 = vld [vmem:[%s3 + $0x19a8] sm:$0xff]
      %v6918 = vld [vmem:[%s3 + $0x19b0] sm:$0xff]
      %v6919 = vld [vmem:[%s3 + $0x19b8] sm:$0xff]
      %v6920 = vld [vmem:[%s3 + $0x19c0] sm:$0xff]
      %v6921 = vld [vmem:[%s3 + $0x19c8] sm:$0xff]
      %v6922 = vld [vmem:[%s3 + $0x19d0] sm:$0xff]
      %v6923 = vld [vmem:[%s3 + $0x19d8] sm:$0xff]
      %v6924 = vld [vmem:[%s3 + $0x19e0] sm:$0xff]
      %v6925 = vld [vmem:[%s3 + $0x19e8] sm:$0xff]
      %v6926 = vld [vmem:[%s3 + $0x19f0] sm:$0xff]
      %v6927 = vld [vmem:[%s3 + $0x19f8] sm:$0xff]
      %v6928 = vld [vmem:[%s3 + $0x1a00] sm:$0xff]
      %v6929 = vld [vmem:[%s3 + $0x1a08] sm:$0xff]
      %v6930 = vld [vmem:[%s3 + $0x1a10] sm:$0xff]
      %v6931 = vld [vmem:[%s3 + $0x1a18] sm:$0xff]
      %v6932 = vld [vmem:[%s3 + $0x1a20] sm:$0xff]
      %v6933 = vld [vmem:[%s3 + $0x1a28] sm:$0xff]
      %v6934 = vld [vmem:[%s3 + $0x1a30] sm:$0xff]
      %v6935 = vld [vmem:[%s3 + $0x1a38] sm:$0xff]
      %v6937 = vlaneseq
      %v6938 = vshrl.u32 %v6937, 7
      %v6939 = vsub.s32 0, %v6938
      %v6940 = vrot.slane %v6895, %v6939
      %v6941 = vlaneseq
      %v6942 = vshrl.u32 %v6941, 7
      %v6943 = vsub.s32 1, %v6942
      %v6944 = vrot.slane %v6895, %v6943
      %v6946 = vsel %vm226, %v6944, 0
      %6948 = vmatprep.subr.mxu0 %v6897
      %6949 = vmatpush1.msra.mxu0 %v6896
      %6950 = vmatprep.subr.mxu0 %v6899
      %6951 = vmatpush1.msra.mxu0 %v6898
      %6952 = vmatprep.subr.mxu0 %v6901
      %6953 = vmatpush1.msra.mxu0 %v6900
      %6954 = vmatprep.subr.mxu0 %v6903
      %6955 = vmatpush1.msra.mxu0 %v6902
      %6956 = vmatprep.subr.mxu0 %v6905
      %6957 = vmatpush1.msra.mxu0 %v6904
      %6958 = vmatprep.subr.mxu0 %v6907
      %6959 = vmatpush1.msra.mxu0 %v6906
      %6960 = vmatprep.subr.mxu0 %v6909
      %6961 = vmatpush1.msra.mxu0 %v6908
      %6962 = vmatprep.subr.mxu0 %v6911
      %6963 = vmatpush1.msra.mxu0 %v6910
      %6964 = vmatprep.subr.mxu0 %v6913
      %6965 = vmatpush1.msra.mxu0 %v6912
      %6966 = vmatprep.subr.mxu0 %v6915
      %6967 = vmatpush1.msra.mxu0 %v6914
      %6968 = vmatprep.subr.mxu0 %v6917
      %6969 = vmatpush1.msra.mxu0 %v6916
      %6970 = vmatprep.subr.mxu0 %v6919
      %6971 = vmatpush1.msra.mxu0 %v6918
      %6972 = vmatprep.subr.mxu0 %v6921
      %6973 = vmatpush1.msra.mxu0 %v6920
      %6974 = vmatprep.subr.mxu0 %v6923
      %6975 = vmatpush1.msra.mxu0 %v6922
      %6976 = vmatprep.subr.mxu0 %v6925
      %6977 = vmatpush1.msra.mxu0 %v6924
      %6978 = vmatprep.subr.mxu0 %v6927
      %6979 = vmatpush1.msra.mxu0 %v6926
      %6980 = vmatprep.subr.mxu0 %v6929
      %6981 = vmatpush1.msra.mxu0 %v6928
      %6982 = vmatprep.subr.mxu0 %v6931
      %6983 = vmatpush1.msra.mxu0 %v6930
      %6984 = vmatprep.subr.mxu0 %v6933
      %6985 = vmatpush1.msra.mxu0 %v6932
      %6986 = vmatprep.subr.mxu0 %v6935
      %6987 = vmatpush1.msra.mxu0 %v6934
      %6988 = vmatprep.subr.mxu0 0.0
      %6989 = vmatpush1.msra.mxu0 0.0
      %6990 = vmatprep.subr.mxu0 0.0
      %6991 = vmatpush1.msra.mxu0 0.0
      %6992 = vmatprep.subr.mxu0 0.0
      %6993 = vmatpush1.msra.mxu0 0.0
      %6994 = vmatprep.subr.mxu0 0.0
      %6995 = vmatpush1.msra.mxu0 0.0
      %6996 = vmatprep.subr.mxu0 0.0
      %6997 = vmatpush1.msra.mxu0 0.0
      %6998 = vmatprep.subr.mxu0 0.0
      %6999 = vmatpush1.msra.mxu0 0.0
      %7000 = vmatprep.subr.mxu0 0.0
      %7001 = vmatpush1.msra.mxu0 0.0
      %7002 = vmatprep.subr.mxu0 0.0
      %7003 = vmatpush1.msra.mxu0 0.0
      %7004 = vmatprep.subr.mxu0 0.0
      %7005 = vmatpush1.msra.mxu0 0.0
      %7006 = vmatprep.subr.mxu0 0.0
      %7007 = vmatpush1.msra.mxu0 0.0
      %7008 = vmatprep.subr.mxu0 0.0
      %7009 = vmatpush1.msra.mxu0 0.0
      %7010 = vmatprep.subr.mxu0 0.0
      %7011 = vmatpush1.msra.mxu0 0.0
      %7012 = vmatprep.mubr.f32.mxu0 %v6946
      %7013 = vmatmul.mubr.f32.gmra.mrb[0].mxu0 %v6940
      %v7014 = vpop.f32.mrb[0].mxu0
      %v7015 = vadd.f32 0.0, %v7014
      %v7016 = vpop.f32.mrb[0].mxu0
      %v7017 = vadd.f32 0.0, %v7016
      %7018 = vdwg.mxu0
      %v7021 = vcombine.low %v7015, %v7017
      %v7023 = vunpack.c.l.s4 1966171168
      %v7024 = vunpack.c.0.s8 %v7023
      %v7025 = vlaneseq
      %v7026 = vshrl.u32 %v7025, 7
      %v7027 = vsub.s32 %v7024, %v7026
      %v7028 = vrot.slane %v7021, %v7027
      %v7030 = vunpack.c.l.s4 1966171168
      %v7031 = vunpack.c.0.s8 %v7030
      %v7032 = vlaneseq
      %v7033 = vshrl.u32 %v7032, 7
      %v7034 = vsub.s32 %v7031, %v7033
      %v7035 = vrot.slane %v7028, %v7034
      %v7037 = vadd.f32 %v6893, %v7035
      %s7038 = scalar_lea.vmem [#allocation3], 37
      %v7039 = vld [vmem:[%s7038] ss:$8 sm:$0x3]
      %v7040 = vld [vmem:[%s3 + $0x1a40] sm:$0xff]
      %v7041 = vld [vmem:[%s3 + $0x1a48] sm:$0xff]
      %v7042 = vld [vmem:[%s3 + $0x1a50] sm:$0xff]
      %v7043 = vld [vmem:[%s3 + $0x1a58] sm:$0xff]
      %v7044 = vld [vmem:[%s3 + $0x1a60] sm:$0xff]
      %v7045 = vld [vmem:[%s3 + $0x1a68] sm:$0xff]
      %v7046 = vld [vmem:[%s3 + $0x1a70] sm:$0xff]
      %v7047 = vld [vmem:[%s3 + $0x1a78] sm:$0xff]
      %v7048 = vld [vmem:[%s3 + $0x1a80] sm:$0xff]
      %v7049 = vld [vmem:[%s3 + $0x1a88] sm:$0xff]
      %v7050 = vld [vmem:[%s3 + $0x1a90] sm:$0xff]
      %v7051 = vld [vmem:[%s3 + $0x1a98] sm:$0xff]
      %v7052 = vld [vmem:[%s3 + $0x1aa0] sm:$0xff]
      %v7053 = vld [vmem:[%s3 + $0x1aa8] sm:$0xff]
      %v7054 = vld [vmem:[%s3 + $0x1ab0] sm:$0xff]
      %v7055 = vld [vmem:[%s3 + $0x1ab8] sm:$0xff]
      %v7056 = vld [vmem:[%s3 + $0x1ac0] sm:$0xff]
      %v7057 = vld [vmem:[%s3 + $0x1ac8] sm:$0xff]
      %v7058 = vld [vmem:[%s3 + $0x1ad0] sm:$0xff]
      %v7059 = vld [vmem:[%s3 + $0x1ad8] sm:$0xff]
      %v7060 = vld [vmem:[%s3 + $0x1ae0] sm:$0xff]
      %v7061 = vld [vmem:[%s3 + $0x1ae8] sm:$0xff]
      %v7062 = vld [vmem:[%s3 + $0x1af0] sm:$0xff]
      %v7063 = vld [vmem:[%s3 + $0x1af8] sm:$0xff]
      %v7064 = vld [vmem:[%s3 + $0x1b00] sm:$0xff]
      %v7065 = vld [vmem:[%s3 + $0x1b08] sm:$0xff]
      %v7066 = vld [vmem:[%s3 + $0x1b10] sm:$0xff]
      %v7067 = vld [vmem:[%s3 + $0x1b18] sm:$0xff]
      %v7068 = vld [vmem:[%s3 + $0x1b20] sm:$0xff]
      %v7069 = vld [vmem:[%s3 + $0x1b28] sm:$0xff]
      %v7070 = vld [vmem:[%s3 + $0x1b30] sm:$0xff]
      %v7071 = vld [vmem:[%s3 + $0x1b38] sm:$0xff]
      %v7072 = vld [vmem:[%s3 + $0x1b40] sm:$0xff]
      %v7073 = vld [vmem:[%s3 + $0x1b48] sm:$0xff]
      %v7074 = vld [vmem:[%s3 + $0x1b50] sm:$0xff]
      %v7075 = vld [vmem:[%s3 + $0x1b58] sm:$0xff]
      %v7076 = vld [vmem:[%s3 + $0x1b60] sm:$0xff]
      %v7077 = vld [vmem:[%s3 + $0x1b68] sm:$0xff]
      %v7078 = vld [vmem:[%s3 + $0x1b70] sm:$0xff]
      %v7079 = vld [vmem:[%s3 + $0x1b78] sm:$0xff]
      %v7081 = vlaneseq
      %v7082 = vshrl.u32 %v7081, 7
      %v7083 = vsub.s32 0, %v7082
      %v7084 = vrot.slane %v7039, %v7083
      %v7085 = vlaneseq
      %v7086 = vshrl.u32 %v7085, 7
      %v7087 = vsub.s32 1, %v7086
      %v7088 = vrot.slane %v7039, %v7087
      %v7090 = vsel %vm226, %v7088, 0
      %7092 = vmatprep.subr.mxu0 %v7041
      %7093 = vmatpush1.msra.mxu0 %v7040
      %7094 = vmatprep.subr.mxu0 %v7043
      %7095 = vmatpush1.msra.mxu0 %v7042
      %7096 = vmatprep.subr.mxu0 %v7045
      %7097 = vmatpush1.msra.mxu0 %v7044
      %7098 = vmatprep.subr.mxu0 %v7047
      %7099 = vmatpush1.msra.mxu0 %v7046
      %7100 = vmatprep.subr.mxu0 %v7049
      %7101 = vmatpush1.msra.mxu0 %v7048
      %7102 = vmatprep.subr.mxu0 %v7051
      %7103 = vmatpush1.msra.mxu0 %v7050
      %7104 = vmatprep.subr.mxu0 %v7053
      %7105 = vmatpush1.msra.mxu0 %v7052
      %7106 = vmatprep.subr.mxu0 %v7055
      %7107 = vmatpush1.msra.mxu0 %v7054
      %7108 = vmatprep.subr.mxu0 %v7057
      %7109 = vmatpush1.msra.mxu0 %v7056
      %7110 = vmatprep.subr.mxu0 %v7059
      %7111 = vmatpush1.msra.mxu0 %v7058
      %7112 = vmatprep.subr.mxu0 %v7061
      %7113 = vmatpush1.msra.mxu0 %v7060
      %7114 = vmatprep.subr.mxu0 %v7063
      %7115 = vmatpush1.msra.mxu0 %v7062
      %7116 = vmatprep.subr.mxu0 %v7065
      %7117 = vmatpush1.msra.mxu0 %v7064
      %7118 = vmatprep.subr.mxu0 %v7067
      %7119 = vmatpush1.msra.mxu0 %v7066
      %7120 = vmatprep.subr.mxu0 %v7069
      %7121 = vmatpush1.msra.mxu0 %v7068
      %7122 = vmatprep.subr.mxu0 %v7071
      %7123 = vmatpush1.msra.mxu0 %v7070
      %7124 = vmatprep.subr.mxu0 %v7073
      %7125 = vmatpush1.msra.mxu0 %v7072
      %7126 = vmatprep.subr.mxu0 %v7075
      %7127 = vmatpush1.msra.mxu0 %v7074
      %7128 = vmatprep.subr.mxu0 %v7077
      %7129 = vmatpush1.msra.mxu0 %v7076
      %7130 = vmatprep.subr.mxu0 %v7079
      %7131 = vmatpush1.msra.mxu0 %v7078
      %7132 = vmatprep.subr.mxu0 0.0
      %7133 = vmatpush1.msra.mxu0 0.0
      %7134 = vmatprep.subr.mxu0 0.0
      %7135 = vmatpush1.msra.mxu0 0.0
      %7136 = vmatprep.subr.mxu0 0.0
      %7137 = vmatpush1.msra.mxu0 0.0
      %7138 = vmatprep.subr.mxu0 0.0
      %7139 = vmatpush1.msra.mxu0 0.0
      %7140 = vmatprep.subr.mxu0 0.0
      %7141 = vmatpush1.msra.mxu0 0.0
      %7142 = vmatprep.subr.mxu0 0.0
      %7143 = vmatpush1.msra.mxu0 0.0
      %7144 = vmatprep.subr.mxu0 0.0
      %7145 = vmatpush1.msra.mxu0 0.0
      %7146 = vmatprep.subr.mxu0 0.0
      %7147 = vmatpush1.msra.mxu0 0.0
      %7148 = vmatprep.subr.mxu0 0.0
      %7149 = vmatpush1.msra.mxu0 0.0
      %7150 = vmatprep.subr.mxu0 0.0
      %7151 = vmatpush1.msra.mxu0 0.0
      %7152 = vmatprep.subr.mxu0 0.0
      %7153 = vmatpush1.msra.mxu0 0.0
      %7154 = vmatprep.subr.mxu0 0.0
      %7155 = vmatpush1.msra.mxu0 0.0
      %7156 = vmatprep.mubr.f32.mxu0 %v7090
      %7157 = vmatmul.mubr.f32.gmra.mrb[0].mxu0 %v7084
      %v7158 = vpop.f32.mrb[0].mxu0
      %v7159 = vadd.f32 0.0, %v7158
      %v7160 = vpop.f32.mrb[0].mxu0
      %v7161 = vadd.f32 0.0, %v7160
      %7162 = vdwg.mxu0
      %v7165 = vcombine.low %v7159, %v7161
      %v7167 = vunpack.c.l.s4 1966171168
      %v7168 = vunpack.c.0.s8 %v7167
      %v7169 = vlaneseq
      %v7170 = vshrl.u32 %v7169, 7
      %v7171 = vsub.s32 %v7168, %v7170
      %v7172 = vrot.slane %v7165, %v7171
      %v7174 = vunpack.c.l.s4 1966171168
      %v7175 = vunpack.c.0.s8 %v7174
      %v7176 = vlaneseq
      %v7177 = vshrl.u32 %v7176, 7
      %v7178 = vsub.s32 %v7175, %v7177
      %v7179 = vrot.slane %v7172, %v7178
      %v7181 = vadd.f32 %v7037, %v7179
      %s7182 = scalar_lea.vmem [#allocation3], 38
      %v7183 = vld [vmem:[%s7182] ss:$8 sm:$0x3]
      %v7184 = vld [vmem:[%s3 + $0x1b80] sm:$0xff]
      %v7185 = vld [vmem:[%s3 + $0x1b88] sm:$0xff]
      %v7186 = vld [vmem:[%s3 + $0x1b90] sm:$0xff]
      %v7187 = vld [vmem:[%s3 + $0x1b98] sm:$0xff]
      %v7188 = vld [vmem:[%s3 + $0x1ba0] sm:$0xff]
      %v7189 = vld [vmem:[%s3 + $0x1ba8] sm:$0xff]
      %v7190 = vld [vmem:[%s3 + $0x1bb0] sm:$0xff]
      %v7191 = vld [vmem:[%s3 + $0x1bb8] sm:$0xff]
      %v7192 = vld [vmem:[%s3 + $0x1bc0] sm:$0xff]
      %v7193 = vld [vmem:[%s3 + $0x1bc8] sm:$0xff]
      %v7194 = vld [vmem:[%s3 + $0x1bd0] sm:$0xff]
      %v7195 = vld [vmem:[%s3 + $0x1bd8] sm:$0xff]
      %v7196 = vld [vmem:[%s3 + $0x1be0] sm:$0xff]
      %v7197 = vld [vmem:[%s3 + $0x1be8] sm:$0xff]
      %v7198 = vld [vmem:[%s3 + $0x1bf0] sm:$0xff]
      %v7199 = vld [vmem:[%s3 + $0x1bf8] sm:$0xff]
      %v7200 = vld [vmem:[%s3 + $0x1c00] sm:$0xff]
      %v7201 = vld [vmem:[%s3 + $0x1c08] sm:$0xff]
      %v7202 = vld [vmem:[%s3 + $0x1c10] sm:$0xff]
      %v7203 = vld [vmem:[%s3 + $0x1c18] sm:$0xff]
      %v7204 = vld [vmem:[%s3 + $0x1c20] sm:$0xff]
      %v7205 = vld [vmem:[%s3 + $0x1c28] sm:$0xff]
      %v7206 = vld [vmem:[%s3 + $0x1c30] sm:$0xff]
      %v7207 = vld [vmem:[%s3 + $0x1c38] sm:$0xff]
      %v7208 = vld [vmem:[%s3 + $0x1c40] sm:$0xff]
      %v7209 = vld [vmem:[%s3 + $0x1c48] sm:$0xff]
      %v7210 = vld [vmem:[%s3 + $0x1c50] sm:$0xff]
      %v7211 = vld [vmem:[%s3 + $0x1c58] sm:$0xff]
      %v7212 = vld [vmem:[%s3 + $0x1c60] sm:$0xff]
      %v7213 = vld [vmem:[%s3 + $0x1c68] sm:$0xff]
      %v7214 = vld [vmem:[%s3 + $0x1c70] sm:$0xff]
      %v7215 = vld [vmem:[%s3 + $0x1c78] sm:$0xff]
      %v7216 = vld [vmem:[%s3 + $0x1c80] sm:$0xff]
      %v7217 = vld [vmem:[%s3 + $0x1c88] sm:$0xff]
      %v7218 = vld [vmem:[%s3 + $0x1c90] sm:$0xff]
      %v7219 = vld [vmem:[%s3 + $0x1c98] sm:$0xff]
      %v7220 = vld [vmem:[%s3 + $0x1ca0] sm:$0xff]
      %v7221 = vld [vmem:[%s3 + $0x1ca8] sm:$0xff]
      %v7222 = vld [vmem:[%s3 + $0x1cb0] sm:$0xff]
      %v7223 = vld [vmem:[%s3 + $0x1cb8] sm:$0xff]
      %v7225 = vlaneseq
      %v7226 = vshrl.u32 %v7225, 7
      %v7227 = vsub.s32 0, %v7226
      %v7228 = vrot.slane %v7183, %v7227
      %v7229 = vlaneseq
      %v7230 = vshrl.u32 %v7229, 7
      %v7231 = vsub.s32 1, %v7230
      %v7232 = vrot.slane %v7183, %v7231
      %v7234 = vsel %vm226, %v7232, 0
      %7236 = vmatprep.subr.mxu0 %v7185
      %7237 = vmatpush1.msra.mxu0 %v7184
      %7238 = vmatprep.subr.mxu0 %v7187
      %7239 = vmatpush1.msra.mxu0 %v7186
      %7240 = vmatprep.subr.mxu0 %v7189
      %7241 = vmatpush1.msra.mxu0 %v7188
      %7242 = vmatprep.subr.mxu0 %v7191
      %7243 = vmatpush1.msra.mxu0 %v7190
      %7244 = vmatprep.subr.mxu0 %v7193
      %7245 = vmatpush1.msra.mxu0 %v7192
      %7246 = vmatprep.subr.mxu0 %v7195
      %7247 = vmatpush1.msra.mxu0 %v7194
      %7248 = vmatprep.subr.mxu0 %v7197
      %7249 = vmatpush1.msra.mxu0 %v7196
      %7250 = vmatprep.subr.mxu0 %v7199
      %7251 = vmatpush1.msra.mxu0 %v7198
      %7252 = vmatprep.subr.mxu0 %v7201
      %7253 = vmatpush1.msra.mxu0 %v7200
      %7254 = vmatprep.subr.mxu0 %v7203
      %7255 = vmatpush1.msra.mxu0 %v7202
      %7256 = vmatprep.subr.mxu0 %v7205
      %7257 = vmatpush1.msra.mxu0 %v7204
      %7258 = vmatprep.subr.mxu0 %v7207
      %7259 = vmatpush1.msra.mxu0 %v7206
      %7260 = vmatprep.subr.mxu0 %v7209
      %7261 = vmatpush1.msra.mxu0 %v7208
      %7262 = vmatprep.subr.mxu0 %v7211
      %7263 = vmatpush1.msra.mxu0 %v7210
      %7264 = vmatprep.subr.mxu0 %v7213
      %7265 = vmatpush1.msra.mxu0 %v7212
      %7266 = vmatprep.subr.mxu0 %v7215
      %7267 = vmatpush1.msra.mxu0 %v7214
      %7268 = vmatprep.subr.mxu0 %v7217
      %7269 = vmatpush1.msra.mxu0 %v7216
      %7270 = vmatprep.subr.mxu0 %v7219
      %7271 = vmatpush1.msra.mxu0 %v7218
      %7272 = vmatprep.subr.mxu0 %v7221
      %7273 = vmatpush1.msra.mxu0 %v7220
      %7274 = vmatprep.subr.mxu0 %v7223
      %7275 = vmatpush1.msra.mxu0 %v7222
      %7276 = vmatprep.subr.mxu0 0.0
      %7277 = vmatpush1.msra.mxu0 0.0
      %7278 = vmatprep.subr.mxu0 0.0
      %7279 = vmatpush1.msra.mxu0 0.0
      %7280 = vmatprep.subr.mxu0 0.0
      %7281 = vmatpush1.msra.mxu0 0.0
      %7282 = vmatprep.subr.mxu0 0.0
      %7283 = vmatpush1.msra.mxu0 0.0
      %7284 = vmatprep.subr.mxu0 0.0
      %7285 = vmatpush1.msra.mxu0 0.0
      %7286 = vmatprep.subr.mxu0 0.0
      %7287 = vmatpush1.msra.mxu0 0.0
      %7288 = vmatprep.subr.mxu0 0.0
      %7289 = vmatpush1.msra.mxu0 0.0
      %7290 = vmatprep.subr.mxu0 0.0
      %7291 = vmatpush1.msra.mxu0 0.0
      %7292 = vmatprep.subr.mxu0 0.0
      %7293 = vmatpush1.msra.mxu0 0.0
      %7294 = vmatprep.subr.mxu0 0.0
      %7295 = vmatpush1.msra.mxu0 0.0
      %7296 = vmatprep.subr.mxu0 0.0
      %7297 = vmatpush1.msra.mxu0 0.0
      %7298 = vmatprep.subr.mxu0 0.0
      %7299 = vmatpush1.msra.mxu0 0.0
      %7300 = vmatprep.mubr.f32.mxu0 %v7234
      %7301 = vmatmul.mubr.f32.gmra.mrb[0].mxu0 %v7228
      %v7302 = vpop.f32.mrb[0].mxu0
      %v7303 = vadd.f32 0.0, %v7302
      %v7304 = vpop.f32.mrb[0].mxu0
      %v7305 = vadd.f32 0.0, %v7304
      %7306 = vdwg.mxu0
      %v7309 = vcombine.low %v7303, %v7305
      %v7311 = vunpack.c.l.s4 1966171168
      %v7312 = vunpack.c.0.s8 %v7311
      %v7313 = vlaneseq
      %v7314 = vshrl.u32 %v7313, 7
      %v7315 = vsub.s32 %v7312, %v7314
      %v7316 = vrot.slane %v7309, %v7315
      %v7318 = vunpack.c.l.s4 1966171168
      %v7319 = vunpack.c.0.s8 %v7318
      %v7320 = vlaneseq
      %v7321 = vshrl.u32 %v7320, 7
      %v7322 = vsub.s32 %v7319, %v7321
      %v7323 = vrot.slane %v7316, %v7322
      %v7325 = vadd.f32 %v7181, %v7323
      %s7326 = scalar_lea.vmem [#allocation3], 39
      %v7327 = vld [vmem:[%s7326] ss:$8 sm:$0x3]
      %v7328 = vld [vmem:[%s3 + $0x1cc0] sm:$0xff]
      %v7329 = vld [vmem:[%s3 + $0x1cc8] sm:$0xff]
      %v7330 = vld [vmem:[%s3 + $0x1cd0] sm:$0xff]
      %v7331 = vld [vmem:[%s3 + $0x1cd8] sm:$0xff]
      %v7332 = vld [vmem:[%s3 + $0x1ce0] sm:$0xff]
      %v7333 = vld [vmem:[%s3 + $0x1ce8] sm:$0xff]
      %v7334 = vld [vmem:[%s3 + $0x1cf0] sm:$0xff]
      %v7335 = vld [vmem:[%s3 + $0x1cf8] sm:$0xff]
      %v7336 = vld [vmem:[%s3 + $0x1d00] sm:$0xff]
      %v7337 = vld [vmem:[%s3 + $0x1d08] sm:$0xff]
      %v7338 = vld [vmem:[%s3 + $0x1d10] sm:$0xff]
      %v7339 = vld [vmem:[%s3 + $0x1d18] sm:$0xff]
      %v7340 = vld [vmem:[%s3 + $0x1d20] sm:$0xff]
      %v7341 = vld [vmem:[%s3 + $0x1d28] sm:$0xff]
      %v7342 = vld [vmem:[%s3 + $0x1d30] sm:$0xff]
      %v7343 = vld [vmem:[%s3 + $0x1d38] sm:$0xff]
      %v7344 = vld [vmem:[%s3 + $0x1d40] sm:$0xff]
      %v7345 = vld [vmem:[%s3 + $0x1d48] sm:$0xff]
      %v7346 = vld [vmem:[%s3 + $0x1d50] sm:$0xff]
      %v7347 = vld [vmem:[%s3 + $0x1d58] sm:$0xff]
      %v7348 = vld [vmem:[%s3 + $0x1d60] sm:$0xff]
      %v7349 = vld [vmem:[%s3 + $0x1d68] sm:$0xff]
      %v7350 = vld [vmem:[%s3 + $0x1d70] sm:$0xff]
      %v7351 = vld [vmem:[%s3 + $0x1d78] sm:$0xff]
      %v7352 = vld [vmem:[%s3 + $0x1d80] sm:$0xff]
      %v7353 = vld [vmem:[%s3 + $0x1d88] sm:$0xff]
      %v7354 = vld [vmem:[%s3 + $0x1d90] sm:$0xff]
      %v7355 = vld [vmem:[%s3 + $0x1d98] sm:$0xff]
      %v7356 = vld [vmem:[%s3 + $0x1da0] sm:$0xff]
      %v7357 = vld [vmem:[%s3 + $0x1da8] sm:$0xff]
      %v7358 = vld [vmem:[%s3 + $0x1db0] sm:$0xff]
      %v7359 = vld [vmem:[%s3 + $0x1db8] sm:$0xff]
      %v7360 = vld [vmem:[%s3 + $0x1dc0] sm:$0xff]
      %v7361 = vld [vmem:[%s3 + $0x1dc8] sm:$0xff]
      %v7362 = vld [vmem:[%s3 + $0x1dd0] sm:$0xff]
      %v7363 = vld [vmem:[%s3 + $0x1dd8] sm:$0xff]
      %v7364 = vld [vmem:[%s3 + $0x1de0] sm:$0xff]
      %v7365 = vld [vmem:[%s3 + $0x1de8] sm:$0xff]
      %v7366 = vld [vmem:[%s3 + $0x1df0] sm:$0xff]
      %v7367 = vld [vmem:[%s3 + $0x1df8] sm:$0xff]
      %v7369 = vlaneseq
      %v7370 = vshrl.u32 %v7369, 7
      %v7371 = vsub.s32 0, %v7370
      %v7372 = vrot.slane %v7327, %v7371
      %v7373 = vlaneseq
      %v7374 = vshrl.u32 %v7373, 7
      %v7375 = vsub.s32 1, %v7374
      %v7376 = vrot.slane %v7327, %v7375
      %v7378 = vsel %vm226, %v7376, 0
      %7380 = vmatprep.subr.mxu0 %v7329
      %7381 = vmatpush1.msra.mxu0 %v7328
      %7382 = vmatprep.subr.mxu0 %v7331
      %7383 = vmatpush1.msra.mxu0 %v7330
      %7384 = vmatprep.subr.mxu0 %v7333
      %7385 = vmatpush1.msra.mxu0 %v7332
      %7386 = vmatprep.subr.mxu0 %v7335
      %7387 = vmatpush1.msra.mxu0 %v7334
      %7388 = vmatprep.subr.mxu0 %v7337
      %7389 = vmatpush1.msra.mxu0 %v7336
      %7390 = vmatprep.subr.mxu0 %v7339
      %7391 = vmatpush1.msra.mxu0 %v7338
      %7392 = vmatprep.subr.mxu0 %v7341
      %7393 = vmatpush1.msra.mxu0 %v7340
      %7394 = vmatprep.subr.mxu0 %v7343
      %7395 = vmatpush1.msra.mxu0 %v7342
      %7396 = vmatprep.subr.mxu0 %v7345
      %7397 = vmatpush1.msra.mxu0 %v7344
      %7398 = vmatprep.subr.mxu0 %v7347
      %7399 = vmatpush1.msra.mxu0 %v7346
      %7400 = vmatprep.subr.mxu0 %v7349
      %7401 = vmatpush1.msra.mxu0 %v7348
      %7402 = vmatprep.subr.mxu0 %v7351
      %7403 = vmatpush1.msra.mxu0 %v7350
      %7404 = vmatprep.subr.mxu0 %v7353
      %7405 = vmatpush1.msra.mxu0 %v7352
      %7406 = vmatprep.subr.mxu0 %v7355
      %7407 = vmatpush1.msra.mxu0 %v7354
      %7408 = vmatprep.subr.mxu0 %v7357
      %7409 = vmatpush1.msra.mxu0 %v7356
      %7410 = vmatprep.subr.mxu0 %v7359
      %7411 = vmatpush1.msra.mxu0 %v7358
      %7412 = vmatprep.subr.mxu0 %v7361
      %7413 = vmatpush1.msra.mxu0 %v7360
      %7414 = vmatprep.subr.mxu0 %v7363
      %7415 = vmatpush1.msra.mxu0 %v7362
      %7416 = vmatprep.subr.mxu0 %v7365
      %7417 = vmatpush1.msra.mxu0 %v7364
      %7418 = vmatprep.subr.mxu0 %v7367
      %7419 = vmatpush1.msra.mxu0 %v7366
      %7420 = vmatprep.subr.mxu0 0.0
      %7421 = vmatpush1.msra.mxu0 0.0
      %7422 = vmatprep.subr.mxu0 0.0
      %7423 = vmatpush1.msra.mxu0 0.0
      %7424 = vmatprep.subr.mxu0 0.0
      %7425 = vmatpush1.msra.mxu0 0.0
      %7426 = vmatprep.subr.mxu0 0.0
      %7427 = vmatpush1.msra.mxu0 0.0
      %7428 = vmatprep.subr.mxu0 0.0
      %7429 = vmatpush1.msra.mxu0 0.0
      %7430 = vmatprep.subr.mxu0 0.0
      %7431 = vmatpush1.msra.mxu0 0.0
      %7432 = vmatprep.subr.mxu0 0.0
      %7433 = vmatpush1.msra.mxu0 0.0
      %7434 = vmatprep.subr.mxu0 0.0
      %7435 = vmatpush1.msra.mxu0 0.0
      %7436 = vmatprep.subr.mxu0 0.0
      %7437 = vmatpush1.msra.mxu0 0.0
      %7438 = vmatprep.subr.mxu0 0.0
      %7439 = vmatpush1.msra.mxu0 0.0
      %7440 = vmatprep.subr.mxu0 0.0
      %7441 = vmatpush1.msra.mxu0 0.0
      %7442 = vmatprep.subr.mxu0 0.0
      %7443 = vmatpush1.msra.mxu0 0.0
      %7444 = vmatprep.mubr.f32.mxu0 %v7378
      %7445 = vmatmul.mubr.f32.gmra.mrb[0].mxu0 %v7372
      %v7446 = vpop.f32.mrb[0].mxu0
      %v7447 = vadd.f32 0.0, %v7446
      %v7448 = vpop.f32.mrb[0].mxu0
      %v7449 = vadd.f32 0.0, %v7448
      %7450 = vdwg.mxu0
      %v7453 = vcombine.low %v7447, %v7449
      %v7455 = vunpack.c.l.s4 1966171168
      %v7456 = vunpack.c.0.s8 %v7455
      %v7457 = vlaneseq
      %v7458 = vshrl.u32 %v7457, 7
      %v7459 = vsub.s32 %v7456, %v7458
      %v7460 = vrot.slane %v7453, %v7459
      %v7462 = vunpack.c.l.s4 1966171168
      %v7463 = vunpack.c.0.s8 %v7462
      %v7464 = vlaneseq
      %v7465 = vshrl.u32 %v7464, 7
      %v7466 = vsub.s32 %v7463, %v7465
      %v7467 = vrot.slane %v7460, %v7466
      %v7469 = vadd.f32 %v7325, %v7467
      %s7470 = scalar_lea.vmem [#allocation3], 48
      %v7471 = vld [vmem:[%s7470] ss:$8 sm:$0x3]
      %v7472 = vld [vmem:[%s3 + $0x1e00] sm:$0xff]
      %v7473 = vld [vmem:[%s3 + $0x1e08] sm:$0xff]
      %v7474 = vld [vmem:[%s3 + $0x1e10] sm:$0xff]
      %v7475 = vld [vmem:[%s3 + $0x1e18] sm:$0xff]
      %v7476 = vld [vmem:[%s3 + $0x1e20] sm:$0xff]
      %v7477 = vld [vmem:[%s3 + $0x1e28] sm:$0xff]
      %v7478 = vld [vmem:[%s3 + $0x1e30] sm:$0xff]
      %v7479 = vld [vmem:[%s3 + $0x1e38] sm:$0xff]
      %v7480 = vld [vmem:[%s3 + $0x1e40] sm:$0xff]
      %v7481 = vld [vmem:[%s3 + $0x1e48] sm:$0xff]
      %v7482 = vld [vmem:[%s3 + $0x1e50] sm:$0xff]
      %v7483 = vld [vmem:[%s3 + $0x1e58] sm:$0xff]
      %v7484 = vld [vmem:[%s3 + $0x1e60] sm:$0xff]
      %v7485 = vld [vmem:[%s3 + $0x1e68] sm:$0xff]
      %v7486 = vld [vmem:[%s3 + $0x1e70] sm:$0xff]
      %v7487 = vld [vmem:[%s3 + $0x1e78] sm:$0xff]
      %v7488 = vld [vmem:[%s3 + $0x1e80] sm:$0xff]
      %v7489 = vld [vmem:[%s3 + $0x1e88] sm:$0xff]
      %v7490 = vld [vmem:[%s3 + $0x1e90] sm:$0xff]
      %v7491 = vld [vmem:[%s3 + $0x1e98] sm:$0xff]
      %v7492 = vld [vmem:[%s3 + $0x1ea0] sm:$0xff]
      %v7493 = vld [vmem:[%s3 + $0x1ea8] sm:$0xff]
      %v7494 = vld [vmem:[%s3 + $0x1eb0] sm:$0xff]
      %v7495 = vld [vmem:[%s3 + $0x1eb8] sm:$0xff]
      %v7496 = vld [vmem:[%s3 + $0x1ec0] sm:$0xff]
      %v7497 = vld [vmem:[%s3 + $0x1ec8] sm:$0xff]
      %v7498 = vld [vmem:[%s3 + $0x1ed0] sm:$0xff]
      %v7499 = vld [vmem:[%s3 + $0x1ed8] sm:$0xff]
      %v7500 = vld [vmem:[%s3 + $0x1ee0] sm:$0xff]
      %v7501 = vld [vmem:[%s3 + $0x1ee8] sm:$0xff]
      %v7502 = vld [vmem:[%s3 + $0x1ef0] sm:$0xff]
      %v7503 = vld [vmem:[%s3 + $0x1ef8] sm:$0xff]
      %v7504 = vld [vmem:[%s3 + $0x1f00] sm:$0xff]
      %v7505 = vld [vmem:[%s3 + $0x1f08] sm:$0xff]
      %v7506 = vld [vmem:[%s3 + $0x1f10] sm:$0xff]
      %v7507 = vld [vmem:[%s3 + $0x1f18] sm:$0xff]
      %v7508 = vld [vmem:[%s3 + $0x1f20] sm:$0xff]
      %v7509 = vld [vmem:[%s3 + $0x1f28] sm:$0xff]
      %v7510 = vld [vmem:[%s3 + $0x1f30] sm:$0xff]
      %v7511 = vld [vmem:[%s3 + $0x1f38] sm:$0xff]
      %v7513 = vlaneseq
      %v7514 = vshrl.u32 %v7513, 7
      %v7515 = vsub.s32 0, %v7514
      %v7516 = vrot.slane %v7471, %v7515
      %v7517 = vlaneseq
      %v7518 = vshrl.u32 %v7517, 7
      %v7519 = vsub.s32 1, %v7518
      %v7520 = vrot.slane %v7471, %v7519
      %v7522 = vsel %vm226, %v7520, 0
      %7524 = vmatprep.subr.mxu0 %v7473
      %7525 = vmatpush1.msra.mxu0 %v7472
      %7526 = vmatprep.subr.mxu0 %v7475
      %7527 = vmatpush1.msra.mxu0 %v7474
      %7528 = vmatprep.subr.mxu0 %v7477
      %7529 = vmatpush1.msra.mxu0 %v7476
      %7530 = vmatprep.subr.mxu0 %v7479
      %7531 = vmatpush1.msra.mxu0 %v7478
      %7532 = vmatprep.subr.mxu0 %v7481
      %7533 = vmatpush1.msra.mxu0 %v7480
      %7534 = vmatprep.subr.mxu0 %v7483
      %7535 = vmatpush1.msra.mxu0 %v7482
      %7536 = vmatprep.subr.mxu0 %v7485
      %7537 = vmatpush1.msra.mxu0 %v7484
      %7538 = vmatprep.subr.mxu0 %v7487
      %7539 = vmatpush1.msra.mxu0 %v7486
      %7540 = vmatprep.subr.mxu0 %v7489
      %7541 = vmatpush1.msra.mxu0 %v7488
      %7542 = vmatprep.subr.mxu0 %v7491
      %7543 = vmatpush1.msra.mxu0 %v7490
      %7544 = vmatprep.subr.mxu0 %v7493
      %7545 = vmatpush1.msra.mxu0 %v7492
      %7546 = vmatprep.subr.mxu0 %v7495
      %7547 = vmatpush1.msra.mxu0 %v7494
      %7548 = vmatprep.subr.mxu0 %v7497
      %7549 = vmatpush1.msra.mxu0 %v7496
      %7550 = vmatprep.subr.mxu0 %v7499
      %7551 = vmatpush1.msra.mxu0 %v7498
      %7552 = vmatprep.subr.mxu0 %v7501
      %7553 = vmatpush1.msra.mxu0 %v7500
      %7554 = vmatprep.subr.mxu0 %v7503
      %7555 = vmatpush1.msra.mxu0 %v7502
      %7556 = vmatprep.subr.mxu0 %v7505
      %7557 = vmatpush1.msra.mxu0 %v7504
      %7558 = vmatprep.subr.mxu0 %v7507
      %7559 = vmatpush1.msra.mxu0 %v7506
      %7560 = vmatprep.subr.mxu0 %v7509
      %7561 = vmatpush1.msra.mxu0 %v7508
      %7562 = vmatprep.subr.mxu0 %v7511
      %7563 = vmatpush1.msra.mxu0 %v7510
      %7564 = vmatprep.subr.mxu0 0.0
      %7565 = vmatpush1.msra.mxu0 0.0
      %7566 = vmatprep.subr.mxu0 0.0
      %7567 = vmatpush1.msra.mxu0 0.0
      %7568 = vmatprep.subr.mxu0 0.0
      %7569 = vmatpush1.msra.mxu0 0.0
      %7570 = vmatprep.subr.mxu0 0.0
      %7571 = vmatpush1.msra.mxu0 0.0
      %7572 = vmatprep.subr.mxu0 0.0
      %7573 = vmatpush1.msra.mxu0 0.0
      %7574 = vmatprep.subr.mxu0 0.0
      %7575 = vmatpush1.msra.mxu0 0.0
      %7576 = vmatprep.subr.mxu0 0.0
      %7577 = vmatpush1.msra.mxu0 0.0
      %7578 = vmatprep.subr.mxu0 0.0
      %7579 = vmatpush1.msra.mxu0 0.0
      %7580 = vmatprep.subr.mxu0 0.0
      %7581 = vmatpush1.msra.mxu0 0.0
      %7582 = vmatprep.subr.mxu0 0.0
      %7583 = vmatpush1.msra.mxu0 0.0
      %7584 = vmatprep.subr.mxu0 0.0
      %7585 = vmatpush1.msra.mxu0 0.0
      %7586 = vmatprep.subr.mxu0 0.0
      %7587 = vmatpush1.msra.mxu0 0.0
      %7588 = vmatprep.mubr.f32.mxu0 %v7522
      %7589 = vmatmul.mubr.f32.gmra.mrb[0].mxu0 %v7516
      %v7590 = vpop.f32.mrb[0].mxu0
      %v7591 = vadd.f32 0.0, %v7590
      %v7592 = vpop.f32.mrb[0].mxu0
      %v7593 = vadd.f32 0.0, %v7592
      %7594 = vdwg.mxu0
      %v7597 = vcombine.low %v7591, %v7593
      %v7599 = vunpack.c.l.s4 1966171168
      %v7600 = vunpack.c.0.s8 %v7599
      %v7601 = vlaneseq
      %v7602 = vshrl.u32 %v7601, 7
      %v7603 = vsub.s32 %v7600, %v7602
      %v7604 = vrot.slane %v7597, %v7603
      %v7606 = vunpack.c.l.s4 1966171168
      %v7607 = vunpack.c.0.s8 %v7606
      %v7608 = vlaneseq
      %v7609 = vshrl.u32 %v7608, 7
      %v7610 = vsub.s32 %v7607, %v7609
      %v7611 = vrot.slane %v7604, %v7610
      %v7613 = vadd.f32 %v7469, %v7611
      %s7614 = scalar_lea.vmem [#allocation3], 49
      %v7615 = vld [vmem:[%s7614] ss:$8 sm:$0x3]
      %v7616 = vld [vmem:[%s3 + $0x1f40] sm:$0xff]
      %v7617 = vld [vmem:[%s3 + $0x1f48] sm:$0xff]
      %v7618 = vld [vmem:[%s3 + $0x1f50] sm:$0xff]
      %v7619 = vld [vmem:[%s3 + $0x1f58] sm:$0xff]
      %v7620 = vld [vmem:[%s3 + $0x1f60] sm:$0xff]
      %v7621 = vld [vmem:[%s3 + $0x1f68] sm:$0xff]
      %v7622 = vld [vmem:[%s3 + $0x1f70] sm:$0xff]
      %v7623 = vld [vmem:[%s3 + $0x1f78] sm:$0xff]
      %v7624 = vld [vmem:[%s3 + $0x1f80] sm:$0xff]
      %v7625 = vld [vmem:[%s3 + $0x1f88] sm:$0xff]
      %v7626 = vld [vmem:[%s3 + $0x1f90] sm:$0xff]
      %v7627 = vld [vmem:[%s3 + $0x1f98] sm:$0xff]
      %v7628 = vld [vmem:[%s3 + $0x1fa0] sm:$0xff]
      %v7629 = vld [vmem:[%s3 + $0x1fa8] sm:$0xff]
      %v7630 = vld [vmem:[%s3 + $0x1fb0] sm:$0xff]
      %v7631 = vld [vmem:[%s3 + $0x1fb8] sm:$0xff]
      %v7632 = vld [vmem:[%s3 + $0x1fc0] sm:$0xff]
      %v7633 = vld [vmem:[%s3 + $0x1fc8] sm:$0xff]
      %v7634 = vld [vmem:[%s3 + $0x1fd0] sm:$0xff]
      %v7635 = vld [vmem:[%s3 + $0x1fd8] sm:$0xff]
      %v7636 = vld [vmem:[%s3 + $0x1fe0] sm:$0xff]
      %v7637 = vld [vmem:[%s3 + $0x1fe8] sm:$0xff]
      %v7638 = vld [vmem:[%s3 + $0x1ff0] sm:$0xff]
      %v7639 = vld [vmem:[%s3 + $0x1ff8] sm:$0xff]
      %v7640 = vld [vmem:[%s3 + $0x2000] sm:$0xff]
      %v7641 = vld [vmem:[%s3 + $0x2008] sm:$0xff]
      %v7642 = vld [vmem:[%s3 + $0x2010] sm:$0xff]
      %v7643 = vld [vmem:[%s3 + $0x2018] sm:$0xff]
      %v7644 = vld [vmem:[%s3 + $0x2020] sm:$0xff]
      %v7645 = vld [vmem:[%s3 + $0x2028] sm:$0xff]
      %v7646 = vld [vmem:[%s3 + $0x2030] sm:$0xff]
      %v7647 = vld [vmem:[%s3 + $0x2038] sm:$0xff]
      %v7648 = vld [vmem:[%s3 + $0x2040] sm:$0xff]
      %v7649 = vld [vmem:[%s3 + $0x2048] sm:$0xff]
      %v7650 = vld [vmem:[%s3 + $0x2050] sm:$0xff]
      %v7651 = vld [vmem:[%s3 + $0x2058] sm:$0xff]
      %v7652 = vld [vmem:[%s3 + $0x2060] sm:$0xff]
      %v7653 = vld [vmem:[%s3 + $0x2068] sm:$0xff]
      %v7654 = vld [vmem:[%s3 + $0x2070] sm:$0xff]
      %v7655 = vld [vmem:[%s3 + $0x2078] sm:$0xff]
      %v7657 = vlaneseq
      %v7658 = vshrl.u32 %v7657, 7
      %v7659 = vsub.s32 0, %v7658
      %v7660 = vrot.slane %v7615, %v7659
      %v7661 = vlaneseq
      %v7662 = vshrl.u32 %v7661, 7
      %v7663 = vsub.s32 1, %v7662
      %v7664 = vrot.slane %v7615, %v7663
      %v7666 = vsel %vm226, %v7664, 0
      %7668 = vmatprep.subr.mxu0 %v7617
      %7669 = vmatpush1.msra.mxu0 %v7616
      %7670 = vmatprep.subr.mxu0 %v7619
      %7671 = vmatpush1.msra.mxu0 %v7618
      %7672 = vmatprep.subr.mxu0 %v7621
      %7673 = vmatpush1.msra.mxu0 %v7620
      %7674 = vmatprep.subr.mxu0 %v7623
      %7675 = vmatpush1.msra.mxu0 %v7622
      %7676 = vmatprep.subr.mxu0 %v7625
      %7677 = vmatpush1.msra.mxu0 %v7624
      %7678 = vmatprep.subr.mxu0 %v7627
      %7679 = vmatpush1.msra.mxu0 %v7626
      %7680 = vmatprep.subr.mxu0 %v7629
      %7681 = vmatpush1.msra.mxu0 %v7628
      %7682 = vmatprep.subr.mxu0 %v7631
      %7683 = vmatpush1.msra.mxu0 %v7630
      %7684 = vmatprep.subr.mxu0 %v7633
      %7685 = vmatpush1.msra.mxu0 %v7632
      %7686 = vmatprep.subr.mxu0 %v7635
      %7687 = vmatpush1.msra.mxu0 %v7634
      %7688 = vmatprep.subr.mxu0 %v7637
      %7689 = vmatpush1.msra.mxu0 %v7636
      %7690 = vmatprep.subr.mxu0 %v7639
      %7691 = vmatpush1.msra.mxu0 %v7638
      %7692 = vmatprep.subr.mxu0 %v7641
      %7693 = vmatpush1.msra.mxu0 %v7640
      %7694 = vmatprep.subr.mxu0 %v7643
      %7695 = vmatpush1.msra.mxu0 %v7642
      %7696 = vmatprep.subr.mxu0 %v7645
      %7697 = vmatpush1.msra.mxu0 %v7644
      %7698 = vmatprep.subr.mxu0 %v7647
      %7699 = vmatpush1.msra.mxu0 %v7646
      %7700 = vmatprep.subr.mxu0 %v7649
      %7701 = vmatpush1.msra.mxu0 %v7648
      %7702 = vmatprep.subr.mxu0 %v7651
      %7703 = vmatpush1.msra.mxu0 %v7650
      %7704 = vmatprep.subr.mxu0 %v7653
      %7705 = vmatpush1.msra.mxu0 %v7652
      %7706 = vmatprep.subr.mxu0 %v7655
      %7707 = vmatpush1.msra.mxu0 %v7654
      %7708 = vmatprep.subr.mxu0 0.0
      %7709 = vmatpush1.msra.mxu0 0.0
      %7710 = vmatprep.subr.mxu0 0.0
      %7711 = vmatpush1.msra.mxu0 0.0
      %7712 = vmatprep.subr.mxu0 0.0
      %7713 = vmatpush1.msra.mxu0 0.0
      %7714 = vmatprep.subr.mxu0 0.0
      %7715 = vmatpush1.msra.mxu0 0.0
      %7716 = vmatprep.subr.mxu0 0.0
      %7717 = vmatpush1.msra.mxu0 0.0
      %7718 = vmatprep.subr.mxu0 0.0
      %7719 = vmatpush1.msra.mxu0 0.0
      %7720 = vmatprep.subr.mxu0 0.0
      %7721 = vmatpush1.msra.mxu0 0.0
      %7722 = vmatprep.subr.mxu0 0.0
      %7723 = vmatpush1.msra.mxu0 0.0
      %7724 = vmatprep.subr.mxu0 0.0
      %7725 = vmatpush1.msra.mxu0 0.0
      %7726 = vmatprep.subr.mxu0 0.0
      %7727 = vmatpush1.msra.mxu0 0.0
      %7728 = vmatprep.subr.mxu0 0.0
      %7729 = vmatpush1.msra.mxu0 0.0
      %7730 = vmatprep.subr.mxu0 0.0
      %7731 = vmatpush1.msra.mxu0 0.0
      %7732 = vmatprep.mubr.f32.mxu0 %v7666
      %7733 = vmatmul.mubr.f32.gmra.mrb[0].mxu0 %v7660
      %v7734 = vpop.f32.mrb[0].mxu0
      %v7735 = vadd.f32 0.0, %v7734
      %v7736 = vpop.f32.mrb[0].mxu0
      %v7737 = vadd.f32 0.0, %v7736
      %7738 = vdwg.mxu0
      %v7741 = vcombine.low %v7735, %v7737
      %v7743 = vunpack.c.l.s4 1966171168
      %v7744 = vunpack.c.0.s8 %v7743
      %v7745 = vlaneseq
      %v7746 = vshrl.u32 %v7745, 7
      %v7747 = vsub.s32 %v7744, %v7746
      %v7748 = vrot.slane %v7741, %v7747
      %v7750 = vunpack.c.l.s4 1966171168
      %v7751 = vunpack.c.0.s8 %v7750
      %v7752 = vlaneseq
      %v7753 = vshrl.u32 %v7752, 7
      %v7754 = vsub.s32 %v7751, %v7753
      %v7755 = vrot.slane %v7748, %v7754
      %v7757 = vadd.f32 %v7613, %v7755
      %s7758 = scalar_lea.vmem [#allocation3], 50
      %v7759 = vld [vmem:[%s7758] ss:$8 sm:$0x3]
      %v7760 = vld [vmem:[%s3 + $0x2080] sm:$0xff]
      %v7761 = vld [vmem:[%s3 + $0x2088] sm:$0xff]
      %v7762 = vld [vmem:[%s3 + $0x2090] sm:$0xff]
      %v7763 = vld [vmem:[%s3 + $0x2098] sm:$0xff]
      %v7764 = vld [vmem:[%s3 + $0x20a0] sm:$0xff]
      %v7765 = vld [vmem:[%s3 + $0x20a8] sm:$0xff]
      %v7766 = vld [vmem:[%s3 + $0x20b0] sm:$0xff]
      %v7767 = vld [vmem:[%s3 + $0x20b8] sm:$0xff]
      %v7768 = vld [vmem:[%s3 + $0x20c0] sm:$0xff]
      %v7769 = vld [vmem:[%s3 + $0x20c8] sm:$0xff]
      %v7770 = vld [vmem:[%s3 + $0x20d0] sm:$0xff]
      %v7771 = vld [vmem:[%s3 + $0x20d8] sm:$0xff]
      %v7772 = vld [vmem:[%s3 + $0x20e0] sm:$0xff]
      %v7773 = vld [vmem:[%s3 + $0x20e8] sm:$0xff]
      %v7774 = vld [vmem:[%s3 + $0x20f0] sm:$0xff]
      %v7775 = vld [vmem:[%s3 + $0x20f8] sm:$0xff]
      %v7776 = vld [vmem:[%s3 + $0x2100] sm:$0xff]
      %v7777 = vld [vmem:[%s3 + $0x2108] sm:$0xff]
      %v7778 = vld [vmem:[%s3 + $0x2110] sm:$0xff]
      %v7779 = vld [vmem:[%s3 + $0x2118] sm:$0xff]
      %v7780 = vld [vmem:[%s3 + $0x2120] sm:$0xff]
      %v7781 = vld [vmem:[%s3 + $0x2128] sm:$0xff]
      %v7782 = vld [vmem:[%s3 + $0x2130] sm:$0xff]
      %v7783 = vld [vmem:[%s3 + $0x2138] sm:$0xff]
      %v7784 = vld [vmem:[%s3 + $0x2140] sm:$0xff]
      %v7785 = vld [vmem:[%s3 + $0x2148] sm:$0xff]
      %v7786 = vld [vmem:[%s3 + $0x2150] sm:$0xff]
      %v7787 = vld [vmem:[%s3 + $0x2158] sm:$0xff]
      %v7788 = vld [vmem:[%s3 + $0x2160] sm:$0xff]
      %v7789 = vld [vmem:[%s3 + $0x2168] sm:$0xff]
      %v7790 = vld [vmem:[%s3 + $0x2170] sm:$0xff]
      %v7791 = vld [vmem:[%s3 + $0x2178] sm:$0xff]
      %v7792 = vld [vmem:[%s3 + $0x2180] sm:$0xff]
      %v7793 = vld [vmem:[%s3 + $0x2188] sm:$0xff]
      %v7794 = vld [vmem:[%s3 + $0x2190] sm:$0xff]
      %v7795 = vld [vmem:[%s3 + $0x2198] sm:$0xff]
      %v7796 = vld [vmem:[%s3 + $0x21a0] sm:$0xff]
      %v7797 = vld [vmem:[%s3 + $0x21a8] sm:$0xff]
      %v7798 = vld [vmem:[%s3 + $0x21b0] sm:$0xff]
      %v7799 = vld [vmem:[%s3 + $0x21b8] sm:$0xff]
      %v7801 = vlaneseq
      %v7802 = vshrl.u32 %v7801, 7
      %v7803 = vsub.s32 0, %v7802
      %v7804 = vrot.slane %v7759, %v7803
      %v7805 = vlaneseq
      %v7806 = vshrl.u32 %v7805, 7
      %v7807 = vsub.s32 1, %v7806
      %v7808 = vrot.slane %v7759, %v7807
      %v7810 = vsel %vm226, %v7808, 0
      %7812 = vmatprep.subr.mxu0 %v7761
      %7813 = vmatpush1.msra.mxu0 %v7760
      %7814 = vmatprep.subr.mxu0 %v7763
      %7815 = vmatpush1.msra.mxu0 %v7762
      %7816 = vmatprep.subr.mxu0 %v7765
      %7817 = vmatpush1.msra.mxu0 %v7764
      %7818 = vmatprep.subr.mxu0 %v7767
      %7819 = vmatpush1.msra.mxu0 %v7766
      %7820 = vmatprep.subr.mxu0 %v7769
      %7821 = vmatpush1.msra.mxu0 %v7768
      %7822 = vmatprep.subr.mxu0 %v7771
      %7823 = vmatpush1.msra.mxu0 %v7770
      %7824 = vmatprep.subr.mxu0 %v7773
      %7825 = vmatpush1.msra.mxu0 %v7772
      %7826 = vmatprep.subr.mxu0 %v7775
      %7827 = vmatpush1.msra.mxu0 %v7774
      %7828 = vmatprep.subr.mxu0 %v7777
      %7829 = vmatpush1.msra.mxu0 %v7776
      %7830 = vmatprep.subr.mxu0 %v7779
      %7831 = vmatpush1.msra.mxu0 %v7778
      %7832 = vmatprep.subr.mxu0 %v7781
      %7833 = vmatpush1.msra.mxu0 %v7780
      %7834 = vmatprep.subr.mxu0 %v7783
      %7835 = vmatpush1.msra.mxu0 %v7782
      %7836 = vmatprep.subr.mxu0 %v7785
      %7837 = vmatpush1.msra.mxu0 %v7784
      %7838 = vmatprep.subr.mxu0 %v7787
      %7839 = vmatpush1.msra.mxu0 %v7786
      %7840 = vmatprep.subr.mxu0 %v7789
      %7841 = vmatpush1.msra.mxu0 %v7788
      %7842 = vmatprep.subr.mxu0 %v7791
      %7843 = vmatpush1.msra.mxu0 %v7790
      %7844 = vmatprep.subr.mxu0 %v7793
      %7845 = vmatpush1.msra.mxu0 %v7792
      %7846 = vmatprep.subr.mxu0 %v7795
      %7847 = vmatpush1.msra.mxu0 %v7794
      %7848 = vmatprep.subr.mxu0 %v7797
      %7849 = vmatpush1.msra.mxu0 %v7796
      %7850 = vmatprep.subr.mxu0 %v7799
      %7851 = vmatpush1.msra.mxu0 %v7798
      %7852 = vmatprep.subr.mxu0 0.0
      %7853 = vmatpush1.msra.mxu0 0.0
      %7854 = vmatprep.subr.mxu0 0.0
      %7855 = vmatpush1.msra.mxu0 0.0
      %7856 = vmatprep.subr.mxu0 0.0
      %7857 = vmatpush1.msra.mxu0 0.0
      %7858 = vmatprep.subr.mxu0 0.0
      %7859 = vmatpush1.msra.mxu0 0.0
      %7860 = vmatprep.subr.mxu0 0.0
      %7861 = vmatpush1.msra.mxu0 0.0
      %7862 = vmatprep.subr.mxu0 0.0
      %7863 = vmatpush1.msra.mxu0 0.0
      %7864 = vmatprep.subr.mxu0 0.0
      %7865 = vmatpush1.msra.mxu0 0.0
      %7866 = vmatprep.subr.mxu0 0.0
      %7867 = vmatpush1.msra.mxu0 0.0
      %7868 = vmatprep.subr.mxu0 0.0
      %7869 = vmatpush1.msra.mxu0 0.0
      %7870 = vmatprep.subr.mxu0 0.0
      %7871 = vmatpush1.msra.mxu0 0.0
      %7872 = vmatprep.subr.mxu0 0.0
      %7873 = vmatpush1.msra.mxu0 0.0
      %7874 = vmatprep.subr.mxu0 0.0
      %7875 = vmatpush1.msra.mxu0 0.0
      %7876 = vmatprep.mubr.f32.mxu0 %v7810
      %7877 = vmatmul.mubr.f32.gmra.mrb[0].mxu0 %v7804
      %v7878 = vpop.f32.mrb[0].mxu0
      %v7879 = vadd.f32 0.0, %v7878
      %v7880 = vpop.f32.mrb[0].mxu0
      %v7881 = vadd.f32 0.0, %v7880
      %7882 = vdwg.mxu0
      %v7885 = vcombine.low %v7879, %v7881
      %v7887 = vunpack.c.l.s4 1966171168
      %v7888 = vunpack.c.0.s8 %v7887
      %v7889 = vlaneseq
      %v7890 = vshrl.u32 %v7889, 7
      %v7891 = vsub.s32 %v7888, %v7890
      %v7892 = vrot.slane %v7885, %v7891
      %v7894 = vunpack.c.l.s4 1966171168
      %v7895 = vunpack.c.0.s8 %v7894
      %v7896 = vlaneseq
      %v7897 = vshrl.u32 %v7896, 7
      %v7898 = vsub.s32 %v7895, %v7897
      %v7899 = vrot.slane %v7892, %v7898
      %v7901 = vadd.f32 %v7757, %v7899
      %s7902 = scalar_lea.vmem [#allocation3], 51
      %v7903 = vld [vmem:[%s7902] ss:$8 sm:$0x3]
      %v7904 = vld [vmem:[%s3 + $0x21c0] sm:$0xff]
      %v7905 = vld [vmem:[%s3 + $0x21c8] sm:$0xff]
      %v7906 = vld [vmem:[%s3 + $0x21d0] sm:$0xff]
      %v7907 = vld [vmem:[%s3 + $0x21d8] sm:$0xff]
      %v7908 = vld [vmem:[%s3 + $0x21e0] sm:$0xff]
      %v7909 = vld [vmem:[%s3 + $0x21e8] sm:$0xff]
      %v7910 = vld [vmem:[%s3 + $0x21f0] sm:$0xff]
      %v7911 = vld [vmem:[%s3 + $0x21f8] sm:$0xff]
      %v7912 = vld [vmem:[%s3 + $0x2200] sm:$0xff]
      %v7913 = vld [vmem:[%s3 + $0x2208] sm:$0xff]
      %v7914 = vld [vmem:[%s3 + $0x2210] sm:$0xff]
      %v7915 = vld [vmem:[%s3 + $0x2218] sm:$0xff]
      %v7916 = vld [vmem:[%s3 + $0x2220] sm:$0xff]
      %v7917 = vld [vmem:[%s3 + $0x2228] sm:$0xff]
      %v7918 = vld [vmem:[%s3 + $0x2230] sm:$0xff]
      %v7919 = vld [vmem:[%s3 + $0x2238] sm:$0xff]
      %v7920 = vld [vmem:[%s3 + $0x2240] sm:$0xff]
      %v7921 = vld [vmem:[%s3 + $0x2248] sm:$0xff]
      %v7922 = vld [vmem:[%s3 + $0x2250] sm:$0xff]
      %v7923 = vld [vmem:[%s3 + $0x2258] sm:$0xff]
      %v7924 = vld [vmem:[%s3 + $0x2260] sm:$0xff]
      %v7925 = vld [vmem:[%s3 + $0x2268] sm:$0xff]
      %v7926 = vld [vmem:[%s3 + $0x2270] sm:$0xff]
      %v7927 = vld [vmem:[%s3 + $0x2278] sm:$0xff]
      %v7928 = vld [vmem:[%s3 + $0x2280] sm:$0xff]
      %v7929 = vld [vmem:[%s3 + $0x2288] sm:$0xff]
      %v7930 = vld [vmem:[%s3 + $0x2290] sm:$0xff]
      %v7931 = vld [vmem:[%s3 + $0x2298] sm:$0xff]
      %v7932 = vld [vmem:[%s3 + $0x22a0] sm:$0xff]
      %v7933 = vld [vmem:[%s3 + $0x22a8] sm:$0xff]
      %v7934 = vld [vmem:[%s3 + $0x22b0] sm:$0xff]
      %v7935 = vld [vmem:[%s3 + $0x22b8] sm:$0xff]
      %v7936 = vld [vmem:[%s3 + $0x22c0] sm:$0xff]
      %v7937 = vld [vmem:[%s3 + $0x22c8] sm:$0xff]
      %v7938 = vld [vmem:[%s3 + $0x22d0] sm:$0xff]
      %v7939 = vld [vmem:[%s3 + $0x22d8] sm:$0xff]
      %v7940 = vld [vmem:[%s3 + $0x22e0] sm:$0xff]
      %v7941 = vld [vmem:[%s3 + $0x22e8] sm:$0xff]
      %v7942 = vld [vmem:[%s3 + $0x22f0] sm:$0xff]
      %v7943 = vld [vmem:[%s3 + $0x22f8] sm:$0xff]
      %v7945 = vlaneseq
      %v7946 = vshrl.u32 %v7945, 7
      %v7947 = vsub.s32 0, %v7946
      %v7948 = vrot.slane %v7903, %v7947
      %v7949 = vlaneseq
      %v7950 = vshrl.u32 %v7949, 7
      %v7951 = vsub.s32 1, %v7950
      %v7952 = vrot.slane %v7903, %v7951
      %v7954 = vsel %vm226, %v7952, 0
      %7956 = vmatprep.subr.mxu0 %v7905
      %7957 = vmatpush1.msra.mxu0 %v7904
      %7958 = vmatprep.subr.mxu0 %v7907
      %7959 = vmatpush1.msra.mxu0 %v7906
      %7960 = vmatprep.subr.mxu0 %v7909
      %7961 = vmatpush1.msra.mxu0 %v7908
      %7962 = vmatprep.subr.mxu0 %v7911
      %7963 = vmatpush1.msra.mxu0 %v7910
      %7964 = vmatprep.subr.mxu0 %v7913
      %7965 = vmatpush1.msra.mxu0 %v7912
      %7966 = vmatprep.subr.mxu0 %v7915
      %7967 = vmatpush1.msra.mxu0 %v7914
      %7968 = vmatprep.subr.mxu0 %v7917
      %7969 = vmatpush1.msra.mxu0 %v7916
      %7970 = vmatprep.subr.mxu0 %v7919
      %7971 = vmatpush1.msra.mxu0 %v7918
      %7972 = vmatprep.subr.mxu0 %v7921
      %7973 = vmatpush1.msra.mxu0 %v7920
      %7974 = vmatprep.subr.mxu0 %v7923
      %7975 = vmatpush1.msra.mxu0 %v7922
      %7976 = vmatprep.subr.mxu0 %v7925
      %7977 = vmatpush1.msra.mxu0 %v7924
      %7978 = vmatprep.subr.mxu0 %v7927
      %7979 = vmatpush1.msra.mxu0 %v7926
      %7980 = vmatprep.subr.mxu0 %v7929
      %7981 = vmatpush1.msra.mxu0 %v7928
      %7982 = vmatprep.subr.mxu0 %v7931
      %7983 = vmatpush1.msra.mxu0 %v7930
      %7984 = vmatprep.subr.mxu0 %v7933
      %7985 = vmatpush1.msra.mxu0 %v7932
      %7986 = vmatprep.subr.mxu0 %v7935
      %7987 = vmatpush1.msra.mxu0 %v7934
      %7988 = vmatprep.subr.mxu0 %v7937
      %7989 = vmatpush1.msra.mxu0 %v7936
      %7990 = vmatprep.subr.mxu0 %v7939
      %7991 = vmatpush1.msra.mxu0 %v7938
      %7992 = vmatprep.subr.mxu0 %v7941
      %7993 = vmatpush1.msra.mxu0 %v7940
      %7994 = vmatprep.subr.mxu0 %v7943
      %7995 = vmatpush1.msra.mxu0 %v7942
      %7996 = vmatprep.subr.mxu0 0.0
      %7997 = vmatpush1.msra.mxu0 0.0
      %7998 = vmatprep.subr.mxu0 0.0
      %7999 = vmatpush1.msra.mxu0 0.0
      %8000 = vmatprep.subr.mxu0 0.0
      %8001 = vmatpush1.msra.mxu0 0.0
      %8002 = vmatprep.subr.mxu0 0.0
      %8003 = vmatpush1.msra.mxu0 0.0
      %8004 = vmatprep.subr.mxu0 0.0
      %8005 = vmatpush1.msra.mxu0 0.0
      %8006 = vmatprep.subr.mxu0 0.0
      %8007 = vmatpush1.msra.mxu0 0.0
      %8008 = vmatprep.subr.mxu0 0.0
      %8009 = vmatpush1.msra.mxu0 0.0
      %8010 = vmatprep.subr.mxu0 0.0
      %8011 = vmatpush1.msra.mxu0 0.0
      %8012 = vmatprep.subr.mxu0 0.0
      %8013 = vmatpush1.msra.mxu0 0.0
      %8014 = vmatprep.subr.mxu0 0.0
      %8015 = vmatpush1.msra.mxu0 0.0
      %8016 = vmatprep.subr.mxu0 0.0
      %8017 = vmatpush1.msra.mxu0 0.0
      %8018 = vmatprep.subr.mxu0 0.0
      %8019 = vmatpush1.msra.mxu0 0.0
      %8020 = vmatprep.mubr.f32.mxu0 %v7954
      %8021 = vmatmul.mubr.f32.gmra.mrb[0].mxu0 %v7948
      %v8022 = vpop.f32.mrb[0].mxu0
      %v8023 = vadd.f32 0.0, %v8022
      %v8024 = vpop.f32.mrb[0].mxu0
      %v8025 = vadd.f32 0.0, %v8024
      %8026 = vdwg.mxu0
      %v8029 = vcombine.low %v8023, %v8025
      %v8031 = vunpack.c.l.s4 1966171168
      %v8032 = vunpack.c.0.s8 %v8031
      %v8033 = vlaneseq
      %v8034 = vshrl.u32 %v8033, 7
      %v8035 = vsub.s32 %v8032, %v8034
      %v8036 = vrot.slane %v8029, %v8035
      %v8038 = vunpack.c.l.s4 1966171168
      %v8039 = vunpack.c.0.s8 %v8038
      %v8040 = vlaneseq
      %v8041 = vshrl.u32 %v8040, 7
      %v8042 = vsub.s32 %v8039, %v8041
      %v8043 = vrot.slane %v8036, %v8042
      %v8045 = vadd.f32 %v7901, %v8043
      %s8046 = scalar_lea.vmem [#allocation3], 52
      %v8047 = vld [vmem:[%s8046] ss:$8 sm:$0x3]
      %v8048 = vld [vmem:[%s3 + $0x2300] sm:$0xff]
      %v8049 = vld [vmem:[%s3 + $0x2308] sm:$0xff]
      %v8050 = vld [vmem:[%s3 + $0x2310] sm:$0xff]
      %v8051 = vld [vmem:[%s3 + $0x2318] sm:$0xff]
      %v8052 = vld [vmem:[%s3 + $0x2320] sm:$0xff]
      %v8053 = vld [vmem:[%s3 + $0x2328] sm:$0xff]
      %v8054 = vld [vmem:[%s3 + $0x2330] sm:$0xff]
      %v8055 = vld [vmem:[%s3 + $0x2338] sm:$0xff]
      %v8056 = vld [vmem:[%s3 + $0x2340] sm:$0xff]
      %v8057 = vld [vmem:[%s3 + $0x2348] sm:$0xff]
      %v8058 = vld [vmem:[%s3 + $0x2350] sm:$0xff]
      %v8059 = vld [vmem:[%s3 + $0x2358] sm:$0xff]
      %v8060 = vld [vmem:[%s3 + $0x2360] sm:$0xff]
      %v8061 = vld [vmem:[%s3 + $0x2368] sm:$0xff]
      %v8062 = vld [vmem:[%s3 + $0x2370] sm:$0xff]
      %v8063 = vld [vmem:[%s3 + $0x2378] sm:$0xff]
      %v8064 = vld [vmem:[%s3 + $0x2380] sm:$0xff]
      %v8065 = vld [vmem:[%s3 + $0x2388] sm:$0xff]
      %v8066 = vld [vmem:[%s3 + $0x2390] sm:$0xff]
      %v8067 = vld [vmem:[%s3 + $0x2398] sm:$0xff]
      %v8068 = vld [vmem:[%s3 + $0x23a0] sm:$0xff]
      %v8069 = vld [vmem:[%s3 + $0x23a8] sm:$0xff]
      %v8070 = vld [vmem:[%s3 + $0x23b0] sm:$0xff]
      %v8071 = vld [vmem:[%s3 + $0x23b8] sm:$0xff]
      %v8072 = vld [vmem:[%s3 + $0x23c0] sm:$0xff]
      %v8073 = vld [vmem:[%s3 + $0x23c8] sm:$0xff]
      %v8074 = vld [vmem:[%s3 + $0x23d0] sm:$0xff]
      %v8075 = vld [vmem:[%s3 + $0x23d8] sm:$0xff]
      %v8076 = vld [vmem:[%s3 + $0x23e0] sm:$0xff]
      %v8077 = vld [vmem:[%s3 + $0x23e8] sm:$0xff]
      %v8078 = vld [vmem:[%s3 + $0x23f0] sm:$0xff]
      %v8079 = vld [vmem:[%s3 + $0x23f8] sm:$0xff]
      %v8080 = vld [vmem:[%s3 + $0x2400] sm:$0xff]
      %v8081 = vld [vmem:[%s3 + $0x2408] sm:$0xff]
      %v8082 = vld [vmem:[%s3 + $0x2410] sm:$0xff]
      %v8083 = vld [vmem:[%s3 + $0x2418] sm:$0xff]
      %v8084 = vld [vmem:[%s3 + $0x2420] sm:$0xff]
      %v8085 = vld [vmem:[%s3 + $0x2428] sm:$0xff]
      %v8086 = vld [vmem:[%s3 + $0x2430] sm:$0xff]
      %v8087 = vld [vmem:[%s3 + $0x2438] sm:$0xff]
      %v8089 = vlaneseq
      %v8090 = vshrl.u32 %v8089, 7
      %v8091 = vsub.s32 0, %v8090
      %v8092 = vrot.slane %v8047, %v8091
      %v8093 = vlaneseq
      %v8094 = vshrl.u32 %v8093, 7
      %v8095 = vsub.s32 1, %v8094
      %v8096 = vrot.slane %v8047, %v8095
      %v8098 = vsel %vm226, %v8096, 0
      %8100 = vmatprep.subr.mxu0 %v8049
      %8101 = vmatpush1.msra.mxu0 %v8048
      %8102 = vmatprep.subr.mxu0 %v8051
      %8103 = vmatpush1.msra.mxu0 %v8050
      %8104 = vmatprep.subr.mxu0 %v8053
      %8105 = vmatpush1.msra.mxu0 %v8052
      %8106 = vmatprep.subr.mxu0 %v8055
      %8107 = vmatpush1.msra.mxu0 %v8054
      %8108 = vmatprep.subr.mxu0 %v8057
      %8109 = vmatpush1.msra.mxu0 %v8056
      %8110 = vmatprep.subr.mxu0 %v8059
      %8111 = vmatpush1.msra.mxu0 %v8058
      %8112 = vmatprep.subr.mxu0 %v8061
      %8113 = vmatpush1.msra.mxu0 %v8060
      %8114 = vmatprep.subr.mxu0 %v8063
      %8115 = vmatpush1.msra.mxu0 %v8062
      %8116 = vmatprep.subr.mxu0 %v8065
      %8117 = vmatpush1.msra.mxu0 %v8064
      %8118 = vmatprep.subr.mxu0 %v8067
      %8119 = vmatpush1.msra.mxu0 %v8066
      %8120 = vmatprep.subr.mxu0 %v8069
      %8121 = vmatpush1.msra.mxu0 %v8068
      %8122 = vmatprep.subr.mxu0 %v8071
      %8123 = vmatpush1.msra.mxu0 %v8070
      %8124 = vmatprep.subr.mxu0 %v8073
      %8125 = vmatpush1.msra.mxu0 %v8072
      %8126 = vmatprep.subr.mxu0 %v8075
      %8127 = vmatpush1.msra.mxu0 %v8074
      %8128 = vmatprep.subr.mxu0 %v8077
      %8129 = vmatpush1.msra.mxu0 %v8076
      %8130 = vmatprep.subr.mxu0 %v8079
      %8131 = vmatpush1.msra.mxu0 %v8078
      %8132 = vmatprep.subr.mxu0 %v8081
      %8133 = vmatpush1.msra.mxu0 %v8080
      %8134 = vmatprep.subr.mxu0 %v8083
      %8135 = vmatpush1.msra.mxu0 %v8082
      %8136 = vmatprep.subr.mxu0 %v8085
      %8137 = vmatpush1.msra.mxu0 %v8084
      %8138 = vmatprep.subr.mxu0 %v8087
      %8139 = vmatpush1.msra.mxu0 %v8086
      %8140 = vmatprep.subr.mxu0 0.0
      %8141 = vmatpush1.msra.mxu0 0.0
      %8142 = vmatprep.subr.mxu0 0.0
      %8143 = vmatpush1.msra.mxu0 0.0
      %8144 = vmatprep.subr.mxu0 0.0
      %8145 = vmatpush1.msra.mxu0 0.0
      %8146 = vmatprep.subr.mxu0 0.0
      %8147 = vmatpush1.msra.mxu0 0.0
      %8148 = vmatprep.subr.mxu0 0.0
      %8149 = vmatpush1.msra.mxu0 0.0
      %8150 = vmatprep.subr.mxu0 0.0
      %8151 = vmatpush1.msra.mxu0 0.0
      %8152 = vmatprep.subr.mxu0 0.0
      %8153 = vmatpush1.msra.mxu0 0.0
      %8154 = vmatprep.subr.mxu0 0.0
      %8155 = vmatpush1.msra.mxu0 0.0
      %8156 = vmatprep.subr.mxu0 0.0
      %8157 = vmatpush1.msra.mxu0 0.0
      %8158 = vmatprep.subr.mxu0 0.0
      %8159 = vmatpush1.msra.mxu0 0.0
      %8160 = vmatprep.subr.mxu0 0.0
      %8161 = vmatpush1.msra.mxu0 0.0
      %8162 = vmatprep.subr.mxu0 0.0
      %8163 = vmatpush1.msra.mxu0 0.0
      %8164 = vmatprep.mubr.f32.mxu0 %v8098
      %8165 = vmatmul.mubr.f32.gmra.mrb[0].mxu0 %v8092
      %v8166 = vpop.f32.mrb[0].mxu0
      %v8167 = vadd.f32 0.0, %v8166
      %v8168 = vpop.f32.mrb[0].mxu0
      %v8169 = vadd.f32 0.0, %v8168
      %8170 = vdwg.mxu0
      %v8173 = vcombine.low %v8167, %v8169
      %v8175 = vunpack.c.l.s4 1966171168
      %v8176 = vunpack.c.0.s8 %v8175
      %v8177 = vlaneseq
      %v8178 = vshrl.u32 %v8177, 7
      %v8179 = vsub.s32 %v8176, %v8178
      %v8180 = vrot.slane %v8173, %v8179
      %v8182 = vunpack.c.l.s4 1966171168
      %v8183 = vunpack.c.0.s8 %v8182
      %v8184 = vlaneseq
      %v8185 = vshrl.u32 %v8184, 7
      %v8186 = vsub.s32 %v8183, %v8185
      %v8187 = vrot.slane %v8180, %v8186
      %v8189 = vadd.f32 %v8045, %v8187
      %s8190 = scalar_lea.vmem [#allocation3], 53
      %v8191 = vld [vmem:[%s8190] ss:$8 sm:$0x3]
      %v8192 = vld [vmem:[%s3 + $0x2440] sm:$0xff]
      %v8193 = vld [vmem:[%s3 + $0x2448] sm:$0xff]
      %v8194 = vld [vmem:[%s3 + $0x2450] sm:$0xff]
      %v8195 = vld [vmem:[%s3 + $0x2458] sm:$0xff]
      %v8196 = vld [vmem:[%s3 + $0x2460] sm:$0xff]
      %v8197 = vld [vmem:[%s3 + $0x2468] sm:$0xff]
      %v8198 = vld [vmem:[%s3 + $0x2470] sm:$0xff]
      %v8199 = vld [vmem:[%s3 + $0x2478] sm:$0xff]
      %v8200 = vld [vmem:[%s3 + $0x2480] sm:$0xff]
      %v8201 = vld [vmem:[%s3 + $0x2488] sm:$0xff]
      %v8202 = vld [vmem:[%s3 + $0x2490] sm:$0xff]
      %v8203 = vld [vmem:[%s3 + $0x2498] sm:$0xff]
      %v8204 = vld [vmem:[%s3 + $0x24a0] sm:$0xff]
      %v8205 = vld [vmem:[%s3 + $0x24a8] sm:$0xff]
      %v8206 = vld [vmem:[%s3 + $0x24b0] sm:$0xff]
      %v8207 = vld [vmem:[%s3 + $0x24b8] sm:$0xff]
      %v8208 = vld [vmem:[%s3 + $0x24c0] sm:$0xff]
      %v8209 = vld [vmem:[%s3 + $0x24c8] sm:$0xff]
      %v8210 = vld [vmem:[%s3 + $0x24d0] sm:$0xff]
      %v8211 = vld [vmem:[%s3 + $0x24d8] sm:$0xff]
      %v8212 = vld [vmem:[%s3 + $0x24e0] sm:$0xff]
      %v8213 = vld [vmem:[%s3 + $0x24e8] sm:$0xff]
      %v8214 = vld [vmem:[%s3 + $0x24f0] sm:$0xff]
      %v8215 = vld [vmem:[%s3 + $0x24f8] sm:$0xff]
      %v8216 = vld [vmem:[%s3 + $0x2500] sm:$0xff]
      %v8217 = vld [vmem:[%s3 + $0x2508] sm:$0xff]
      %v8218 = vld [vmem:[%s3 + $0x2510] sm:$0xff]
      %v8219 = vld [vmem:[%s3 + $0x2518] sm:$0xff]
      %v8220 = vld [vmem:[%s3 + $0x2520] sm:$0xff]
      %v8221 = vld [vmem:[%s3 + $0x2528] sm:$0xff]
      %v8222 = vld [vmem:[%s3 + $0x2530] sm:$0xff]
      %v8223 = vld [vmem:[%s3 + $0x2538] sm:$0xff]
      %v8224 = vld [vmem:[%s3 + $0x2540] sm:$0xff]
      %v8225 = vld [vmem:[%s3 + $0x2548] sm:$0xff]
      %v8226 = vld [vmem:[%s3 + $0x2550] sm:$0xff]
      %v8227 = vld [vmem:[%s3 + $0x2558] sm:$0xff]
      %v8228 = vld [vmem:[%s3 + $0x2560] sm:$0xff]
      %v8229 = vld [vmem:[%s3 + $0x2568] sm:$0xff]
      %v8230 = vld [vmem:[%s3 + $0x2570] sm:$0xff]
      %v8231 = vld [vmem:[%s3 + $0x2578] sm:$0xff]
      %v8233 = vlaneseq
      %v8234 = vshrl.u32 %v8233, 7
      %v8235 = vsub.s32 0, %v8234
      %v8236 = vrot.slane %v8191, %v8235
      %v8237 = vlaneseq
      %v8238 = vshrl.u32 %v8237, 7
      %v8239 = vsub.s32 1, %v8238
      %v8240 = vrot.slane %v8191, %v8239
      %v8242 = vsel %vm226, %v8240, 0
      %8244 = vmatprep.subr.mxu0 %v8193
      %8245 = vmatpush1.msra.mxu0 %v8192
      %8246 = vmatprep.subr.mxu0 %v8195
      %8247 = vmatpush1.msra.mxu0 %v8194
      %8248 = vmatprep.subr.mxu0 %v8197
      %8249 = vmatpush1.msra.mxu0 %v8196
      %8250 = vmatprep.subr.mxu0 %v8199
      %8251 = vmatpush1.msra.mxu0 %v8198
      %8252 = vmatprep.subr.mxu0 %v8201
      %8253 = vmatpush1.msra.mxu0 %v8200
      %8254 = vmatprep.subr.mxu0 %v8203
      %8255 = vmatpush1.msra.mxu0 %v8202
      %8256 = vmatprep.subr.mxu0 %v8205
      %8257 = vmatpush1.msra.mxu0 %v8204
      %8258 = vmatprep.subr.mxu0 %v8207
      %8259 = vmatpush1.msra.mxu0 %v8206
      %8260 = vmatprep.subr.mxu0 %v8209
      %8261 = vmatpush1.msra.mxu0 %v8208
      %8262 = vmatprep.subr.mxu0 %v8211
      %8263 = vmatpush1.msra.mxu0 %v8210
      %8264 = vmatprep.subr.mxu0 %v8213
      %8265 = vmatpush1.msra.mxu0 %v8212
      %8266 = vmatprep.subr.mxu0 %v8215
      %8267 = vmatpush1.msra.mxu0 %v8214
      %8268 = vmatprep.subr.mxu0 %v8217
      %8269 = vmatpush1.msra.mxu0 %v8216
      %8270 = vmatprep.subr.mxu0 %v8219
      %8271 = vmatpush1.msra.mxu0 %v8218
      %8272 = vmatprep.subr.mxu0 %v8221
      %8273 = vmatpush1.msra.mxu0 %v8220
      %8274 = vmatprep.subr.mxu0 %v8223
      %8275 = vmatpush1.msra.mxu0 %v8222
      %8276 = vmatprep.subr.mxu0 %v8225
      %8277 = vmatpush1.msra.mxu0 %v8224
      %8278 = vmatprep.subr.mxu0 %v8227
      %8279 = vmatpush1.msra.mxu0 %v8226
      %8280 = vmatprep.subr.mxu0 %v8229
      %8281 = vmatpush1.msra.mxu0 %v8228
      %8282 = vmatprep.subr.mxu0 %v8231
      %8283 = vmatpush1.msra.mxu0 %v8230
      %8284 = vmatprep.subr.mxu0 0.0
      %8285 = vmatpush1.msra.mxu0 0.0
      %8286 = vmatprep.subr.mxu0 0.0
      %8287 = vmatpush1.msra.mxu0 0.0
      %8288 = vmatprep.subr.mxu0 0.0
      %8289 = vmatpush1.msra.mxu0 0.0
      %8290 = vmatprep.subr.mxu0 0.0
      %8291 = vmatpush1.msra.mxu0 0.0
      %8292 = vmatprep.subr.mxu0 0.0
      %8293 = vmatpush1.msra.mxu0 0.0
      %8294 = vmatprep.subr.mxu0 0.0
      %8295 = vmatpush1.msra.mxu0 0.0
      %8296 = vmatprep.subr.mxu0 0.0
      %8297 = vmatpush1.msra.mxu0 0.0
      %8298 = vmatprep.subr.mxu0 0.0
      %8299 = vmatpush1.msra.mxu0 0.0
      %8300 = vmatprep.subr.mxu0 0.0
      %8301 = vmatpush1.msra.mxu0 0.0
      %8302 = vmatprep.subr.mxu0 0.0
      %8303 = vmatpush1.msra.mxu0 0.0
      %8304 = vmatprep.subr.mxu0 0.0
      %8305 = vmatpush1.msra.mxu0 0.0
      %8306 = vmatprep.subr.mxu0 0.0
      %8307 = vmatpush1.msra.mxu0 0.0
      %8308 = vmatprep.mubr.f32.mxu0 %v8242
      %8309 = vmatmul.mubr.f32.gmra.mrb[0].mxu0 %v8236
      %v8310 = vpop.f32.mrb[0].mxu0
      %v8311 = vadd.f32 0.0, %v8310
      %v8312 = vpop.f32.mrb[0].mxu0
      %v8313 = vadd.f32 0.0, %v8312
      %8314 = vdwg.mxu0
      %v8317 = vcombine.low %v8311, %v8313
      %v8319 = vunpack.c.l.s4 1966171168
      %v8320 = vunpack.c.0.s8 %v8319
      %v8321 = vlaneseq
      %v8322 = vshrl.u32 %v8321, 7
      %v8323 = vsub.s32 %v8320, %v8322
      %v8324 = vrot.slane %v8317, %v8323
      %v8326 = vunpack.c.l.s4 1966171168
      %v8327 = vunpack.c.0.s8 %v8326
      %v8328 = vlaneseq
      %v8329 = vshrl.u32 %v8328, 7
      %v8330 = vsub.s32 %v8327, %v8329
      %v8331 = vrot.slane %v8324, %v8330
      %v8333 = vadd.f32 %v8189, %v8331
      %s8334 = scalar_lea.vmem [#allocation3], 54
      %v8335 = vld [vmem:[%s8334] ss:$8 sm:$0x3]
      %v8336 = vld [vmem:[%s3 + $0x2580] sm:$0xff]
      %v8337 = vld [vmem:[%s3 + $0x2588] sm:$0xff]
      %v8338 = vld [vmem:[%s3 + $0x2590] sm:$0xff]
      %v8339 = vld [vmem:[%s3 + $0x2598] sm:$0xff]
      %v8340 = vld [vmem:[%s3 + $0x25a0] sm:$0xff]
      %v8341 = vld [vmem:[%s3 + $0x25a8] sm:$0xff]
      %v8342 = vld [vmem:[%s3 + $0x25b0] sm:$0xff]
      %v8343 = vld [vmem:[%s3 + $0x25b8] sm:$0xff]
      %v8344 = vld [vmem:[%s3 + $0x25c0] sm:$0xff]
      %v8345 = vld [vmem:[%s3 + $0x25c8] sm:$0xff]
      %v8346 = vld [vmem:[%s3 + $0x25d0] sm:$0xff]
      %v8347 = vld [vmem:[%s3 + $0x25d8] sm:$0xff]
      %v8348 = vld [vmem:[%s3 + $0x25e0] sm:$0xff]
      %v8349 = vld [vmem:[%s3 + $0x25e8] sm:$0xff]
      %v8350 = vld [vmem:[%s3 + $0x25f0] sm:$0xff]
      %v8351 = vld [vmem:[%s3 + $0x25f8] sm:$0xff]
      %v8352 = vld [vmem:[%s3 + $0x2600] sm:$0xff]
      %v8353 = vld [vmem:[%s3 + $0x2608] sm:$0xff]
      %v8354 = vld [vmem:[%s3 + $0x2610] sm:$0xff]
      %v8355 = vld [vmem:[%s3 + $0x2618] sm:$0xff]
      %v8356 = vld [vmem:[%s3 + $0x2620] sm:$0xff]
      %v8357 = vld [vmem:[%s3 + $0x2628] sm:$0xff]
      %v8358 = vld [vmem:[%s3 + $0x2630] sm:$0xff]
      %v8359 = vld [vmem:[%s3 + $0x2638] sm:$0xff]
      %v8360 = vld [vmem:[%s3 + $0x2640] sm:$0xff]
      %v8361 = vld [vmem:[%s3 + $0x2648] sm:$0xff]
      %v8362 = vld [vmem:[%s3 + $0x2650] sm:$0xff]
      %v8363 = vld [vmem:[%s3 + $0x2658] sm:$0xff]
      %v8364 = vld [vmem:[%s3 + $0x2660] sm:$0xff]
      %v8365 = vld [vmem:[%s3 + $0x2668] sm:$0xff]
      %v8366 = vld [vmem:[%s3 + $0x2670] sm:$0xff]
      %v8367 = vld [vmem:[%s3 + $0x2678] sm:$0xff]
      %v8368 = vld [vmem:[%s3 + $0x2680] sm:$0xff]
      %v8369 = vld [vmem:[%s3 + $0x2688] sm:$0xff]
      %v8370 = vld [vmem:[%s3 + $0x2690] sm:$0xff]
      %v8371 = vld [vmem:[%s3 + $0x2698] sm:$0xff]
      %v8372 = vld [vmem:[%s3 + $0x26a0] sm:$0xff]
      %v8373 = vld [vmem:[%s3 + $0x26a8] sm:$0xff]
      %v8374 = vld [vmem:[%s3 + $0x26b0] sm:$0xff]
      %v8375 = vld [vmem:[%s3 + $0x26b8] sm:$0xff]
      %v8377 = vlaneseq
      %v8378 = vshrl.u32 %v8377, 7
      %v8379 = vsub.s32 0, %v8378
      %v8380 = vrot.slane %v8335, %v8379
      %v8381 = vlaneseq
      %v8382 = vshrl.u32 %v8381, 7
      %v8383 = vsub.s32 1, %v8382
      %v8384 = vrot.slane %v8335, %v8383
      %v8386 = vsel %vm226, %v8384, 0
      %8388 = vmatprep.subr.mxu0 %v8337
      %8389 = vmatpush1.msra.mxu0 %v8336
      %8390 = vmatprep.subr.mxu0 %v8339
      %8391 = vmatpush1.msra.mxu0 %v8338
      %8392 = vmatprep.subr.mxu0 %v8341
      %8393 = vmatpush1.msra.mxu0 %v8340
      %8394 = vmatprep.subr.mxu0 %v8343
      %8395 = vmatpush1.msra.mxu0 %v8342
      %8396 = vmatprep.subr.mxu0 %v8345
      %8397 = vmatpush1.msra.mxu0 %v8344
      %8398 = vmatprep.subr.mxu0 %v8347
      %8399 = vmatpush1.msra.mxu0 %v8346
      %8400 = vmatprep.subr.mxu0 %v8349
      %8401 = vmatpush1.msra.mxu0 %v8348
      %8402 = vmatprep.subr.mxu0 %v8351
      %8403 = vmatpush1.msra.mxu0 %v8350
      %8404 = vmatprep.subr.mxu0 %v8353
      %8405 = vmatpush1.msra.mxu0 %v8352
      %8406 = vmatprep.subr.mxu0 %v8355
      %8407 = vmatpush1.msra.mxu0 %v8354
      %8408 = vmatprep.subr.mxu0 %v8357
      %8409 = vmatpush1.msra.mxu0 %v8356
      %8410 = vmatprep.subr.mxu0 %v8359
      %8411 = vmatpush1.msra.mxu0 %v8358
      %8412 = vmatprep.subr.mxu0 %v8361
      %8413 = vmatpush1.msra.mxu0 %v8360
      %8414 = vmatprep.subr.mxu0 %v8363
      %8415 = vmatpush1.msra.mxu0 %v8362
      %8416 = vmatprep.subr.mxu0 %v8365
      %8417 = vmatpush1.msra.mxu0 %v8364
      %8418 = vmatprep.subr.mxu0 %v8367
      %8419 = vmatpush1.msra.mxu0 %v8366
      %8420 = vmatprep.subr.mxu0 %v8369
      %8421 = vmatpush1.msra.mxu0 %v8368
      %8422 = vmatprep.subr.mxu0 %v8371
      %8423 = vmatpush1.msra.mxu0 %v8370
      %8424 = vmatprep.subr.mxu0 %v8373
      %8425 = vmatpush1.msra.mxu0 %v8372
      %8426 = vmatprep.subr.mxu0 %v8375
      %8427 = vmatpush1.msra.mxu0 %v8374
      %8428 = vmatprep.subr.mxu0 0.0
      %8429 = vmatpush1.msra.mxu0 0.0
      %8430 = vmatprep.subr.mxu0 0.0
      %8431 = vmatpush1.msra.mxu0 0.0
      %8432 = vmatprep.subr.mxu0 0.0
      %8433 = vmatpush1.msra.mxu0 0.0
      %8434 = vmatprep.subr.mxu0 0.0
      %8435 = vmatpush1.msra.mxu0 0.0
      %8436 = vmatprep.subr.mxu0 0.0
      %8437 = vmatpush1.msra.mxu0 0.0
      %8438 = vmatprep.subr.mxu0 0.0
      %8439 = vmatpush1.msra.mxu0 0.0
      %8440 = vmatprep.subr.mxu0 0.0
      %8441 = vmatpush1.msra.mxu0 0.0
      %8442 = vmatprep.subr.mxu0 0.0
      %8443 = vmatpush1.msra.mxu0 0.0
      %8444 = vmatprep.subr.mxu0 0.0
      %8445 = vmatpush1.msra.mxu0 0.0
      %8446 = vmatprep.subr.mxu0 0.0
      %8447 = vmatpush1.msra.mxu0 0.0
      %8448 = vmatprep.subr.mxu0 0.0
      %8449 = vmatpush1.msra.mxu0 0.0
      %8450 = vmatprep.subr.mxu0 0.0
      %8451 = vmatpush1.msra.mxu0 0.0
      %8452 = vmatprep.mubr.f32.mxu0 %v8386
      %8453 = vmatmul.mubr.f32.gmra.mrb[0].mxu0 %v8380
      %v8454 = vpop.f32.mrb[0].mxu0
      %v8455 = vadd.f32 0.0, %v8454
      %v8456 = vpop.f32.mrb[0].mxu0
      %v8457 = vadd.f32 0.0, %v8456
      %8458 = vdwg.mxu0
      %v8461 = vcombine.low %v8455, %v8457
      %v8463 = vunpack.c.l.s4 1966171168
      %v8464 = vunpack.c.0.s8 %v8463
      %v8465 = vlaneseq
      %v8466 = vshrl.u32 %v8465, 7
      %v8467 = vsub.s32 %v8464, %v8466
      %v8468 = vrot.slane %v8461, %v8467
      %v8470 = vunpack.c.l.s4 1966171168
      %v8471 = vunpack.c.0.s8 %v8470
      %v8472 = vlaneseq
      %v8473 = vshrl.u32 %v8472, 7
      %v8474 = vsub.s32 %v8471, %v8473
      %v8475 = vrot.slane %v8468, %v8474
      %v8477 = vadd.f32 %v8333, %v8475
      %s8478 = scalar_lea.vmem [#allocation3], 55
      %v8479 = vld [vmem:[%s8478] ss:$8 sm:$0x3]
      %v8480 = vld [vmem:[%s3 + $0x26c0] sm:$0xff]
      %v8481 = vld [vmem:[%s3 + $0x26c8] sm:$0xff]
      %v8482 = vld [vmem:[%s3 + $0x26d0] sm:$0xff]
      %v8483 = vld [vmem:[%s3 + $0x26d8] sm:$0xff]
      %v8484 = vld [vmem:[%s3 + $0x26e0] sm:$0xff]
      %v8485 = vld [vmem:[%s3 + $0x26e8] sm:$0xff]
      %v8486 = vld [vmem:[%s3 + $0x26f0] sm:$0xff]
      %v8487 = vld [vmem:[%s3 + $0x26f8] sm:$0xff]
      %v8488 = vld [vmem:[%s3 + $0x2700] sm:$0xff]
      %v8489 = vld [vmem:[%s3 + $0x2708] sm:$0xff]
      %v8490 = vld [vmem:[%s3 + $0x2710] sm:$0xff]
      %v8491 = vld [vmem:[%s3 + $0x2718] sm:$0xff]
      %v8492 = vld [vmem:[%s3 + $0x2720] sm:$0xff]
      %v8493 = vld [vmem:[%s3 + $0x2728] sm:$0xff]
      %v8494 = vld [vmem:[%s3 + $0x2730] sm:$0xff]
      %v8495 = vld [vmem:[%s3 + $0x2738] sm:$0xff]
      %v8496 = vld [vmem:[%s3 + $0x2740] sm:$0xff]
      %v8497 = vld [vmem:[%s3 + $0x2748] sm:$0xff]
      %v8498 = vld [vmem:[%s3 + $0x2750] sm:$0xff]
      %v8499 = vld [vmem:[%s3 + $0x2758] sm:$0xff]
      %v8500 = vld [vmem:[%s3 + $0x2760] sm:$0xff]
      %v8501 = vld [vmem:[%s3 + $0x2768] sm:$0xff]
      %v8502 = vld [vmem:[%s3 + $0x2770] sm:$0xff]
      %v8503 = vld [vmem:[%s3 + $0x2778] sm:$0xff]
      %v8504 = vld [vmem:[%s3 + $0x2780] sm:$0xff]
      %v8505 = vld [vmem:[%s3 + $0x2788] sm:$0xff]
      %v8506 = vld [vmem:[%s3 + $0x2790] sm:$0xff]
      %v8507 = vld [vmem:[%s3 + $0x2798] sm:$0xff]
      %v8508 = vld [vmem:[%s3 + $0x27a0] sm:$0xff]
      %v8509 = vld [vmem:[%s3 + $0x27a8] sm:$0xff]
      %v8510 = vld [vmem:[%s3 + $0x27b0] sm:$0xff]
      %v8511 = vld [vmem:[%s3 + $0x27b8] sm:$0xff]
      %v8512 = vld [vmem:[%s3 + $0x27c0] sm:$0xff]
      %v8513 = vld [vmem:[%s3 + $0x27c8] sm:$0xff]
      %v8514 = vld [vmem:[%s3 + $0x27d0] sm:$0xff]
      %v8515 = vld [vmem:[%s3 + $0x27d8] sm:$0xff]
      %v8516 = vld [vmem:[%s3 + $0x27e0] sm:$0xff]
      %v8517 = vld [vmem:[%s3 + $0x27e8] sm:$0xff]
      %v8518 = vld [vmem:[%s3 + $0x27f0] sm:$0xff]
      %v8519 = vld [vmem:[%s3 + $0x27f8] sm:$0xff]
      %v8521 = vlaneseq
      %v8522 = vshrl.u32 %v8521, 7
      %v8523 = vsub.s32 0, %v8522
      %v8524 = vrot.slane %v8479, %v8523
      %v8525 = vlaneseq
      %v8526 = vshrl.u32 %v8525, 7
      %v8527 = vsub.s32 1, %v8526
      %v8528 = vrot.slane %v8479, %v8527
      %v8530 = vsel %vm226, %v8528, 0
      %8532 = vmatprep.subr.mxu0 %v8481
      %8533 = vmatpush1.msra.mxu0 %v8480
      %8534 = vmatprep.subr.mxu0 %v8483
      %8535 = vmatpush1.msra.mxu0 %v8482
      %8536 = vmatprep.subr.mxu0 %v8485
      %8537 = vmatpush1.msra.mxu0 %v8484
      %8538 = vmatprep.subr.mxu0 %v8487
      %8539 = vmatpush1.msra.mxu0 %v8486
      %8540 = vmatprep.subr.mxu0 %v8489
      %8541 = vmatpush1.msra.mxu0 %v8488
      %8542 = vmatprep.subr.mxu0 %v8491
      %8543 = vmatpush1.msra.mxu0 %v8490
      %8544 = vmatprep.subr.mxu0 %v8493
      %8545 = vmatpush1.msra.mxu0 %v8492
      %8546 = vmatprep.subr.mxu0 %v8495
      %8547 = vmatpush1.msra.mxu0 %v8494
      %8548 = vmatprep.subr.mxu0 %v8497
      %8549 = vmatpush1.msra.mxu0 %v8496
      %8550 = vmatprep.subr.mxu0 %v8499
      %8551 = vmatpush1.msra.mxu0 %v8498
      %8552 = vmatprep.subr.mxu0 %v8501
      %8553 = vmatpush1.msra.mxu0 %v8500
      %8554 = vmatprep.subr.mxu0 %v8503
      %8555 = vmatpush1.msra.mxu0 %v8502
      %8556 = vmatprep.subr.mxu0 %v8505
      %8557 = vmatpush1.msra.mxu0 %v8504
      %8558 = vmatprep.subr.mxu0 %v8507
      %8559 = vmatpush1.msra.mxu0 %v8506
      %8560 = vmatprep.subr.mxu0 %v8509
      %8561 = vmatpush1.msra.mxu0 %v8508
      %8562 = vmatprep.subr.mxu0 %v8511
      %8563 = vmatpush1.msra.mxu0 %v8510
      %8564 = vmatprep.subr.mxu0 %v8513
      %8565 = vmatpush1.msra.mxu0 %v8512
      %8566 = vmatprep.subr.mxu0 %v8515
      %8567 = vmatpush1.msra.mxu0 %v8514
      %8568 = vmatprep.subr.mxu0 %v8517
      %8569 = vmatpush1.msra.mxu0 %v8516
      %8570 = vmatprep.subr.mxu0 %v8519
      %8571 = vmatpush1.msra.mxu0 %v8518
      %8572 = vmatprep.subr.mxu0 0.0
      %8573 = vmatpush1.msra.mxu0 0.0
      %8574 = vmatprep.subr.mxu0 0.0
      %8575 = vmatpush1.msra.mxu0 0.0
      %8576 = vmatprep.subr.mxu0 0.0
      %8577 = vmatpush1.msra.mxu0 0.0
      %8578 = vmatprep.subr.mxu0 0.0
      %8579 = vmatpush1.msra.mxu0 0.0
      %8580 = vmatprep.subr.mxu0 0.0
      %8581 = vmatpush1.msra.mxu0 0.0
      %8582 = vmatprep.subr.mxu0 0.0
      %8583 = vmatpush1.msra.mxu0 0.0
      %8584 = vmatprep.subr.mxu0 0.0
      %8585 = vmatpush1.msra.mxu0 0.0
      %8586 = vmatprep.subr.mxu0 0.0
      %8587 = vmatpush1.msra.mxu0 0.0
      %8588 = vmatprep.subr.mxu0 0.0
      %8589 = vmatpush1.msra.mxu0 0.0
      %8590 = vmatprep.subr.mxu0 0.0
      %8591 = vmatpush1.msra.mxu0 0.0
      %8592 = vmatprep.subr.mxu0 0.0
      %8593 = vmatpush1.msra.mxu0 0.0
      %8594 = vmatprep.subr.mxu0 0.0
      %8595 = vmatpush1.msra.mxu0 0.0
      %8596 = vmatprep.mubr.f32.mxu0 %v8530
      %8597 = vmatmul.mubr.f32.gmra.mrb[0].mxu0 %v8524
      %v8598 = vpop.f32.mrb[0].mxu0
      %v8599 = vadd.f32 0.0, %v8598
      %v8600 = vpop.f32.mrb[0].mxu0
      %v8601 = vadd.f32 0.0, %v8600
      %8602 = vdwg.mxu0
      %v8605 = vcombine.low %v8599, %v8601
      %v8607 = vunpack.c.l.s4 1966171168
      %v8608 = vunpack.c.0.s8 %v8607
      %v8609 = vlaneseq
      %v8610 = vshrl.u32 %v8609, 7
      %v8611 = vsub.s32 %v8608, %v8610
      %v8612 = vrot.slane %v8605, %v8611
      %v8614 = vunpack.c.l.s4 1966171168
      %v8615 = vunpack.c.0.s8 %v8614
      %v8616 = vlaneseq
      %v8617 = vshrl.u32 %v8616, 7
      %v8618 = vsub.s32 %v8615, %v8617
      %v8619 = vrot.slane %v8612, %v8618
      %v8621 = vadd.f32 %v8477, %v8619
      %v8622 = vlaneseq
      %vm8623 = vcmp.ge.s32.totalorder %v8622, 0
      %vm8624 = vcmp.lt.s32.totalorder %v8622, 160
      %vm8625 = vmand %vm8623, %vm8624
      %8626 = vst.msk [vmem:[%s222] sm:$0x3] %vm8625, %v8621
      %p8627 = scmp.lt.s32.totalorder %s16, 1
      %s8628 = scalar_select %p8627, %s16, 1
      %s8629 = smul.addr %s8628, 2
      %s8630 = scalar_lea.vmem %s5, %s8629
      // Predicated region
      $region41: #{xnet_forward.1} parent=39 // pred_check
        %p8631 = pneg %p144
      $region42: #{xnet_forward.1} parent=39 // pred_check_branch
        %8633 = sbr.rel (%p8631) target = $region44
      $region43: #{xnet_forward.1} parent=39 // pred_region
        _
      $region44: #{xnet_forward.1} parent=39 // pred_fallthru
        _
    $region40: #{xnet_forward.1} parent=5 // pred_fallthru
      _
    %p8634 = scmp.le.s32.totalorder 2, %s11
    // Predicated region
    $region45: #{xnet_forward.1} parent=5 // pred_check
      %p8635 = pneg %p8634
    $region46: #{xnet_forward.1} parent=5 // pred_check_branch
      %8637 = sbr.rel (%p8635) target = $region48
    $region47: #{xnet_forward.1} parent=5 // pred_region
      %s8638 = ssub.s32 %s11, 2
      // Predicated region
      $region49: #{xnet_forward.1} parent=47 // pred_check
        %p8639 = pneg %p150
      $region50: #{xnet_forward.1} parent=47 // pred_check_branch
        %8641 = sbr.rel (%p8639) target = $region52
      $region51: #{xnet_forward.1} parent=47 // pred_region
        %p8642 = scmp.lt.s32.totalorder %s17, 1
        %s8643 = scalar_select %p8642, %s17, 1
        %s8644 = smul.addr %s8643, 2
        %s8645 = scalar_lea.vmem %s5, %s8644
      $region52: #{xnet_forward.1} parent=47 // pred_fallthru
        _
    $region48: #{xnet_forward.1} parent=5 // pred_fallthru
      _
  $region6: #{xnet_forward.1} parent=0 // loop_footer
    %s15 = sadd.s32 1, %s11
  $region7: #{xnet_forward.1} parent=0 // loop_footer_branch
    %10 = sbr.rel target = $region3
  $region8: #{xnet_forward.1} parent=0 // loop_exit
    _

</llo_original>
